<compile_context>
chip_gen: v5e
topology: v5e:2x2
jax: 0.10.0
libtpu: 0.0.40
codegen_flags: <defaults>
</compile_context>

<pallas_src>
import functools
import math
import types

import jax
import jax.numpy as jnp
from jax.experimental import pallas as pl
from jax.experimental.pallas import tpu as pltpu

_VMEM_LIMIT = 32 * 1024 * 1024
_HI = jax.lax.Precision.HIGHEST  # used only in the pure-JAX reference


def _round_up(x, m):
    return ((x + m - 1) // m) * m


# ---------------------------------------------------------------------------
# Kernel 1: fused linear (GEMM + bias [+ ReLU]) over row blocks
# ---------------------------------------------------------------------------
def _linear_kernel(x_ref, w_ref, b_ref, o_ref, *, activation):
    y = jnp.dot(x_ref[...], w_ref[...], preferred_element_type=jnp.float32)
    y = y + b_ref[...]
    if activation == "relu":
        y = jnp.maximum(y, 0.0)
    o_ref[...] = y.astype(o_ref.dtype)


def pallas_linear(x, w, b, activation=None, *, block_rows=512):
    orig_shape = x.shape
    d_in = orig_shape[-1]
    d_out = w.shape[1]
    rows = math.prod(orig_shape[:-1])
    x2 = x.reshape(rows, d_in)

    br = min(block_rows, _round_up(rows, 8))
    rows_pad = _round_up(rows, br)
    if rows_pad != rows:
        x2 = jnp.pad(x2, ((0, rows_pad - rows), (0, 0)))

    out = pl.pallas_call(
        functools.partial(_linear_kernel, activation=activation),
        out_shape=jax.ShapeDtypeStruct((rows_pad, d_out), x.dtype),
        grid_spec=pltpu.PrefetchScalarGridSpec(
            num_scalar_prefetch=0,
            grid=(rows_pad // br,),
            in_specs=[
                pl.BlockSpec((br, d_in), lambda i: (i, 0)),
                pl.BlockSpec((d_in, d_out), lambda i: (0, 0)),   # resident
                pl.BlockSpec((1, d_out), lambda i: (0, 0)),      # resident
            ],
            out_specs=pl.BlockSpec((br, d_out), lambda i: (i, 0)),
        ),
        compiler_params=pltpu.CompilerParams(
            dimension_semantics=("parallel",),
            vmem_limit_bytes=_VMEM_LIMIT,
        ),
        cost_estimate=pl.CostEstimate(
            flops=2 * rows_pad * d_in * d_out,
            transcendentals=0,
            bytes_accessed=4 * (rows_pad * (d_in + d_out) + d_in * d_out + d_out),
        ),
    )(x2, w, b.reshape(1, d_out))
    return out[:rows].reshape(*orig_shape[:-1], d_out)


# ---------------------------------------------------------------------------
# Kernel 2: LayerNorm over the last dim, row-blocked
# ---------------------------------------------------------------------------
def _layernorm_kernel(x_ref, g_ref, b_ref, o_ref, *, eps):
    x = x_ref[...].astype(jnp.float32)
    mu = jnp.mean(x, axis=-1, keepdims=True)
    xc = x - mu
    var = jnp.mean(xc * xc, axis=-1, keepdims=True)
    y = xc * jax.lax.rsqrt(var + eps) * g_ref[...] + b_ref[...]
    o_ref[...] = y.astype(o_ref.dtype)


def pallas_layernorm(x, g, b, eps=1e-6, *, block_rows=512):
    orig_shape = x.shape
    d = orig_shape[-1]
    rows = math.prod(orig_shape[:-1])
    x2 = x.reshape(rows, d)

    br = min(block_rows, _round_up(rows, 8))
    rows_pad = _round_up(rows, br)
    if rows_pad != rows:
        x2 = jnp.pad(x2, ((0, rows_pad - rows), (0, 0)))

    out = pl.pallas_call(
        functools.partial(_layernorm_kernel, eps=eps),
        out_shape=jax.ShapeDtypeStruct((rows_pad, d), x.dtype),
        grid_spec=pltpu.PrefetchScalarGridSpec(
            num_scalar_prefetch=0,
            grid=(rows_pad // br,),
            in_specs=[
                pl.BlockSpec((br, d), lambda i: (i, 0)),
                pl.BlockSpec((1, d), lambda i: (0, 0)),
                pl.BlockSpec((1, d), lambda i: (0, 0)),
            ],
            out_specs=pl.BlockSpec((br, d), lambda i: (i, 0)),
        ),
        compiler_params=pltpu.CompilerParams(
            dimension_semantics=("parallel",),
            vmem_limit_bytes=_VMEM_LIMIT,
        ),
    )(x2, g.reshape(1, d), b.reshape(1, d))
    return out[:rows].reshape(orig_shape)


# ---------------------------------------------------------------------------
# Kernel 3: batched scaled-dot-product attention  (q,k,v: (N, T, D))
# ---------------------------------------------------------------------------
def _attention_kernel(q_ref, k_ref, v_ref, o_ref, *, scale):
    q = q_ref[...].astype(jnp.float32)
    k = k_ref[...].astype(jnp.float32)
    v = v_ref[...].astype(jnp.float32)
    s = jnp.einsum("bqd,bkd->bqk", q, k, preferred_element_type=jnp.float32) * scale
    s = s - jnp.max(s, axis=-1, keepdims=True)
    p = jnp.exp(s)
    p = p / jnp.sum(p, axis=-1, keepdims=True)
    o = jnp.einsum("bqk,bkd->bqd", p, v, preferred_element_type=jnp.float32)
    o_ref[...] = o.astype(o_ref.dtype)


def pallas_attention(q, k, v, *, block_batch=128):
    n, t_q, d = q.shape
    t_k = k.shape[1]
    s_blk = min(block_batch, n)
    n_pad = _round_up(n, s_blk)
    if n_pad != n:
        pad = ((0, n_pad - n), (0, 0), (0, 0))
        q, k, v = jnp.pad(q, pad), jnp.pad(k, pad), jnp.pad(v, pad)

    out = pl.pallas_call(
        functools.partial(_attention_kernel, scale=1.0 / math.sqrt(d)),
        out_shape=jax.ShapeDtypeStruct((n_pad, t_q, d), q.dtype),
        grid_spec=pltpu.PrefetchScalarGridSpec(
            num_scalar_prefetch=0,
            grid=(n_pad // s_blk,),
            in_specs=[
                pl.BlockSpec((s_blk, t_q, d), lambda i: (i, 0, 0)),
                pl.BlockSpec((s_blk, t_k, d), lambda i: (i, 0, 0)),
                pl.BlockSpec((s_blk, t_k, d), lambda i: (i, 0, 0)),
            ],
            out_specs=pl.BlockSpec((s_blk, t_q, d), lambda i: (i, 0, 0)),
        ),
        compiler_params=pltpu.CompilerParams(
            dimension_semantics=("parallel",),
            vmem_limit_bytes=_VMEM_LIMIT,
        ),
        cost_estimate=pl.CostEstimate(
            flops=4 * n_pad * t_q * t_k * d,
            transcendentals=n_pad * t_q * t_k,
            bytes_accessed=4 * n_pad * (2 * t_q * d + 2 * t_k * d),
        ),
    )(q, k, v)
    return out[:n]


# ---------------------------------------------------------------------------
# Kernel 4: ContextAttention (windowed self-attention incl. zero left padding)
# ---------------------------------------------------------------------------
def _context_attn_kernel(q_ref, xp_ref, o_ref, *, context_len, scale):
    q = q_ref[...].astype(jnp.float32)      # (S, t_out, D)
    xp = xp_ref[...].astype(jnp.float32)    # (S, t_pad, D)
    s = jnp.einsum("bqd,bkd->bqk", q, xp, preferred_element_type=jnp.float32) * scale
    qi = jax.lax.broadcasted_iota(jnp.int32, s.shape, 1)
    kj = jax.lax.broadcasted_iota(jnp.int32, s.shape, 2)
    in_window = (kj >= qi) & (kj < qi + context_len)
    s = jnp.where(in_window, s, -jnp.inf)
    s = s - jnp.max(s, axis=-1, keepdims=True)
    p = jnp.exp(s)
    p = p / jnp.sum(p, axis=-1, keepdims=True)
    o = jnp.einsum("bqk,bkd->bqd", p, xp, preferred_element_type=jnp.float32)
    o_ref[...] = o.astype(o_ref.dtype)


def pallas_context_attention(x, context_len, padding=True, *, block_batch=128):
    b, m, t, d = x.shape
    n = b * m
    xf = x.reshape(n, t, d)
    if padding:
        xp = jnp.pad(xf, ((0, 0), (context_len - 1, 0), (0, 0)))
    else:
        xp = xf
    t_pad = xp.shape[1]
    q = xp[:, context_len - 1:, :]
    t_out = q.shape[1]

    s_blk = min(block_batch, n)
    n_pad = _round_up(n, s_blk)
    if n_pad != n:
        pad = ((0, n_pad - n), (0, 0), (0, 0))
        q, xp = jnp.pad(q, pad), jnp.pad(xp, pad)

    out = pl.pallas_call(
        functools.partial(_context_attn_kernel,
                          context_len=context_len, scale=1.0 / math.sqrt(d)),
        out_shape=jax.ShapeDtypeStruct((n_pad, t_out, d), x.dtype),
        grid_spec=pltpu.PrefetchScalarGridSpec(
            num_scalar_prefetch=0,
            grid=(n_pad // s_blk,),
            in_specs=[
                pl.BlockSpec((s_blk, t_out, d), lambda i: (i, 0, 0)),
                pl.BlockSpec((s_blk, t_pad, d), lambda i: (i, 0, 0)),
            ],
            out_specs=pl.BlockSpec((s_blk, t_out, d), lambda i: (i, 0, 0)),
        ),
        compiler_params=pltpu.CompilerParams(
            dimension_semantics=("parallel",),
            vmem_limit_bytes=_VMEM_LIMIT,
        ),
    )(q, xp)
    return out[:n].reshape(b, m, t_out, d)


# ---------------------------------------------------------------------------
# Pure-JAX reference primitives (faithful transcription of the PyTorch code)
# ---------------------------------------------------------------------------
def ref_linear(x, w, b, activation=None):
    y = jnp.dot(x, w, precision=_HI) + b
    if activation == "relu":
        y = jnp.maximum(y, 0.0)
    return y


def ref_layernorm(x, g, b, eps=1e-6):
    mu = jnp.mean(x, axis=-1, keepdims=True)
    var = jnp.mean((x - mu) ** 2, axis=-1, keepdims=True)
    return (x - mu) * jax.lax.rsqrt(var + eps) * g + b


def ref_attention(q, k, v):
    d = q.shape[-1]
    s = jnp.einsum("bqd,bkd->bqk", q, k, precision=_HI) / math.sqrt(d)
    p = jax.nn.softmax(s, axis=-1)
    return jnp.einsum("bqk,bkd->bqd", p, v, precision=_HI)


def ref_context_attention(x, context_len, padding=True):
    b, m, t, d = x.shape
    if padding:
        x = jnp.concatenate(
            [jnp.zeros((b, m, context_len - 1, d), x.dtype), x], axis=2)
    q = x[:, :, context_len - 1:, :]
    aw = jnp.einsum("bmqd,bmkd->bmqk", q, x, precision=_HI) / math.sqrt(d)
    outs = []
    for i in range(aw.shape[-2]):
        w_i = jax.nn.softmax(aw[:, :, i:i + 1, i:i + context_len], axis=-1)
        w_i = jnp.transpose(w_i, (0, 1, 3, 2))
        x_i = x[:, :, i:i + context_len, :]
        outs.append(jnp.sum(w_i * x_i, axis=2, keepdims=True))
    return jnp.concatenate(outs, axis=2)


PALLAS_OPS = types.SimpleNamespace(
    linear=pallas_linear, layernorm=pallas_layernorm,
    attention=pallas_attention, context_attention=pallas_context_attention)
REF_OPS = types.SimpleNamespace(
    linear=ref_linear, layernorm=ref_layernorm,
    attention=ref_attention, context_attention=ref_context_attention)


# ---------------------------------------------------------------------------
# Shared plumbing (mirrors the PyTorch forward, parameterized by primitives)
# ---------------------------------------------------------------------------
def multi_head_attention(p, query, key, value, ops, *, h, context_len,
                         context_attn, relat_attn, padding):
    b, m, t_q, d_model = query.shape
    t_v = value.shape[2]
    d_k = d_model // h

    q = ops.linear(query, p["wq_w"], p["wq_b"])   # Conv2d 1x1 == pointwise linear
    k = ops.linear(key, p["wk_w"], p["wk_b"])
    v = ops.linear(value, p["wv_w"], p["wv_b"])

    if context_attn:
        cq = ops.context_attention(q, context_len, padding)
        ck = ops.context_attention(k, context_len, True)
    else:
        cq, ck = q, k
    t_cq = cq.shape[2]

    cqh = jnp.transpose(cq.reshape(b, m, t_cq, h, d_k), (0, 1, 3, 2, 4))
    ckh = jnp.transpose(ck.reshape(b, m, t_v, h, d_k), (0, 1, 3, 2, 4))
    vh = jnp.transpose(v.reshape(b, m, t_v, h, d_k), (0, 1, 3, 2, 4))

    x = ops.attention(cqh.reshape(b * m * h, t_cq, d_k),
                      ckh.reshape(b * m * h, t_v, d_k),
                      vh.reshape(b * m * h, t_v, d_k))
    x = jnp.transpose(x.reshape(b, m, h, t_cq, d_k), (0, 1, 3, 2, 4))  # (b,m,t,h,dk)

    if relat_attn:
        xr = jnp.transpose(x, (0, 2, 3, 1, 4))               # (b,t,h,m,dk)
        xrf = xr.reshape(b * t_cq * h, m, d_k)
        xo = ops.attention(xrf, xrf, xrf).reshape(b, t_cq, h, m, d_k)
        x = jnp.transpose(xo, (3, 0, 1, 2, 4))               # (m,b,t,h,dk)
    # mirrors torch: x.transpose(1, 0).contiguous().view(b, m, -1, h * d_k)
    x = jnp.transpose(x, (1, 0, 2, 3, 4)).reshape(b, m, t_cq, h * d_k)
    return ops.linear(x, p["fc_w"], p["fc_b"])


def sublayer_connection(p, x, sublayer_fn, ops):
    # TODO(synk): nn.Dropout omitted (eval-mode identity).
    return x + sublayer_fn(ops.layernorm(x, p["ln_g"], p["ln_b"]))


def decoder_layer(p, x, memory, ops, cfg):
    h, c_len = cfg["h"], cfg["context_len"]
    x = sublayer_connection(
        p["sub"][0], x,
        lambda i: multi_head_attention(
            p["self_attn"], i, i, i, ops, h=h, context_len=c_len,
            context_attn=cfg["context_attn"],
            relat_attn=cfg["relation_aware"], padding=True),
        ops)
    x = sublayer_connection(
        p["sub"][1], x,
        lambda i: multi_head_attention(
            p["src_attn"], i, memory, memory, ops, h=h, context_len=c_len,
            context_attn=cfg["context_attn"], relat_attn=False, padding=True),
        ops)
    x = sublayer_connection(
        p["sub"][2], x,
        lambda i: ops.linear(
            ops.linear(i, p["ffn"]["w1"], p["ffn"]["b1"], activation="relu"),
            p["ffn"]["w2"], p["ffn"]["b2"]),
        ops)
    return x


def decoder_forward(params, x, memory, ops, cfg):
    # TODO(synk): tgt_mask masked_fill path not implemented (run with tgt_mask=None).
    for lp in params["layers"]:
        x = decoder_layer(lp, x, memory, ops, cfg)
    return ops.layernorm(x, params["norm_g"], params["norm_b"])


# ---------------------------------------------------------------------------
# Parameter init (torch-like: uniform(-1/sqrt(fan_in), 1/sqrt(fan_in)))
# ---------------------------------------------------------------------------
def init_params(key, num_layers, d_model):
    def linear_init(k, d_in, d_out):
        k1, k2 = jax.random.split(k)
        bound = 1.0 / math.sqrt(d_in)
        w = jax.random.uniform(k1, (d_in, d_out), jnp.float32, -bound, bound)
        b = jax.random.uniform(k2, (d_out,), jnp.float32, -bound, bound)
        return w, b

    def attn_params(k):
        p = {}
        for name, kk in zip(("wq", "wk", "wv", "fc"), jax.random.split(k, 4)):
            w, b = linear_init(kk, d_model, d_model)
            p[name + "_w"], p[name + "_b"] = w, b
        return p

    layers = []
    for lk in jax.random.split(key, num_layers):
        k_self, k_src, k_f1, k_f2 = jax.random.split(lk, 4)
        w1, b1 = linear_init(k_f1, d_model, 4 * d_model)
        w2, b2 = linear_init(k_f2, 4 * d_model, d_model)
        layers.append({
            "self_attn": attn_params(k_self),
            "src_attn": attn_params(k_src),
            "ffn": {"w1": w1, "b1": b1, "w2": w2, "b2": b2},
            "sub": [{"ln_g": jnp.ones((d_model,), jnp.float32),
                     "ln_b": jnp.zeros((d_model,), jnp.float32)}
                    for _ in range(3)],
        })
    return {"layers": layers,
            "norm_g": jnp.ones((d_model,), jnp.float32),
            "norm_b": jnp.zeros((d_model,), jnp.float32)}


if __name__ == "__main__":
    b, m, t, d_model = 2, 4, 8, 32
    num_layers, h, context_len = 2, 4, 3
    cfg = dict(h=h, context_len=context_len, context_attn=True,
               relation_aware=True)

    key = jax.random.PRNGKey(0)
    kp, kx, km = jax.random.split(key, 3)
    params = init_params(kp, num_layers, d_model)
    x = jax.random.normal(kx, (b, m, t, d_model), jnp.float32)
    memory = jax.random.normal(km, (b, m, t, d_model), jnp.float32)

    pallas_fwd = jax.jit(
        lambda p_, x_, mem_: decoder_forward(p_, x_, mem_, PALLAS_OPS, cfg))
    out = jax.block_until_ready(pallas_fwd(params, x, memory))

    ref = jax.block_until_ready(decoder_forward(params, x, memory, REF_OPS, cfg))

    assert out.shape == (b, m, t, d_model)
    err = float(jnp.max(jnp.abs(out - ref)))
    assert err < 2e-2, f"max abs error too large: {err}"
    print("KERNEL_OK")
</pallas_src>

<mosaic_0001>
module attributes {stable_mosaic.version = 11 : i64} {
  func.func @_linear_kernel(%arg0: i32, %arg1: memref<64x32xf32, #tpu.memory_space<vmem>>, %arg2: memref<32x32xf32, #tpu.memory_space<vmem>>, %arg3: memref<1x32xf32, #tpu.memory_space<vmem>>, %arg4: memref<64x32xf32, #tpu.memory_space<vmem>>) attributes {dimension_semantics = [#tpu.dimension_semantics<parallel>], iteration_bounds = array<i64: 1>, scalar_prefetch = 0 : i64, scratch_operands = 0 : i64, tpu.core_type = #tpu.core_type<tc>, window_params = [{transform_indices = @transform_0, window_bounds = array<i64: 64, 32>}, {pipeline_mode = #tpu.pipeline_mode<synchronous>, transform_indices = @transform_1, window_bounds = array<i64: 32, 32>}, {pipeline_mode = #tpu.pipeline_mode<synchronous>, transform_indices = @transform_2, window_bounds = array<i64: 1, 32>}, {transform_indices = @transform_3, window_bounds = array<i64: 64, 32>}]} {
    %c0 = arith.constant 0 : index
    %c0_0 = arith.constant 0 : index
    %0 = vector.load %arg1[%c0, %c0_0] : memref<64x32xf32, #tpu.memory_space<vmem>>, vector<64x32xf32>
    %c0_1 = arith.constant 0 : index
    %c0_2 = arith.constant 0 : index
    %1 = vector.load %arg2[%c0_1, %c0_2] : memref<32x32xf32, #tpu.memory_space<vmem>>, vector<32x32xf32>
    %cst = arith.constant dense<0.000000e+00> : vector<64x32xf32>
    %2 = tpu.matmul %0, %1, %cst {dimension_numbers = #tpu.dot_dimension_numbers<[1], [0], [0], [1], [0, 0, 1, 1], [], []>} : vector<64x32xf32>, vector<32x32xf32>, vector<64x32xf32> -> vector<64x32xf32>
    %c0_3 = arith.constant 0 : index
    %c0_4 = arith.constant 0 : index
    %3 = vector.load %arg3[%c0_3, %c0_4] : memref<1x32xf32, #tpu.memory_space<vmem>>, vector<1x32xf32>
    %4 = vector.broadcast %3 : vector<1x32xf32> to vector<64x32xf32>
    %5 = arith.addf %2, %4 : vector<64x32xf32>
    %c0_5 = arith.constant 0 : index
    %c0_6 = arith.constant 0 : index
    %6 = vector.load %arg4[%c0_5, %c0_6] : memref<64x32xf32, #tpu.memory_space<vmem>>, vector<64x32xf32>
    tpu.vector_store %arg4[%c0_5, %c0_6], %5 {strides = array<i32>} : memref<64x32xf32, #tpu.memory_space<vmem>>, vector<64x32xf32>,
    return
  }
  func.func @transform_0(%arg0: i32) -> (i32, i32) {
    %c0_i32 = arith.constant 0 : i32
    %c0_i32_0 = arith.constant 0 : i32
    return %arg0, %c0_i32 : i32, i32
  }
  func.func @transform_1(%arg0: i32) -> (i32, i32) {
    %c0_i32 = arith.constant 0 : i32
    %c0_i32_0 = arith.constant 0 : i32
    %c0_i32_1 = arith.constant 0 : i32
    return %c0_i32, %c0_i32_0 : i32, i32
  }
  func.func @transform_2(%arg0: i32) -> (i32, i32) {
    %c0_i32 = arith.constant 0 : i32
    %c0_i32_0 = arith.constant 0 : i32
    %c0_i32_1 = arith.constant 0 : i32
    return %c0_i32, %c0_i32_0 : i32, i32
  }
  func.func @transform_3(%arg0: i32) -> (i32, i32) {
    %c0_i32 = arith.constant 0 : i32
    %c0_i32_0 = arith.constant 0 : i32
    return %arg0, %c0_i32 : i32, i32
  }
}

module attributes {stable_mosaic.version = 11 : i64} {
  func.func @_context_attn_kernel(%arg0: i32, %arg1: memref<8x8x32xf32, #tpu.memory_space<vmem>>, %arg2: memref<8x10x32xf32, #tpu.memory_space<vmem>>, %arg3: memref<8x8x32xf32, #tpu.memory_space<vmem>>) attributes {dimension_semantics = [#tpu.dimension_semantics<parallel>], iteration_bounds = array<i64: 1>, scalar_prefetch = 0 : i64, scratch_operands = 0 : i64, tpu.core_type = #tpu.core_type<tc>, window_params = [{transform_indices = @transform_0, window_bounds = array<i64: 8, 8, 32>}, {transform_indices = @transform_1, window_bounds = array<i64: 8, 10, 32>}, {transform_indices = @transform_2, window_bounds = array<i64: 8, 8, 32>}]} {
    %c0 = arith.constant 0 : index
    %c0_0 = arith.constant 0 : index
    %c0_1 = arith.constant 0 : index
    %0 = vector.load %arg1[%c0, %c0_0, %c0_1] : memref<8x8x32xf32, #tpu.memory_space<vmem>>, vector<8x8x32xf32>
    %c0_2 = arith.constant 0 : index
    %c0_3 = arith.constant 0 : index
    %c0_4 = arith.constant 0 : index
    %1 = vector.load %arg2[%c0_2, %c0_3, %c0_4] : memref<8x10x32xf32, #tpu.memory_space<vmem>>, vector<8x10x32xf32>
    "tpu.trace_start"() <{level = 10 : i32, message = "bqd,bkd->bqk"}> : () -> ()
    %cst = arith.constant dense<0.000000e+00> : vector<8x8x10xf32>
    %2 = tpu.matmul %0, %1, %cst {dimension_numbers = #tpu.dot_dimension_numbers<[2], [2], [1], [1], [0, 0, 0, 1, 1, 1], [0], [0]>} : vector<8x8x32xf32>, vector<8x10x32xf32>, vector<8x8x10xf32> -> vector<8x8x10xf32>
    "tpu.trace_stop"() : () -> ()
    %cst_5 = arith.constant 0.176776692 : f32
    %3 = vector.broadcast %cst_5 : f32 to vector<8x8x10xf32>
    %4 = arith.mulf %2, %3 : vector<8x8x10xf32>
    %5 = tpu.iota {dimensions = array<i32: 1>} : vector<8x8x10xi32>
    %6 = tpu.iota {dimensions = array<i32: 2>} : vector<8x8x10xi32>
    %7 = arith.cmpi sge, %6, %5 : vector<8x8x10xi32>
    %c3_i32 = arith.constant 3 : i32
    %8 = vector.broadcast %c3_i32 : i32 to vector<8x8x10xi32>
    %9 = arith.addi %5, %8 : vector<8x8x10xi32>
    %10 = arith.cmpi slt, %6, %9 : vector<8x8x10xi32>
    %11 = arith.andi %7, %10 : vector<8x8x10xi1>
    %cst_6 = arith.constant 0xFF800000 : f32
    %12 = vector.broadcast %cst_6 : f32 to vector<8x8x10xf32>
    %13 = arith.select %11, %4, %12 : vector<8x8x10xi1>, vector<8x8x10xf32>
    %cst_7 = arith.constant dense<0xFF800000> : vector<8x8xf32>
    %14 = vector.multi_reduction <maximumf>, %13, %cst_7 [2] : vector<8x8x10xf32> to vector<8x8xf32>
    %15 = vector.shape_cast %14 : vector<8x8xf32> to vector<8x8x1xf32>
    %16 = vector.broadcast %15 : vector<8x8x1xf32> to vector<8x8x10xf32>
    %17 = arith.subf %13, %16 : vector<8x8x10xf32>
    %18 = math.exp %17 : vector<8x8x10xf32>
    %cst_8 = arith.constant dense<0.000000e+00> : vector<8x8xf32>
    %19 = vector.multi_reduction <add>, %18, %cst_8 [2] : vector<8x8x10xf32> to vector<8x8xf32>
    %20 = vector.shape_cast %19 : vector<8x8xf32> to vector<8x8x1xf32>
    %21 = vector.broadcast %20 : vector<8x8x1xf32> to vector<8x8x10xf32>
    %22 = arith.divf %18, %21 : vector<8x8x10xf32>
    "tpu.trace_start"() <{level = 10 : i32, message = "bqk,bkd->bqd"}> : () -> ()
    %cst_9 = arith.constant dense<0.000000e+00> : vector<8x8x32xf32>
    %23 = tpu.matmul %22, %1, %cst_9 {dimension_numbers = #tpu.dot_dimension_numbers<[2], [1], [1], [2], [0, 0, 0, 1, 1, 2], [0], [0]>} : vector<8x8x10xf32>, vector<8x10x32xf32>, vector<8x8x32xf32> -> vector<8x8x32xf32>
    "tpu.trace_stop"() : () -> ()
    %c0_10 = arith.constant 0 : index
    %c0_11 = arith.constant 0 : index
    %c0_12 = arith.constant 0 : index
    %24 = vector.load %arg3[%c0_10, %c0_11, %c0_12] : memref<8x8x32xf32, #tpu.memory_space<vmem>>, vector<8x8x32xf32>
    tpu.vector_store %arg3[%c0_10, %c0_11, %c0_12], %23 {strides = array<i32>} : memref<8x8x32xf32, #tpu.memory_space<vmem>>, vector<8x8x32xf32>,
    return
  }
  func.func @transform_0(%arg0: i32) -> (i32, i32, i32) {
    %c0_i32 = arith.constant 0 : i32
    %c0_i32_0 = arith.constant 0 : i32
    %c0_i32_1 = arith.constant 0 : i32
    return %arg0, %c0_i32, %c0_i32_0 : i32, i32, i32
  }
  func.func @transform_1(%arg0: i32) -> (i32, i32, i32) {
    %c0_i32 = arith.constant 0 : i32
    %c0_i32_0 = arith.constant 0 : i32
    %c0_i32_1 = arith.constant 0 : i32
    return %arg0, %c0_i32, %c0_i32_0 : i32, i32, i32
  }
  func.func @transform_2(%arg0: i32) -> (i32, i32, i32) {
    %c0_i32 = arith.constant 0 : i32
    %c0_i32_0 = arith.constant 0 : i32
    %c0_i32_1 = arith.constant 0 : i32
    return %arg0, %c0_i32, %c0_i32_0 : i32, i32, i32
  }
}

module attributes {stable_mosaic.version = 11 : i64} {
  func.func @_layernorm_kernel(%arg0: i32, %arg1: memref<64x32xf32, #tpu.memory_space<vmem>>, %arg2: memref<1x32xf32, #tpu.memory_space<vmem>>, %arg3: memref<1x32xf32, #tpu.memory_space<vmem>>, %arg4: memref<64x32xf32, #tpu.memory_space<vmem>>) attributes {dimension_semantics = [#tpu.dimension_semantics<parallel>], iteration_bounds = array<i64: 1>, scalar_prefetch = 0 : i64, scratch_operands = 0 : i64, tpu.core_type = #tpu.core_type<tc>, window_params = [{transform_indices = @transform_0, window_bounds = array<i64: 64, 32>}, {pipeline_mode = #tpu.pipeline_mode<synchronous>, transform_indices = @transform_1, window_bounds = array<i64: 1, 32>}, {pipeline_mode = #tpu.pipeline_mode<synchronous>, transform_indices = @transform_2, window_bounds = array<i64: 1, 32>}, {transform_indices = @transform_3, window_bounds = array<i64: 64, 32>}]} {
    %c0 = arith.constant 0 : index
    %c0_0 = arith.constant 0 : index
    %0 = vector.load %arg1[%c0, %c0_0] : memref<64x32xf32, #tpu.memory_space<vmem>>, vector<64x32xf32>
    %cst = arith.constant dense<0.000000e+00> : vector<64xf32>
    %1 = vector.multi_reduction <add>, %0, %cst [1] : vector<64x32xf32> to vector<64xf32>
    %2 = vector.shape_cast %1 : vector<64xf32> to vector<64x1xf32>
    %cst_1 = arith.constant 3.200000e+01 : f32
    %3 = vector.broadcast %cst_1 : f32 to vector<64x1xf32>
    %4 = arith.divf %2, %3 : vector<64x1xf32>
    %5 = vector.broadcast %4 : vector<64x1xf32> to vector<64x32xf32>
    %6 = arith.subf %0, %5 : vector<64x32xf32>
    %7 = arith.mulf %6, %6 : vector<64x32xf32>
    %cst_2 = arith.constant dense<0.000000e+00> : vector<64xf32>
    %8 = vector.multi_reduction <add>, %7, %cst_2 [1] : vector<64x32xf32> to vector<64xf32>
    %9 = vector.shape_cast %8 : vector<64xf32> to vector<64x1xf32>
    %cst_3 = arith.constant 3.200000e+01 : f32
    %10 = vector.broadcast %cst_3 : f32 to vector<64x1xf32>
    %11 = arith.divf %9, %10 : vector<64x1xf32>
    %cst_4 = arith.constant 9.99999997E-7 : f32
    %12 = vector.broadcast %cst_4 : f32 to vector<64x1xf32>
    %13 = arith.addf %11, %12 : vector<64x1xf32>
    %14 = math.rsqrt %13 : vector<64x1xf32>
    %15 = vector.broadcast %14 : vector<64x1xf32> to vector<64x32xf32>
    %16 = arith.mulf %6, %15 : vector<64x32xf32>
    %c0_5 = arith.constant 0 : index
    %c0_6 = arith.constant 0 : index
    %17 = vector.load %arg2[%c0_5, %c0_6] : memref<1x32xf32, #tpu.memory_space<vmem>>, vector<1x32xf32>
    %18 = vector.broadcast %17 : vector<1x32xf32> to vector<64x32xf32>
    %19 = arith.mulf %16, %18 : vector<64x32xf32>
    %c0_7 = arith.constant 0 : index
    %c0_8 = arith.constant 0 : index
    %20 = vector.load %arg3[%c0_7, %c0_8] : memref<1x32xf32, #tpu.memory_space<vmem>>, vector<1x32xf32>
    %21 = vector.broadcast %20 : vector<1x32xf32> to vector<64x32xf32>
    %22 = arith.addf %19, %21 : vector<64x32xf32>
    %c0_9 = arith.constant 0 : index
    %c0_10 = arith.constant 0 : index
    %23 = vector.load %arg4[%c0_9, %c0_10] : memref<64x32xf32, #tpu.memory_space<vmem>>, vector<64x32xf32>
    tpu.vector_store %arg4[%c0_9, %c0_10], %22 {strides = array<i32>} : memref<64x32xf32, #tpu.memory_space<vmem>>, vector<64x32xf32>,
    return
  }
  func.func @transform_0(%arg0: i32) -> (i32, i32) {
    %c0_i32 = arith.constant 0 : i32
    %c0_i32_0 = arith.constant 0 : i32
    return %arg0, %c0_i32 : i32, i32
  }
  func.func @transform_1(%arg0: i32) -> (i32, i32) {
    %c0_i32 = arith.constant 0 : i32
    %c0_i32_0 = arith.constant 0 : i32
    %c0_i32_1 = arith.constant 0 : i32
    return %c0_i32, %c0_i32_0 : i32, i32
  }
  func.func @transform_2(%arg0: i32) -> (i32, i32) {
    %c0_i32 = arith.constant 0 : i32
    %c0_i32_0 = arith.constant 0 : i32
    %c0_i32_1 = arith.constant 0 : i32
    return %c0_i32, %c0_i32_0 : i32, i32
  }
  func.func @transform_3(%arg0: i32) -> (i32, i32) {
    %c0_i32 = arith.constant 0 : i32
    %c0_i32_0 = arith.constant 0 : i32
    return %arg0, %c0_i32 : i32, i32
  }
}

module attributes {stable_mosaic.version = 11 : i64} {
  func.func @_attention_kernel(%arg0: i32, %arg1: memref<32x8x8xf32, #tpu.memory_space<vmem>>, %arg2: memref<32x8x8xf32, #tpu.memory_space<vmem>>, %arg3: memref<32x8x8xf32, #tpu.memory_space<vmem>>, %arg4: memref<32x8x8xf32, #tpu.memory_space<vmem>>) attributes {dimension_semantics = [#tpu.dimension_semantics<parallel>], iteration_bounds = array<i64: 1>, scalar_prefetch = 0 : i64, scratch_operands = 0 : i64, tpu.core_type = #tpu.core_type<tc>, window_params = [{transform_indices = @transform_0, window_bounds = array<i64: 32, 8, 8>}, {transform_indices = @transform_1, window_bounds = array<i64: 32, 8, 8>}, {transform_indices = @transform_2, window_bounds = array<i64: 32, 8, 8>}, {transform_indices = @transform_3, window_bounds = array<i64: 32, 8, 8>}]} {
    %c0 = arith.constant 0 : index
    %c0_0 = arith.constant 0 : index
    %c0_1 = arith.constant 0 : index
    %0 = vector.load %arg1[%c0, %c0_0, %c0_1] : memref<32x8x8xf32, #tpu.memory_space<vmem>>, vector<32x8x8xf32>
    %c0_2 = arith.constant 0 : index
    %c0_3 = arith.constant 0 : index
    %c0_4 = arith.constant 0 : index
    %1 = vector.load %arg2[%c0_2, %c0_3, %c0_4] : memref<32x8x8xf32, #tpu.memory_space<vmem>>, vector<32x8x8xf32>
    %c0_5 = arith.constant 0 : index
    %c0_6 = arith.constant 0 : index
    %c0_7 = arith.constant 0 : index
    %2 = vector.load %arg3[%c0_5, %c0_6, %c0_7] : memref<32x8x8xf32, #tpu.memory_space<vmem>>, vector<32x8x8xf32>
    "tpu.trace_start"() <{level = 10 : i32, message = "bqd,bkd->bqk"}> : () -> ()
    %cst = arith.constant dense<0.000000e+00> : vector<32x8x8xf32>
    %3 = tpu.matmul %0, %1, %cst {dimension_numbers = #tpu.dot_dimension_numbers<[2], [2], [1], [1], [0, 0, 0, 1, 1, 1], [0], [0]>} : vector<32x8x8xf32>, vector<32x8x8xf32>, vector<32x8x8xf32> -> vector<32x8x8xf32>
    "tpu.trace_stop"() : () -> ()
    %cst_8 = arith.constant 0.353553385 : f32
    %4 = vector.broadcast %cst_8 : f32 to vector<32x8x8xf32>
    %5 = arith.mulf %3, %4 : vector<32x8x8xf32>
    %cst_9 = arith.constant dense<0xFF800000> : vector<32x8xf32>
    %6 = vector.multi_reduction <maximumf>, %5, %cst_9 [2] : vector<32x8x8xf32> to vector<32x8xf32>
    %7 = vector.shape_cast %6 : vector<32x8xf32> to vector<32x8x1xf32>
    %8 = vector.broadcast %7 : vector<32x8x1xf32> to vector<32x8x8xf32>
    %9 = arith.subf %5, %8 : vector<32x8x8xf32>
    %10 = math.exp %9 : vector<32x8x8xf32>
    %cst_10 = arith.constant dense<0.000000e+00> : vector<32x8xf32>
    %11 = vector.multi_reduction <add>, %10, %cst_10 [2] : vector<32x8x8xf32> to vector<32x8xf32>
    %12 = vector.shape_cast %11 : vector<32x8xf32> to vector<32x8x1xf32>
    %13 = vector.broadcast %12 : vector<32x8x1xf32> to vector<32x8x8xf32>
    %14 = arith.divf %10, %13 : vector<32x8x8xf32>
    "tpu.trace_start"() <{level = 10 : i32, message = "bqk,bkd->bqd"}> : () -> ()
    %cst_11 = arith.constant dense<0.000000e+00> : vector<32x8x8xf32>
    %15 = tpu.matmul %14, %2, %cst_11 {dimension_numbers = #tpu.dot_dimension_numbers<[2], [1], [1], [2], [0, 0, 0, 1, 1, 2], [0], [0]>} : vector<32x8x8xf32>, vector<32x8x8xf32>, vector<32x8x8xf32> -> vector<32x8x8xf32>
    "tpu.trace_stop"() : () -> ()
    %c0_12 = arith.constant 0 : index
    %c0_13 = arith.constant 0 : index
    %c0_14 = arith.constant 0 : index
    %16 = vector.load %arg4[%c0_12, %c0_13, %c0_14] : memref<32x8x8xf32, #tpu.memory_space<vmem>>, vector<32x8x8xf32>
    tpu.vector_store %arg4[%c0_12, %c0_13, %c0_14], %15 {strides = array<i32>} : memref<32x8x8xf32, #tpu.memory_space<vmem>>, vector<32x8x8xf32>,
    return
  }
  func.func @transform_0(%arg0: i32) -> (i32, i32, i32) {
    %c0_i32 = arith.constant 0 : i32
    %c0_i32_0 = arith.constant 0 : i32
    %c0_i32_1 = arith.constant 0 : i32
    return %arg0, %c0_i32, %c0_i32_0 : i32, i32, i32
  }
  func.func @transform_1(%arg0: i32) -> (i32, i32, i32) {
    %c0_i32 = arith.constant 0 : i32
    %c0_i32_0 = arith.constant 0 : i32
    %c0_i32_1 = arith.constant 0 : i32
    return %arg0, %c0_i32, %c0_i32_0 : i32, i32, i32
  }
  func.func @transform_2(%arg0: i32) -> (i32, i32, i32) {
    %c0_i32 = arith.constant 0 : i32
    %c0_i32_0 = arith.constant 0 : i32
    %c0_i32_1 = arith.constant 0 : i32
    return %arg0, %c0_i32, %c0_i32_0 : i32, i32, i32
  }
  func.func @transform_3(%arg0: i32) -> (i32, i32, i32) {
    %c0_i32 = arith.constant 0 : i32
    %c0_i32_0 = arith.constant 0 : i32
    %c0_i32_1 = arith.constant 0 : i32
    return %arg0, %c0_i32, %c0_i32_0 : i32, i32, i32
  }
}

module attributes {stable_mosaic.version = 11 : i64} {
  func.func @_attention_kernel(%arg0: i32, %arg1: memref<64x4x8xf32, #tpu.memory_space<vmem>>, %arg2: memref<64x4x8xf32, #tpu.memory_space<vmem>>, %arg3: memref<64x4x8xf32, #tpu.memory_space<vmem>>, %arg4: memref<64x4x8xf32, #tpu.memory_space<vmem>>) attributes {dimension_semantics = [#tpu.dimension_semantics<parallel>], iteration_bounds = array<i64: 1>, scalar_prefetch = 0 : i64, scratch_operands = 0 : i64, tpu.core_type = #tpu.core_type<tc>, window_params = [{transform_indices = @transform_0, window_bounds = array<i64: 64, 4, 8>}, {transform_indices = @transform_1, window_bounds = array<i64: 64, 4, 8>}, {transform_indices = @transform_2, window_bounds = array<i64: 64, 4, 8>}, {transform_indices = @transform_3, window_bounds = array<i64: 64, 4, 8>}]} {
    %c0 = arith.constant 0 : index
    %c0_0 = arith.constant 0 : index
    %c0_1 = arith.constant 0 : index
    %0 = vector.load %arg1[%c0, %c0_0, %c0_1] : memref<64x4x8xf32, #tpu.memory_space<vmem>>, vector<64x4x8xf32>
    %c0_2 = arith.constant 0 : index
    %c0_3 = arith.constant 0 : index
    %c0_4 = arith.constant 0 : index
    %1 = vector.load %arg2[%c0_2, %c0_3, %c0_4] : memref<64x4x8xf32, #tpu.memory_space<vmem>>, vector<64x4x8xf32>
    %c0_5 = arith.constant 0 : index
    %c0_6 = arith.constant 0 : index
    %c0_7 = arith.constant 0 : index
    %2 = vector.load %arg3[%c0_5, %c0_6, %c0_7] : memref<64x4x8xf32, #tpu.memory_space<vmem>>, vector<64x4x8xf32>
    "tpu.trace_start"() <{level = 10 : i32, message = "bqd,bkd->bqk"}> : () -> ()
    %cst = arith.constant dense<0.000000e+00> : vector<64x4x4xf32>
    %3 = tpu.matmul %0, %1, %cst {dimension_numbers = #tpu.dot_dimension_numbers<[2], [2], [1], [1], [0, 0, 0, 1, 1, 1], [0], [0]>} : vector<64x4x8xf32>, vector<64x4x8xf32>, vector<64x4x4xf32> -> vector<64x4x4xf32>
    "tpu.trace_stop"() : () -> ()
    %cst_8 = arith.constant 0.353553385 : f32
    %4 = vector.broadcast %cst_8 : f32 to vector<64x4x4xf32>
    %5 = arith.mulf %3, %4 : vector<64x4x4xf32>
    %cst_9 = arith.constant dense<0xFF800000> : vector<64x4xf32>
    %6 = vector.multi_reduction <maximumf>, %5, %cst_9 [2] : vector<64x4x4xf32> to vector<64x4xf32>
    %7 = vector.shape_cast %6 : vector<64x4xf32> to vector<64x4x1xf32>
    %8 = vector.broadcast %7 : vector<64x4x1xf32> to vector<64x4x4xf32>
    %9 = arith.subf %5, %8 : vector<64x4x4xf32>
    %10 = math.exp %9 : vector<64x4x4xf32>
    %cst_10 = arith.constant dense<0.000000e+00> : vector<64x4xf32>
    %11 = vector.multi_reduction <add>, %10, %cst_10 [2] : vector<64x4x4xf32> to vector<64x4xf32>
    %12 = vector.shape_cast %11 : vector<64x4xf32> to vector<64x4x1xf32>
    %13 = vector.broadcast %12 : vector<64x4x1xf32> to vector<64x4x4xf32>
    %14 = arith.divf %10, %13 : vector<64x4x4xf32>
    "tpu.trace_start"() <{level = 10 : i32, message = "bqk,bkd->bqd"}> : () -> ()
    %cst_11 = arith.constant dense<0.000000e+00> : vector<64x4x8xf32>
    %15 = tpu.matmul %14, %2, %cst_11 {dimension_numbers = #tpu.dot_dimension_numbers<[2], [1], [1], [2], [0, 0, 0, 1, 1, 2], [0], [0]>} : vector<64x4x4xf32>, vector<64x4x8xf32>, vector<64x4x8xf32> -> vector<64x4x8xf32>
    "tpu.trace_stop"() : () -> ()
    %c0_12 = arith.constant 0 : index
    %c0_13 = arith.constant 0 : index
    %c0_14 = arith.constant 0 : index
    %16 = vector.load %arg4[%c0_12, %c0_13, %c0_14] : memref<64x4x8xf32, #tpu.memory_space<vmem>>, vector<64x4x8xf32>
    tpu.vector_store %arg4[%c0_12, %c0_13, %c0_14], %15 {strides = array<i32>} : memref<64x4x8xf32, #tpu.memory_space<vmem>>, vector<64x4x8xf32>,
    return
  }
  func.func @transform_0(%arg0: i32) -> (i32, i32, i32) {
    %c0_i32 = arith.constant 0 : i32
    %c0_i32_0 = arith.constant 0 : i32
    %c0_i32_1 = arith.constant 0 : i32
    return %arg0, %c0_i32, %c0_i32_0 : i32, i32, i32
  }
  func.func @transform_1(%arg0: i32) -> (i32, i32, i32) {
    %c0_i32 = arith.constant 0 : i32
    %c0_i32_0 = arith.constant 0 : i32
    %c0_i32_1 = arith.constant 0 : i32
    return %arg0, %c0_i32, %c0_i32_0 : i32, i32, i32
  }
  func.func @transform_2(%arg0: i32) -> (i32, i32, i32) {
    %c0_i32 = arith.constant 0 : i32
    %c0_i32_0 = arith.constant 0 : i32
    %c0_i32_1 = arith.constant 0 : i32
    return %arg0, %c0_i32, %c0_i32_0 : i32, i32, i32
  }
  func.func @transform_3(%arg0: i32) -> (i32, i32, i32) {
    %c0_i32 = arith.constant 0 : i32
    %c0_i32_0 = arith.constant 0 : i32
    %c0_i32_1 = arith.constant 0 : i32
    return %arg0, %c0_i32, %c0_i32_0 : i32, i32, i32
  }
}

module attributes {stable_mosaic.version = 11 : i64} {
  func.func @_layernorm_kernel(%arg0: i32, %arg1: memref<64x32xf32, #tpu.memory_space<vmem>>, %arg2: memref<1x32xf32, #tpu.memory_space<vmem>>, %arg3: memref<1x32xf32, #tpu.memory_space<vmem>>, %arg4: memref<64x32xf32, #tpu.memory_space<vmem>>) attributes {dimension_semantics = [#tpu.dimension_semantics<parallel>], iteration_bounds = array<i64: 1>, scalar_prefetch = 0 : i64, scratch_operands = 0 : i64, tpu.core_type = #tpu.core_type<tc>, window_params = [{transform_indices = @transform_0, window_bounds = array<i64: 64, 32>}, {pipeline_mode = #tpu.pipeline_mode<synchronous>, transform_indices = @transform_1, window_bounds = array<i64: 1, 32>}, {pipeline_mode = #tpu.pipeline_mode<synchronous>, transform_indices = @transform_2, window_bounds = array<i64: 1, 32>}, {transform_indices = @transform_3, window_bounds = array<i64: 64, 32>}]} {
    %c0 = arith.constant 0 : index
    %c0_0 = arith.constant 0 : index
    %0 = vector.load %arg1[%c0, %c0_0] : memref<64x32xf32, #tpu.memory_space<vmem>>, vector<64x32xf32>
    %cst = arith.constant dense<0.000000e+00> : vector<64xf32>
    %1 = vector.multi_reduction <add>, %0, %cst [1] : vector<64x32xf32> to vector<64xf32>
    %2 = vector.shape_cast %1 : vector<64xf32> to vector<64x1xf32>
    %cst_1 = arith.constant 3.200000e+01 : f32
    %3 = vector.broadcast %cst_1 : f32 to vector<64x1xf32>
    %4 = arith.divf %2, %3 : vector<64x1xf32>
    %5 = vector.broadcast %4 : vector<64x1xf32> to vector<64x32xf32>
    %6 = arith.subf %0, %5 : vector<64x32xf32>
    %7 = arith.mulf %6, %6 : vector<64x32xf32>
    %cst_2 = arith.constant dense<0.000000e+00> : vector<64xf32>
    %8 = vector.multi_reduction <add>, %7, %cst_2 [1] : vector<64x32xf32> to vector<64xf32>
    %9 = vector.shape_cast %8 : vector<64xf32> to vector<64x1xf32>
    %cst_3 = arith.constant 3.200000e+01 : f32
    %10 = vector.broadcast %cst_3 : f32 to vector<64x1xf32>
    %11 = arith.divf %9, %10 : vector<64x1xf32>
    %cst_4 = arith.constant 9.99999997E-7 : f32
    %12 = vector.broadcast %cst_4 : f32 to vector<64x1xf32>
    %13 = arith.addf %11, %12 : vector<64x1xf32>
    %14 = math.rsqrt %13 : vector<64x1xf32>
    %15 = vector.broadcast %14 : vector<64x1xf32> to vector<64x32xf32>
    %16 = arith.mulf %6, %15 : vector<64x32xf32>
    %c0_5 = arith.constant 0 : index
    %c0_6 = arith.constant 0 : index
    %17 = vector.load %arg2[%c0_5, %c0_6] : memref<1x32xf32, #tpu.memory_space<vmem>>, vector<1x32xf32>
    %18 = vector.broadcast %17 : vector<1x32xf32> to vector<64x32xf32>
    %19 = arith.mulf %16, %18 : vector<64x32xf32>
    %c0_7 = arith.constant 0 : index
    %c0_8 = arith.constant 0 : index
    %20 = vector.load %arg3[%c0_7, %c0_8] : memref<1x32xf32, #tpu.memory_space<vmem>>, vector<1x32xf32>
    %21 = vector.broadcast %20 : vector<1x32xf32> to vector<64x32xf32>
    %22 = arith.addf %19, %21 : vector<64x32xf32>
    %c0_9 = arith.constant 0 : index
    %c0_10 = arith.constant 0 : index
    %23 = vector.load %arg4[%c0_9, %c0_10] : memref<64x32xf32, #tpu.memory_space<vmem>>, vector<64x32xf32>
    tpu.vector_store %arg4[%c0_9, %c0_10], %22 {strides = array<i32>} : memref<64x32xf32, #tpu.memory_space<vmem>>, vector<64x32xf32>,
    return
  }
  func.func @transform_0(%arg0: i32) -> (i32, i32) {
    %c0_i32 = arith.constant 0 : i32
    %c0_i32_0 = arith.constant 0 : i32
    return %arg0, %c0_i32 : i32, i32
  }
  func.func @transform_1(%arg0: i32) -> (i32, i32) {
    %c0_i32 = arith.constant 0 : i32
    %c0_i32_0 = arith.constant 0 : i32
    %c0_i32_1 = arith.constant 0 : i32
    return %c0_i32, %c0_i32_0 : i32, i32
  }
  func.func @transform_2(%arg0: i32) -> (i32, i32) {
    %c0_i32 = arith.constant 0 : i32
    %c0_i32_0 = arith.constant 0 : i32
    %c0_i32_1 = arith.constant 0 : i32
    return %c0_i32, %c0_i32_0 : i32, i32
  }
  func.func @transform_3(%arg0: i32) -> (i32, i32) {
    %c0_i32 = arith.constant 0 : i32
    %c0_i32_0 = arith.constant 0 : i32
    return %arg0, %c0_i32 : i32, i32
  }
}

module attributes {stable_mosaic.version = 11 : i64} {
  func.func @_linear_kernel(%arg0: i32, %arg1: memref<64x32xf32, #tpu.memory_space<vmem>>, %arg2: memref<32x128xf32, #tpu.memory_space<vmem>>, %arg3: memref<1x128xf32, #tpu.memory_space<vmem>>, %arg4: memref<64x128xf32, #tpu.memory_space<vmem>>) attributes {dimension_semantics = [#tpu.dimension_semantics<parallel>], iteration_bounds = array<i64: 1>, scalar_prefetch = 0 : i64, scratch_operands = 0 : i64, tpu.core_type = #tpu.core_type<tc>, window_params = [{transform_indices = @transform_0, window_bounds = array<i64: 64, 32>}, {pipeline_mode = #tpu.pipeline_mode<synchronous>, transform_indices = @transform_1, window_bounds = array<i64: 32, 128>}, {pipeline_mode = #tpu.pipeline_mode<synchronous>, transform_indices = @transform_2, window_bounds = array<i64: 1, 128>}, {transform_indices = @transform_3, window_bounds = array<i64: 64, 128>}]} {
    %c0 = arith.constant 0 : index
    %c0_0 = arith.constant 0 : index
    %0 = vector.load %arg1[%c0, %c0_0] : memref<64x32xf32, #tpu.memory_space<vmem>>, vector<64x32xf32>
    %c0_1 = arith.constant 0 : index
    %c0_2 = arith.constant 0 : index
    %1 = vector.load %arg2[%c0_1, %c0_2] : memref<32x128xf32, #tpu.memory_space<vmem>>, vector<32x128xf32>
    %cst = arith.constant dense<0.000000e+00> : vector<64x128xf32>
    %2 = tpu.matmul %0, %1, %cst {dimension_numbers = #tpu.dot_dimension_numbers<[1], [0], [0], [1], [0, 0, 1, 1], [], []>} : vector<64x32xf32>, vector<32x128xf32>, vector<64x128xf32> -> vector<64x128xf32>
    %c0_3 = arith.constant 0 : index
    %c0_4 = arith.constant 0 : index
    %3 = vector.load %arg3[%c0_3, %c0_4] : memref<1x128xf32, #tpu.memory_space<vmem>>, vector<1x128xf32>
    %4 = vector.broadcast %3 : vector<1x128xf32> to vector<64x128xf32>
    %5 = arith.addf %2, %4 : vector<64x128xf32>
    %cst_5 = arith.constant 0.000000e+00 : f32
    %6 = vector.broadcast %cst_5 : f32 to vector<64x128xf32>
    %7 = arith.maximumf %5, %6 : vector<64x128xf32>
    %c0_6 = arith.constant 0 : index
    %c0_7 = arith.constant 0 : index
    %8 = vector.load %arg4[%c0_6, %c0_7] : memref<64x128xf32, #tpu.memory_space<vmem>>, vector<64x128xf32>
    tpu.vector_store %arg4[%c0_6, %c0_7], %7 {strides = array<i32>} : memref<64x128xf32, #tpu.memory_space<vmem>>, vector<64x128xf32>,
    return
  }
  func.func @transform_0(%arg0: i32) -> (i32, i32) {
    %c0_i32 = arith.constant 0 : i32
    %c0_i32_0 = arith.constant 0 : i32
    return %arg0, %c0_i32 : i32, i32
  }
  func.func @transform_1(%arg0: i32) -> (i32, i32) {
    %c0_i32 = arith.constant 0 : i32
    %c0_i32_0 = arith.constant 0 : i32
    %c0_i32_1 = arith.constant 0 : i32
    return %c0_i32, %c0_i32_0 : i32, i32
  }
  func.func @transform_2(%arg0: i32) -> (i32, i32) {
    %c0_i32 = arith.constant 0 : i32
    %c0_i32_0 = arith.constant 0 : i32
    %c0_i32_1 = arith.constant 0 : i32
    return %c0_i32, %c0_i32_0 : i32, i32
  }
  func.func @transform_3(%arg0: i32) -> (i32, i32) {
    %c0_i32 = arith.constant 0 : i32
    %c0_i32_0 = arith.constant 0 : i32
    return %arg0, %c0_i32 : i32, i32
  }
}

module attributes {stable_mosaic.version = 11 : i64} {
  func.func @_layernorm_kernel(%arg0: i32, %arg1: memref<64x32xf32, #tpu.memory_space<vmem>>, %arg2: memref<1x32xf32, #tpu.memory_space<vmem>>, %arg3: memref<1x32xf32, #tpu.memory_space<vmem>>, %arg4: memref<64x32xf32, #tpu.memory_space<vmem>>) attributes {dimension_semantics = [#tpu.dimension_semantics<parallel>], iteration_bounds = array<i64: 1>, scalar_prefetch = 0 : i64, scratch_operands = 0 : i64, tpu.core_type = #tpu.core_type<tc>, window_params = [{transform_indices = @transform_0, window_bounds = array<i64: 64, 32>}, {pipeline_mode = #tpu.pipeline_mode<synchronous>, transform_indices = @transform_1, window_bounds = array<i64: 1, 32>}, {pipeline_mode = #tpu.pipeline_mode<synchronous>, transform_indices = @transform_2, window_bounds = array<i64: 1, 32>}, {transform_indices = @transform_3, window_bounds = array<i64: 64, 32>}]} {
    %c0 = arith.constant 0 : index
    %c0_0 = arith.constant 0 : index
    %0 = vector.load %arg1[%c0, %c0_0] : memref<64x32xf32, #tpu.memory_space<vmem>>, vector<64x32xf32>
    %cst = arith.constant dense<0.000000e+00> : vector<64xf32>
    %1 = vector.multi_reduction <add>, %0, %cst [1] : vector<64x32xf32> to vector<64xf32>
    %2 = vector.shape_cast %1 : vector<64xf32> to vector<64x1xf32>
    %cst_1 = arith.constant 3.200000e+01 : f32
    %3 = vector.broadcast %cst_1 : f32 to vector<64x1xf32>
    %4 = arith.divf %2, %3 : vector<64x1xf32>
    %5 = vector.broadcast %4 : vector<64x1xf32> to vector<64x32xf32>
    %6 = arith.subf %0, %5 : vector<64x32xf32>
    %7 = arith.mulf %6, %6 : vector<64x32xf32>
    %cst_2 = arith.constant dense<0.000000e+00> : vector<64xf32>
    %8 = vector.multi_reduction <add>, %7, %cst_2 [1] : vector<64x32xf32> to vector<64xf32>
    %9 = vector.shape_cast %8 : vector<64xf32> to vector<64x1xf32>
    %cst_3 = arith.constant 3.200000e+01 : f32
    %10 = vector.broadcast %cst_3 : f32 to vector<64x1xf32>
    %11 = arith.divf %9, %10 : vector<64x1xf32>
    %cst_4 = arith.constant 9.99999997E-7 : f32
    %12 = vector.broadcast %cst_4 : f32 to vector<64x1xf32>
    %13 = arith.addf %11, %12 : vector<64x1xf32>
    %14 = math.rsqrt %13 : vector<64x1xf32>
    %15 = vector.broadcast %14 : vector<64x1xf32> to vector<64x32xf32>
    %16 = arith.mulf %6, %15 : vector<64x32xf32>
    %c0_5 = arith.constant 0 : index
    %c0_6 = arith.constant 0 : index
    %17 = vector.load %arg2[%c0_5, %c0_6] : memref<1x32xf32, #tpu.memory_space<vmem>>, vector<1x32xf32>
    %18 = vector.broadcast %17 : vector<1x32xf32> to vector<64x32xf32>
    %19 = arith.mulf %16, %18 : vector<64x32xf32>
    %c0_7 = arith.constant 0 : index
    %c0_8 = arith.constant 0 : index
    %20 = vector.load %arg3[%c0_7, %c0_8] : memref<1x32xf32, #tpu.memory_space<vmem>>, vector<1x32xf32>
    %21 = vector.broadcast %20 : vector<1x32xf32> to vector<64x32xf32>
    %22 = arith.addf %19, %21 : vector<64x32xf32>
    %c0_9 = arith.constant 0 : index
    %c0_10 = arith.constant 0 : index
    %23 = vector.load %arg4[%c0_9, %c0_10] : memref<64x32xf32, #tpu.memory_space<vmem>>, vector<64x32xf32>
    tpu.vector_store %arg4[%c0_9, %c0_10], %22 {strides = array<i32>} : memref<64x32xf32, #tpu.memory_space<vmem>>, vector<64x32xf32>,
    return
  }
  func.func @transform_0(%arg0: i32) -> (i32, i32) {
    %c0_i32 = arith.constant 0 : i32
    %c0_i32_0 = arith.constant 0 : i32
    return %arg0, %c0_i32 : i32, i32
  }
  func.func @transform_1(%arg0: i32) -> (i32, i32) {
    %c0_i32 = arith.constant 0 : i32
    %c0_i32_0 = arith.constant 0 : i32
    %c0_i32_1 = arith.constant 0 : i32
    return %c0_i32, %c0_i32_0 : i32, i32
  }
  func.func @transform_2(%arg0: i32) -> (i32, i32) {
    %c0_i32 = arith.constant 0 : i32
    %c0_i32_0 = arith.constant 0 : i32
    %c0_i32_1 = arith.constant 0 : i32
    return %c0_i32, %c0_i32_0 : i32, i32
  }
  func.func @transform_3(%arg0: i32) -> (i32, i32) {
    %c0_i32 = arith.constant 0 : i32
    %c0_i32_0 = arith.constant 0 : i32
    return %arg0, %c0_i32 : i32, i32
  }
}

module attributes {stable_mosaic.version = 11 : i64} {
  func.func @_linear_kernel(%arg0: i32, %arg1: memref<64x128xf32, #tpu.memory_space<vmem>>, %arg2: memref<128x32xf32, #tpu.memory_space<vmem>>, %arg3: memref<1x32xf32, #tpu.memory_space<vmem>>, %arg4: memref<64x32xf32, #tpu.memory_space<vmem>>) attributes {dimension_semantics = [#tpu.dimension_semantics<parallel>], iteration_bounds = array<i64: 1>, scalar_prefetch = 0 : i64, scratch_operands = 0 : i64, tpu.core_type = #tpu.core_type<tc>, window_params = [{transform_indices = @transform_0, window_bounds = array<i64: 64, 128>}, {pipeline_mode = #tpu.pipeline_mode<synchronous>, transform_indices = @transform_1, window_bounds = array<i64: 128, 32>}, {pipeline_mode = #tpu.pipeline_mode<synchronous>, transform_indices = @transform_2, window_bounds = array<i64: 1, 32>}, {transform_indices = @transform_3, window_bounds = array<i64: 64, 32>}]} {
    %c0 = arith.constant 0 : index
    %c0_0 = arith.constant 0 : index
    %0 = vector.load %arg1[%c0, %c0_0] : memref<64x128xf32, #tpu.memory_space<vmem>>, vector<64x128xf32>
    %c0_1 = arith.constant 0 : index
    %c0_2 = arith.constant 0 : index
    %1 = vector.load %arg2[%c0_1, %c0_2] : memref<128x32xf32, #tpu.memory_space<vmem>>, vector<128x32xf32>
    %cst = arith.constant dense<0.000000e+00> : vector<64x32xf32>
    %2 = tpu.matmul %0, %1, %cst {dimension_numbers = #tpu.dot_dimension_numbers<[1], [0], [0], [1], [0, 0, 1, 1], [], []>} : vector<64x128xf32>, vector<128x32xf32>, vector<64x32xf32> -> vector<64x32xf32>
    %c0_3 = arith.constant 0 : index
    %c0_4 = arith.constant 0 : index
    %3 = vector.load %arg3[%c0_3, %c0_4] : memref<1x32xf32, #tpu.memory_space<vmem>>, vector<1x32xf32>
    %4 = vector.broadcast %3 : vector<1x32xf32> to vector<64x32xf32>
    %5 = arith.addf %2, %4 : vector<64x32xf32>
    %c0_5 = arith.constant 0 : index
    %c0_6 = arith.constant 0 : index
    %6 = vector.load %arg4[%c0_5, %c0_6] : memref<64x32xf32, #tpu.memory_space<vmem>>, vector<64x32xf32>
    tpu.vector_store %arg4[%c0_5, %c0_6], %5 {strides = array<i32>} : memref<64x32xf32, #tpu.memory_space<vmem>>, vector<64x32xf32>,
    return
  }
  func.func @transform_0(%arg0: i32) -> (i32, i32) {
    %c0_i32 = arith.constant 0 : i32
    %c0_i32_0 = arith.constant 0 : i32
    return %arg0, %c0_i32 : i32, i32
  }
  func.func @transform_1(%arg0: i32) -> (i32, i32) {
    %c0_i32 = arith.constant 0 : i32
    %c0_i32_0 = arith.constant 0 : i32
    %c0_i32_1 = arith.constant 0 : i32
    return %c0_i32, %c0_i32_0 : i32, i32
  }
  func.func @transform_2(%arg0: i32) -> (i32, i32) {
    %c0_i32 = arith.constant 0 : i32
    %c0_i32_0 = arith.constant 0 : i32
    %c0_i32_1 = arith.constant 0 : i32
    return %c0_i32, %c0_i32_0 : i32, i32
  }
  func.func @transform_3(%arg0: i32) -> (i32, i32) {
    %c0_i32 = arith.constant 0 : i32
    %c0_i32_0 = arith.constant 0 : i32
    return %arg0, %c0_i32 : i32, i32
  }
}

</mosaic_0001>

<llo_original>
// kernel: _lambda_.43
$region0: #{_lambda_.43}
  #allocation0 [shape = 'u32[]', space=smem, size = 0x4, offset = 0x4, fixed_abs, tag = 'smem constant byte address 0x4 - core index']
  #allocation1 [shape = 'u32[72,128]{1,0:T(1,128)}', space=vmem, size = 0x9000, scoped, tag = 'internal scratch']
  %s0 = inlined_call_operand.vmem [shape: f32[64,32], index: 0, kind: input, shape index: {}]
  %s1 = inlined_call_operand.vmem [shape: f32[32,32], index: 1, kind: input, shape index: {}]
  %s2 = inlined_call_operand.vmem [shape: f32[1,32], index: 2, kind: input, shape index: {}]
  %s3 = inlined_call_operand.vmem [shape: f32[64,32], index: 3, kind: output, shape index: {}]
  %s4 = sld [smem:[#allocation0]]
  $region22: #{_lambda_.43} parent=0
    _
  %s6 = ssub.s32 1, %s4
  %s7 = scalar_select 0, %s6, %s4
  // Predicated region
  $region2: #{_lambda_.43} parent=0 // pred_check
    _
  $region3: #{_lambda_.43} parent=0 // pred_check_branch
    %9 = sbr.rel (0) target = $region5
  $region4: #{_lambda_.43} parent=0 // pred_region
    _
  $region5: #{_lambda_.43} parent=0 // pred_fallthru
    _
  // Predicated region
  $region6: #{_lambda_.43} parent=0 // pred_check
    _
  $region7: #{_lambda_.43} parent=0 // pred_check_branch
    %11 = sbr.rel (0) target = $region9
  $region8: #{_lambda_.43} parent=0 // pred_region
    _
  $region9: #{_lambda_.43} parent=0 // pred_fallthru
    _
  // Predicated region
  $region10: #{_lambda_.43} parent=0 // pred_check
    _
  $region11: #{_lambda_.43} parent=0 // pred_check_branch
    %13 = sbr.rel (0) target = $region13
  $region12: #{_lambda_.43} parent=0 // pred_region
    _
  $region13: #{_lambda_.43} parent=0 // pred_fallthru
    _
  %v14 = vld [vmem:[%s0] sm:$0xff]
  %v15 = vld [vmem:[%s0 + $0x8] sm:$0xff]
  %v16 = vld [vmem:[%s0 + $0x10] sm:$0xff]
  %v17 = vld [vmem:[%s0 + $0x18] sm:$0xff]
  %v18 = vld [vmem:[%s0 + $0x20] sm:$0xff]
  %v19 = vld [vmem:[%s0 + $0x28] sm:$0xff]
  %v20 = vld [vmem:[%s0 + $0x30] sm:$0xff]
  %v21 = vld [vmem:[%s0 + $0x38] sm:$0xff]
  %v22 = vld [vmem:[%s1] sm:$0xff]
  %v23 = vld [vmem:[%s1 + $0x8] sm:$0xff]
  %v24 = vld [vmem:[%s1 + $0x10] sm:$0xff]
  %v25 = vld [vmem:[%s1 + $0x18] sm:$0xff]
  %v26 = vld [vmem:[%s2] sm:$0x1]
  %v28 = vperm.slane %v26, 0
  %vm30 = vcmask 261120
  %v32 = vsel %vm30, %v14, 0
  %v35 = vsel %vm30, %v15, 0
  %v38 = vsel %vm30, %v16, 0
  %v41 = vsel %vm30, %v17, 0
  %v44 = vsel %vm30, %v18, 0
  %v47 = vsel %vm30, %v19, 0
  %v50 = vsel %vm30, %v20, 0
  %v53 = vsel %vm30, %v21, 0
  %55 = vmatpush.msra.mxu0 0.0
  %56 = vmatpush.msra.mxu0 0.0
  %57 = vmatpush.msra.mxu0 0.0
  %58 = vmatpush.msra.mxu0 0.0
  %59 = vmatpush.msra.mxu0 0.0
  %60 = vmatpush.msra.mxu0 0.0
  %61 = vmatpush.msra.mxu0 0.0
  %62 = vmatpush.msra.mxu0 0.0
  %63 = vmatpush.msra.mxu0 0.0
  %64 = vmatpush.msra.mxu0 0.0
  %65 = vmatpush.msra.mxu0 0.0
  %66 = vmatpush.msra.mxu0 0.0
  %67 = vmatpush.msra.mxu0 %v25
  %68 = vmatpush.msra.mxu0 %v24
  %69 = vmatpush.msra.mxu0 %v23
  %70 = vmatpush.msra.mxu0 %v22
  %71 = vmatmul.f32.gmra.mxu0 %v32
  %v72 = vpop.f32.mrf.mxu0
  %v73 = vadd.f32 %v28, %v72
  %74 = vmatmul.f32.gmra.mxu0 %v35
  %v75 = vpop.f32.mrf.mxu0
  %v76 = vadd.f32 %v28, %v75
  %77 = vmatmul.f32.gmra.mxu0 %v38
  %v78 = vpop.f32.mrf.mxu0
  %v79 = vadd.f32 %v28, %v78
  %80 = vmatmul.f32.gmra.mxu0 %v41
  %v81 = vpop.f32.mrf.mxu0
  %v82 = vadd.f32 %v28, %v81
  %83 = vmatmul.f32.gmra.mxu0 %v44
  %v84 = vpop.f32.mrf.mxu0
  %v85 = vadd.f32 %v28, %v84
  %86 = vmatmul.f32.gmra.mxu0 %v47
  %v87 = vpop.f32.mrf.mxu0
  %v88 = vadd.f32 %v28, %v87
  %89 = vmatmul.f32.gmra.mxu0 %v50
  %v90 = vpop.f32.mrf.mxu0
  %v91 = vadd.f32 %v28, %v90
  %92 = vmatmul.f32.gmra.mxu0 %v53
  %v93 = vpop.f32.mrf.mxu0
  %v94 = vadd.f32 %v28, %v93
  %95 = vdwg.mxu0
  %96 = vst.msk [vmem:[%s3] sm:$0xff] %vm30, %v73
  %97 = vst.msk [vmem:[%s3 + $0x8] sm:$0xff] %vm30, %v76
  %98 = vst.msk [vmem:[%s3 + $0x10] sm:$0xff] %vm30, %v79
  %99 = vst.msk [vmem:[%s3 + $0x18] sm:$0xff] %vm30, %v82
  %100 = vst.msk [vmem:[%s3 + $0x20] sm:$0xff] %vm30, %v85
  %101 = vst.msk [vmem:[%s3 + $0x28] sm:$0xff] %vm30, %v88
  %102 = vst.msk [vmem:[%s3 + $0x30] sm:$0xff] %vm30, %v91
  %103 = vst.msk [vmem:[%s3 + $0x38] sm:$0xff] %vm30, %v94
  // Predicated region
  $region14: #{_lambda_.43} parent=0 // pred_check
    _
  $region15: #{_lambda_.43} parent=0 // pred_check_branch
    %105 = sbr.rel (0) target = $region17
  $region16: #{_lambda_.43} parent=0 // pred_region
    _
  $region17: #{_lambda_.43} parent=0 // pred_fallthru
    _
  // Predicated region
  $region18: #{_lambda_.43} parent=0 // pred_check
    _
  $region19: #{_lambda_.43} parent=0 // pred_check_branch
    %107 = sbr.rel (0) target = $region21
  $region20: #{_lambda_.43} parent=0 // pred_region
    _
  $region21: #{_lambda_.43} parent=0 // pred_fallthru
    _

// kernel: _lambda_.41
$region0: #{_lambda_.41}
  #allocation0 [shape = 'u32[]', space=smem, size = 0x4, offset = 0x4, fixed_abs, tag = 'smem constant byte address 0x4 - core index']
  #allocation1 [shape = 'u32[72,128]{1,0:T(1,128)}', space=vmem, size = 0x9000, scoped, tag = 'internal scratch']
  %s0 = inlined_call_operand.hbm [shape: f32[64,32], index: 0, kind: input, shape index: {}]
  %s1 = inlined_call_operand.vmem [shape: f32[1,32], index: 1, kind: input, shape index: {}]
  %s2 = inlined_call_operand.vmem [shape: f32[1,32], index: 2, kind: input, shape index: {}]
  %s3 = inlined_call_operand.vmem [shape: f32[64,32], index: 3, kind: output, shape index: {}]
  %s4 = sld [smem:[#allocation0]]
  $region26: #{_lambda_.41} parent=0
    _
  %s6 = ssub.s32 1, %s4
  %s7 = scalar_select 0, %s6, %s4
  $region1: #{_lambda_.41} parent=0
    #allocation2 [shape = 'u8[32768]{0}', space=vmem, size = 0x8000, scoped, tag = 'input window, operand 0, single buffered']
    #allocation3 [shape = 's32[1]{0}', space=sflag, size = 0x4, scoped, tag = 'scoped memory for _lambda_.41']
    %8 = vsyncpa [#allocation3], 0
    // Predicated region
    $region2: #{_lambda_.41} parent=1 // pred_check
      _
    $region3: #{_lambda_.41} parent=1 // pred_check_branch
      %10 = sbr.rel (0) target = $region5
    $region4: #{_lambda_.41} parent=1 // pred_region
      %12 = vsyncadd [#allocation3], 0
      %s13 = sshll.u32 %s0, 4
      %s14 = int_to_ptr.hbm [resolvable:$true] %s13
      %s15 = sshll.u32 [#allocation2], 4
      %s16 = int_to_ptr.vmem [resolvable:$true] %s15
      %21 = dma.hbm_to_vmem [thread:$0]  %s14, 1024, %s16, [#allocation3], 128, 128, 8
    $region5: #{_lambda_.41} parent=1 // pred_fallthru
      _
    // Predicated region
    $region6: #{_lambda_.41} parent=1 // pred_check
      _
    $region7: #{_lambda_.41} parent=1 // pred_check_branch
      %23 = sbr.rel (0) target = $region9
    $region8: #{_lambda_.41} parent=1 // pred_region
      _
    $region9: #{_lambda_.41} parent=1 // pred_fallthru
      _
    // Predicated region
    $region10: #{_lambda_.41} parent=1 // pred_check
      _
    $region11: #{_lambda_.41} parent=1 // pred_check_branch
      %25 = sbr.rel (0) target = $region13
    $region12: #{_lambda_.41} parent=1 // pred_region
      _
    $region13: #{_lambda_.41} parent=1 // pred_fallthru
      _
    // Predicated region
    $region14: #{_lambda_.41} parent=1 // pred_check
      _
    $region15: #{_lambda_.41} parent=1 // pred_check_branch
      %27 = sbr.rel (0) target = $region17
    $region16: #{_lambda_.41} parent=1 // pred_region
      %29 = dma.done [#allocation3], 1024
    $region17: #{_lambda_.41} parent=1 // pred_fallthru
      _
    %v30 = vld [vmem:[#allocation2] sm:$0xff]
    %v31 = vld [vmem:[#allocation2 + $0x8] sm:$0xff]
    %v32 = vld [vmem:[#allocation2 + $0x10] sm:$0xff]
    %v33 = vld [vmem:[#allocation2 + $0x18] sm:$0xff]
    %v34 = vld [vmem:[#allocation2 + $0x20] sm:$0xff]
    %v35 = vld [vmem:[#allocation2 + $0x28] sm:$0xff]
    %v36 = vld [vmem:[#allocation2 + $0x30] sm:$0xff]
    %v37 = vld [vmem:[#allocation2 + $0x38] sm:$0xff]
    %vm38 = vcmask 261120
    %v39 = vsel %vm38, %v30, 0.0
    %40 = vadd.xlane.f32.xlu0 %v39
    %v41 = vpop.xlane.xlu0 %40
    %v42 = vsel %vm38, %v31, 0.0
    %43 = vadd.xlane.f32.xlu0 %v42
    %v44 = vpop.xlane.xlu0 %43
    %v45 = vsel %vm38, %v32, 0.0
    %46 = vadd.xlane.f32.xlu0 %v45
    %v47 = vpop.xlane.xlu0 %46
    %v48 = vsel %vm38, %v33, 0.0
    %49 = vadd.xlane.f32.xlu0 %v48
    %v50 = vpop.xlane.xlu0 %49
    %v51 = vsel %vm38, %v34, 0.0
    %52 = vadd.xlane.f32.xlu0 %v51
    %v53 = vpop.xlane.xlu0 %52
    %v54 = vsel %vm38, %v35, 0.0
    %55 = vadd.xlane.f32.xlu0 %v54
    %v56 = vpop.xlane.xlu0 %55
    %v57 = vsel %vm38, %v36, 0.0
    %58 = vadd.xlane.f32.xlu0 %v57
    %v59 = vpop.xlane.xlu0 %58
    %v60 = vsel %vm38, %v37, 0.0
    %61 = vadd.xlane.f32.xlu0 %v60
    %v62 = vpop.xlane.xlu0 %61
    %v63 = vrcp.pop 32.0
    %v64 = vmul.f32 32.0, %v63
    %v65 = vsub.f32 1.0, %v64
    %v66 = vmul.f32 %v63, %v65
    %v67 = vadd.f32 %v63, %v66
    %vm68 = vweird.f32 %v63
    %v69 = vsel %vm68, %v63, %v67
    %v70 = vmul.f32 %v41, %v69
    %v71 = vmul.f32 %v44, %v69
    %v72 = vmul.f32 %v47, %v69
    %v73 = vmul.f32 %v50, %v69
    %v74 = vmul.f32 %v53, %v69
    %v75 = vmul.f32 %v56, %v69
    %v76 = vmul.f32 %v59, %v69
    %v77 = vmul.f32 %v62, %v69
    %v78 = vsub.f32 %v30, %v70
    %v79 = vsub.f32 %v31, %v71
    %v80 = vsub.f32 %v32, %v72
    %v81 = vsub.f32 %v33, %v73
    %v82 = vsub.f32 %v34, %v74
    %v83 = vsub.f32 %v35, %v75
    %v84 = vsub.f32 %v36, %v76
    %v85 = vsub.f32 %v37, %v77
    %v86 = vmul.f32 %v78, %v78
    %v87 = vmul.f32 %v79, %v79
    %v88 = vmul.f32 %v80, %v80
    %v89 = vmul.f32 %v81, %v81
    %v90 = vmul.f32 %v82, %v82
    %v91 = vmul.f32 %v83, %v83
    %v92 = vmul.f32 %v84, %v84
    %v93 = vmul.f32 %v85, %v85
    %v94 = vsel %vm38, %v86, 0.0
    %95 = vadd.xlane.f32.xlu0 %v94
    %v96 = vpop.xlane.xlu0 %95
    %v97 = vsel %vm38, %v87, 0.0
    %98 = vadd.xlane.f32.xlu0 %v97
    %v99 = vpop.xlane.xlu0 %98
    %v100 = vsel %vm38, %v88, 0.0
    %101 = vadd.xlane.f32.xlu0 %v100
    %v102 = vpop.xlane.xlu0 %101
    %v103 = vsel %vm38, %v89, 0.0
    %104 = vadd.xlane.f32.xlu0 %v103
    %v105 = vpop.xlane.xlu0 %104
    %v106 = vsel %vm38, %v90, 0.0
    %107 = vadd.xlane.f32.xlu0 %v106
    %v108 = vpop.xlane.xlu0 %107
    %v109 = vsel %vm38, %v91, 0.0
    %110 = vadd.xlane.f32.xlu0 %v109
    %v111 = vpop.xlane.xlu0 %110
    %v112 = vsel %vm38, %v92, 0.0
    %113 = vadd.xlane.f32.xlu0 %v112
    %v114 = vpop.xlane.xlu0 %113
    %v115 = vsel %vm38, %v93, 0.0
    %116 = vadd.xlane.f32.xlu0 %v115
    %v117 = vpop.xlane.xlu0 %116
    %v118 = vmul.f32 %v96, %v69
    %v119 = vmul.f32 %v99, %v69
    %v120 = vmul.f32 %v102, %v69
    %v121 = vmul.f32 %v105, %v69
    %v122 = vmul.f32 %v108, %v69
    %v123 = vmul.f32 %v111, %v69
    %v124 = vmul.f32 %v114, %v69
    %v125 = vmul.f32 %v117, %v69
    %v126 = vadd.f32 %v118, 1e-06
    %v127 = vadd.f32 %v119, 1e-06
    %v128 = vadd.f32 %v120, 1e-06
    %v129 = vadd.f32 %v121, 1e-06
    %v130 = vadd.f32 %v122, 1e-06
    %v131 = vadd.f32 %v123, 1e-06
    %v132 = vadd.f32 %v124, 1e-06
    %v133 = vadd.f32 %v125, 1e-06
    %v134 = vrsqrt.pop %v126
    %v135 = vmul.f32 %v134, %v126
    %v136 = vmul.f32 %v135, %v134
    %v137 = vmul.f32 0.5, %v136
    %v138 = vsub.f32 1.5, %v137
    %v139 = vmul.f32 %v134, %v138
    %vm140 = vweird.f32 %v126
    %vm141 = vweird.f32 %v134
    %vm142 = vmor %vm140, %vm141
    %v143 = vsel %vm142, %v134, %v139
    %v144 = vrsqrt.pop %v127
    %v145 = vmul.f32 %v144, %v127
    %v146 = vmul.f32 %v145, %v144
    %v147 = vmul.f32 0.5, %v146
    %v148 = vsub.f32 1.5, %v147
    %v149 = vmul.f32 %v144, %v148
    %vm150 = vweird.f32 %v127
    %vm151 = vweird.f32 %v144
    %vm152 = vmor %vm150, %vm151
    %v153 = vsel %vm152, %v144, %v149
    %v154 = vrsqrt.pop %v128
    %v155 = vmul.f32 %v154, %v128
    %v156 = vmul.f32 %v155, %v154
    %v157 = vmul.f32 0.5, %v156
    %v158 = vsub.f32 1.5, %v157
    %v159 = vmul.f32 %v154, %v158
    %vm160 = vweird.f32 %v128
    %vm161 = vweird.f32 %v154
    %vm162 = vmor %vm160, %vm161
    %v163 = vsel %vm162, %v154, %v159
    %v164 = vrsqrt.pop %v129
    %v165 = vmul.f32 %v164, %v129
    %v166 = vmul.f32 %v165, %v164
    %v167 = vmul.f32 0.5, %v166
    %v168 = vsub.f32 1.5, %v167
    %v169 = vmul.f32 %v164, %v168
    %vm170 = vweird.f32 %v129
    %vm171 = vweird.f32 %v164
    %vm172 = vmor %vm170, %vm171
    %v173 = vsel %vm172, %v164, %v169
    %v174 = vrsqrt.pop %v130
    %v175 = vmul.f32 %v174, %v130
    %v176 = vmul.f32 %v175, %v174
    %v177 = vmul.f32 0.5, %v176
    %v178 = vsub.f32 1.5, %v177
    %v179 = vmul.f32 %v174, %v178
    %vm180 = vweird.f32 %v130
    %vm181 = vweird.f32 %v174
    %vm182 = vmor %vm180, %vm181
    %v183 = vsel %vm182, %v174, %v179
    %v184 = vrsqrt.pop %v131
    %v185 = vmul.f32 %v184, %v131
    %v186 = vmul.f32 %v185, %v184
    %v187 = vmul.f32 0.5, %v186
    %v188 = vsub.f32 1.5, %v187
    %v189 = vmul.f32 %v184, %v188
    %vm190 = vweird.f32 %v131
    %vm191 = vweird.f32 %v184
    %vm192 = vmor %vm190, %vm191
    %v193 = vsel %vm192, %v184, %v189
    %v194 = vrsqrt.pop %v132
    %v195 = vmul.f32 %v194, %v132
    %v196 = vmul.f32 %v195, %v194
    %v197 = vmul.f32 0.5, %v196
    %v198 = vsub.f32 1.5, %v197
    %v199 = vmul.f32 %v194, %v198
    %vm200 = vweird.f32 %v132
    %vm201 = vweird.f32 %v194
    %vm202 = vmor %vm200, %vm201
    %v203 = vsel %vm202, %v194, %v199
    %v204 = vrsqrt.pop %v133
    %v205 = vmul.f32 %v204, %v133
    %v206 = vmul.f32 %v205, %v204
    %v207 = vmul.f32 0.5, %v206
    %v208 = vsub.f32 1.5, %v207
    %v209 = vmul.f32 %v204, %v208
    %vm210 = vweird.f32 %v133
    %vm211 = vweird.f32 %v204
    %vm212 = vmor %vm210, %vm211
    %v213 = vsel %vm212, %v204, %v209
    %v214 = vmul.f32 %v78, %v143
    %v215 = vmul.f32 %v79, %v153
    %v216 = vmul.f32 %v80, %v163
    %v217 = vmul.f32 %v81, %v173
    %v218 = vmul.f32 %v82, %v183
    %v219 = vmul.f32 %v83, %v193
    %v220 = vmul.f32 %v84, %v203
    %v221 = vmul.f32 %v85, %v213
    %v222 = vld [vmem:[%s1] sm:$0x1]
    %v224 = vperm.slane %v222, 0
    %v226 = vmul.f32 %v214, %v224
    %v227 = vmul.f32 %v215, %v224
    %v228 = vmul.f32 %v216, %v224
    %v229 = vmul.f32 %v217, %v224
    %v230 = vmul.f32 %v218, %v224
    %v231 = vmul.f32 %v219, %v224
    %v232 = vmul.f32 %v220, %v224
    %v233 = vmul.f32 %v221, %v224
    %v234 = vld [vmem:[%s2] sm:$0x1]
    %v236 = vperm.slane %v234, 0
    %v238 = vadd.f32 %v226, %v236
    %v239 = vadd.f32 %v227, %v236
    %v240 = vadd.f32 %v228, %v236
    %v241 = vadd.f32 %v229, %v236
    %v242 = vadd.f32 %v230, %v236
    %v243 = vadd.f32 %v231, %v236
    %v244 = vadd.f32 %v232, %v236
    %v245 = vadd.f32 %v233, %v236
    %246 = vst.msk [vmem:[%s3] sm:$0xff] %vm38, %v238
    %247 = vst.msk [vmem:[%s3 + $0x8] sm:$0xff] %vm38, %v239
    %248 = vst.msk [vmem:[%s3 + $0x10] sm:$0xff] %vm38, %v240
    %249 = vst.msk [vmem:[%s3 + $0x18] sm:$0xff] %vm38, %v241
    %250 = vst.msk [vmem:[%s3 + $0x20] sm:$0xff] %vm38, %v242
    %251 = vst.msk [vmem:[%s3 + $0x28] sm:$0xff] %vm38, %v243
    %252 = vst.msk [vmem:[%s3 + $0x30] sm:$0xff] %vm38, %v244
    %253 = vst.msk [vmem:[%s3 + $0x38] sm:$0xff] %vm38, %v245
    // Predicated region
    $region18: #{_lambda_.41} parent=1 // pred_check
      _
    $region19: #{_lambda_.41} parent=1 // pred_check_branch
      %255 = sbr.rel (0) target = $region21
    $region20: #{_lambda_.41} parent=1 // pred_region
      _
    $region21: #{_lambda_.41} parent=1 // pred_fallthru
      _
    // Predicated region
    $region22: #{_lambda_.41} parent=1 // pred_check
      _
    $region23: #{_lambda_.41} parent=1 // pred_check_branch
      %257 = sbr.rel (0) target = $region25
    $region24: #{_lambda_.41} parent=1 // pred_region
      _
    $region25: #{_lambda_.41} parent=1 // pred_fallthru
      _
    %258 = vsyncpa [#allocation3], 1

// kernel: _lambda_.46
$region0: #{_lambda_.46}
  #allocation0 [shape = 'u32[]', space=smem, size = 0x4, offset = 0x4, fixed_abs, tag = 'smem constant byte address 0x4 - core index']
  #allocation1 [shape = 'u32[72,128]{1,0:T(1,128)}', space=vmem, size = 0x9000, scoped, tag = 'internal scratch']
  %s0 = inlined_call_operand.vmem [shape: f32[8,8,32], index: 0, kind: input, shape index: {}]
  %s1 = inlined_call_operand.vmem [shape: f32[8,10,32], index: 1, kind: input, shape index: {}]
  %s2 = inlined_call_operand.vmem [shape: f32[8,8,32], index: 2, kind: output, shape index: {}]
  %s3 = sld [smem:[#allocation0]]
  $region18: #{_lambda_.46} parent=0
    _
  %s5 = ssub.s32 1, %s3
  %s6 = scalar_select 0, %s5, %s3
  // Predicated region
  $region2: #{_lambda_.46} parent=0 // pred_check
    _
  $region3: #{_lambda_.46} parent=0 // pred_check_branch
    %8 = sbr.rel (0) target = $region5
  $region4: #{_lambda_.46} parent=0 // pred_region
    _
  $region5: #{_lambda_.46} parent=0 // pred_fallthru
    _
  // Predicated region
  $region6: #{_lambda_.46} parent=0 // pred_check
    _
  $region7: #{_lambda_.46} parent=0 // pred_check_branch
    %10 = sbr.rel (0) target = $region9
  $region8: #{_lambda_.46} parent=0 // pred_region
    _
  $region9: #{_lambda_.46} parent=0 // pred_fallthru
    _
  %v11 = vld [vmem:[%s0] sm:$0xff]
  %v12 = vld [vmem:[%s0 + $0x8] sm:$0xff]
  %v13 = vld [vmem:[%s0 + $0x10] sm:$0xff]
  %v14 = vld [vmem:[%s0 + $0x18] sm:$0xff]
  %v15 = vld [vmem:[%s0 + $0x20] sm:$0xff]
  %v16 = vld [vmem:[%s0 + $0x28] sm:$0xff]
  %v17 = vld [vmem:[%s0 + $0x30] sm:$0xff]
  %v18 = vld [vmem:[%s0 + $0x38] sm:$0xff]
  %v19 = vld [vmem:[%s1] sm:$0xff]
  %v20 = vld [vmem:[%s1 + $0x8] sm:$0x3]
  %v21 = vld [vmem:[%s1 + $0x10] sm:$0xff]
  %v22 = vld [vmem:[%s1 + $0x18] sm:$0x3]
  %v23 = vld [vmem:[%s1 + $0x20] sm:$0xff]
  %v24 = vld [vmem:[%s1 + $0x28] sm:$0x3]
  %v25 = vld [vmem:[%s1 + $0x30] sm:$0xff]
  %v26 = vld [vmem:[%s1 + $0x38] sm:$0x3]
  %v27 = vld [vmem:[%s1 + $0x40] sm:$0xff]
  %v28 = vld [vmem:[%s1 + $0x48] sm:$0x3]
  %v29 = vld [vmem:[%s1 + $0x50] sm:$0xff]
  %v30 = vld [vmem:[%s1 + $0x58] sm:$0x3]
  %v31 = vld [vmem:[%s1 + $0x60] sm:$0xff]
  %v32 = vld [vmem:[%s1 + $0x68] sm:$0x3]
  %v33 = vld [vmem:[%s1 + $0x70] sm:$0xff]
  %v34 = vld [vmem:[%s1 + $0x78] sm:$0x3]
  %vm35 = vcmask 261120
  %v37 = vsel %vm35, %v11, 0
  %v40 = vsel %vm35, %v19, 0
  %v43 = vsel %vm35, %v20, 0
  %45 = vmatpush.xpose.msra.mxu0 0.0
  %46 = vmatpush.xpose.msra.mxu0 0.0
  %47 = vmatpush.xpose.msra.mxu0 0.0
  %48 = vmatpush.xpose.msra.mxu0 0.0
  %49 = vmatpush.xpose.msra.mxu0 0.0
  %50 = vmatpush.xpose.msra.mxu0 0.0
  %51 = vmatpush.xpose.msra.mxu0 0.0
  %52 = vmatpush.xpose.msra.mxu0 0.0
  %53 = vmatpush.xpose.msra.mxu0 0.0
  %54 = vmatpush.xpose.msra.mxu0 0.0
  %55 = vmatpush.xpose.msra.mxu0 0.0
  %56 = vmatpush.xpose.msra.mxu0 0.0
  %57 = vmatpush.xpose.msra.mxu0 0.0
  %58 = vmatpush.xpose.msra.mxu0 0.0
  %59 = vmatpush.xpose.msra.mxu0 %v43
  %60 = vmatpush.xpose.msra.mxu0 %v40
  %61 = vmatmul.f32.gmra.mxu0 %v37
  %v62 = vpop.f32.mrf.mxu0
  %v63 = vadd.f32 0.0, %v62
  %64 = vdwg.mxu0
  %v66 = vsel %vm35, %v12, 0
  %v69 = vsel %vm35, %v21, 0
  %v72 = vsel %vm35, %v22, 0
  %74 = vmatpush.xpose.msra.mxu0 0.0
  %75 = vmatpush.xpose.msra.mxu0 0.0
  %76 = vmatpush.xpose.msra.mxu0 0.0
  %77 = vmatpush.xpose.msra.mxu0 0.0
  %78 = vmatpush.xpose.msra.mxu0 0.0
  %79 = vmatpush.xpose.msra.mxu0 0.0
  %80 = vmatpush.xpose.msra.mxu0 0.0
  %81 = vmatpush.xpose.msra.mxu0 0.0
  %82 = vmatpush.xpose.msra.mxu0 0.0
  %83 = vmatpush.xpose.msra.mxu0 0.0
  %84 = vmatpush.xpose.msra.mxu0 0.0
  %85 = vmatpush.xpose.msra.mxu0 0.0
  %86 = vmatpush.xpose.msra.mxu0 0.0
  %87 = vmatpush.xpose.msra.mxu0 0.0
  %88 = vmatpush.xpose.msra.mxu0 %v72
  %89 = vmatpush.xpose.msra.mxu0 %v69
  %90 = vmatmul.f32.gmra.mxu0 %v66
  %v91 = vpop.f32.mrf.mxu0
  %v92 = vadd.f32 0.0, %v91
  %93 = vdwg.mxu0
  %v95 = vsel %vm35, %v13, 0
  %v98 = vsel %vm35, %v23, 0
  %v101 = vsel %vm35, %v24, 0
  %103 = vmatpush.xpose.msra.mxu0 0.0
  %104 = vmatpush.xpose.msra.mxu0 0.0
  %105 = vmatpush.xpose.msra.mxu0 0.0
  %106 = vmatpush.xpose.msra.mxu0 0.0
  %107 = vmatpush.xpose.msra.mxu0 0.0
  %108 = vmatpush.xpose.msra.mxu0 0.0
  %109 = vmatpush.xpose.msra.mxu0 0.0
  %110 = vmatpush.xpose.msra.mxu0 0.0
  %111 = vmatpush.xpose.msra.mxu0 0.0
  %112 = vmatpush.xpose.msra.mxu0 0.0
  %113 = vmatpush.xpose.msra.mxu0 0.0
  %114 = vmatpush.xpose.msra.mxu0 0.0
  %115 = vmatpush.xpose.msra.mxu0 0.0
  %116 = vmatpush.xpose.msra.mxu0 0.0
  %117 = vmatpush.xpose.msra.mxu0 %v101
  %118 = vmatpush.xpose.msra.mxu0 %v98
  %119 = vmatmul.f32.gmra.mxu0 %v95
  %v120 = vpop.f32.mrf.mxu0
  %v121 = vadd.f32 0.0, %v120
  %122 = vdwg.mxu0
  %v124 = vsel %vm35, %v14, 0
  %v127 = vsel %vm35, %v25, 0
  %v130 = vsel %vm35, %v26, 0
  %132 = vmatpush.xpose.msra.mxu0 0.0
  %133 = vmatpush.xpose.msra.mxu0 0.0
  %134 = vmatpush.xpose.msra.mxu0 0.0
  %135 = vmatpush.xpose.msra.mxu0 0.0
  %136 = vmatpush.xpose.msra.mxu0 0.0
  %137 = vmatpush.xpose.msra.mxu0 0.0
  %138 = vmatpush.xpose.msra.mxu0 0.0
  %139 = vmatpush.xpose.msra.mxu0 0.0
  %140 = vmatpush.xpose.msra.mxu0 0.0
  %141 = vmatpush.xpose.msra.mxu0 0.0
  %142 = vmatpush.xpose.msra.mxu0 0.0
  %143 = vmatpush.xpose.msra.mxu0 0.0
  %144 = vmatpush.xpose.msra.mxu0 0.0
  %145 = vmatpush.xpose.msra.mxu0 0.0
  %146 = vmatpush.xpose.msra.mxu0 %v130
  %147 = vmatpush.xpose.msra.mxu0 %v127
  %148 = vmatmul.f32.gmra.mxu0 %v124
  %v149 = vpop.f32.mrf.mxu0
  %v150 = vadd.f32 0.0, %v149
  %151 = vdwg.mxu0
  %v153 = vsel %vm35, %v15, 0
  %v156 = vsel %vm35, %v27, 0
  %v159 = vsel %vm35, %v28, 0
  %161 = vmatpush.xpose.msra.mxu0 0.0
  %162 = vmatpush.xpose.msra.mxu0 0.0
  %163 = vmatpush.xpose.msra.mxu0 0.0
  %164 = vmatpush.xpose.msra.mxu0 0.0
  %165 = vmatpush.xpose.msra.mxu0 0.0
  %166 = vmatpush.xpose.msra.mxu0 0.0
  %167 = vmatpush.xpose.msra.mxu0 0.0
  %168 = vmatpush.xpose.msra.mxu0 0.0
  %169 = vmatpush.xpose.msra.mxu0 0.0
  %170 = vmatpush.xpose.msra.mxu0 0.0
  %171 = vmatpush.xpose.msra.mxu0 0.0
  %172 = vmatpush.xpose.msra.mxu0 0.0
  %173 = vmatpush.xpose.msra.mxu0 0.0
  %174 = vmatpush.xpose.msra.mxu0 0.0
  %175 = vmatpush.xpose.msra.mxu0 %v159
  %176 = vmatpush.xpose.msra.mxu0 %v156
  %177 = vmatmul.f32.gmra.mxu0 %v153
  %v178 = vpop.f32.mrf.mxu0
  %v179 = vadd.f32 0.0, %v178
  %180 = vdwg.mxu0
  %v182 = vsel %vm35, %v16, 0
  %v185 = vsel %vm35, %v29, 0
  %v188 = vsel %vm35, %v30, 0
  %190 = vmatpush.xpose.msra.mxu0 0.0
  %191 = vmatpush.xpose.msra.mxu0 0.0
  %192 = vmatpush.xpose.msra.mxu0 0.0
  %193 = vmatpush.xpose.msra.mxu0 0.0
  %194 = vmatpush.xpose.msra.mxu0 0.0
  %195 = vmatpush.xpose.msra.mxu0 0.0
  %196 = vmatpush.xpose.msra.mxu0 0.0
  %197 = vmatpush.xpose.msra.mxu0 0.0
  %198 = vmatpush.xpose.msra.mxu0 0.0
  %199 = vmatpush.xpose.msra.mxu0 0.0
  %200 = vmatpush.xpose.msra.mxu0 0.0
  %201 = vmatpush.xpose.msra.mxu0 0.0
  %202 = vmatpush.xpose.msra.mxu0 0.0
  %203 = vmatpush.xpose.msra.mxu0 0.0
  %204 = vmatpush.xpose.msra.mxu0 %v188
  %205 = vmatpush.xpose.msra.mxu0 %v185
  %206 = vmatmul.f32.gmra.mxu0 %v182
  %v207 = vpop.f32.mrf.mxu0
  %v208 = vadd.f32 0.0, %v207
  %209 = vdwg.mxu0
  %v211 = vsel %vm35, %v17, 0
  %v214 = vsel %vm35, %v31, 0
  %v217 = vsel %vm35, %v32, 0
  %219 = vmatpush.xpose.msra.mxu0 0.0
  %220 = vmatpush.xpose.msra.mxu0 0.0
  %221 = vmatpush.xpose.msra.mxu0 0.0
  %222 = vmatpush.xpose.msra.mxu0 0.0
  %223 = vmatpush.xpose.msra.mxu0 0.0
  %224 = vmatpush.xpose.msra.mxu0 0.0
  %225 = vmatpush.xpose.msra.mxu0 0.0
  %226 = vmatpush.xpose.msra.mxu0 0.0
  %227 = vmatpush.xpose.msra.mxu0 0.0
  %228 = vmatpush.xpose.msra.mxu0 0.0
  %229 = vmatpush.xpose.msra.mxu0 0.0
  %230 = vmatpush.xpose.msra.mxu0 0.0
  %231 = vmatpush.xpose.msra.mxu0 0.0
  %232 = vmatpush.xpose.msra.mxu0 0.0
  %233 = vmatpush.xpose.msra.mxu0 %v217
  %234 = vmatpush.xpose.msra.mxu0 %v214
  %235 = vmatmul.f32.gmra.mxu0 %v211
  %v236 = vpop.f32.mrf.mxu0
  %v237 = vadd.f32 0.0, %v236
  %238 = vdwg.mxu0
  %v240 = vsel %vm35, %v18, 0
  %v243 = vsel %vm35, %v33, 0
  %v246 = vsel %vm35, %v34, 0
  %248 = vmatpush.xpose.msra.mxu0 0.0
  %249 = vmatpush.xpose.msra.mxu0 0.0
  %250 = vmatpush.xpose.msra.mxu0 0.0
  %251 = vmatpush.xpose.msra.mxu0 0.0
  %252 = vmatpush.xpose.msra.mxu0 0.0
  %253 = vmatpush.xpose.msra.mxu0 0.0
  %254 = vmatpush.xpose.msra.mxu0 0.0
  %255 = vmatpush.xpose.msra.mxu0 0.0
  %256 = vmatpush.xpose.msra.mxu0 0.0
  %257 = vmatpush.xpose.msra.mxu0 0.0
  %258 = vmatpush.xpose.msra.mxu0 0.0
  %259 = vmatpush.xpose.msra.mxu0 0.0
  %260 = vmatpush.xpose.msra.mxu0 0.0
  %261 = vmatpush.xpose.msra.mxu0 0.0
  %262 = vmatpush.xpose.msra.mxu0 %v246
  %263 = vmatpush.xpose.msra.mxu0 %v243
  %264 = vmatmul.f32.gmra.mxu0 %v240
  %v265 = vpop.f32.mrf.mxu0
  %v266 = vadd.f32 0.0, %v265
  %267 = vdwg.mxu0
  %v268 = vmul.f32 %v63, 0.17677669
  %v269 = vmul.f32 %v92, 0.17677669
  %v270 = vmul.f32 %v121, 0.17677669
  %v271 = vmul.f32 %v150, 0.17677669
  %v272 = vmul.f32 %v179, 0.17677669
  %v273 = vmul.f32 %v208, 0.17677669
  %v274 = vmul.f32 %v237, 0.17677669
  %v275 = vmul.f32 %v266, 0.17677669
  %v276 = vlaneseq
  %v277 = vshrl.u32 %v276, 7
  %v278 = vlaneseq
  %v279 = vand.u32 %v278, 127
  %vm280 = vcmp.ge.s32.totalorder %v279, %v277
  %v281 = vadd.s32 %v277, 3
  %vm282 = vcmp.lt.s32.totalorder %v279, %v281
  %vm283 = vmand %vm280, %vm282
  %v284 = vsel %vm283, %v268, -inf
  %v285 = vsel %vm283, %v269, -inf
  %v286 = vsel %vm283, %v270, -inf
  %v287 = vsel %vm283, %v271, -inf
  %v288 = vsel %vm283, %v272, -inf
  %v289 = vsel %vm283, %v273, -inf
  %v290 = vsel %vm283, %v274, -inf
  %v291 = vsel %vm283, %v275, -inf
  %vm292 = vcmask 80896
  %v293 = vsel %vm292, %v284, -inf
  %294 = vmax.xlane.f32.xlu0 %v293
  %v295 = vpop.xlane.xlu0 %294
  %v296 = vsel %vm292, %v285, -inf
  %297 = vmax.xlane.f32.xlu0 %v296
  %v298 = vpop.xlane.xlu0 %297
  %v299 = vsel %vm292, %v286, -inf
  %300 = vmax.xlane.f32.xlu0 %v299
  %v301 = vpop.xlane.xlu0 %300
  %v302 = vsel %vm292, %v287, -inf
  %303 = vmax.xlane.f32.xlu0 %v302
  %v304 = vpop.xlane.xlu0 %303
  %v305 = vsel %vm292, %v288, -inf
  %306 = vmax.xlane.f32.xlu0 %v305
  %v307 = vpop.xlane.xlu0 %306
  %v308 = vsel %vm292, %v289, -inf
  %309 = vmax.xlane.f32.xlu0 %v308
  %v310 = vpop.xlane.xlu0 %309
  %v311 = vsel %vm292, %v290, -inf
  %312 = vmax.xlane.f32.xlu0 %v311
  %v313 = vpop.xlane.xlu0 %312
  %v314 = vsel %vm292, %v291, -inf
  %315 = vmax.xlane.f32.xlu0 %v314
  %v316 = vpop.xlane.xlu0 %315
  %v317 = vsub.f32 %v284, %v295
  %v318 = vsub.f32 %v285, %v298
  %v319 = vsub.f32 %v286, %v301
  %v320 = vsub.f32 %v287, %v304
  %v321 = vsub.f32 %v288, %v307
  %v322 = vsub.f32 %v289, %v310
  %v323 = vsub.f32 %v290, %v313
  %v324 = vsub.f32 %v291, %v316
  %v325 = vmul.f32 %v317, 1.442695
  %v326 = vpow.pop %v325
  %v327 = vmul.f32 %v318, 1.442695
  %v328 = vpow.pop %v327
  %v329 = vmul.f32 %v319, 1.442695
  %v330 = vpow.pop %v329
  %v331 = vmul.f32 %v320, 1.442695
  %v332 = vpow.pop %v331
  %v333 = vmul.f32 %v321, 1.442695
  %v334 = vpow.pop %v333
  %v335 = vmul.f32 %v322, 1.442695
  %v336 = vpow.pop %v335
  %v337 = vmul.f32 %v323, 1.442695
  %v338 = vpow.pop %v337
  %v339 = vmul.f32 %v324, 1.442695
  %v340 = vpow.pop %v339
  %v341 = vsel %vm292, %v326, 0.0
  %342 = vadd.xlane.f32.xlu0 %v341
  %v343 = vpop.xlane.xlu0 %342
  %v344 = vsel %vm292, %v328, 0.0
  %345 = vadd.xlane.f32.xlu0 %v344
  %v346 = vpop.xlane.xlu0 %345
  %v347 = vsel %vm292, %v330, 0.0
  %348 = vadd.xlane.f32.xlu0 %v347
  %v349 = vpop.xlane.xlu0 %348
  %v350 = vsel %vm292, %v332, 0.0
  %351 = vadd.xlane.f32.xlu0 %v350
  %v352 = vpop.xlane.xlu0 %351
  %v353 = vsel %vm292, %v334, 0.0
  %354 = vadd.xlane.f32.xlu0 %v353
  %v355 = vpop.xlane.xlu0 %354
  %v356 = vsel %vm292, %v336, 0.0
  %357 = vadd.xlane.f32.xlu0 %v356
  %v358 = vpop.xlane.xlu0 %357
  %v359 = vsel %vm292, %v338, 0.0
  %360 = vadd.xlane.f32.xlu0 %v359
  %v361 = vpop.xlane.xlu0 %360
  %v362 = vsel %vm292, %v340, 0.0
  %363 = vadd.xlane.f32.xlu0 %v362
  %v364 = vpop.xlane.xlu0 %363
  %v365 = vrcp.pop %v343
  %v366 = vmul.f32 %v343, %v365
  %v367 = vsub.f32 1.0, %v366
  %v368 = vmul.f32 %v365, %v367
  %v369 = vadd.f32 %v365, %v368
  %vm370 = vweird.f32 %v343
  %vm371 = vweird.f32 %v365
  %vm372 = vmor %vm370, %vm371
  %v373 = vsel %vm372, %v365, %v369
  %v374 = vand.u32 2147483647, %v343
  %vm375 = vcmp.eq.f32.partialorder %v374, 8.507059e+37
  %v376 = vand.u32 %v343, 2147483648
  %v377 = vor.u32 1.1754944e-38, %v376
  %v378 = vsel %vm375, %v377, %v373
  %v379 = vmul.f32 %v326, %v378
  %v380 = vrcp.pop %v346
  %v381 = vmul.f32 %v346, %v380
  %v382 = vsub.f32 1.0, %v381
  %v383 = vmul.f32 %v380, %v382
  %v384 = vadd.f32 %v380, %v383
  %vm385 = vweird.f32 %v346
  %vm386 = vweird.f32 %v380
  %vm387 = vmor %vm385, %vm386
  %v388 = vsel %vm387, %v380, %v384
  %v389 = vand.u32 2147483647, %v346
  %vm390 = vcmp.eq.f32.partialorder %v389, 8.507059e+37
  %v391 = vand.u32 %v346, 2147483648
  %v392 = vor.u32 1.1754944e-38, %v391
  %v393 = vsel %vm390, %v392, %v388
  %v394 = vmul.f32 %v328, %v393
  %v395 = vrcp.pop %v349
  %v396 = vmul.f32 %v349, %v395
  %v397 = vsub.f32 1.0, %v396
  %v398 = vmul.f32 %v395, %v397
  %v399 = vadd.f32 %v395, %v398
  %vm400 = vweird.f32 %v349
  %vm401 = vweird.f32 %v395
  %vm402 = vmor %vm400, %vm401
  %v403 = vsel %vm402, %v395, %v399
  %v404 = vand.u32 2147483647, %v349
  %vm405 = vcmp.eq.f32.partialorder %v404, 8.507059e+37
  %v406 = vand.u32 %v349, 2147483648
  %v407 = vor.u32 1.1754944e-38, %v406
  %v408 = vsel %vm405, %v407, %v403
  %v409 = vmul.f32 %v330, %v408
  %v410 = vrcp.pop %v352
  %v411 = vmul.f32 %v352, %v410
  %v412 = vsub.f32 1.0, %v411
  %v413 = vmul.f32 %v410, %v412
  %v414 = vadd.f32 %v410, %v413
  %vm415 = vweird.f32 %v352
  %vm416 = vweird.f32 %v410
  %vm417 = vmor %vm415, %vm416
  %v418 = vsel %vm417, %v410, %v414
  %v419 = vand.u32 2147483647, %v352
  %vm420 = vcmp.eq.f32.partialorder %v419, 8.507059e+37
  %v421 = vand.u32 %v352, 2147483648
  %v422 = vor.u32 1.1754944e-38, %v421
  %v423 = vsel %vm420, %v422, %v418
  %v424 = vmul.f32 %v332, %v423
  %v425 = vrcp.pop %v355
  %v426 = vmul.f32 %v355, %v425
  %v427 = vsub.f32 1.0, %v426
  %v428 = vmul.f32 %v425, %v427
  %v429 = vadd.f32 %v425, %v428
  %vm430 = vweird.f32 %v355
  %vm431 = vweird.f32 %v425
  %vm432 = vmor %vm430, %vm431
  %v433 = vsel %vm432, %v425, %v429
  %v434 = vand.u32 2147483647, %v355
  %vm435 = vcmp.eq.f32.partialorder %v434, 8.507059e+37
  %v436 = vand.u32 %v355, 2147483648
  %v437 = vor.u32 1.1754944e-38, %v436
  %v438 = vsel %vm435, %v437, %v433
  %v439 = vmul.f32 %v334, %v438
  %v440 = vrcp.pop %v358
  %v441 = vmul.f32 %v358, %v440
  %v442 = vsub.f32 1.0, %v441
  %v443 = vmul.f32 %v440, %v442
  %v444 = vadd.f32 %v440, %v443
  %vm445 = vweird.f32 %v358
  %vm446 = vweird.f32 %v440
  %vm447 = vmor %vm445, %vm446
  %v448 = vsel %vm447, %v440, %v444
  %v449 = vand.u32 2147483647, %v358
  %vm450 = vcmp.eq.f32.partialorder %v449, 8.507059e+37
  %v451 = vand.u32 %v358, 2147483648
  %v452 = vor.u32 1.1754944e-38, %v451
  %v453 = vsel %vm450, %v452, %v448
  %v454 = vmul.f32 %v336, %v453
  %v455 = vrcp.pop %v361
  %v456 = vmul.f32 %v361, %v455
  %v457 = vsub.f32 1.0, %v456
  %v458 = vmul.f32 %v455, %v457
  %v459 = vadd.f32 %v455, %v458
  %vm460 = vweird.f32 %v361
  %vm461 = vweird.f32 %v455
  %vm462 = vmor %vm460, %vm461
  %v463 = vsel %vm462, %v455, %v459
  %v464 = vand.u32 2147483647, %v361
  %vm465 = vcmp.eq.f32.partialorder %v464, 8.507059e+37
  %v466 = vand.u32 %v361, 2147483648
  %v467 = vor.u32 1.1754944e-38, %v466
  %v468 = vsel %vm465, %v467, %v463
  %v469 = vmul.f32 %v338, %v468
  %v470 = vrcp.pop %v364
  %v471 = vmul.f32 %v364, %v470
  %v472 = vsub.f32 1.0, %v471
  %v473 = vmul.f32 %v470, %v472
  %v474 = vadd.f32 %v470, %v473
  %vm475 = vweird.f32 %v364
  %vm476 = vweird.f32 %v470
  %vm477 = vmor %vm475, %vm476
  %v478 = vsel %vm477, %v470, %v474
  %v479 = vand.u32 2147483647, %v364
  %vm480 = vcmp.eq.f32.partialorder %v479, 8.507059e+37
  %v481 = vand.u32 %v364, 2147483648
  %v482 = vor.u32 1.1754944e-38, %v481
  %v483 = vsel %vm480, %v482, %v478
  %v484 = vmul.f32 %v340, %v483
  %v486 = vsel %vm292, %v379, 0
  %vm488 = vcmask 1041408
  %v489 = vsel %vm488, %v20, 0
  %491 = vmatpush.msra.mxu0 0.0
  %492 = vmatpush.msra.mxu0 0.0
  %493 = vmatpush.msra.mxu0 0.0
  %494 = vmatpush.msra.mxu0 0.0
  %495 = vmatpush.msra.mxu0 0.0
  %496 = vmatpush.msra.mxu0 0.0
  %497 = vmatpush.msra.mxu0 0.0
  %498 = vmatpush.msra.mxu0 0.0
  %499 = vmatpush.msra.mxu0 0.0
  %500 = vmatpush.msra.mxu0 0.0
  %501 = vmatpush.msra.mxu0 0.0
  %502 = vmatpush.msra.mxu0 0.0
  %503 = vmatpush.msra.mxu0 0.0
  %504 = vmatpush.msra.mxu0 0.0
  %505 = vmatpush.msra.mxu0 %v489
  %506 = vmatpush.msra.mxu0 %v19
  %507 = vmatmul.f32.gmra.mxu0 %v486
  %v508 = vpop.f32.mrf.mxu0
  %v509 = vadd.f32 0.0, %v508
  %510 = vdwg.mxu0
  %v512 = vsel %vm292, %v394, 0
  %v514 = vsel %vm488, %v22, 0
  %516 = vmatpush.msra.mxu0 0.0
  %517 = vmatpush.msra.mxu0 0.0
  %518 = vmatpush.msra.mxu0 0.0
  %519 = vmatpush.msra.mxu0 0.0
  %520 = vmatpush.msra.mxu0 0.0
  %521 = vmatpush.msra.mxu0 0.0
  %522 = vmatpush.msra.mxu0 0.0
  %523 = vmatpush.msra.mxu0 0.0
  %524 = vmatpush.msra.mxu0 0.0
  %525 = vmatpush.msra.mxu0 0.0
  %526 = vmatpush.msra.mxu0 0.0
  %527 = vmatpush.msra.mxu0 0.0
  %528 = vmatpush.msra.mxu0 0.0
  %529 = vmatpush.msra.mxu0 0.0
  %530 = vmatpush.msra.mxu0 %v514
  %531 = vmatpush.msra.mxu0 %v21
  %532 = vmatmul.f32.gmra.mxu0 %v512
  %v533 = vpop.f32.mrf.mxu0
  %v534 = vadd.f32 0.0, %v533
  %535 = vdwg.mxu0
  %v537 = vsel %vm292, %v409, 0
  %v539 = vsel %vm488, %v24, 0
  %541 = vmatpush.msra.mxu0 0.0
  %542 = vmatpush.msra.mxu0 0.0
  %543 = vmatpush.msra.mxu0 0.0
  %544 = vmatpush.msra.mxu0 0.0
  %545 = vmatpush.msra.mxu0 0.0
  %546 = vmatpush.msra.mxu0 0.0
  %547 = vmatpush.msra.mxu0 0.0
  %548 = vmatpush.msra.mxu0 0.0
  %549 = vmatpush.msra.mxu0 0.0
  %550 = vmatpush.msra.mxu0 0.0
  %551 = vmatpush.msra.mxu0 0.0
  %552 = vmatpush.msra.mxu0 0.0
  %553 = vmatpush.msra.mxu0 0.0
  %554 = vmatpush.msra.mxu0 0.0
  %555 = vmatpush.msra.mxu0 %v539
  %556 = vmatpush.msra.mxu0 %v23
  %557 = vmatmul.f32.gmra.mxu0 %v537
  %v558 = vpop.f32.mrf.mxu0
  %v559 = vadd.f32 0.0, %v558
  %560 = vdwg.mxu0
  %v562 = vsel %vm292, %v424, 0
  %v564 = vsel %vm488, %v26, 0
  %566 = vmatpush.msra.mxu0 0.0
  %567 = vmatpush.msra.mxu0 0.0
  %568 = vmatpush.msra.mxu0 0.0
  %569 = vmatpush.msra.mxu0 0.0
  %570 = vmatpush.msra.mxu0 0.0
  %571 = vmatpush.msra.mxu0 0.0
  %572 = vmatpush.msra.mxu0 0.0
  %573 = vmatpush.msra.mxu0 0.0
  %574 = vmatpush.msra.mxu0 0.0
  %575 = vmatpush.msra.mxu0 0.0
  %576 = vmatpush.msra.mxu0 0.0
  %577 = vmatpush.msra.mxu0 0.0
  %578 = vmatpush.msra.mxu0 0.0
  %579 = vmatpush.msra.mxu0 0.0
  %580 = vmatpush.msra.mxu0 %v564
  %581 = vmatpush.msra.mxu0 %v25
  %582 = vmatmul.f32.gmra.mxu0 %v562
  %v583 = vpop.f32.mrf.mxu0
  %v584 = vadd.f32 0.0, %v583
  %585 = vdwg.mxu0
  %v587 = vsel %vm292, %v439, 0
  %v589 = vsel %vm488, %v28, 0
  %591 = vmatpush.msra.mxu0 0.0
  %592 = vmatpush.msra.mxu0 0.0
  %593 = vmatpush.msra.mxu0 0.0
  %594 = vmatpush.msra.mxu0 0.0
  %595 = vmatpush.msra.mxu0 0.0
  %596 = vmatpush.msra.mxu0 0.0
  %597 = vmatpush.msra.mxu0 0.0
  %598 = vmatpush.msra.mxu0 0.0
  %599 = vmatpush.msra.mxu0 0.0
  %600 = vmatpush.msra.mxu0 0.0
  %601 = vmatpush.msra.mxu0 0.0
  %602 = vmatpush.msra.mxu0 0.0
  %603 = vmatpush.msra.mxu0 0.0
  %604 = vmatpush.msra.mxu0 0.0
  %605 = vmatpush.msra.mxu0 %v589
  %606 = vmatpush.msra.mxu0 %v27
  %607 = vmatmul.f32.gmra.mxu0 %v587
  %v608 = vpop.f32.mrf.mxu0
  %v609 = vadd.f32 0.0, %v608
  %610 = vdwg.mxu0
  %v612 = vsel %vm292, %v454, 0
  %v614 = vsel %vm488, %v30, 0
  %616 = vmatpush.msra.mxu0 0.0
  %617 = vmatpush.msra.mxu0 0.0
  %618 = vmatpush.msra.mxu0 0.0
  %619 = vmatpush.msra.mxu0 0.0
  %620 = vmatpush.msra.mxu0 0.0
  %621 = vmatpush.msra.mxu0 0.0
  %622 = vmatpush.msra.mxu0 0.0
  %623 = vmatpush.msra.mxu0 0.0
  %624 = vmatpush.msra.mxu0 0.0
  %625 = vmatpush.msra.mxu0 0.0
  %626 = vmatpush.msra.mxu0 0.0
  %627 = vmatpush.msra.mxu0 0.0
  %628 = vmatpush.msra.mxu0 0.0
  %629 = vmatpush.msra.mxu0 0.0
  %630 = vmatpush.msra.mxu0 %v614
  %631 = vmatpush.msra.mxu0 %v29
  %632 = vmatmul.f32.gmra.mxu0 %v612
  %v633 = vpop.f32.mrf.mxu0
  %v634 = vadd.f32 0.0, %v633
  %635 = vdwg.mxu0
  %v637 = vsel %vm292, %v469, 0
  %v639 = vsel %vm488, %v32, 0
  %641 = vmatpush.msra.mxu0 0.0
  %642 = vmatpush.msra.mxu0 0.0
  %643 = vmatpush.msra.mxu0 0.0
  %644 = vmatpush.msra.mxu0 0.0
  %645 = vmatpush.msra.mxu0 0.0
  %646 = vmatpush.msra.mxu0 0.0
  %647 = vmatpush.msra.mxu0 0.0
  %648 = vmatpush.msra.mxu0 0.0
  %649 = vmatpush.msra.mxu0 0.0
  %650 = vmatpush.msra.mxu0 0.0
  %651 = vmatpush.msra.mxu0 0.0
  %652 = vmatpush.msra.mxu0 0.0
  %653 = vmatpush.msra.mxu0 0.0
  %654 = vmatpush.msra.mxu0 0.0
  %655 = vmatpush.msra.mxu0 %v639
  %656 = vmatpush.msra.mxu0 %v31
  %657 = vmatmul.f32.gmra.mxu0 %v637
  %v658 = vpop.f32.mrf.mxu0
  %v659 = vadd.f32 0.0, %v658
  %660 = vdwg.mxu0
  %v662 = vsel %vm292, %v484, 0
  %v664 = vsel %vm488, %v34, 0
  %666 = vmatpush.msra.mxu0 0.0
  %667 = vmatpush.msra.mxu0 0.0
  %668 = vmatpush.msra.mxu0 0.0
  %669 = vmatpush.msra.mxu0 0.0
  %670 = vmatpush.msra.mxu0 0.0
  %671 = vmatpush.msra.mxu0 0.0
  %672 = vmatpush.msra.mxu0 0.0
  %673 = vmatpush.msra.mxu0 0.0
  %674 = vmatpush.msra.mxu0 0.0
  %675 = vmatpush.msra.mxu0 0.0
  %676 = vmatpush.msra.mxu0 0.0
  %677 = vmatpush.msra.mxu0 0.0
  %678 = vmatpush.msra.mxu0 0.0
  %679 = vmatpush.msra.mxu0 0.0
  %680 = vmatpush.msra.mxu0 %v664
  %681 = vmatpush.msra.mxu0 %v33
  %682 = vmatmul.f32.gmra.mxu0 %v662
  %v683 = vpop.f32.mrf.mxu0
  %v684 = vadd.f32 0.0, %v683
  %685 = vdwg.mxu0
  %686 = vst.msk [vmem:[%s2] sm:$0xff] %vm35, %v509
  %687 = vst.msk [vmem:[%s2 + $0x8] sm:$0xff] %vm35, %v534
  %688 = vst.msk [vmem:[%s2 + $0x10] sm:$0xff] %vm35, %v559
  %689 = vst.msk [vmem:[%s2 + $0x18] sm:$0xff] %vm35, %v584
  %690 = vst.msk [vmem:[%s2 + $0x20] sm:$0xff] %vm35, %v609
  %691 = vst.msk [vmem:[%s2 + $0x28] sm:$0xff] %vm35, %v634
  %692 = vst.msk [vmem:[%s2 + $0x30] sm:$0xff] %vm35, %v659
  %693 = vst.msk [vmem:[%s2 + $0x38] sm:$0xff] %vm35, %v684
  // Predicated region
  $region10: #{_lambda_.46} parent=0 // pred_check
    _
  $region11: #{_lambda_.46} parent=0 // pred_check_branch
    %695 = sbr.rel (0) target = $region13
  $region12: #{_lambda_.46} parent=0 // pred_region
    _
  $region13: #{_lambda_.46} parent=0 // pred_fallthru
    _
  // Predicated region
  $region14: #{_lambda_.46} parent=0 // pred_check
    _
  $region15: #{_lambda_.46} parent=0 // pred_check_branch
    %697 = sbr.rel (0) target = $region17
  $region16: #{_lambda_.46} parent=0 // pred_region
    _
  $region17: #{_lambda_.46} parent=0 // pred_fallthru
    _

// kernel: _lambda_.47
$region0: #{_lambda_.47}
  #allocation0 [shape = 'u32[]', space=smem, size = 0x4, offset = 0x4, fixed_abs, tag = 'smem constant byte address 0x4 - core index']
  #allocation1 [shape = 'u32[72,128]{1,0:T(1,128)}', space=vmem, size = 0x9000, scoped, tag = 'internal scratch']
  %s0 = inlined_call_operand.vmem [shape: f32[32,8,8], index: 0, kind: input, shape index: {}]
  %s1 = inlined_call_operand.vmem [shape: f32[32,8,8], index: 1, kind: input, shape index: {}]
  %s2 = inlined_call_operand.vmem [shape: f32[32,8,8], index: 2, kind: input, shape index: {}]
  %s3 = inlined_call_operand.vmem [shape: f32[32,8,8], index: 3, kind: output, shape index: {}]
  %s4 = sld [smem:[#allocation0]]
  $region22: #{_lambda_.47} parent=0
    _
  %s6 = ssub.s32 1, %s4
  %s7 = scalar_select 0, %s6, %s4
  // Predicated region
  $region2: #{_lambda_.47} parent=0 // pred_check
    _
  $region3: #{_lambda_.47} parent=0 // pred_check_branch
    %9 = sbr.rel (0) target = $region5
  $region4: #{_lambda_.47} parent=0 // pred_region
    _
  $region5: #{_lambda_.47} parent=0 // pred_fallthru
    _
  // Predicated region
  $region6: #{_lambda_.47} parent=0 // pred_check
    _
  $region7: #{_lambda_.47} parent=0 // pred_check_branch
    %11 = sbr.rel (0) target = $region9
  $region8: #{_lambda_.47} parent=0 // pred_region
    _
  $region9: #{_lambda_.47} parent=0 // pred_fallthru
    _
  // Predicated region
  $region10: #{_lambda_.47} parent=0 // pred_check
    _
  $region11: #{_lambda_.47} parent=0 // pred_check_branch
    %13 = sbr.rel (0) target = $region13
  $region12: #{_lambda_.47} parent=0 // pred_region
    _
  $region13: #{_lambda_.47} parent=0 // pred_fallthru
    _
  %v14 = vld [vmem:[%s0] sm:$0xff]
  %v15 = vld [vmem:[%s0 + $0x8] sm:$0xff]
  %v16 = vld [vmem:[%s0 + $0x10] sm:$0xff]
  %v17 = vld [vmem:[%s0 + $0x18] sm:$0xff]
  %v18 = vld [vmem:[%s0 + $0x20] sm:$0xff]
  %v19 = vld [vmem:[%s0 + $0x28] sm:$0xff]
  %v20 = vld [vmem:[%s0 + $0x30] sm:$0xff]
  %v21 = vld [vmem:[%s0 + $0x38] sm:$0xff]
  %v22 = vld [vmem:[%s0 + $0x40] sm:$0xff]
  %v23 = vld [vmem:[%s0 + $0x48] sm:$0xff]
  %v24 = vld [vmem:[%s0 + $0x50] sm:$0xff]
  %v25 = vld [vmem:[%s0 + $0x58] sm:$0xff]
  %v26 = vld [vmem:[%s0 + $0x60] sm:$0xff]
  %v27 = vld [vmem:[%s0 + $0x68] sm:$0xff]
  %v28 = vld [vmem:[%s0 + $0x70] sm:$0xff]
  %v29 = vld [vmem:[%s0 + $0x78] sm:$0xff]
  %v30 = vld [vmem:[%s0 + $0x80] sm:$0xff]
  %v31 = vld [vmem:[%s0 + $0x88] sm:$0xff]
  %v32 = vld [vmem:[%s0 + $0x90] sm:$0xff]
  %v33 = vld [vmem:[%s0 + $0x98] sm:$0xff]
  %v34 = vld [vmem:[%s0 + $0xa0] sm:$0xff]
  %v35 = vld [vmem:[%s0 + $0xa8] sm:$0xff]
  %v36 = vld [vmem:[%s0 + $0xb0] sm:$0xff]
  %v37 = vld [vmem:[%s0 + $0xb8] sm:$0xff]
  %v38 = vld [vmem:[%s0 + $0xc0] sm:$0xff]
  %v39 = vld [vmem:[%s0 + $0xc8] sm:$0xff]
  %v40 = vld [vmem:[%s0 + $0xd0] sm:$0xff]
  %v41 = vld [vmem:[%s0 + $0xd8] sm:$0xff]
  %v42 = vld [vmem:[%s0 + $0xe0] sm:$0xff]
  %v43 = vld [vmem:[%s0 + $0xe8] sm:$0xff]
  %v44 = vld [vmem:[%s0 + $0xf0] sm:$0xff]
  %v45 = vld [vmem:[%s0 + $0xf8] sm:$0xff]
  %v46 = vld [vmem:[%s1] sm:$0xff]
  %v47 = vld [vmem:[%s1 + $0x8] sm:$0xff]
  %v48 = vld [vmem:[%s1 + $0x10] sm:$0xff]
  %v49 = vld [vmem:[%s1 + $0x18] sm:$0xff]
  %v50 = vld [vmem:[%s1 + $0x20] sm:$0xff]
  %v51 = vld [vmem:[%s1 + $0x28] sm:$0xff]
  %v52 = vld [vmem:[%s1 + $0x30] sm:$0xff]
  %v53 = vld [vmem:[%s1 + $0x38] sm:$0xff]
  %v54 = vld [vmem:[%s1 + $0x40] sm:$0xff]
  %v55 = vld [vmem:[%s1 + $0x48] sm:$0xff]
  %v56 = vld [vmem:[%s1 + $0x50] sm:$0xff]
  %v57 = vld [vmem:[%s1 + $0x58] sm:$0xff]
  %v58 = vld [vmem:[%s1 + $0x60] sm:$0xff]
  %v59 = vld [vmem:[%s1 + $0x68] sm:$0xff]
  %v60 = vld [vmem:[%s1 + $0x70] sm:$0xff]
  %v61 = vld [vmem:[%s1 + $0x78] sm:$0xff]
  %v62 = vld [vmem:[%s1 + $0x80] sm:$0xff]
  %v63 = vld [vmem:[%s1 + $0x88] sm:$0xff]
  %v64 = vld [vmem:[%s1 + $0x90] sm:$0xff]
  %v65 = vld [vmem:[%s1 + $0x98] sm:$0xff]
  %v66 = vld [vmem:[%s1 + $0xa0] sm:$0xff]
  %v67 = vld [vmem:[%s1 + $0xa8] sm:$0xff]
  %v68 = vld [vmem:[%s1 + $0xb0] sm:$0xff]
  %v69 = vld [vmem:[%s1 + $0xb8] sm:$0xff]
  %v70 = vld [vmem:[%s1 + $0xc0] sm:$0xff]
  %v71 = vld [vmem:[%s1 + $0xc8] sm:$0xff]
  %v72 = vld [vmem:[%s1 + $0xd0] sm:$0xff]
  %v73 = vld [vmem:[%s1 + $0xd8] sm:$0xff]
  %v74 = vld [vmem:[%s1 + $0xe0] sm:$0xff]
  %v75 = vld [vmem:[%s1 + $0xe8] sm:$0xff]
  %v76 = vld [vmem:[%s1 + $0xf0] sm:$0xff]
  %v77 = vld [vmem:[%s1 + $0xf8] sm:$0xff]
  %v78 = vld [vmem:[%s2] sm:$0xff]
  %v79 = vld [vmem:[%s2 + $0x8] sm:$0xff]
  %v80 = vld [vmem:[%s2 + $0x10] sm:$0xff]
  %v81 = vld [vmem:[%s2 + $0x18] sm:$0xff]
  %v82 = vld [vmem:[%s2 + $0x20] sm:$0xff]
  %v83 = vld [vmem:[%s2 + $0x28] sm:$0xff]
  %v84 = vld [vmem:[%s2 + $0x30] sm:$0xff]
  %v85 = vld [vmem:[%s2 + $0x38] sm:$0xff]
  %v86 = vld [vmem:[%s2 + $0x40] sm:$0xff]
  %v87 = vld [vmem:[%s2 + $0x48] sm:$0xff]
  %v88 = vld [vmem:[%s2 + $0x50] sm:$0xff]
  %v89 = vld [vmem:[%s2 + $0x58] sm:$0xff]
  %v90 = vld [vmem:[%s2 + $0x60] sm:$0xff]
  %v91 = vld [vmem:[%s2 + $0x68] sm:$0xff]
  %v92 = vld [vmem:[%s2 + $0x70] sm:$0xff]
  %v93 = vld [vmem:[%s2 + $0x78] sm:$0xff]
  %v94 = vld [vmem:[%s2 + $0x80] sm:$0xff]
  %v95 = vld [vmem:[%s2 + $0x88] sm:$0xff]
  %v96 = vld [vmem:[%s2 + $0x90] sm:$0xff]
  %v97 = vld [vmem:[%s2 + $0x98] sm:$0xff]
  %v98 = vld [vmem:[%s2 + $0xa0] sm:$0xff]
  %v99 = vld [vmem:[%s2 + $0xa8] sm:$0xff]
  %v100 = vld [vmem:[%s2 + $0xb0] sm:$0xff]
  %v101 = vld [vmem:[%s2 + $0xb8] sm:$0xff]
  %v102 = vld [vmem:[%s2 + $0xc0] sm:$0xff]
  %v103 = vld [vmem:[%s2 + $0xc8] sm:$0xff]
  %v104 = vld [vmem:[%s2 + $0xd0] sm:$0xff]
  %v105 = vld [vmem:[%s2 + $0xd8] sm:$0xff]
  %v106 = vld [vmem:[%s2 + $0xe0] sm:$0xff]
  %v107 = vld [vmem:[%s2 + $0xe8] sm:$0xff]
  %v108 = vld [vmem:[%s2 + $0xf0] sm:$0xff]
  %v109 = vld [vmem:[%s2 + $0xf8] sm:$0xff]
  %vm110 = vcmask 64512
  %v112 = vsel %vm110, %v14, 0
  %v115 = vsel %vm110, %v46, 0
  %117 = vmatpush.xpose.msra.mxu0 0.0
  %118 = vmatpush.xpose.msra.mxu0 0.0
  %119 = vmatpush.xpose.msra.mxu0 0.0
  %120 = vmatpush.xpose.msra.mxu0 0.0
  %121 = vmatpush.xpose.msra.mxu0 0.0
  %122 = vmatpush.xpose.msra.mxu0 0.0
  %123 = vmatpush.xpose.msra.mxu0 0.0
  %124 = vmatpush.xpose.msra.mxu0 0.0
  %125 = vmatpush.xpose.msra.mxu0 0.0
  %126 = vmatpush.xpose.msra.mxu0 0.0
  %127 = vmatpush.xpose.msra.mxu0 0.0
  %128 = vmatpush.xpose.msra.mxu0 0.0
  %129 = vmatpush.xpose.msra.mxu0 0.0
  %130 = vmatpush.xpose.msra.mxu0 0.0
  %131 = vmatpush.xpose.msra.mxu0 0.0
  %132 = vmatpush.xpose.msra.mxu0 %v115
  %133 = vmatmul.f32.gmra.mxu0 %v112
  %v134 = vpop.f32.mrf.mxu0
  %v135 = vadd.f32 0.0, %v134
  %136 = vdwg.mxu0
  %v138 = vsel %vm110, %v15, 0
  %v141 = vsel %vm110, %v47, 0
  %143 = vmatpush.xpose.msra.mxu0 0.0
  %144 = vmatpush.xpose.msra.mxu0 0.0
  %145 = vmatpush.xpose.msra.mxu0 0.0
  %146 = vmatpush.xpose.msra.mxu0 0.0
  %147 = vmatpush.xpose.msra.mxu0 0.0
  %148 = vmatpush.xpose.msra.mxu0 0.0
  %149 = vmatpush.xpose.msra.mxu0 0.0
  %150 = vmatpush.xpose.msra.mxu0 0.0
  %151 = vmatpush.xpose.msra.mxu0 0.0
  %152 = vmatpush.xpose.msra.mxu0 0.0
  %153 = vmatpush.xpose.msra.mxu0 0.0
  %154 = vmatpush.xpose.msra.mxu0 0.0
  %155 = vmatpush.xpose.msra.mxu0 0.0
  %156 = vmatpush.xpose.msra.mxu0 0.0
  %157 = vmatpush.xpose.msra.mxu0 0.0
  %158 = vmatpush.xpose.msra.mxu0 %v141
  %159 = vmatmul.f32.gmra.mxu0 %v138
  %v160 = vpop.f32.mrf.mxu0
  %v161 = vadd.f32 0.0, %v160
  %162 = vdwg.mxu0
  %v164 = vsel %vm110, %v16, 0
  %v167 = vsel %vm110, %v48, 0
  %169 = vmatpush.xpose.msra.mxu0 0.0
  %170 = vmatpush.xpose.msra.mxu0 0.0
  %171 = vmatpush.xpose.msra.mxu0 0.0
  %172 = vmatpush.xpose.msra.mxu0 0.0
  %173 = vmatpush.xpose.msra.mxu0 0.0
  %174 = vmatpush.xpose.msra.mxu0 0.0
  %175 = vmatpush.xpose.msra.mxu0 0.0
  %176 = vmatpush.xpose.msra.mxu0 0.0
  %177 = vmatpush.xpose.msra.mxu0 0.0
  %178 = vmatpush.xpose.msra.mxu0 0.0
  %179 = vmatpush.xpose.msra.mxu0 0.0
  %180 = vmatpush.xpose.msra.mxu0 0.0
  %181 = vmatpush.xpose.msra.mxu0 0.0
  %182 = vmatpush.xpose.msra.mxu0 0.0
  %183 = vmatpush.xpose.msra.mxu0 0.0
  %184 = vmatpush.xpose.msra.mxu0 %v167
  %185 = vmatmul.f32.gmra.mxu0 %v164
  %v186 = vpop.f32.mrf.mxu0
  %v187 = vadd.f32 0.0, %v186
  %188 = vdwg.mxu0
  %v190 = vsel %vm110, %v17, 0
  %v193 = vsel %vm110, %v49, 0
  %195 = vmatpush.xpose.msra.mxu0 0.0
  %196 = vmatpush.xpose.msra.mxu0 0.0
  %197 = vmatpush.xpose.msra.mxu0 0.0
  %198 = vmatpush.xpose.msra.mxu0 0.0
  %199 = vmatpush.xpose.msra.mxu0 0.0
  %200 = vmatpush.xpose.msra.mxu0 0.0
  %201 = vmatpush.xpose.msra.mxu0 0.0
  %202 = vmatpush.xpose.msra.mxu0 0.0
  %203 = vmatpush.xpose.msra.mxu0 0.0
  %204 = vmatpush.xpose.msra.mxu0 0.0
  %205 = vmatpush.xpose.msra.mxu0 0.0
  %206 = vmatpush.xpose.msra.mxu0 0.0
  %207 = vmatpush.xpose.msra.mxu0 0.0
  %208 = vmatpush.xpose.msra.mxu0 0.0
  %209 = vmatpush.xpose.msra.mxu0 0.0
  %210 = vmatpush.xpose.msra.mxu0 %v193
  %211 = vmatmul.f32.gmra.mxu0 %v190
  %v212 = vpop.f32.mrf.mxu0
  %v213 = vadd.f32 0.0, %v212
  %214 = vdwg.mxu0
  %v216 = vsel %vm110, %v18, 0
  %v219 = vsel %vm110, %v50, 0
  %221 = vmatpush.xpose.msra.mxu0 0.0
  %222 = vmatpush.xpose.msra.mxu0 0.0
  %223 = vmatpush.xpose.msra.mxu0 0.0
  %224 = vmatpush.xpose.msra.mxu0 0.0
  %225 = vmatpush.xpose.msra.mxu0 0.0
  %226 = vmatpush.xpose.msra.mxu0 0.0
  %227 = vmatpush.xpose.msra.mxu0 0.0
  %228 = vmatpush.xpose.msra.mxu0 0.0
  %229 = vmatpush.xpose.msra.mxu0 0.0
  %230 = vmatpush.xpose.msra.mxu0 0.0
  %231 = vmatpush.xpose.msra.mxu0 0.0
  %232 = vmatpush.xpose.msra.mxu0 0.0
  %233 = vmatpush.xpose.msra.mxu0 0.0
  %234 = vmatpush.xpose.msra.mxu0 0.0
  %235 = vmatpush.xpose.msra.mxu0 0.0
  %236 = vmatpush.xpose.msra.mxu0 %v219
  %237 = vmatmul.f32.gmra.mxu0 %v216
  %v238 = vpop.f32.mrf.mxu0
  %v239 = vadd.f32 0.0, %v238
  %240 = vdwg.mxu0
  %v242 = vsel %vm110, %v19, 0
  %v245 = vsel %vm110, %v51, 0
  %247 = vmatpush.xpose.msra.mxu0 0.0
  %248 = vmatpush.xpose.msra.mxu0 0.0
  %249 = vmatpush.xpose.msra.mxu0 0.0
  %250 = vmatpush.xpose.msra.mxu0 0.0
  %251 = vmatpush.xpose.msra.mxu0 0.0
  %252 = vmatpush.xpose.msra.mxu0 0.0
  %253 = vmatpush.xpose.msra.mxu0 0.0
  %254 = vmatpush.xpose.msra.mxu0 0.0
  %255 = vmatpush.xpose.msra.mxu0 0.0
  %256 = vmatpush.xpose.msra.mxu0 0.0
  %257 = vmatpush.xpose.msra.mxu0 0.0
  %258 = vmatpush.xpose.msra.mxu0 0.0
  %259 = vmatpush.xpose.msra.mxu0 0.0
  %260 = vmatpush.xpose.msra.mxu0 0.0
  %261 = vmatpush.xpose.msra.mxu0 0.0
  %262 = vmatpush.xpose.msra.mxu0 %v245
  %263 = vmatmul.f32.gmra.mxu0 %v242
  %v264 = vpop.f32.mrf.mxu0
  %v265 = vadd.f32 0.0, %v264
  %266 = vdwg.mxu0
  %v268 = vsel %vm110, %v20, 0
  %v271 = vsel %vm110, %v52, 0
  %273 = vmatpush.xpose.msra.mxu0 0.0
  %274 = vmatpush.xpose.msra.mxu0 0.0
  %275 = vmatpush.xpose.msra.mxu0 0.0
  %276 = vmatpush.xpose.msra.mxu0 0.0
  %277 = vmatpush.xpose.msra.mxu0 0.0
  %278 = vmatpush.xpose.msra.mxu0 0.0
  %279 = vmatpush.xpose.msra.mxu0 0.0
  %280 = vmatpush.xpose.msra.mxu0 0.0
  %281 = vmatpush.xpose.msra.mxu0 0.0
  %282 = vmatpush.xpose.msra.mxu0 0.0
  %283 = vmatpush.xpose.msra.mxu0 0.0
  %284 = vmatpush.xpose.msra.mxu0 0.0
  %285 = vmatpush.xpose.msra.mxu0 0.0
  %286 = vmatpush.xpose.msra.mxu0 0.0
  %287 = vmatpush.xpose.msra.mxu0 0.0
  %288 = vmatpush.xpose.msra.mxu0 %v271
  %289 = vmatmul.f32.gmra.mxu0 %v268
  %v290 = vpop.f32.mrf.mxu0
  %v291 = vadd.f32 0.0, %v290
  %292 = vdwg.mxu0
  %v294 = vsel %vm110, %v21, 0
  %v297 = vsel %vm110, %v53, 0
  %299 = vmatpush.xpose.msra.mxu0 0.0
  %300 = vmatpush.xpose.msra.mxu0 0.0
  %301 = vmatpush.xpose.msra.mxu0 0.0
  %302 = vmatpush.xpose.msra.mxu0 0.0
  %303 = vmatpush.xpose.msra.mxu0 0.0
  %304 = vmatpush.xpose.msra.mxu0 0.0
  %305 = vmatpush.xpose.msra.mxu0 0.0
  %306 = vmatpush.xpose.msra.mxu0 0.0
  %307 = vmatpush.xpose.msra.mxu0 0.0
  %308 = vmatpush.xpose.msra.mxu0 0.0
  %309 = vmatpush.xpose.msra.mxu0 0.0
  %310 = vmatpush.xpose.msra.mxu0 0.0
  %311 = vmatpush.xpose.msra.mxu0 0.0
  %312 = vmatpush.xpose.msra.mxu0 0.0
  %313 = vmatpush.xpose.msra.mxu0 0.0
  %314 = vmatpush.xpose.msra.mxu0 %v297
  %315 = vmatmul.f32.gmra.mxu0 %v294
  %v316 = vpop.f32.mrf.mxu0
  %v317 = vadd.f32 0.0, %v316
  %318 = vdwg.mxu0
  %v320 = vsel %vm110, %v22, 0
  %v323 = vsel %vm110, %v54, 0
  %325 = vmatpush.xpose.msra.mxu0 0.0
  %326 = vmatpush.xpose.msra.mxu0 0.0
  %327 = vmatpush.xpose.msra.mxu0 0.0
  %328 = vmatpush.xpose.msra.mxu0 0.0
  %329 = vmatpush.xpose.msra.mxu0 0.0
  %330 = vmatpush.xpose.msra.mxu0 0.0
  %331 = vmatpush.xpose.msra.mxu0 0.0
  %332 = vmatpush.xpose.msra.mxu0 0.0
  %333 = vmatpush.xpose.msra.mxu0 0.0
  %334 = vmatpush.xpose.msra.mxu0 0.0
  %335 = vmatpush.xpose.msra.mxu0 0.0
  %336 = vmatpush.xpose.msra.mxu0 0.0
  %337 = vmatpush.xpose.msra.mxu0 0.0
  %338 = vmatpush.xpose.msra.mxu0 0.0
  %339 = vmatpush.xpose.msra.mxu0 0.0
  %340 = vmatpush.xpose.msra.mxu0 %v323
  %341 = vmatmul.f32.gmra.mxu0 %v320
  %v342 = vpop.f32.mrf.mxu0
  %v343 = vadd.f32 0.0, %v342
  %344 = vdwg.mxu0
  %v346 = vsel %vm110, %v23, 0
  %v349 = vsel %vm110, %v55, 0
  %351 = vmatpush.xpose.msra.mxu0 0.0
  %352 = vmatpush.xpose.msra.mxu0 0.0
  %353 = vmatpush.xpose.msra.mxu0 0.0
  %354 = vmatpush.xpose.msra.mxu0 0.0
  %355 = vmatpush.xpose.msra.mxu0 0.0
  %356 = vmatpush.xpose.msra.mxu0 0.0
  %357 = vmatpush.xpose.msra.mxu0 0.0
  %358 = vmatpush.xpose.msra.mxu0 0.0
  %359 = vmatpush.xpose.msra.mxu0 0.0
  %360 = vmatpush.xpose.msra.mxu0 0.0
  %361 = vmatpush.xpose.msra.mxu0 0.0
  %362 = vmatpush.xpose.msra.mxu0 0.0
  %363 = vmatpush.xpose.msra.mxu0 0.0
  %364 = vmatpush.xpose.msra.mxu0 0.0
  %365 = vmatpush.xpose.msra.mxu0 0.0
  %366 = vmatpush.xpose.msra.mxu0 %v349
  %367 = vmatmul.f32.gmra.mxu0 %v346
  %v368 = vpop.f32.mrf.mxu0
  %v369 = vadd.f32 0.0, %v368
  %370 = vdwg.mxu0
  %v372 = vsel %vm110, %v24, 0
  %v375 = vsel %vm110, %v56, 0
  %377 = vmatpush.xpose.msra.mxu0 0.0
  %378 = vmatpush.xpose.msra.mxu0 0.0
  %379 = vmatpush.xpose.msra.mxu0 0.0
  %380 = vmatpush.xpose.msra.mxu0 0.0
  %381 = vmatpush.xpose.msra.mxu0 0.0
  %382 = vmatpush.xpose.msra.mxu0 0.0
  %383 = vmatpush.xpose.msra.mxu0 0.0
  %384 = vmatpush.xpose.msra.mxu0 0.0
  %385 = vmatpush.xpose.msra.mxu0 0.0
  %386 = vmatpush.xpose.msra.mxu0 0.0
  %387 = vmatpush.xpose.msra.mxu0 0.0
  %388 = vmatpush.xpose.msra.mxu0 0.0
  %389 = vmatpush.xpose.msra.mxu0 0.0
  %390 = vmatpush.xpose.msra.mxu0 0.0
  %391 = vmatpush.xpose.msra.mxu0 0.0
  %392 = vmatpush.xpose.msra.mxu0 %v375
  %393 = vmatmul.f32.gmra.mxu0 %v372
  %v394 = vpop.f32.mrf.mxu0
  %v395 = vadd.f32 0.0, %v394
  %396 = vdwg.mxu0
  %v398 = vsel %vm110, %v25, 0
  %v401 = vsel %vm110, %v57, 0
  %403 = vmatpush.xpose.msra.mxu0 0.0
  %404 = vmatpush.xpose.msra.mxu0 0.0
  %405 = vmatpush.xpose.msra.mxu0 0.0
  %406 = vmatpush.xpose.msra.mxu0 0.0
  %407 = vmatpush.xpose.msra.mxu0 0.0
  %408 = vmatpush.xpose.msra.mxu0 0.0
  %409 = vmatpush.xpose.msra.mxu0 0.0
  %410 = vmatpush.xpose.msra.mxu0 0.0
  %411 = vmatpush.xpose.msra.mxu0 0.0
  %412 = vmatpush.xpose.msra.mxu0 0.0
  %413 = vmatpush.xpose.msra.mxu0 0.0
  %414 = vmatpush.xpose.msra.mxu0 0.0
  %415 = vmatpush.xpose.msra.mxu0 0.0
  %416 = vmatpush.xpose.msra.mxu0 0.0
  %417 = vmatpush.xpose.msra.mxu0 0.0
  %418 = vmatpush.xpose.msra.mxu0 %v401
  %419 = vmatmul.f32.gmra.mxu0 %v398
  %v420 = vpop.f32.mrf.mxu0
  %v421 = vadd.f32 0.0, %v420
  %422 = vdwg.mxu0
  %v424 = vsel %vm110, %v26, 0
  %v427 = vsel %vm110, %v58, 0
  %429 = vmatpush.xpose.msra.mxu0 0.0
  %430 = vmatpush.xpose.msra.mxu0 0.0
  %431 = vmatpush.xpose.msra.mxu0 0.0
  %432 = vmatpush.xpose.msra.mxu0 0.0
  %433 = vmatpush.xpose.msra.mxu0 0.0
  %434 = vmatpush.xpose.msra.mxu0 0.0
  %435 = vmatpush.xpose.msra.mxu0 0.0
  %436 = vmatpush.xpose.msra.mxu0 0.0
  %437 = vmatpush.xpose.msra.mxu0 0.0
  %438 = vmatpush.xpose.msra.mxu0 0.0
  %439 = vmatpush.xpose.msra.mxu0 0.0
  %440 = vmatpush.xpose.msra.mxu0 0.0
  %441 = vmatpush.xpose.msra.mxu0 0.0
  %442 = vmatpush.xpose.msra.mxu0 0.0
  %443 = vmatpush.xpose.msra.mxu0 0.0
  %444 = vmatpush.xpose.msra.mxu0 %v427
  %445 = vmatmul.f32.gmra.mxu0 %v424
  %v446 = vpop.f32.mrf.mxu0
  %v447 = vadd.f32 0.0, %v446
  %448 = vdwg.mxu0
  %v450 = vsel %vm110, %v27, 0
  %v453 = vsel %vm110, %v59, 0
  %455 = vmatpush.xpose.msra.mxu0 0.0
  %456 = vmatpush.xpose.msra.mxu0 0.0
  %457 = vmatpush.xpose.msra.mxu0 0.0
  %458 = vmatpush.xpose.msra.mxu0 0.0
  %459 = vmatpush.xpose.msra.mxu0 0.0
  %460 = vmatpush.xpose.msra.mxu0 0.0
  %461 = vmatpush.xpose.msra.mxu0 0.0
  %462 = vmatpush.xpose.msra.mxu0 0.0
  %463 = vmatpush.xpose.msra.mxu0 0.0
  %464 = vmatpush.xpose.msra.mxu0 0.0
  %465 = vmatpush.xpose.msra.mxu0 0.0
  %466 = vmatpush.xpose.msra.mxu0 0.0
  %467 = vmatpush.xpose.msra.mxu0 0.0
  %468 = vmatpush.xpose.msra.mxu0 0.0
  %469 = vmatpush.xpose.msra.mxu0 0.0
  %470 = vmatpush.xpose.msra.mxu0 %v453
  %471 = vmatmul.f32.gmra.mxu0 %v450
  %v472 = vpop.f32.mrf.mxu0
  %v473 = vadd.f32 0.0, %v472
  %474 = vdwg.mxu0
  %v476 = vsel %vm110, %v28, 0
  %v479 = vsel %vm110, %v60, 0
  %481 = vmatpush.xpose.msra.mxu0 0.0
  %482 = vmatpush.xpose.msra.mxu0 0.0
  %483 = vmatpush.xpose.msra.mxu0 0.0
  %484 = vmatpush.xpose.msra.mxu0 0.0
  %485 = vmatpush.xpose.msra.mxu0 0.0
  %486 = vmatpush.xpose.msra.mxu0 0.0
  %487 = vmatpush.xpose.msra.mxu0 0.0
  %488 = vmatpush.xpose.msra.mxu0 0.0
  %489 = vmatpush.xpose.msra.mxu0 0.0
  %490 = vmatpush.xpose.msra.mxu0 0.0
  %491 = vmatpush.xpose.msra.mxu0 0.0
  %492 = vmatpush.xpose.msra.mxu0 0.0
  %493 = vmatpush.xpose.msra.mxu0 0.0
  %494 = vmatpush.xpose.msra.mxu0 0.0
  %495 = vmatpush.xpose.msra.mxu0 0.0
  %496 = vmatpush.xpose.msra.mxu0 %v479
  %497 = vmatmul.f32.gmra.mxu0 %v476
  %v498 = vpop.f32.mrf.mxu0
  %v499 = vadd.f32 0.0, %v498
  %500 = vdwg.mxu0
  %v502 = vsel %vm110, %v29, 0
  %v505 = vsel %vm110, %v61, 0
  %507 = vmatpush.xpose.msra.mxu0 0.0
  %508 = vmatpush.xpose.msra.mxu0 0.0
  %509 = vmatpush.xpose.msra.mxu0 0.0
  %510 = vmatpush.xpose.msra.mxu0 0.0
  %511 = vmatpush.xpose.msra.mxu0 0.0
  %512 = vmatpush.xpose.msra.mxu0 0.0
  %513 = vmatpush.xpose.msra.mxu0 0.0
  %514 = vmatpush.xpose.msra.mxu0 0.0
  %515 = vmatpush.xpose.msra.mxu0 0.0
  %516 = vmatpush.xpose.msra.mxu0 0.0
  %517 = vmatpush.xpose.msra.mxu0 0.0
  %518 = vmatpush.xpose.msra.mxu0 0.0
  %519 = vmatpush.xpose.msra.mxu0 0.0
  %520 = vmatpush.xpose.msra.mxu0 0.0
  %521 = vmatpush.xpose.msra.mxu0 0.0
  %522 = vmatpush.xpose.msra.mxu0 %v505
  %523 = vmatmul.f32.gmra.mxu0 %v502
  %v524 = vpop.f32.mrf.mxu0
  %v525 = vadd.f32 0.0, %v524
  %526 = vdwg.mxu0
  %v528 = vsel %vm110, %v30, 0
  %v531 = vsel %vm110, %v62, 0
  %533 = vmatpush.xpose.msra.mxu0 0.0
  %534 = vmatpush.xpose.msra.mxu0 0.0
  %535 = vmatpush.xpose.msra.mxu0 0.0
  %536 = vmatpush.xpose.msra.mxu0 0.0
  %537 = vmatpush.xpose.msra.mxu0 0.0
  %538 = vmatpush.xpose.msra.mxu0 0.0
  %539 = vmatpush.xpose.msra.mxu0 0.0
  %540 = vmatpush.xpose.msra.mxu0 0.0
  %541 = vmatpush.xpose.msra.mxu0 0.0
  %542 = vmatpush.xpose.msra.mxu0 0.0
  %543 = vmatpush.xpose.msra.mxu0 0.0
  %544 = vmatpush.xpose.msra.mxu0 0.0
  %545 = vmatpush.xpose.msra.mxu0 0.0
  %546 = vmatpush.xpose.msra.mxu0 0.0
  %547 = vmatpush.xpose.msra.mxu0 0.0
  %548 = vmatpush.xpose.msra.mxu0 %v531
  %549 = vmatmul.f32.gmra.mxu0 %v528
  %v550 = vpop.f32.mrf.mxu0
  %v551 = vadd.f32 0.0, %v550
  %552 = vdwg.mxu0
  %v554 = vsel %vm110, %v31, 0
  %v557 = vsel %vm110, %v63, 0
  %559 = vmatpush.xpose.msra.mxu0 0.0
  %560 = vmatpush.xpose.msra.mxu0 0.0
  %561 = vmatpush.xpose.msra.mxu0 0.0
  %562 = vmatpush.xpose.msra.mxu0 0.0
  %563 = vmatpush.xpose.msra.mxu0 0.0
  %564 = vmatpush.xpose.msra.mxu0 0.0
  %565 = vmatpush.xpose.msra.mxu0 0.0
  %566 = vmatpush.xpose.msra.mxu0 0.0
  %567 = vmatpush.xpose.msra.mxu0 0.0
  %568 = vmatpush.xpose.msra.mxu0 0.0
  %569 = vmatpush.xpose.msra.mxu0 0.0
  %570 = vmatpush.xpose.msra.mxu0 0.0
  %571 = vmatpush.xpose.msra.mxu0 0.0
  %572 = vmatpush.xpose.msra.mxu0 0.0
  %573 = vmatpush.xpose.msra.mxu0 0.0
  %574 = vmatpush.xpose.msra.mxu0 %v557
  %575 = vmatmul.f32.gmra.mxu0 %v554
  %v576 = vpop.f32.mrf.mxu0
  %v577 = vadd.f32 0.0, %v576
  %578 = vdwg.mxu0
  %v580 = vsel %vm110, %v32, 0
  %v583 = vsel %vm110, %v64, 0
  %585 = vmatpush.xpose.msra.mxu0 0.0
  %586 = vmatpush.xpose.msra.mxu0 0.0
  %587 = vmatpush.xpose.msra.mxu0 0.0
  %588 = vmatpush.xpose.msra.mxu0 0.0
  %589 = vmatpush.xpose.msra.mxu0 0.0
  %590 = vmatpush.xpose.msra.mxu0 0.0
  %591 = vmatpush.xpose.msra.mxu0 0.0
  %592 = vmatpush.xpose.msra.mxu0 0.0
  %593 = vmatpush.xpose.msra.mxu0 0.0
  %594 = vmatpush.xpose.msra.mxu0 0.0
  %595 = vmatpush.xpose.msra.mxu0 0.0
  %596 = vmatpush.xpose.msra.mxu0 0.0
  %597 = vmatpush.xpose.msra.mxu0 0.0
  %598 = vmatpush.xpose.msra.mxu0 0.0
  %599 = vmatpush.xpose.msra.mxu0 0.0
  %600 = vmatpush.xpose.msra.mxu0 %v583
  %601 = vmatmul.f32.gmra.mxu0 %v580
  %v602 = vpop.f32.mrf.mxu0
  %v603 = vadd.f32 0.0, %v602
  %604 = vdwg.mxu0
  %v606 = vsel %vm110, %v33, 0
  %v609 = vsel %vm110, %v65, 0
  %611 = vmatpush.xpose.msra.mxu0 0.0
  %612 = vmatpush.xpose.msra.mxu0 0.0
  %613 = vmatpush.xpose.msra.mxu0 0.0
  %614 = vmatpush.xpose.msra.mxu0 0.0
  %615 = vmatpush.xpose.msra.mxu0 0.0
  %616 = vmatpush.xpose.msra.mxu0 0.0
  %617 = vmatpush.xpose.msra.mxu0 0.0
  %618 = vmatpush.xpose.msra.mxu0 0.0
  %619 = vmatpush.xpose.msra.mxu0 0.0
  %620 = vmatpush.xpose.msra.mxu0 0.0
  %621 = vmatpush.xpose.msra.mxu0 0.0
  %622 = vmatpush.xpose.msra.mxu0 0.0
  %623 = vmatpush.xpose.msra.mxu0 0.0
  %624 = vmatpush.xpose.msra.mxu0 0.0
  %625 = vmatpush.xpose.msra.mxu0 0.0
  %626 = vmatpush.xpose.msra.mxu0 %v609
  %627 = vmatmul.f32.gmra.mxu0 %v606
  %v628 = vpop.f32.mrf.mxu0
  %v629 = vadd.f32 0.0, %v628
  %630 = vdwg.mxu0
  %v632 = vsel %vm110, %v34, 0
  %v635 = vsel %vm110, %v66, 0
  %637 = vmatpush.xpose.msra.mxu0 0.0
  %638 = vmatpush.xpose.msra.mxu0 0.0
  %639 = vmatpush.xpose.msra.mxu0 0.0
  %640 = vmatpush.xpose.msra.mxu0 0.0
  %641 = vmatpush.xpose.msra.mxu0 0.0
  %642 = vmatpush.xpose.msra.mxu0 0.0
  %643 = vmatpush.xpose.msra.mxu0 0.0
  %644 = vmatpush.xpose.msra.mxu0 0.0
  %645 = vmatpush.xpose.msra.mxu0 0.0
  %646 = vmatpush.xpose.msra.mxu0 0.0
  %647 = vmatpush.xpose.msra.mxu0 0.0
  %648 = vmatpush.xpose.msra.mxu0 0.0
  %649 = vmatpush.xpose.msra.mxu0 0.0
  %650 = vmatpush.xpose.msra.mxu0 0.0
  %651 = vmatpush.xpose.msra.mxu0 0.0
  %652 = vmatpush.xpose.msra.mxu0 %v635
  %653 = vmatmul.f32.gmra.mxu0 %v632
  %v654 = vpop.f32.mrf.mxu0
  %v655 = vadd.f32 0.0, %v654
  %656 = vdwg.mxu0
  %v658 = vsel %vm110, %v35, 0
  %v661 = vsel %vm110, %v67, 0
  %663 = vmatpush.xpose.msra.mxu0 0.0
  %664 = vmatpush.xpose.msra.mxu0 0.0
  %665 = vmatpush.xpose.msra.mxu0 0.0
  %666 = vmatpush.xpose.msra.mxu0 0.0
  %667 = vmatpush.xpose.msra.mxu0 0.0
  %668 = vmatpush.xpose.msra.mxu0 0.0
  %669 = vmatpush.xpose.msra.mxu0 0.0
  %670 = vmatpush.xpose.msra.mxu0 0.0
  %671 = vmatpush.xpose.msra.mxu0 0.0
  %672 = vmatpush.xpose.msra.mxu0 0.0
  %673 = vmatpush.xpose.msra.mxu0 0.0
  %674 = vmatpush.xpose.msra.mxu0 0.0
  %675 = vmatpush.xpose.msra.mxu0 0.0
  %676 = vmatpush.xpose.msra.mxu0 0.0
  %677 = vmatpush.xpose.msra.mxu0 0.0
  %678 = vmatpush.xpose.msra.mxu0 %v661
  %679 = vmatmul.f32.gmra.mxu0 %v658
  %v680 = vpop.f32.mrf.mxu0
  %v681 = vadd.f32 0.0, %v680
  %682 = vdwg.mxu0
  %v684 = vsel %vm110, %v36, 0
  %v687 = vsel %vm110, %v68, 0
  %689 = vmatpush.xpose.msra.mxu0 0.0
  %690 = vmatpush.xpose.msra.mxu0 0.0
  %691 = vmatpush.xpose.msra.mxu0 0.0
  %692 = vmatpush.xpose.msra.mxu0 0.0
  %693 = vmatpush.xpose.msra.mxu0 0.0
  %694 = vmatpush.xpose.msra.mxu0 0.0
  %695 = vmatpush.xpose.msra.mxu0 0.0
  %696 = vmatpush.xpose.msra.mxu0 0.0
  %697 = vmatpush.xpose.msra.mxu0 0.0
  %698 = vmatpush.xpose.msra.mxu0 0.0
  %699 = vmatpush.xpose.msra.mxu0 0.0
  %700 = vmatpush.xpose.msra.mxu0 0.0
  %701 = vmatpush.xpose.msra.mxu0 0.0
  %702 = vmatpush.xpose.msra.mxu0 0.0
  %703 = vmatpush.xpose.msra.mxu0 0.0
  %704 = vmatpush.xpose.msra.mxu0 %v687
  %705 = vmatmul.f32.gmra.mxu0 %v684
  %v706 = vpop.f32.mrf.mxu0
  %v707 = vadd.f32 0.0, %v706
  %708 = vdwg.mxu0
  %v710 = vsel %vm110, %v37, 0
  %v713 = vsel %vm110, %v69, 0
  %715 = vmatpush.xpose.msra.mxu0 0.0
  %716 = vmatpush.xpose.msra.mxu0 0.0
  %717 = vmatpush.xpose.msra.mxu0 0.0
  %718 = vmatpush.xpose.msra.mxu0 0.0
  %719 = vmatpush.xpose.msra.mxu0 0.0
  %720 = vmatpush.xpose.msra.mxu0 0.0
  %721 = vmatpush.xpose.msra.mxu0 0.0
  %722 = vmatpush.xpose.msra.mxu0 0.0
  %723 = vmatpush.xpose.msra.mxu0 0.0
  %724 = vmatpush.xpose.msra.mxu0 0.0
  %725 = vmatpush.xpose.msra.mxu0 0.0
  %726 = vmatpush.xpose.msra.mxu0 0.0
  %727 = vmatpush.xpose.msra.mxu0 0.0
  %728 = vmatpush.xpose.msra.mxu0 0.0
  %729 = vmatpush.xpose.msra.mxu0 0.0
  %730 = vmatpush.xpose.msra.mxu0 %v713
  %731 = vmatmul.f32.gmra.mxu0 %v710
  %v732 = vpop.f32.mrf.mxu0
  %v733 = vadd.f32 0.0, %v732
  %734 = vdwg.mxu0
  %v736 = vsel %vm110, %v38, 0
  %v739 = vsel %vm110, %v70, 0
  %741 = vmatpush.xpose.msra.mxu0 0.0
  %742 = vmatpush.xpose.msra.mxu0 0.0
  %743 = vmatpush.xpose.msra.mxu0 0.0
  %744 = vmatpush.xpose.msra.mxu0 0.0
  %745 = vmatpush.xpose.msra.mxu0 0.0
  %746 = vmatpush.xpose.msra.mxu0 0.0
  %747 = vmatpush.xpose.msra.mxu0 0.0
  %748 = vmatpush.xpose.msra.mxu0 0.0
  %749 = vmatpush.xpose.msra.mxu0 0.0
  %750 = vmatpush.xpose.msra.mxu0 0.0
  %751 = vmatpush.xpose.msra.mxu0 0.0
  %752 = vmatpush.xpose.msra.mxu0 0.0
  %753 = vmatpush.xpose.msra.mxu0 0.0
  %754 = vmatpush.xpose.msra.mxu0 0.0
  %755 = vmatpush.xpose.msra.mxu0 0.0
  %756 = vmatpush.xpose.msra.mxu0 %v739
  %757 = vmatmul.f32.gmra.mxu0 %v736
  %v758 = vpop.f32.mrf.mxu0
  %v759 = vadd.f32 0.0, %v758
  %760 = vdwg.mxu0
  %v762 = vsel %vm110, %v39, 0
  %v765 = vsel %vm110, %v71, 0
  %767 = vmatpush.xpose.msra.mxu0 0.0
  %768 = vmatpush.xpose.msra.mxu0 0.0
  %769 = vmatpush.xpose.msra.mxu0 0.0
  %770 = vmatpush.xpose.msra.mxu0 0.0
  %771 = vmatpush.xpose.msra.mxu0 0.0
  %772 = vmatpush.xpose.msra.mxu0 0.0
  %773 = vmatpush.xpose.msra.mxu0 0.0
  %774 = vmatpush.xpose.msra.mxu0 0.0
  %775 = vmatpush.xpose.msra.mxu0 0.0
  %776 = vmatpush.xpose.msra.mxu0 0.0
  %777 = vmatpush.xpose.msra.mxu0 0.0
  %778 = vmatpush.xpose.msra.mxu0 0.0
  %779 = vmatpush.xpose.msra.mxu0 0.0
  %780 = vmatpush.xpose.msra.mxu0 0.0
  %781 = vmatpush.xpose.msra.mxu0 0.0
  %782 = vmatpush.xpose.msra.mxu0 %v765
  %783 = vmatmul.f32.gmra.mxu0 %v762
  %v784 = vpop.f32.mrf.mxu0
  %v785 = vadd.f32 0.0, %v784
  %786 = vdwg.mxu0
  %v788 = vsel %vm110, %v40, 0
  %v791 = vsel %vm110, %v72, 0
  %793 = vmatpush.xpose.msra.mxu0 0.0
  %794 = vmatpush.xpose.msra.mxu0 0.0
  %795 = vmatpush.xpose.msra.mxu0 0.0
  %796 = vmatpush.xpose.msra.mxu0 0.0
  %797 = vmatpush.xpose.msra.mxu0 0.0
  %798 = vmatpush.xpose.msra.mxu0 0.0
  %799 = vmatpush.xpose.msra.mxu0 0.0
  %800 = vmatpush.xpose.msra.mxu0 0.0
  %801 = vmatpush.xpose.msra.mxu0 0.0
  %802 = vmatpush.xpose.msra.mxu0 0.0
  %803 = vmatpush.xpose.msra.mxu0 0.0
  %804 = vmatpush.xpose.msra.mxu0 0.0
  %805 = vmatpush.xpose.msra.mxu0 0.0
  %806 = vmatpush.xpose.msra.mxu0 0.0
  %807 = vmatpush.xpose.msra.mxu0 0.0
  %808 = vmatpush.xpose.msra.mxu0 %v791
  %809 = vmatmul.f32.gmra.mxu0 %v788
  %v810 = vpop.f32.mrf.mxu0
  %v811 = vadd.f32 0.0, %v810
  %812 = vdwg.mxu0
  %v814 = vsel %vm110, %v41, 0
  %v817 = vsel %vm110, %v73, 0
  %819 = vmatpush.xpose.msra.mxu0 0.0
  %820 = vmatpush.xpose.msra.mxu0 0.0
  %821 = vmatpush.xpose.msra.mxu0 0.0
  %822 = vmatpush.xpose.msra.mxu0 0.0
  %823 = vmatpush.xpose.msra.mxu0 0.0
  %824 = vmatpush.xpose.msra.mxu0 0.0
  %825 = vmatpush.xpose.msra.mxu0 0.0
  %826 = vmatpush.xpose.msra.mxu0 0.0
  %827 = vmatpush.xpose.msra.mxu0 0.0
  %828 = vmatpush.xpose.msra.mxu0 0.0
  %829 = vmatpush.xpose.msra.mxu0 0.0
  %830 = vmatpush.xpose.msra.mxu0 0.0
  %831 = vmatpush.xpose.msra.mxu0 0.0
  %832 = vmatpush.xpose.msra.mxu0 0.0
  %833 = vmatpush.xpose.msra.mxu0 0.0
  %834 = vmatpush.xpose.msra.mxu0 %v817
  %835 = vmatmul.f32.gmra.mxu0 %v814
  %v836 = vpop.f32.mrf.mxu0
  %v837 = vadd.f32 0.0, %v836
  %838 = vdwg.mxu0
  %v840 = vsel %vm110, %v42, 0
  %v843 = vsel %vm110, %v74, 0
  %845 = vmatpush.xpose.msra.mxu0 0.0
  %846 = vmatpush.xpose.msra.mxu0 0.0
  %847 = vmatpush.xpose.msra.mxu0 0.0
  %848 = vmatpush.xpose.msra.mxu0 0.0
  %849 = vmatpush.xpose.msra.mxu0 0.0
  %850 = vmatpush.xpose.msra.mxu0 0.0
  %851 = vmatpush.xpose.msra.mxu0 0.0
  %852 = vmatpush.xpose.msra.mxu0 0.0
  %853 = vmatpush.xpose.msra.mxu0 0.0
  %854 = vmatpush.xpose.msra.mxu0 0.0
  %855 = vmatpush.xpose.msra.mxu0 0.0
  %856 = vmatpush.xpose.msra.mxu0 0.0
  %857 = vmatpush.xpose.msra.mxu0 0.0
  %858 = vmatpush.xpose.msra.mxu0 0.0
  %859 = vmatpush.xpose.msra.mxu0 0.0
  %860 = vmatpush.xpose.msra.mxu0 %v843
  %861 = vmatmul.f32.gmra.mxu0 %v840
  %v862 = vpop.f32.mrf.mxu0
  %v863 = vadd.f32 0.0, %v862
  %864 = vdwg.mxu0
  %v866 = vsel %vm110, %v43, 0
  %v869 = vsel %vm110, %v75, 0
  %871 = vmatpush.xpose.msra.mxu0 0.0
  %872 = vmatpush.xpose.msra.mxu0 0.0
  %873 = vmatpush.xpose.msra.mxu0 0.0
  %874 = vmatpush.xpose.msra.mxu0 0.0
  %875 = vmatpush.xpose.msra.mxu0 0.0
  %876 = vmatpush.xpose.msra.mxu0 0.0
  %877 = vmatpush.xpose.msra.mxu0 0.0
  %878 = vmatpush.xpose.msra.mxu0 0.0
  %879 = vmatpush.xpose.msra.mxu0 0.0
  %880 = vmatpush.xpose.msra.mxu0 0.0
  %881 = vmatpush.xpose.msra.mxu0 0.0
  %882 = vmatpush.xpose.msra.mxu0 0.0
  %883 = vmatpush.xpose.msra.mxu0 0.0
  %884 = vmatpush.xpose.msra.mxu0 0.0
  %885 = vmatpush.xpose.msra.mxu0 0.0
  %886 = vmatpush.xpose.msra.mxu0 %v869
  %887 = vmatmul.f32.gmra.mxu0 %v866
  %v888 = vpop.f32.mrf.mxu0
  %v889 = vadd.f32 0.0, %v888
  %890 = vdwg.mxu0
  %v892 = vsel %vm110, %v44, 0
  %v895 = vsel %vm110, %v76, 0
  %897 = vmatpush.xpose.msra.mxu0 0.0
  %898 = vmatpush.xpose.msra.mxu0 0.0
  %899 = vmatpush.xpose.msra.mxu0 0.0
  %900 = vmatpush.xpose.msra.mxu0 0.0
  %901 = vmatpush.xpose.msra.mxu0 0.0
  %902 = vmatpush.xpose.msra.mxu0 0.0
  %903 = vmatpush.xpose.msra.mxu0 0.0
  %904 = vmatpush.xpose.msra.mxu0 0.0
  %905 = vmatpush.xpose.msra.mxu0 0.0
  %906 = vmatpush.xpose.msra.mxu0 0.0
  %907 = vmatpush.xpose.msra.mxu0 0.0
  %908 = vmatpush.xpose.msra.mxu0 0.0
  %909 = vmatpush.xpose.msra.mxu0 0.0
  %910 = vmatpush.xpose.msra.mxu0 0.0
  %911 = vmatpush.xpose.msra.mxu0 0.0
  %912 = vmatpush.xpose.msra.mxu0 %v895
  %913 = vmatmul.f32.gmra.mxu0 %v892
  %v914 = vpop.f32.mrf.mxu0
  %v915 = vadd.f32 0.0, %v914
  %916 = vdwg.mxu0
  %v918 = vsel %vm110, %v45, 0
  %v921 = vsel %vm110, %v77, 0
  %923 = vmatpush.xpose.msra.mxu0 0.0
  %924 = vmatpush.xpose.msra.mxu0 0.0
  %925 = vmatpush.xpose.msra.mxu0 0.0
  %926 = vmatpush.xpose.msra.mxu0 0.0
  %927 = vmatpush.xpose.msra.mxu0 0.0
  %928 = vmatpush.xpose.msra.mxu0 0.0
  %929 = vmatpush.xpose.msra.mxu0 0.0
  %930 = vmatpush.xpose.msra.mxu0 0.0
  %931 = vmatpush.xpose.msra.mxu0 0.0
  %932 = vmatpush.xpose.msra.mxu0 0.0
  %933 = vmatpush.xpose.msra.mxu0 0.0
  %934 = vmatpush.xpose.msra.mxu0 0.0
  %935 = vmatpush.xpose.msra.mxu0 0.0
  %936 = vmatpush.xpose.msra.mxu0 0.0
  %937 = vmatpush.xpose.msra.mxu0 0.0
  %938 = vmatpush.xpose.msra.mxu0 %v921
  %939 = vmatmul.f32.gmra.mxu0 %v918
  %v940 = vpop.f32.mrf.mxu0
  %v941 = vadd.f32 0.0, %v940
  %942 = vdwg.mxu0
  %v943 = vmul.f32 %v135, 0.35355338
  %v944 = vmul.f32 %v161, 0.35355338
  %v945 = vmul.f32 %v187, 0.35355338
  %v946 = vmul.f32 %v213, 0.35355338
  %v947 = vmul.f32 %v239, 0.35355338
  %v948 = vmul.f32 %v265, 0.35355338
  %v949 = vmul.f32 %v291, 0.35355338
  %v950 = vmul.f32 %v317, 0.35355338
  %v951 = vmul.f32 %v343, 0.35355338
  %v952 = vmul.f32 %v369, 0.35355338
  %v953 = vmul.f32 %v395, 0.35355338
  %v954 = vmul.f32 %v421, 0.35355338
  %v955 = vmul.f32 %v447, 0.35355338
  %v956 = vmul.f32 %v473, 0.35355338
  %v957 = vmul.f32 %v499, 0.35355338
  %v958 = vmul.f32 %v525, 0.35355338
  %v959 = vmul.f32 %v551, 0.35355338
  %v960 = vmul.f32 %v577, 0.35355338
  %v961 = vmul.f32 %v603, 0.35355338
  %v962 = vmul.f32 %v629, 0.35355338
  %v963 = vmul.f32 %v655, 0.35355338
  %v964 = vmul.f32 %v681, 0.35355338
  %v965 = vmul.f32 %v707, 0.35355338
  %v966 = vmul.f32 %v733, 0.35355338
  %v967 = vmul.f32 %v759, 0.35355338
  %v968 = vmul.f32 %v785, 0.35355338
  %v969 = vmul.f32 %v811, 0.35355338
  %v970 = vmul.f32 %v837, 0.35355338
  %v971 = vmul.f32 %v863, 0.35355338
  %v972 = vmul.f32 %v889, 0.35355338
  %v973 = vmul.f32 %v915, 0.35355338
  %v974 = vmul.f32 %v941, 0.35355338
  %v975 = vsel %vm110, %v943, -inf
  %976 = vmax.xlane.f32.xlu0 %v975
  %v977 = vpop.xlane.xlu0 %976
  %v978 = vsel %vm110, %v944, -inf
  %979 = vmax.xlane.f32.xlu0 %v978
  %v980 = vpop.xlane.xlu0 %979
  %v981 = vsel %vm110, %v945, -inf
  %982 = vmax.xlane.f32.xlu0 %v981
  %v983 = vpop.xlane.xlu0 %982
  %v984 = vsel %vm110, %v946, -inf
  %985 = vmax.xlane.f32.xlu0 %v984
  %v986 = vpop.xlane.xlu0 %985
  %v987 = vsel %vm110, %v947, -inf
  %988 = vmax.xlane.f32.xlu0 %v987
  %v989 = vpop.xlane.xlu0 %988
  %v990 = vsel %vm110, %v948, -inf
  %991 = vmax.xlane.f32.xlu0 %v990
  %v992 = vpop.xlane.xlu0 %991
  %v993 = vsel %vm110, %v949, -inf
  %994 = vmax.xlane.f32.xlu0 %v993
  %v995 = vpop.xlane.xlu0 %994
  %v996 = vsel %vm110, %v950, -inf
  %997 = vmax.xlane.f32.xlu0 %v996
  %v998 = vpop.xlane.xlu0 %997
  %v999 = vsel %vm110, %v951, -inf
  %1000 = vmax.xlane.f32.xlu0 %v999
  %v1001 = vpop.xlane.xlu0 %1000
  %v1002 = vsel %vm110, %v952, -inf
  %1003 = vmax.xlane.f32.xlu0 %v1002
  %v1004 = vpop.xlane.xlu0 %1003
  %v1005 = vsel %vm110, %v953, -inf
  %1006 = vmax.xlane.f32.xlu0 %v1005
  %v1007 = vpop.xlane.xlu0 %1006
  %v1008 = vsel %vm110, %v954, -inf
  %1009 = vmax.xlane.f32.xlu0 %v1008
  %v1010 = vpop.xlane.xlu0 %1009
  %v1011 = vsel %vm110, %v955, -inf
  %1012 = vmax.xlane.f32.xlu0 %v1011
  %v1013 = vpop.xlane.xlu0 %1012
  %v1014 = vsel %vm110, %v956, -inf
  %1015 = vmax.xlane.f32.xlu0 %v1014
  %v1016 = vpop.xlane.xlu0 %1015
  %v1017 = vsel %vm110, %v957, -inf
  %1018 = vmax.xlane.f32.xlu0 %v1017
  %v1019 = vpop.xlane.xlu0 %1018
  %v1020 = vsel %vm110, %v958, -inf
  %1021 = vmax.xlane.f32.xlu0 %v1020
  %v1022 = vpop.xlane.xlu0 %1021
  %v1023 = vsel %vm110, %v959, -inf
  %1024 = vmax.xlane.f32.xlu0 %v1023
  %v1025 = vpop.xlane.xlu0 %1024
  %v1026 = vsel %vm110, %v960, -inf
  %1027 = vmax.xlane.f32.xlu0 %v1026
  %v1028 = vpop.xlane.xlu0 %1027
  %v1029 = vsel %vm110, %v961, -inf
  %1030 = vmax.xlane.f32.xlu0 %v1029
  %v1031 = vpop.xlane.xlu0 %1030
  %v1032 = vsel %vm110, %v962, -inf
  %1033 = vmax.xlane.f32.xlu0 %v1032
  %v1034 = vpop.xlane.xlu0 %1033
  %v1035 = vsel %vm110, %v963, -inf
  %1036 = vmax.xlane.f32.xlu0 %v1035
  %v1037 = vpop.xlane.xlu0 %1036
  %v1038 = vsel %vm110, %v964, -inf
  %1039 = vmax.xlane.f32.xlu0 %v1038
  %v1040 = vpop.xlane.xlu0 %1039
  %v1041 = vsel %vm110, %v965, -inf
  %1042 = vmax.xlane.f32.xlu0 %v1041
  %v1043 = vpop.xlane.xlu0 %1042
  %v1044 = vsel %vm110, %v966, -inf
  %1045 = vmax.xlane.f32.xlu0 %v1044
  %v1046 = vpop.xlane.xlu0 %1045
  %v1047 = vsel %vm110, %v967, -inf
  %1048 = vmax.xlane.f32.xlu0 %v1047
  %v1049 = vpop.xlane.xlu0 %1048
  %v1050 = vsel %vm110, %v968, -inf
  %1051 = vmax.xlane.f32.xlu0 %v1050
  %v1052 = vpop.xlane.xlu0 %1051
  %v1053 = vsel %vm110, %v969, -inf
  %1054 = vmax.xlane.f32.xlu0 %v1053
  %v1055 = vpop.xlane.xlu0 %1054
  %v1056 = vsel %vm110, %v970, -inf
  %1057 = vmax.xlane.f32.xlu0 %v1056
  %v1058 = vpop.xlane.xlu0 %1057
  %v1059 = vsel %vm110, %v971, -inf
  %1060 = vmax.xlane.f32.xlu0 %v1059
  %v1061 = vpop.xlane.xlu0 %1060
  %v1062 = vsel %vm110, %v972, -inf
  %1063 = vmax.xlane.f32.xlu0 %v1062
  %v1064 = vpop.xlane.xlu0 %1063
  %v1065 = vsel %vm110, %v973, -inf
  %1066 = vmax.xlane.f32.xlu0 %v1065
  %v1067 = vpop.xlane.xlu0 %1066
  %v1068 = vsel %vm110, %v974, -inf
  %1069 = vmax.xlane.f32.xlu0 %v1068
  %v1070 = vpop.xlane.xlu0 %1069
  %v1071 = vsub.f32 %v943, %v977
  %v1072 = vsub.f32 %v944, %v980
  %v1073 = vsub.f32 %v945, %v983
  %v1074 = vsub.f32 %v946, %v986
  %v1075 = vsub.f32 %v947, %v989
  %v1076 = vsub.f32 %v948, %v992
  %v1077 = vsub.f32 %v949, %v995
  %v1078 = vsub.f32 %v950, %v998
  %v1079 = vsub.f32 %v951, %v1001
  %v1080 = vsub.f32 %v952, %v1004
  %v1081 = vsub.f32 %v953, %v1007
  %v1082 = vsub.f32 %v954, %v1010
  %v1083 = vsub.f32 %v955, %v1013
  %v1084 = vsub.f32 %v956, %v1016
  %v1085 = vsub.f32 %v957, %v1019
  %v1086 = vsub.f32 %v958, %v1022
  %v1087 = vsub.f32 %v959, %v1025
  %v1088 = vsub.f32 %v960, %v1028
  %v1089 = vsub.f32 %v961, %v1031
  %v1090 = vsub.f32 %v962, %v1034
  %v1091 = vsub.f32 %v963, %v1037
  %v1092 = vsub.f32 %v964, %v1040
  %v1093 = vsub.f32 %v965, %v1043
  %v1094 = vsub.f32 %v966, %v1046
  %v1095 = vsub.f32 %v967, %v1049
  %v1096 = vsub.f32 %v968, %v1052
  %v1097 = vsub.f32 %v969, %v1055
  %v1098 = vsub.f32 %v970, %v1058
  %v1099 = vsub.f32 %v971, %v1061
  %v1100 = vsub.f32 %v972, %v1064
  %v1101 = vsub.f32 %v973, %v1067
  %v1102 = vsub.f32 %v974, %v1070
  %v1103 = vmul.f32 %v1071, 1.442695
  %v1104 = vpow.pop %v1103
  %v1105 = vmul.f32 %v1072, 1.442695
  %v1106 = vpow.pop %v1105
  %v1107 = vmul.f32 %v1073, 1.442695
  %v1108 = vpow.pop %v1107
  %v1109 = vmul.f32 %v1074, 1.442695
  %v1110 = vpow.pop %v1109
  %v1111 = vmul.f32 %v1075, 1.442695
  %v1112 = vpow.pop %v1111
  %v1113 = vmul.f32 %v1076, 1.442695
  %v1114 = vpow.pop %v1113
  %v1115 = vmul.f32 %v1077, 1.442695
  %v1116 = vpow.pop %v1115
  %v1117 = vmul.f32 %v1078, 1.442695
  %v1118 = vpow.pop %v1117
  %v1119 = vmul.f32 %v1079, 1.442695
  %v1120 = vpow.pop %v1119
  %v1121 = vmul.f32 %v1080, 1.442695
  %v1122 = vpow.pop %v1121
  %v1123 = vmul.f32 %v1081, 1.442695
  %v1124 = vpow.pop %v1123
  %v1125 = vmul.f32 %v1082, 1.442695
  %v1126 = vpow.pop %v1125
  %v1127 = vmul.f32 %v1083, 1.442695
  %v1128 = vpow.pop %v1127
  %v1129 = vmul.f32 %v1084, 1.442695
  %v1130 = vpow.pop %v1129
  %v1131 = vmul.f32 %v1085, 1.442695
  %v1132 = vpow.pop %v1131
  %v1133 = vmul.f32 %v1086, 1.442695
  %v1134 = vpow.pop %v1133
  %v1135 = vmul.f32 %v1087, 1.442695
  %v1136 = vpow.pop %v1135
  %v1137 = vmul.f32 %v1088, 1.442695
  %v1138 = vpow.pop %v1137
  %v1139 = vmul.f32 %v1089, 1.442695
  %v1140 = vpow.pop %v1139
  %v1141 = vmul.f32 %v1090, 1.442695
  %v1142 = vpow.pop %v1141
  %v1143 = vmul.f32 %v1091, 1.442695
  %v1144 = vpow.pop %v1143
  %v1145 = vmul.f32 %v1092, 1.442695
  %v1146 = vpow.pop %v1145
  %v1147 = vmul.f32 %v1093, 1.442695
  %v1148 = vpow.pop %v1147
  %v1149 = vmul.f32 %v1094, 1.442695
  %v1150 = vpow.pop %v1149
  %v1151 = vmul.f32 %v1095, 1.442695
  %v1152 = vpow.pop %v1151
  %v1153 = vmul.f32 %v1096, 1.442695
  %v1154 = vpow.pop %v1153
  %v1155 = vmul.f32 %v1097, 1.442695
  %v1156 = vpow.pop %v1155
  %v1157 = vmul.f32 %v1098, 1.442695
  %v1158 = vpow.pop %v1157
  %v1159 = vmul.f32 %v1099, 1.442695
  %v1160 = vpow.pop %v1159
  %v1161 = vmul.f32 %v1100, 1.442695
  %v1162 = vpow.pop %v1161
  %v1163 = vmul.f32 %v1101, 1.442695
  %v1164 = vpow.pop %v1163
  %v1165 = vmul.f32 %v1102, 1.442695
  %v1166 = vpow.pop %v1165
  %v1167 = vsel %vm110, %v1104, 0.0
  %1168 = vadd.xlane.f32.xlu0 %v1167
  %v1169 = vpop.xlane.xlu0 %1168
  %v1170 = vsel %vm110, %v1106, 0.0
  %1171 = vadd.xlane.f32.xlu0 %v1170
  %v1172 = vpop.xlane.xlu0 %1171
  %v1173 = vsel %vm110, %v1108, 0.0
  %1174 = vadd.xlane.f32.xlu0 %v1173
  %v1175 = vpop.xlane.xlu0 %1174
  %v1176 = vsel %vm110, %v1110, 0.0
  %1177 = vadd.xlane.f32.xlu0 %v1176
  %v1178 = vpop.xlane.xlu0 %1177
  %v1179 = vsel %vm110, %v1112, 0.0
  %1180 = vadd.xlane.f32.xlu0 %v1179
  %v1181 = vpop.xlane.xlu0 %1180
  %v1182 = vsel %vm110, %v1114, 0.0
  %1183 = vadd.xlane.f32.xlu0 %v1182
  %v1184 = vpop.xlane.xlu0 %1183
  %v1185 = vsel %vm110, %v1116, 0.0
  %1186 = vadd.xlane.f32.xlu0 %v1185
  %v1187 = vpop.xlane.xlu0 %1186
  %v1188 = vsel %vm110, %v1118, 0.0
  %1189 = vadd.xlane.f32.xlu0 %v1188
  %v1190 = vpop.xlane.xlu0 %1189
  %v1191 = vsel %vm110, %v1120, 0.0
  %1192 = vadd.xlane.f32.xlu0 %v1191
  %v1193 = vpop.xlane.xlu0 %1192
  %v1194 = vsel %vm110, %v1122, 0.0
  %1195 = vadd.xlane.f32.xlu0 %v1194
  %v1196 = vpop.xlane.xlu0 %1195
  %v1197 = vsel %vm110, %v1124, 0.0
  %1198 = vadd.xlane.f32.xlu0 %v1197
  %v1199 = vpop.xlane.xlu0 %1198
  %v1200 = vsel %vm110, %v1126, 0.0
  %1201 = vadd.xlane.f32.xlu0 %v1200
  %v1202 = vpop.xlane.xlu0 %1201
  %v1203 = vsel %vm110, %v1128, 0.0
  %1204 = vadd.xlane.f32.xlu0 %v1203
  %v1205 = vpop.xlane.xlu0 %1204
  %v1206 = vsel %vm110, %v1130, 0.0
  %1207 = vadd.xlane.f32.xlu0 %v1206
  %v1208 = vpop.xlane.xlu0 %1207
  %v1209 = vsel %vm110, %v1132, 0.0
  %1210 = vadd.xlane.f32.xlu0 %v1209
  %v1211 = vpop.xlane.xlu0 %1210
  %v1212 = vsel %vm110, %v1134, 0.0
  %1213 = vadd.xlane.f32.xlu0 %v1212
  %v1214 = vpop.xlane.xlu0 %1213
  %v1215 = vsel %vm110, %v1136, 0.0
  %1216 = vadd.xlane.f32.xlu0 %v1215
  %v1217 = vpop.xlane.xlu0 %1216
  %v1218 = vsel %vm110, %v1138, 0.0
  %1219 = vadd.xlane.f32.xlu0 %v1218
  %v1220 = vpop.xlane.xlu0 %1219
  %v1221 = vsel %vm110, %v1140, 0.0
  %1222 = vadd.xlane.f32.xlu0 %v1221
  %v1223 = vpop.xlane.xlu0 %1222
  %v1224 = vsel %vm110, %v1142, 0.0
  %1225 = vadd.xlane.f32.xlu0 %v1224
  %v1226 = vpop.xlane.xlu0 %1225
  %v1227 = vsel %vm110, %v1144, 0.0
  %1228 = vadd.xlane.f32.xlu0 %v1227
  %v1229 = vpop.xlane.xlu0 %1228
  %v1230 = vsel %vm110, %v1146, 0.0
  %1231 = vadd.xlane.f32.xlu0 %v1230
  %v1232 = vpop.xlane.xlu0 %1231
  %v1233 = vsel %vm110, %v1148, 0.0
  %1234 = vadd.xlane.f32.xlu0 %v1233
  %v1235 = vpop.xlane.xlu0 %1234
  %v1236 = vsel %vm110, %v1150, 0.0
  %1237 = vadd.xlane.f32.xlu0 %v1236
  %v1238 = vpop.xlane.xlu0 %1237
  %v1239 = vsel %vm110, %v1152, 0.0
  %1240 = vadd.xlane.f32.xlu0 %v1239
  %v1241 = vpop.xlane.xlu0 %1240
  %v1242 = vsel %vm110, %v1154, 0.0
  %1243 = vadd.xlane.f32.xlu0 %v1242
  %v1244 = vpop.xlane.xlu0 %1243
  %v1245 = vsel %vm110, %v1156, 0.0
  %1246 = vadd.xlane.f32.xlu0 %v1245
  %v1247 = vpop.xlane.xlu0 %1246
  %v1248 = vsel %vm110, %v1158, 0.0
  %1249 = vadd.xlane.f32.xlu0 %v1248
  %v1250 = vpop.xlane.xlu0 %1249
  %v1251 = vsel %vm110, %v1160, 0.0
  %1252 = vadd.xlane.f32.xlu0 %v1251
  %v1253 = vpop.xlane.xlu0 %1252
  %v1254 = vsel %vm110, %v1162, 0.0
  %1255 = vadd.xlane.f32.xlu0 %v1254
  %v1256 = vpop.xlane.xlu0 %1255
  %v1257 = vsel %vm110, %v1164, 0.0
  %1258 = vadd.xlane.f32.xlu0 %v1257
  %v1259 = vpop.xlane.xlu0 %1258
  %v1260 = vsel %vm110, %v1166, 0.0
  %1261 = vadd.xlane.f32.xlu0 %v1260
  %v1262 = vpop.xlane.xlu0 %1261
  %v1263 = vrcp.pop %v1169
  %v1264 = vmul.f32 %v1169, %v1263
  %v1265 = vsub.f32 1.0, %v1264
  %v1266 = vmul.f32 %v1263, %v1265
  %v1267 = vadd.f32 %v1263, %v1266
  %vm1268 = vweird.f32 %v1169
  %vm1269 = vweird.f32 %v1263
  %vm1270 = vmor %vm1268, %vm1269
  %v1271 = vsel %vm1270, %v1263, %v1267
  %v1272 = vand.u32 2147483647, %v1169
  %vm1273 = vcmp.eq.f32.partialorder %v1272, 8.507059e+37
  %v1274 = vand.u32 %v1169, 2147483648
  %v1275 = vor.u32 1.1754944e-38, %v1274
  %v1276 = vsel %vm1273, %v1275, %v1271
  %v1277 = vmul.f32 %v1104, %v1276
  %v1278 = vrcp.pop %v1172
  %v1279 = vmul.f32 %v1172, %v1278
  %v1280 = vsub.f32 1.0, %v1279
  %v1281 = vmul.f32 %v1278, %v1280
  %v1282 = vadd.f32 %v1278, %v1281
  %vm1283 = vweird.f32 %v1172
  %vm1284 = vweird.f32 %v1278
  %vm1285 = vmor %vm1283, %vm1284
  %v1286 = vsel %vm1285, %v1278, %v1282
  %v1287 = vand.u32 2147483647, %v1172
  %vm1288 = vcmp.eq.f32.partialorder %v1287, 8.507059e+37
  %v1289 = vand.u32 %v1172, 2147483648
  %v1290 = vor.u32 1.1754944e-38, %v1289
  %v1291 = vsel %vm1288, %v1290, %v1286
  %v1292 = vmul.f32 %v1106, %v1291
  %v1293 = vrcp.pop %v1175
  %v1294 = vmul.f32 %v1175, %v1293
  %v1295 = vsub.f32 1.0, %v1294
  %v1296 = vmul.f32 %v1293, %v1295
  %v1297 = vadd.f32 %v1293, %v1296
  %vm1298 = vweird.f32 %v1175
  %vm1299 = vweird.f32 %v1293
  %vm1300 = vmor %vm1298, %vm1299
  %v1301 = vsel %vm1300, %v1293, %v1297
  %v1302 = vand.u32 2147483647, %v1175
  %vm1303 = vcmp.eq.f32.partialorder %v1302, 8.507059e+37
  %v1304 = vand.u32 %v1175, 2147483648
  %v1305 = vor.u32 1.1754944e-38, %v1304
  %v1306 = vsel %vm1303, %v1305, %v1301
  %v1307 = vmul.f32 %v1108, %v1306
  %v1308 = vrcp.pop %v1178
  %v1309 = vmul.f32 %v1178, %v1308
  %v1310 = vsub.f32 1.0, %v1309
  %v1311 = vmul.f32 %v1308, %v1310
  %v1312 = vadd.f32 %v1308, %v1311
  %vm1313 = vweird.f32 %v1178
  %vm1314 = vweird.f32 %v1308
  %vm1315 = vmor %vm1313, %vm1314
  %v1316 = vsel %vm1315, %v1308, %v1312
  %v1317 = vand.u32 2147483647, %v1178
  %vm1318 = vcmp.eq.f32.partialorder %v1317, 8.507059e+37
  %v1319 = vand.u32 %v1178, 2147483648
  %v1320 = vor.u32 1.1754944e-38, %v1319
  %v1321 = vsel %vm1318, %v1320, %v1316
  %v1322 = vmul.f32 %v1110, %v1321
  %v1323 = vrcp.pop %v1181
  %v1324 = vmul.f32 %v1181, %v1323
  %v1325 = vsub.f32 1.0, %v1324
  %v1326 = vmul.f32 %v1323, %v1325
  %v1327 = vadd.f32 %v1323, %v1326
  %vm1328 = vweird.f32 %v1181
  %vm1329 = vweird.f32 %v1323
  %vm1330 = vmor %vm1328, %vm1329
  %v1331 = vsel %vm1330, %v1323, %v1327
  %v1332 = vand.u32 2147483647, %v1181
  %vm1333 = vcmp.eq.f32.partialorder %v1332, 8.507059e+37
  %v1334 = vand.u32 %v1181, 2147483648
  %v1335 = vor.u32 1.1754944e-38, %v1334
  %v1336 = vsel %vm1333, %v1335, %v1331
  %v1337 = vmul.f32 %v1112, %v1336
  %v1338 = vrcp.pop %v1184
  %v1339 = vmul.f32 %v1184, %v1338
  %v1340 = vsub.f32 1.0, %v1339
  %v1341 = vmul.f32 %v1338, %v1340
  %v1342 = vadd.f32 %v1338, %v1341
  %vm1343 = vweird.f32 %v1184
  %vm1344 = vweird.f32 %v1338
  %vm1345 = vmor %vm1343, %vm1344
  %v1346 = vsel %vm1345, %v1338, %v1342
  %v1347 = vand.u32 2147483647, %v1184
  %vm1348 = vcmp.eq.f32.partialorder %v1347, 8.507059e+37
  %v1349 = vand.u32 %v1184, 2147483648
  %v1350 = vor.u32 1.1754944e-38, %v1349
  %v1351 = vsel %vm1348, %v1350, %v1346
  %v1352 = vmul.f32 %v1114, %v1351
  %v1353 = vrcp.pop %v1187
  %v1354 = vmul.f32 %v1187, %v1353
  %v1355 = vsub.f32 1.0, %v1354
  %v1356 = vmul.f32 %v1353, %v1355
  %v1357 = vadd.f32 %v1353, %v1356
  %vm1358 = vweird.f32 %v1187
  %vm1359 = vweird.f32 %v1353
  %vm1360 = vmor %vm1358, %vm1359
  %v1361 = vsel %vm1360, %v1353, %v1357
  %v1362 = vand.u32 2147483647, %v1187
  %vm1363 = vcmp.eq.f32.partialorder %v1362, 8.507059e+37
  %v1364 = vand.u32 %v1187, 2147483648
  %v1365 = vor.u32 1.1754944e-38, %v1364
  %v1366 = vsel %vm1363, %v1365, %v1361
  %v1367 = vmul.f32 %v1116, %v1366
  %v1368 = vrcp.pop %v1190
  %v1369 = vmul.f32 %v1190, %v1368
  %v1370 = vsub.f32 1.0, %v1369
  %v1371 = vmul.f32 %v1368, %v1370
  %v1372 = vadd.f32 %v1368, %v1371
  %vm1373 = vweird.f32 %v1190
  %vm1374 = vweird.f32 %v1368
  %vm1375 = vmor %vm1373, %vm1374
  %v1376 = vsel %vm1375, %v1368, %v1372
  %v1377 = vand.u32 2147483647, %v1190
  %vm1378 = vcmp.eq.f32.partialorder %v1377, 8.507059e+37
  %v1379 = vand.u32 %v1190, 2147483648
  %v1380 = vor.u32 1.1754944e-38, %v1379
  %v1381 = vsel %vm1378, %v1380, %v1376
  %v1382 = vmul.f32 %v1118, %v1381
  %v1383 = vrcp.pop %v1193
  %v1384 = vmul.f32 %v1193, %v1383
  %v1385 = vsub.f32 1.0, %v1384
  %v1386 = vmul.f32 %v1383, %v1385
  %v1387 = vadd.f32 %v1383, %v1386
  %vm1388 = vweird.f32 %v1193
  %vm1389 = vweird.f32 %v1383
  %vm1390 = vmor %vm1388, %vm1389
  %v1391 = vsel %vm1390, %v1383, %v1387
  %v1392 = vand.u32 2147483647, %v1193
  %vm1393 = vcmp.eq.f32.partialorder %v1392, 8.507059e+37
  %v1394 = vand.u32 %v1193, 2147483648
  %v1395 = vor.u32 1.1754944e-38, %v1394
  %v1396 = vsel %vm1393, %v1395, %v1391
  %v1397 = vmul.f32 %v1120, %v1396
  %v1398 = vrcp.pop %v1196
  %v1399 = vmul.f32 %v1196, %v1398
  %v1400 = vsub.f32 1.0, %v1399
  %v1401 = vmul.f32 %v1398, %v1400
  %v1402 = vadd.f32 %v1398, %v1401
  %vm1403 = vweird.f32 %v1196
  %vm1404 = vweird.f32 %v1398
  %vm1405 = vmor %vm1403, %vm1404
  %v1406 = vsel %vm1405, %v1398, %v1402
  %v1407 = vand.u32 2147483647, %v1196
  %vm1408 = vcmp.eq.f32.partialorder %v1407, 8.507059e+37
  %v1409 = vand.u32 %v1196, 2147483648
  %v1410 = vor.u32 1.1754944e-38, %v1409
  %v1411 = vsel %vm1408, %v1410, %v1406
  %v1412 = vmul.f32 %v1122, %v1411
  %v1413 = vrcp.pop %v1199
  %v1414 = vmul.f32 %v1199, %v1413
  %v1415 = vsub.f32 1.0, %v1414
  %v1416 = vmul.f32 %v1413, %v1415
  %v1417 = vadd.f32 %v1413, %v1416
  %vm1418 = vweird.f32 %v1199
  %vm1419 = vweird.f32 %v1413
  %vm1420 = vmor %vm1418, %vm1419
  %v1421 = vsel %vm1420, %v1413, %v1417
  %v1422 = vand.u32 2147483647, %v1199
  %vm1423 = vcmp.eq.f32.partialorder %v1422, 8.507059e+37
  %v1424 = vand.u32 %v1199, 2147483648
  %v1425 = vor.u32 1.1754944e-38, %v1424
  %v1426 = vsel %vm1423, %v1425, %v1421
  %v1427 = vmul.f32 %v1124, %v1426
  %v1428 = vrcp.pop %v1202
  %v1429 = vmul.f32 %v1202, %v1428
  %v1430 = vsub.f32 1.0, %v1429
  %v1431 = vmul.f32 %v1428, %v1430
  %v1432 = vadd.f32 %v1428, %v1431
  %vm1433 = vweird.f32 %v1202
  %vm1434 = vweird.f32 %v1428
  %vm1435 = vmor %vm1433, %vm1434
  %v1436 = vsel %vm1435, %v1428, %v1432
  %v1437 = vand.u32 2147483647, %v1202
  %vm1438 = vcmp.eq.f32.partialorder %v1437, 8.507059e+37
  %v1439 = vand.u32 %v1202, 2147483648
  %v1440 = vor.u32 1.1754944e-38, %v1439
  %v1441 = vsel %vm1438, %v1440, %v1436
  %v1442 = vmul.f32 %v1126, %v1441
  %v1443 = vrcp.pop %v1205
  %v1444 = vmul.f32 %v1205, %v1443
  %v1445 = vsub.f32 1.0, %v1444
  %v1446 = vmul.f32 %v1443, %v1445
  %v1447 = vadd.f32 %v1443, %v1446
  %vm1448 = vweird.f32 %v1205
  %vm1449 = vweird.f32 %v1443
  %vm1450 = vmor %vm1448, %vm1449
  %v1451 = vsel %vm1450, %v1443, %v1447
  %v1452 = vand.u32 2147483647, %v1205
  %vm1453 = vcmp.eq.f32.partialorder %v1452, 8.507059e+37
  %v1454 = vand.u32 %v1205, 2147483648
  %v1455 = vor.u32 1.1754944e-38, %v1454
  %v1456 = vsel %vm1453, %v1455, %v1451
  %v1457 = vmul.f32 %v1128, %v1456
  %v1458 = vrcp.pop %v1208
  %v1459 = vmul.f32 %v1208, %v1458
  %v1460 = vsub.f32 1.0, %v1459
  %v1461 = vmul.f32 %v1458, %v1460
  %v1462 = vadd.f32 %v1458, %v1461
  %vm1463 = vweird.f32 %v1208
  %vm1464 = vweird.f32 %v1458
  %vm1465 = vmor %vm1463, %vm1464
  %v1466 = vsel %vm1465, %v1458, %v1462
  %v1467 = vand.u32 2147483647, %v1208
  %vm1468 = vcmp.eq.f32.partialorder %v1467, 8.507059e+37
  %v1469 = vand.u32 %v1208, 2147483648
  %v1470 = vor.u32 1.1754944e-38, %v1469
  %v1471 = vsel %vm1468, %v1470, %v1466
  %v1472 = vmul.f32 %v1130, %v1471
  %v1473 = vrcp.pop %v1211
  %v1474 = vmul.f32 %v1211, %v1473
  %v1475 = vsub.f32 1.0, %v1474
  %v1476 = vmul.f32 %v1473, %v1475
  %v1477 = vadd.f32 %v1473, %v1476
  %vm1478 = vweird.f32 %v1211
  %vm1479 = vweird.f32 %v1473
  %vm1480 = vmor %vm1478, %vm1479
  %v1481 = vsel %vm1480, %v1473, %v1477
  %v1482 = vand.u32 2147483647, %v1211
  %vm1483 = vcmp.eq.f32.partialorder %v1482, 8.507059e+37
  %v1484 = vand.u32 %v1211, 2147483648
  %v1485 = vor.u32 1.1754944e-38, %v1484
  %v1486 = vsel %vm1483, %v1485, %v1481
  %v1487 = vmul.f32 %v1132, %v1486
  %v1488 = vrcp.pop %v1214
  %v1489 = vmul.f32 %v1214, %v1488
  %v1490 = vsub.f32 1.0, %v1489
  %v1491 = vmul.f32 %v1488, %v1490
  %v1492 = vadd.f32 %v1488, %v1491
  %vm1493 = vweird.f32 %v1214
  %vm1494 = vweird.f32 %v1488
  %vm1495 = vmor %vm1493, %vm1494
  %v1496 = vsel %vm1495, %v1488, %v1492
  %v1497 = vand.u32 2147483647, %v1214
  %vm1498 = vcmp.eq.f32.partialorder %v1497, 8.507059e+37
  %v1499 = vand.u32 %v1214, 2147483648
  %v1500 = vor.u32 1.1754944e-38, %v1499
  %v1501 = vsel %vm1498, %v1500, %v1496
  %v1502 = vmul.f32 %v1134, %v1501
  %v1503 = vrcp.pop %v1217
  %v1504 = vmul.f32 %v1217, %v1503
  %v1505 = vsub.f32 1.0, %v1504
  %v1506 = vmul.f32 %v1503, %v1505
  %v1507 = vadd.f32 %v1503, %v1506
  %vm1508 = vweird.f32 %v1217
  %vm1509 = vweird.f32 %v1503
  %vm1510 = vmor %vm1508, %vm1509
  %v1511 = vsel %vm1510, %v1503, %v1507
  %v1512 = vand.u32 2147483647, %v1217
  %vm1513 = vcmp.eq.f32.partialorder %v1512, 8.507059e+37
  %v1514 = vand.u32 %v1217, 2147483648
  %v1515 = vor.u32 1.1754944e-38, %v1514
  %v1516 = vsel %vm1513, %v1515, %v1511
  %v1517 = vmul.f32 %v1136, %v1516
  %v1518 = vrcp.pop %v1220
  %v1519 = vmul.f32 %v1220, %v1518
  %v1520 = vsub.f32 1.0, %v1519
  %v1521 = vmul.f32 %v1518, %v1520
  %v1522 = vadd.f32 %v1518, %v1521
  %vm1523 = vweird.f32 %v1220
  %vm1524 = vweird.f32 %v1518
  %vm1525 = vmor %vm1523, %vm1524
  %v1526 = vsel %vm1525, %v1518, %v1522
  %v1527 = vand.u32 2147483647, %v1220
  %vm1528 = vcmp.eq.f32.partialorder %v1527, 8.507059e+37
  %v1529 = vand.u32 %v1220, 2147483648
  %v1530 = vor.u32 1.1754944e-38, %v1529
  %v1531 = vsel %vm1528, %v1530, %v1526
  %v1532 = vmul.f32 %v1138, %v1531
  %v1533 = vrcp.pop %v1223
  %v1534 = vmul.f32 %v1223, %v1533
  %v1535 = vsub.f32 1.0, %v1534
  %v1536 = vmul.f32 %v1533, %v1535
  %v1537 = vadd.f32 %v1533, %v1536
  %vm1538 = vweird.f32 %v1223
  %vm1539 = vweird.f32 %v1533
  %vm1540 = vmor %vm1538, %vm1539
  %v1541 = vsel %vm1540, %v1533, %v1537
  %v1542 = vand.u32 2147483647, %v1223
  %vm1543 = vcmp.eq.f32.partialorder %v1542, 8.507059e+37
  %v1544 = vand.u32 %v1223, 2147483648
  %v1545 = vor.u32 1.1754944e-38, %v1544
  %v1546 = vsel %vm1543, %v1545, %v1541
  %v1547 = vmul.f32 %v1140, %v1546
  %v1548 = vrcp.pop %v1226
  %v1549 = vmul.f32 %v1226, %v1548
  %v1550 = vsub.f32 1.0, %v1549
  %v1551 = vmul.f32 %v1548, %v1550
  %v1552 = vadd.f32 %v1548, %v1551
  %vm1553 = vweird.f32 %v1226
  %vm1554 = vweird.f32 %v1548
  %vm1555 = vmor %vm1553, %vm1554
  %v1556 = vsel %vm1555, %v1548, %v1552
  %v1557 = vand.u32 2147483647, %v1226
  %vm1558 = vcmp.eq.f32.partialorder %v1557, 8.507059e+37
  %v1559 = vand.u32 %v1226, 2147483648
  %v1560 = vor.u32 1.1754944e-38, %v1559
  %v1561 = vsel %vm1558, %v1560, %v1556
  %v1562 = vmul.f32 %v1142, %v1561
  %v1563 = vrcp.pop %v1229
  %v1564 = vmul.f32 %v1229, %v1563
  %v1565 = vsub.f32 1.0, %v1564
  %v1566 = vmul.f32 %v1563, %v1565
  %v1567 = vadd.f32 %v1563, %v1566
  %vm1568 = vweird.f32 %v1229
  %vm1569 = vweird.f32 %v1563
  %vm1570 = vmor %vm1568, %vm1569
  %v1571 = vsel %vm1570, %v1563, %v1567
  %v1572 = vand.u32 2147483647, %v1229
  %vm1573 = vcmp.eq.f32.partialorder %v1572, 8.507059e+37
  %v1574 = vand.u32 %v1229, 2147483648
  %v1575 = vor.u32 1.1754944e-38, %v1574
  %v1576 = vsel %vm1573, %v1575, %v1571
  %v1577 = vmul.f32 %v1144, %v1576
  %v1578 = vrcp.pop %v1232
  %v1579 = vmul.f32 %v1232, %v1578
  %v1580 = vsub.f32 1.0, %v1579
  %v1581 = vmul.f32 %v1578, %v1580
  %v1582 = vadd.f32 %v1578, %v1581
  %vm1583 = vweird.f32 %v1232
  %vm1584 = vweird.f32 %v1578
  %vm1585 = vmor %vm1583, %vm1584
  %v1586 = vsel %vm1585, %v1578, %v1582
  %v1587 = vand.u32 2147483647, %v1232
  %vm1588 = vcmp.eq.f32.partialorder %v1587, 8.507059e+37
  %v1589 = vand.u32 %v1232, 2147483648
  %v1590 = vor.u32 1.1754944e-38, %v1589
  %v1591 = vsel %vm1588, %v1590, %v1586
  %v1592 = vmul.f32 %v1146, %v1591
  %v1593 = vrcp.pop %v1235
  %v1594 = vmul.f32 %v1235, %v1593
  %v1595 = vsub.f32 1.0, %v1594
  %v1596 = vmul.f32 %v1593, %v1595
  %v1597 = vadd.f32 %v1593, %v1596
  %vm1598 = vweird.f32 %v1235
  %vm1599 = vweird.f32 %v1593
  %vm1600 = vmor %vm1598, %vm1599
  %v1601 = vsel %vm1600, %v1593, %v1597
  %v1602 = vand.u32 2147483647, %v1235
  %vm1603 = vcmp.eq.f32.partialorder %v1602, 8.507059e+37
  %v1604 = vand.u32 %v1235, 2147483648
  %v1605 = vor.u32 1.1754944e-38, %v1604
  %v1606 = vsel %vm1603, %v1605, %v1601
  %v1607 = vmul.f32 %v1148, %v1606
  %v1608 = vrcp.pop %v1238
  %v1609 = vmul.f32 %v1238, %v1608
  %v1610 = vsub.f32 1.0, %v1609
  %v1611 = vmul.f32 %v1608, %v1610
  %v1612 = vadd.f32 %v1608, %v1611
  %vm1613 = vweird.f32 %v1238
  %vm1614 = vweird.f32 %v1608
  %vm1615 = vmor %vm1613, %vm1614
  %v1616 = vsel %vm1615, %v1608, %v1612
  %v1617 = vand.u32 2147483647, %v1238
  %vm1618 = vcmp.eq.f32.partialorder %v1617, 8.507059e+37
  %v1619 = vand.u32 %v1238, 2147483648
  %v1620 = vor.u32 1.1754944e-38, %v1619
  %v1621 = vsel %vm1618, %v1620, %v1616
  %v1622 = vmul.f32 %v1150, %v1621
  %v1623 = vrcp.pop %v1241
  %v1624 = vmul.f32 %v1241, %v1623
  %v1625 = vsub.f32 1.0, %v1624
  %v1626 = vmul.f32 %v1623, %v1625
  %v1627 = vadd.f32 %v1623, %v1626
  %vm1628 = vweird.f32 %v1241
  %vm1629 = vweird.f32 %v1623
  %vm1630 = vmor %vm1628, %vm1629
  %v1631 = vsel %vm1630, %v1623, %v1627
  %v1632 = vand.u32 2147483647, %v1241
  %vm1633 = vcmp.eq.f32.partialorder %v1632, 8.507059e+37
  %v1634 = vand.u32 %v1241, 2147483648
  %v1635 = vor.u32 1.1754944e-38, %v1634
  %v1636 = vsel %vm1633, %v1635, %v1631
  %v1637 = vmul.f32 %v1152, %v1636
  %v1638 = vrcp.pop %v1244
  %v1639 = vmul.f32 %v1244, %v1638
  %v1640 = vsub.f32 1.0, %v1639
  %v1641 = vmul.f32 %v1638, %v1640
  %v1642 = vadd.f32 %v1638, %v1641
  %vm1643 = vweird.f32 %v1244
  %vm1644 = vweird.f32 %v1638
  %vm1645 = vmor %vm1643, %vm1644
  %v1646 = vsel %vm1645, %v1638, %v1642
  %v1647 = vand.u32 2147483647, %v1244
  %vm1648 = vcmp.eq.f32.partialorder %v1647, 8.507059e+37
  %v1649 = vand.u32 %v1244, 2147483648
  %v1650 = vor.u32 1.1754944e-38, %v1649
  %v1651 = vsel %vm1648, %v1650, %v1646
  %v1652 = vmul.f32 %v1154, %v1651
  %v1653 = vrcp.pop %v1247
  %v1654 = vmul.f32 %v1247, %v1653
  %v1655 = vsub.f32 1.0, %v1654
  %v1656 = vmul.f32 %v1653, %v1655
  %v1657 = vadd.f32 %v1653, %v1656
  %vm1658 = vweird.f32 %v1247
  %vm1659 = vweird.f32 %v1653
  %vm1660 = vmor %vm1658, %vm1659
  %v1661 = vsel %vm1660, %v1653, %v1657
  %v1662 = vand.u32 2147483647, %v1247
  %vm1663 = vcmp.eq.f32.partialorder %v1662, 8.507059e+37
  %v1664 = vand.u32 %v1247, 2147483648
  %v1665 = vor.u32 1.1754944e-38, %v1664
  %v1666 = vsel %vm1663, %v1665, %v1661
  %v1667 = vmul.f32 %v1156, %v1666
  %v1668 = vrcp.pop %v1250
  %v1669 = vmul.f32 %v1250, %v1668
  %v1670 = vsub.f32 1.0, %v1669
  %v1671 = vmul.f32 %v1668, %v1670
  %v1672 = vadd.f32 %v1668, %v1671
  %vm1673 = vweird.f32 %v1250
  %vm1674 = vweird.f32 %v1668
  %vm1675 = vmor %vm1673, %vm1674
  %v1676 = vsel %vm1675, %v1668, %v1672
  %v1677 = vand.u32 2147483647, %v1250
  %vm1678 = vcmp.eq.f32.partialorder %v1677, 8.507059e+37
  %v1679 = vand.u32 %v1250, 2147483648
  %v1680 = vor.u32 1.1754944e-38, %v1679
  %v1681 = vsel %vm1678, %v1680, %v1676
  %v1682 = vmul.f32 %v1158, %v1681
  %v1683 = vrcp.pop %v1253
  %v1684 = vmul.f32 %v1253, %v1683
  %v1685 = vsub.f32 1.0, %v1684
  %v1686 = vmul.f32 %v1683, %v1685
  %v1687 = vadd.f32 %v1683, %v1686
  %vm1688 = vweird.f32 %v1253
  %vm1689 = vweird.f32 %v1683
  %vm1690 = vmor %vm1688, %vm1689
  %v1691 = vsel %vm1690, %v1683, %v1687
  %v1692 = vand.u32 2147483647, %v1253
  %vm1693 = vcmp.eq.f32.partialorder %v1692, 8.507059e+37
  %v1694 = vand.u32 %v1253, 2147483648
  %v1695 = vor.u32 1.1754944e-38, %v1694
  %v1696 = vsel %vm1693, %v1695, %v1691
  %v1697 = vmul.f32 %v1160, %v1696
  %v1698 = vrcp.pop %v1256
  %v1699 = vmul.f32 %v1256, %v1698
  %v1700 = vsub.f32 1.0, %v1699
  %v1701 = vmul.f32 %v1698, %v1700
  %v1702 = vadd.f32 %v1698, %v1701
  %vm1703 = vweird.f32 %v1256
  %vm1704 = vweird.f32 %v1698
  %vm1705 = vmor %vm1703, %vm1704
  %v1706 = vsel %vm1705, %v1698, %v1702
  %v1707 = vand.u32 2147483647, %v1256
  %vm1708 = vcmp.eq.f32.partialorder %v1707, 8.507059e+37
  %v1709 = vand.u32 %v1256, 2147483648
  %v1710 = vor.u32 1.1754944e-38, %v1709
  %v1711 = vsel %vm1708, %v1710, %v1706
  %v1712 = vmul.f32 %v1162, %v1711
  %v1713 = vrcp.pop %v1259
  %v1714 = vmul.f32 %v1259, %v1713
  %v1715 = vsub.f32 1.0, %v1714
  %v1716 = vmul.f32 %v1713, %v1715
  %v1717 = vadd.f32 %v1713, %v1716
  %vm1718 = vweird.f32 %v1259
  %vm1719 = vweird.f32 %v1713
  %vm1720 = vmor %vm1718, %vm1719
  %v1721 = vsel %vm1720, %v1713, %v1717
  %v1722 = vand.u32 2147483647, %v1259
  %vm1723 = vcmp.eq.f32.partialorder %v1722, 8.507059e+37
  %v1724 = vand.u32 %v1259, 2147483648
  %v1725 = vor.u32 1.1754944e-38, %v1724
  %v1726 = vsel %vm1723, %v1725, %v1721
  %v1727 = vmul.f32 %v1164, %v1726
  %v1728 = vrcp.pop %v1262
  %v1729 = vmul.f32 %v1262, %v1728
  %v1730 = vsub.f32 1.0, %v1729
  %v1731 = vmul.f32 %v1728, %v1730
  %v1732 = vadd.f32 %v1728, %v1731
  %vm1733 = vweird.f32 %v1262
  %vm1734 = vweird.f32 %v1728
  %vm1735 = vmor %vm1733, %vm1734
  %v1736 = vsel %vm1735, %v1728, %v1732
  %v1737 = vand.u32 2147483647, %v1262
  %vm1738 = vcmp.eq.f32.partialorder %v1737, 8.507059e+37
  %v1739 = vand.u32 %v1262, 2147483648
  %v1740 = vor.u32 1.1754944e-38, %v1739
  %v1741 = vsel %vm1738, %v1740, %v1736
  %v1742 = vmul.f32 %v1166, %v1741
  %v1744 = vsel %vm110, %v1277, 0
  %1746 = vmatpush.msra.mxu0 0.0
  %1747 = vmatpush.msra.mxu0 0.0
  %1748 = vmatpush.msra.mxu0 0.0
  %1749 = vmatpush.msra.mxu0 0.0
  %1750 = vmatpush.msra.mxu0 0.0
  %1751 = vmatpush.msra.mxu0 0.0
  %1752 = vmatpush.msra.mxu0 0.0
  %1753 = vmatpush.msra.mxu0 0.0
  %1754 = vmatpush.msra.mxu0 0.0
  %1755 = vmatpush.msra.mxu0 0.0
  %1756 = vmatpush.msra.mxu0 0.0
  %1757 = vmatpush.msra.mxu0 0.0
  %1758 = vmatpush.msra.mxu0 0.0
  %1759 = vmatpush.msra.mxu0 0.0
  %1760 = vmatpush.msra.mxu0 0.0
  %1761 = vmatpush.msra.mxu0 %v78
  %1762 = vmatmul.f32.gmra.mxu0 %v1744
  %v1763 = vpop.f32.mrf.mxu0
  %v1764 = vadd.f32 0.0, %v1763
  %1765 = vdwg.mxu0
  %v1767 = vsel %vm110, %v1292, 0
  %1769 = vmatpush.msra.mxu0 0.0
  %1770 = vmatpush.msra.mxu0 0.0
  %1771 = vmatpush.msra.mxu0 0.0
  %1772 = vmatpush.msra.mxu0 0.0
  %1773 = vmatpush.msra.mxu0 0.0
  %1774 = vmatpush.msra.mxu0 0.0
  %1775 = vmatpush.msra.mxu0 0.0
  %1776 = vmatpush.msra.mxu0 0.0
  %1777 = vmatpush.msra.mxu0 0.0
  %1778 = vmatpush.msra.mxu0 0.0
  %1779 = vmatpush.msra.mxu0 0.0
  %1780 = vmatpush.msra.mxu0 0.0
  %1781 = vmatpush.msra.mxu0 0.0
  %1782 = vmatpush.msra.mxu0 0.0
  %1783 = vmatpush.msra.mxu0 0.0
  %1784 = vmatpush.msra.mxu0 %v79
  %1785 = vmatmul.f32.gmra.mxu0 %v1767
  %v1786 = vpop.f32.mrf.mxu0
  %v1787 = vadd.f32 0.0, %v1786
  %1788 = vdwg.mxu0
  %v1790 = vsel %vm110, %v1307, 0
  %1792 = vmatpush.msra.mxu0 0.0
  %1793 = vmatpush.msra.mxu0 0.0
  %1794 = vmatpush.msra.mxu0 0.0
  %1795 = vmatpush.msra.mxu0 0.0
  %1796 = vmatpush.msra.mxu0 0.0
  %1797 = vmatpush.msra.mxu0 0.0
  %1798 = vmatpush.msra.mxu0 0.0
  %1799 = vmatpush.msra.mxu0 0.0
  %1800 = vmatpush.msra.mxu0 0.0
  %1801 = vmatpush.msra.mxu0 0.0
  %1802 = vmatpush.msra.mxu0 0.0
  %1803 = vmatpush.msra.mxu0 0.0
  %1804 = vmatpush.msra.mxu0 0.0
  %1805 = vmatpush.msra.mxu0 0.0
  %1806 = vmatpush.msra.mxu0 0.0
  %1807 = vmatpush.msra.mxu0 %v80
  %1808 = vmatmul.f32.gmra.mxu0 %v1790
  %v1809 = vpop.f32.mrf.mxu0
  %v1810 = vadd.f32 0.0, %v1809
  %1811 = vdwg.mxu0
  %v1813 = vsel %vm110, %v1322, 0
  %1815 = vmatpush.msra.mxu0 0.0
  %1816 = vmatpush.msra.mxu0 0.0
  %1817 = vmatpush.msra.mxu0 0.0
  %1818 = vmatpush.msra.mxu0 0.0
  %1819 = vmatpush.msra.mxu0 0.0
  %1820 = vmatpush.msra.mxu0 0.0
  %1821 = vmatpush.msra.mxu0 0.0
  %1822 = vmatpush.msra.mxu0 0.0
  %1823 = vmatpush.msra.mxu0 0.0
  %1824 = vmatpush.msra.mxu0 0.0
  %1825 = vmatpush.msra.mxu0 0.0
  %1826 = vmatpush.msra.mxu0 0.0
  %1827 = vmatpush.msra.mxu0 0.0
  %1828 = vmatpush.msra.mxu0 0.0
  %1829 = vmatpush.msra.mxu0 0.0
  %1830 = vmatpush.msra.mxu0 %v81
  %1831 = vmatmul.f32.gmra.mxu0 %v1813
  %v1832 = vpop.f32.mrf.mxu0
  %v1833 = vadd.f32 0.0, %v1832
  %1834 = vdwg.mxu0
  %v1836 = vsel %vm110, %v1337, 0
  %1838 = vmatpush.msra.mxu0 0.0
  %1839 = vmatpush.msra.mxu0 0.0
  %1840 = vmatpush.msra.mxu0 0.0
  %1841 = vmatpush.msra.mxu0 0.0
  %1842 = vmatpush.msra.mxu0 0.0
  %1843 = vmatpush.msra.mxu0 0.0
  %1844 = vmatpush.msra.mxu0 0.0
  %1845 = vmatpush.msra.mxu0 0.0
  %1846 = vmatpush.msra.mxu0 0.0
  %1847 = vmatpush.msra.mxu0 0.0
  %1848 = vmatpush.msra.mxu0 0.0
  %1849 = vmatpush.msra.mxu0 0.0
  %1850 = vmatpush.msra.mxu0 0.0
  %1851 = vmatpush.msra.mxu0 0.0
  %1852 = vmatpush.msra.mxu0 0.0
  %1853 = vmatpush.msra.mxu0 %v82
  %1854 = vmatmul.f32.gmra.mxu0 %v1836
  %v1855 = vpop.f32.mrf.mxu0
  %v1856 = vadd.f32 0.0, %v1855
  %1857 = vdwg.mxu0
  %v1859 = vsel %vm110, %v1352, 0
  %1861 = vmatpush.msra.mxu0 0.0
  %1862 = vmatpush.msra.mxu0 0.0
  %1863 = vmatpush.msra.mxu0 0.0
  %1864 = vmatpush.msra.mxu0 0.0
  %1865 = vmatpush.msra.mxu0 0.0
  %1866 = vmatpush.msra.mxu0 0.0
  %1867 = vmatpush.msra.mxu0 0.0
  %1868 = vmatpush.msra.mxu0 0.0
  %1869 = vmatpush.msra.mxu0 0.0
  %1870 = vmatpush.msra.mxu0 0.0
  %1871 = vmatpush.msra.mxu0 0.0
  %1872 = vmatpush.msra.mxu0 0.0
  %1873 = vmatpush.msra.mxu0 0.0
  %1874 = vmatpush.msra.mxu0 0.0
  %1875 = vmatpush.msra.mxu0 0.0
  %1876 = vmatpush.msra.mxu0 %v83
  %1877 = vmatmul.f32.gmra.mxu0 %v1859
  %v1878 = vpop.f32.mrf.mxu0
  %v1879 = vadd.f32 0.0, %v1878
  %1880 = vdwg.mxu0
  %v1882 = vsel %vm110, %v1367, 0
  %1884 = vmatpush.msra.mxu0 0.0
  %1885 = vmatpush.msra.mxu0 0.0
  %1886 = vmatpush.msra.mxu0 0.0
  %1887 = vmatpush.msra.mxu0 0.0
  %1888 = vmatpush.msra.mxu0 0.0
  %1889 = vmatpush.msra.mxu0 0.0
  %1890 = vmatpush.msra.mxu0 0.0
  %1891 = vmatpush.msra.mxu0 0.0
  %1892 = vmatpush.msra.mxu0 0.0
  %1893 = vmatpush.msra.mxu0 0.0
  %1894 = vmatpush.msra.mxu0 0.0
  %1895 = vmatpush.msra.mxu0 0.0
  %1896 = vmatpush.msra.mxu0 0.0
  %1897 = vmatpush.msra.mxu0 0.0
  %1898 = vmatpush.msra.mxu0 0.0
  %1899 = vmatpush.msra.mxu0 %v84
  %1900 = vmatmul.f32.gmra.mxu0 %v1882
  %v1901 = vpop.f32.mrf.mxu0
  %v1902 = vadd.f32 0.0, %v1901
  %1903 = vdwg.mxu0
  %v1905 = vsel %vm110, %v1382, 0
  %1907 = vmatpush.msra.mxu0 0.0
  %1908 = vmatpush.msra.mxu0 0.0
  %1909 = vmatpush.msra.mxu0 0.0
  %1910 = vmatpush.msra.mxu0 0.0
  %1911 = vmatpush.msra.mxu0 0.0
  %1912 = vmatpush.msra.mxu0 0.0
  %1913 = vmatpush.msra.mxu0 0.0
  %1914 = vmatpush.msra.mxu0 0.0
  %1915 = vmatpush.msra.mxu0 0.0
  %1916 = vmatpush.msra.mxu0 0.0
  %1917 = vmatpush.msra.mxu0 0.0
  %1918 = vmatpush.msra.mxu0 0.0
  %1919 = vmatpush.msra.mxu0 0.0
  %1920 = vmatpush.msra.mxu0 0.0
  %1921 = vmatpush.msra.mxu0 0.0
  %1922 = vmatpush.msra.mxu0 %v85
  %1923 = vmatmul.f32.gmra.mxu0 %v1905
  %v1924 = vpop.f32.mrf.mxu0
  %v1925 = vadd.f32 0.0, %v1924
  %1926 = vdwg.mxu0
  %v1928 = vsel %vm110, %v1397, 0
  %1930 = vmatpush.msra.mxu0 0.0
  %1931 = vmatpush.msra.mxu0 0.0
  %1932 = vmatpush.msra.mxu0 0.0
  %1933 = vmatpush.msra.mxu0 0.0
  %1934 = vmatpush.msra.mxu0 0.0
  %1935 = vmatpush.msra.mxu0 0.0
  %1936 = vmatpush.msra.mxu0 0.0
  %1937 = vmatpush.msra.mxu0 0.0
  %1938 = vmatpush.msra.mxu0 0.0
  %1939 = vmatpush.msra.mxu0 0.0
  %1940 = vmatpush.msra.mxu0 0.0
  %1941 = vmatpush.msra.mxu0 0.0
  %1942 = vmatpush.msra.mxu0 0.0
  %1943 = vmatpush.msra.mxu0 0.0
  %1944 = vmatpush.msra.mxu0 0.0
  %1945 = vmatpush.msra.mxu0 %v86
  %1946 = vmatmul.f32.gmra.mxu0 %v1928
  %v1947 = vpop.f32.mrf.mxu0
  %v1948 = vadd.f32 0.0, %v1947
  %1949 = vdwg.mxu0
  %v1951 = vsel %vm110, %v1412, 0
  %1953 = vmatpush.msra.mxu0 0.0
  %1954 = vmatpush.msra.mxu0 0.0
  %1955 = vmatpush.msra.mxu0 0.0
  %1956 = vmatpush.msra.mxu0 0.0
  %1957 = vmatpush.msra.mxu0 0.0
  %1958 = vmatpush.msra.mxu0 0.0
  %1959 = vmatpush.msra.mxu0 0.0
  %1960 = vmatpush.msra.mxu0 0.0
  %1961 = vmatpush.msra.mxu0 0.0
  %1962 = vmatpush.msra.mxu0 0.0
  %1963 = vmatpush.msra.mxu0 0.0
  %1964 = vmatpush.msra.mxu0 0.0
  %1965 = vmatpush.msra.mxu0 0.0
  %1966 = vmatpush.msra.mxu0 0.0
  %1967 = vmatpush.msra.mxu0 0.0
  %1968 = vmatpush.msra.mxu0 %v87
  %1969 = vmatmul.f32.gmra.mxu0 %v1951
  %v1970 = vpop.f32.mrf.mxu0
  %v1971 = vadd.f32 0.0, %v1970
  %1972 = vdwg.mxu0
  %v1974 = vsel %vm110, %v1427, 0
  %1976 = vmatpush.msra.mxu0 0.0
  %1977 = vmatpush.msra.mxu0 0.0
  %1978 = vmatpush.msra.mxu0 0.0
  %1979 = vmatpush.msra.mxu0 0.0
  %1980 = vmatpush.msra.mxu0 0.0
  %1981 = vmatpush.msra.mxu0 0.0
  %1982 = vmatpush.msra.mxu0 0.0
  %1983 = vmatpush.msra.mxu0 0.0
  %1984 = vmatpush.msra.mxu0 0.0
  %1985 = vmatpush.msra.mxu0 0.0
  %1986 = vmatpush.msra.mxu0 0.0
  %1987 = vmatpush.msra.mxu0 0.0
  %1988 = vmatpush.msra.mxu0 0.0
  %1989 = vmatpush.msra.mxu0 0.0
  %1990 = vmatpush.msra.mxu0 0.0
  %1991 = vmatpush.msra.mxu0 %v88
  %1992 = vmatmul.f32.gmra.mxu0 %v1974
  %v1993 = vpop.f32.mrf.mxu0
  %v1994 = vadd.f32 0.0, %v1993
  %1995 = vdwg.mxu0
  %v1997 = vsel %vm110, %v1442, 0
  %1999 = vmatpush.msra.mxu0 0.0
  %2000 = vmatpush.msra.mxu0 0.0
  %2001 = vmatpush.msra.mxu0 0.0
  %2002 = vmatpush.msra.mxu0 0.0
  %2003 = vmatpush.msra.mxu0 0.0
  %2004 = vmatpush.msra.mxu0 0.0
  %2005 = vmatpush.msra.mxu0 0.0
  %2006 = vmatpush.msra.mxu0 0.0
  %2007 = vmatpush.msra.mxu0 0.0
  %2008 = vmatpush.msra.mxu0 0.0
  %2009 = vmatpush.msra.mxu0 0.0
  %2010 = vmatpush.msra.mxu0 0.0
  %2011 = vmatpush.msra.mxu0 0.0
  %2012 = vmatpush.msra.mxu0 0.0
  %2013 = vmatpush.msra.mxu0 0.0
  %2014 = vmatpush.msra.mxu0 %v89
  %2015 = vmatmul.f32.gmra.mxu0 %v1997
  %v2016 = vpop.f32.mrf.mxu0
  %v2017 = vadd.f32 0.0, %v2016
  %2018 = vdwg.mxu0
  %v2020 = vsel %vm110, %v1457, 0
  %2022 = vmatpush.msra.mxu0 0.0
  %2023 = vmatpush.msra.mxu0 0.0
  %2024 = vmatpush.msra.mxu0 0.0
  %2025 = vmatpush.msra.mxu0 0.0
  %2026 = vmatpush.msra.mxu0 0.0
  %2027 = vmatpush.msra.mxu0 0.0
  %2028 = vmatpush.msra.mxu0 0.0
  %2029 = vmatpush.msra.mxu0 0.0
  %2030 = vmatpush.msra.mxu0 0.0
  %2031 = vmatpush.msra.mxu0 0.0
  %2032 = vmatpush.msra.mxu0 0.0
  %2033 = vmatpush.msra.mxu0 0.0
  %2034 = vmatpush.msra.mxu0 0.0
  %2035 = vmatpush.msra.mxu0 0.0
  %2036 = vmatpush.msra.mxu0 0.0
  %2037 = vmatpush.msra.mxu0 %v90
  %2038 = vmatmul.f32.gmra.mxu0 %v2020
  %v2039 = vpop.f32.mrf.mxu0
  %v2040 = vadd.f32 0.0, %v2039
  %2041 = vdwg.mxu0
  %v2043 = vsel %vm110, %v1472, 0
  %2045 = vmatpush.msra.mxu0 0.0
  %2046 = vmatpush.msra.mxu0 0.0
  %2047 = vmatpush.msra.mxu0 0.0
  %2048 = vmatpush.msra.mxu0 0.0
  %2049 = vmatpush.msra.mxu0 0.0
  %2050 = vmatpush.msra.mxu0 0.0
  %2051 = vmatpush.msra.mxu0 0.0
  %2052 = vmatpush.msra.mxu0 0.0
  %2053 = vmatpush.msra.mxu0 0.0
  %2054 = vmatpush.msra.mxu0 0.0
  %2055 = vmatpush.msra.mxu0 0.0
  %2056 = vmatpush.msra.mxu0 0.0
  %2057 = vmatpush.msra.mxu0 0.0
  %2058 = vmatpush.msra.mxu0 0.0
  %2059 = vmatpush.msra.mxu0 0.0
  %2060 = vmatpush.msra.mxu0 %v91
  %2061 = vmatmul.f32.gmra.mxu0 %v2043
  %v2062 = vpop.f32.mrf.mxu0
  %v2063 = vadd.f32 0.0, %v2062
  %2064 = vdwg.mxu0
  %v2066 = vsel %vm110, %v1487, 0
  %2068 = vmatpush.msra.mxu0 0.0
  %2069 = vmatpush.msra.mxu0 0.0
  %2070 = vmatpush.msra.mxu0 0.0
  %2071 = vmatpush.msra.mxu0 0.0
  %2072 = vmatpush.msra.mxu0 0.0
  %2073 = vmatpush.msra.mxu0 0.0
  %2074 = vmatpush.msra.mxu0 0.0
  %2075 = vmatpush.msra.mxu0 0.0
  %2076 = vmatpush.msra.mxu0 0.0
  %2077 = vmatpush.msra.mxu0 0.0
  %2078 = vmatpush.msra.mxu0 0.0
  %2079 = vmatpush.msra.mxu0 0.0
  %2080 = vmatpush.msra.mxu0 0.0
  %2081 = vmatpush.msra.mxu0 0.0
  %2082 = vmatpush.msra.mxu0 0.0
  %2083 = vmatpush.msra.mxu0 %v92
  %2084 = vmatmul.f32.gmra.mxu0 %v2066
  %v2085 = vpop.f32.mrf.mxu0
  %v2086 = vadd.f32 0.0, %v2085
  %2087 = vdwg.mxu0
  %v2089 = vsel %vm110, %v1502, 0
  %2091 = vmatpush.msra.mxu0 0.0
  %2092 = vmatpush.msra.mxu0 0.0
  %2093 = vmatpush.msra.mxu0 0.0
  %2094 = vmatpush.msra.mxu0 0.0
  %2095 = vmatpush.msra.mxu0 0.0
  %2096 = vmatpush.msra.mxu0 0.0
  %2097 = vmatpush.msra.mxu0 0.0
  %2098 = vmatpush.msra.mxu0 0.0
  %2099 = vmatpush.msra.mxu0 0.0
  %2100 = vmatpush.msra.mxu0 0.0
  %2101 = vmatpush.msra.mxu0 0.0
  %2102 = vmatpush.msra.mxu0 0.0
  %2103 = vmatpush.msra.mxu0 0.0
  %2104 = vmatpush.msra.mxu0 0.0
  %2105 = vmatpush.msra.mxu0 0.0
  %2106 = vmatpush.msra.mxu0 %v93
  %2107 = vmatmul.f32.gmra.mxu0 %v2089
  %v2108 = vpop.f32.mrf.mxu0
  %v2109 = vadd.f32 0.0, %v2108
  %2110 = vdwg.mxu0
  %v2112 = vsel %vm110, %v1517, 0
  %2114 = vmatpush.msra.mxu0 0.0
  %2115 = vmatpush.msra.mxu0 0.0
  %2116 = vmatpush.msra.mxu0 0.0
  %2117 = vmatpush.msra.mxu0 0.0
  %2118 = vmatpush.msra.mxu0 0.0
  %2119 = vmatpush.msra.mxu0 0.0
  %2120 = vmatpush.msra.mxu0 0.0
  %2121 = vmatpush.msra.mxu0 0.0
  %2122 = vmatpush.msra.mxu0 0.0
  %2123 = vmatpush.msra.mxu0 0.0
  %2124 = vmatpush.msra.mxu0 0.0
  %2125 = vmatpush.msra.mxu0 0.0
  %2126 = vmatpush.msra.mxu0 0.0
  %2127 = vmatpush.msra.mxu0 0.0
  %2128 = vmatpush.msra.mxu0 0.0
  %2129 = vmatpush.msra.mxu0 %v94
  %2130 = vmatmul.f32.gmra.mxu0 %v2112
  %v2131 = vpop.f32.mrf.mxu0
  %v2132 = vadd.f32 0.0, %v2131
  %2133 = vdwg.mxu0
  %v2135 = vsel %vm110, %v1532, 0
  %2137 = vmatpush.msra.mxu0 0.0
  %2138 = vmatpush.msra.mxu0 0.0
  %2139 = vmatpush.msra.mxu0 0.0
  %2140 = vmatpush.msra.mxu0 0.0
  %2141 = vmatpush.msra.mxu0 0.0
  %2142 = vmatpush.msra.mxu0 0.0
  %2143 = vmatpush.msra.mxu0 0.0
  %2144 = vmatpush.msra.mxu0 0.0
  %2145 = vmatpush.msra.mxu0 0.0
  %2146 = vmatpush.msra.mxu0 0.0
  %2147 = vmatpush.msra.mxu0 0.0
  %2148 = vmatpush.msra.mxu0 0.0
  %2149 = vmatpush.msra.mxu0 0.0
  %2150 = vmatpush.msra.mxu0 0.0
  %2151 = vmatpush.msra.mxu0 0.0
  %2152 = vmatpush.msra.mxu0 %v95
  %2153 = vmatmul.f32.gmra.mxu0 %v2135
  %v2154 = vpop.f32.mrf.mxu0
  %v2155 = vadd.f32 0.0, %v2154
  %2156 = vdwg.mxu0
  %v2158 = vsel %vm110, %v1547, 0
  %2160 = vmatpush.msra.mxu0 0.0
  %2161 = vmatpush.msra.mxu0 0.0
  %2162 = vmatpush.msra.mxu0 0.0
  %2163 = vmatpush.msra.mxu0 0.0
  %2164 = vmatpush.msra.mxu0 0.0
  %2165 = vmatpush.msra.mxu0 0.0
  %2166 = vmatpush.msra.mxu0 0.0
  %2167 = vmatpush.msra.mxu0 0.0
  %2168 = vmatpush.msra.mxu0 0.0
  %2169 = vmatpush.msra.mxu0 0.0
  %2170 = vmatpush.msra.mxu0 0.0
  %2171 = vmatpush.msra.mxu0 0.0
  %2172 = vmatpush.msra.mxu0 0.0
  %2173 = vmatpush.msra.mxu0 0.0
  %2174 = vmatpush.msra.mxu0 0.0
  %2175 = vmatpush.msra.mxu0 %v96
  %2176 = vmatmul.f32.gmra.mxu0 %v2158
  %v2177 = vpop.f32.mrf.mxu0
  %v2178 = vadd.f32 0.0, %v2177
  %2179 = vdwg.mxu0
  %v2181 = vsel %vm110, %v1562, 0
  %2183 = vmatpush.msra.mxu0 0.0
  %2184 = vmatpush.msra.mxu0 0.0
  %2185 = vmatpush.msra.mxu0 0.0
  %2186 = vmatpush.msra.mxu0 0.0
  %2187 = vmatpush.msra.mxu0 0.0
  %2188 = vmatpush.msra.mxu0 0.0
  %2189 = vmatpush.msra.mxu0 0.0
  %2190 = vmatpush.msra.mxu0 0.0
  %2191 = vmatpush.msra.mxu0 0.0
  %2192 = vmatpush.msra.mxu0 0.0
  %2193 = vmatpush.msra.mxu0 0.0
  %2194 = vmatpush.msra.mxu0 0.0
  %2195 = vmatpush.msra.mxu0 0.0
  %2196 = vmatpush.msra.mxu0 0.0
  %2197 = vmatpush.msra.mxu0 0.0
  %2198 = vmatpush.msra.mxu0 %v97
  %2199 = vmatmul.f32.gmra.mxu0 %v2181
  %v2200 = vpop.f32.mrf.mxu0
  %v2201 = vadd.f32 0.0, %v2200
  %2202 = vdwg.mxu0
  %v2204 = vsel %vm110, %v1577, 0
  %2206 = vmatpush.msra.mxu0 0.0
  %2207 = vmatpush.msra.mxu0 0.0
  %2208 = vmatpush.msra.mxu0 0.0
  %2209 = vmatpush.msra.mxu0 0.0
  %2210 = vmatpush.msra.mxu0 0.0
  %2211 = vmatpush.msra.mxu0 0.0
  %2212 = vmatpush.msra.mxu0 0.0
  %2213 = vmatpush.msra.mxu0 0.0
  %2214 = vmatpush.msra.mxu0 0.0
  %2215 = vmatpush.msra.mxu0 0.0
  %2216 = vmatpush.msra.mxu0 0.0
  %2217 = vmatpush.msra.mxu0 0.0
  %2218 = vmatpush.msra.mxu0 0.0
  %2219 = vmatpush.msra.mxu0 0.0
  %2220 = vmatpush.msra.mxu0 0.0
  %2221 = vmatpush.msra.mxu0 %v98
  %2222 = vmatmul.f32.gmra.mxu0 %v2204
  %v2223 = vpop.f32.mrf.mxu0
  %v2224 = vadd.f32 0.0, %v2223
  %2225 = vdwg.mxu0
  %v2227 = vsel %vm110, %v1592, 0
  %2229 = vmatpush.msra.mxu0 0.0
  %2230 = vmatpush.msra.mxu0 0.0
  %2231 = vmatpush.msra.mxu0 0.0
  %2232 = vmatpush.msra.mxu0 0.0
  %2233 = vmatpush.msra.mxu0 0.0
  %2234 = vmatpush.msra.mxu0 0.0
  %2235 = vmatpush.msra.mxu0 0.0
  %2236 = vmatpush.msra.mxu0 0.0
  %2237 = vmatpush.msra.mxu0 0.0
  %2238 = vmatpush.msra.mxu0 0.0
  %2239 = vmatpush.msra.mxu0 0.0
  %2240 = vmatpush.msra.mxu0 0.0
  %2241 = vmatpush.msra.mxu0 0.0
  %2242 = vmatpush.msra.mxu0 0.0
  %2243 = vmatpush.msra.mxu0 0.0
  %2244 = vmatpush.msra.mxu0 %v99
  %2245 = vmatmul.f32.gmra.mxu0 %v2227
  %v2246 = vpop.f32.mrf.mxu0
  %v2247 = vadd.f32 0.0, %v2246
  %2248 = vdwg.mxu0
  %v2250 = vsel %vm110, %v1607, 0
  %2252 = vmatpush.msra.mxu0 0.0
  %2253 = vmatpush.msra.mxu0 0.0
  %2254 = vmatpush.msra.mxu0 0.0
  %2255 = vmatpush.msra.mxu0 0.0
  %2256 = vmatpush.msra.mxu0 0.0
  %2257 = vmatpush.msra.mxu0 0.0
  %2258 = vmatpush.msra.mxu0 0.0
  %2259 = vmatpush.msra.mxu0 0.0
  %2260 = vmatpush.msra.mxu0 0.0
  %2261 = vmatpush.msra.mxu0 0.0
  %2262 = vmatpush.msra.mxu0 0.0
  %2263 = vmatpush.msra.mxu0 0.0
  %2264 = vmatpush.msra.mxu0 0.0
  %2265 = vmatpush.msra.mxu0 0.0
  %2266 = vmatpush.msra.mxu0 0.0
  %2267 = vmatpush.msra.mxu0 %v100
  %2268 = vmatmul.f32.gmra.mxu0 %v2250
  %v2269 = vpop.f32.mrf.mxu0
  %v2270 = vadd.f32 0.0, %v2269
  %2271 = vdwg.mxu0
  %v2273 = vsel %vm110, %v1622, 0
  %2275 = vmatpush.msra.mxu0 0.0
  %2276 = vmatpush.msra.mxu0 0.0
  %2277 = vmatpush.msra.mxu0 0.0
  %2278 = vmatpush.msra.mxu0 0.0
  %2279 = vmatpush.msra.mxu0 0.0
  %2280 = vmatpush.msra.mxu0 0.0
  %2281 = vmatpush.msra.mxu0 0.0
  %2282 = vmatpush.msra.mxu0 0.0
  %2283 = vmatpush.msra.mxu0 0.0
  %2284 = vmatpush.msra.mxu0 0.0
  %2285 = vmatpush.msra.mxu0 0.0
  %2286 = vmatpush.msra.mxu0 0.0
  %2287 = vmatpush.msra.mxu0 0.0
  %2288 = vmatpush.msra.mxu0 0.0
  %2289 = vmatpush.msra.mxu0 0.0
  %2290 = vmatpush.msra.mxu0 %v101
  %2291 = vmatmul.f32.gmra.mxu0 %v2273
  %v2292 = vpop.f32.mrf.mxu0
  %v2293 = vadd.f32 0.0, %v2292
  %2294 = vdwg.mxu0
  %v2296 = vsel %vm110, %v1637, 0
  %2298 = vmatpush.msra.mxu0 0.0
  %2299 = vmatpush.msra.mxu0 0.0
  %2300 = vmatpush.msra.mxu0 0.0
  %2301 = vmatpush.msra.mxu0 0.0
  %2302 = vmatpush.msra.mxu0 0.0
  %2303 = vmatpush.msra.mxu0 0.0
  %2304 = vmatpush.msra.mxu0 0.0
  %2305 = vmatpush.msra.mxu0 0.0
  %2306 = vmatpush.msra.mxu0 0.0
  %2307 = vmatpush.msra.mxu0 0.0
  %2308 = vmatpush.msra.mxu0 0.0
  %2309 = vmatpush.msra.mxu0 0.0
  %2310 = vmatpush.msra.mxu0 0.0
  %2311 = vmatpush.msra.mxu0 0.0
  %2312 = vmatpush.msra.mxu0 0.0
  %2313 = vmatpush.msra.mxu0 %v102
  %2314 = vmatmul.f32.gmra.mxu0 %v2296
  %v2315 = vpop.f32.mrf.mxu0
  %v2316 = vadd.f32 0.0, %v2315
  %2317 = vdwg.mxu0
  %v2319 = vsel %vm110, %v1652, 0
  %2321 = vmatpush.msra.mxu0 0.0
  %2322 = vmatpush.msra.mxu0 0.0
  %2323 = vmatpush.msra.mxu0 0.0
  %2324 = vmatpush.msra.mxu0 0.0
  %2325 = vmatpush.msra.mxu0 0.0
  %2326 = vmatpush.msra.mxu0 0.0
  %2327 = vmatpush.msra.mxu0 0.0
  %2328 = vmatpush.msra.mxu0 0.0
  %2329 = vmatpush.msra.mxu0 0.0
  %2330 = vmatpush.msra.mxu0 0.0
  %2331 = vmatpush.msra.mxu0 0.0
  %2332 = vmatpush.msra.mxu0 0.0
  %2333 = vmatpush.msra.mxu0 0.0
  %2334 = vmatpush.msra.mxu0 0.0
  %2335 = vmatpush.msra.mxu0 0.0
  %2336 = vmatpush.msra.mxu0 %v103
  %2337 = vmatmul.f32.gmra.mxu0 %v2319
  %v2338 = vpop.f32.mrf.mxu0
  %v2339 = vadd.f32 0.0, %v2338
  %2340 = vdwg.mxu0
  %v2342 = vsel %vm110, %v1667, 0
  %2344 = vmatpush.msra.mxu0 0.0
  %2345 = vmatpush.msra.mxu0 0.0
  %2346 = vmatpush.msra.mxu0 0.0
  %2347 = vmatpush.msra.mxu0 0.0
  %2348 = vmatpush.msra.mxu0 0.0
  %2349 = vmatpush.msra.mxu0 0.0
  %2350 = vmatpush.msra.mxu0 0.0
  %2351 = vmatpush.msra.mxu0 0.0
  %2352 = vmatpush.msra.mxu0 0.0
  %2353 = vmatpush.msra.mxu0 0.0
  %2354 = vmatpush.msra.mxu0 0.0
  %2355 = vmatpush.msra.mxu0 0.0
  %2356 = vmatpush.msra.mxu0 0.0
  %2357 = vmatpush.msra.mxu0 0.0
  %2358 = vmatpush.msra.mxu0 0.0
  %2359 = vmatpush.msra.mxu0 %v104
  %2360 = vmatmul.f32.gmra.mxu0 %v2342
  %v2361 = vpop.f32.mrf.mxu0
  %v2362 = vadd.f32 0.0, %v2361
  %2363 = vdwg.mxu0
  %v2365 = vsel %vm110, %v1682, 0
  %2367 = vmatpush.msra.mxu0 0.0
  %2368 = vmatpush.msra.mxu0 0.0
  %2369 = vmatpush.msra.mxu0 0.0
  %2370 = vmatpush.msra.mxu0 0.0
  %2371 = vmatpush.msra.mxu0 0.0
  %2372 = vmatpush.msra.mxu0 0.0
  %2373 = vmatpush.msra.mxu0 0.0
  %2374 = vmatpush.msra.mxu0 0.0
  %2375 = vmatpush.msra.mxu0 0.0
  %2376 = vmatpush.msra.mxu0 0.0
  %2377 = vmatpush.msra.mxu0 0.0
  %2378 = vmatpush.msra.mxu0 0.0
  %2379 = vmatpush.msra.mxu0 0.0
  %2380 = vmatpush.msra.mxu0 0.0
  %2381 = vmatpush.msra.mxu0 0.0
  %2382 = vmatpush.msra.mxu0 %v105
  %2383 = vmatmul.f32.gmra.mxu0 %v2365
  %v2384 = vpop.f32.mrf.mxu0
  %v2385 = vadd.f32 0.0, %v2384
  %2386 = vdwg.mxu0
  %v2388 = vsel %vm110, %v1697, 0
  %2390 = vmatpush.msra.mxu0 0.0
  %2391 = vmatpush.msra.mxu0 0.0
  %2392 = vmatpush.msra.mxu0 0.0
  %2393 = vmatpush.msra.mxu0 0.0
  %2394 = vmatpush.msra.mxu0 0.0
  %2395 = vmatpush.msra.mxu0 0.0
  %2396 = vmatpush.msra.mxu0 0.0
  %2397 = vmatpush.msra.mxu0 0.0
  %2398 = vmatpush.msra.mxu0 0.0
  %2399 = vmatpush.msra.mxu0 0.0
  %2400 = vmatpush.msra.mxu0 0.0
  %2401 = vmatpush.msra.mxu0 0.0
  %2402 = vmatpush.msra.mxu0 0.0
  %2403 = vmatpush.msra.mxu0 0.0
  %2404 = vmatpush.msra.mxu0 0.0
  %2405 = vmatpush.msra.mxu0 %v106
  %2406 = vmatmul.f32.gmra.mxu0 %v2388
  %v2407 = vpop.f32.mrf.mxu0
  %v2408 = vadd.f32 0.0, %v2407
  %2409 = vdwg.mxu0
  %v2411 = vsel %vm110, %v1712, 0
  %2413 = vmatpush.msra.mxu0 0.0
  %2414 = vmatpush.msra.mxu0 0.0
  %2415 = vmatpush.msra.mxu0 0.0
  %2416 = vmatpush.msra.mxu0 0.0
  %2417 = vmatpush.msra.mxu0 0.0
  %2418 = vmatpush.msra.mxu0 0.0
  %2419 = vmatpush.msra.mxu0 0.0
  %2420 = vmatpush.msra.mxu0 0.0
  %2421 = vmatpush.msra.mxu0 0.0
  %2422 = vmatpush.msra.mxu0 0.0
  %2423 = vmatpush.msra.mxu0 0.0
  %2424 = vmatpush.msra.mxu0 0.0
  %2425 = vmatpush.msra.mxu0 0.0
  %2426 = vmatpush.msra.mxu0 0.0
  %2427 = vmatpush.msra.mxu0 0.0
  %2428 = vmatpush.msra.mxu0 %v107
  %2429 = vmatmul.f32.gmra.mxu0 %v2411
  %v2430 = vpop.f32.mrf.mxu0
  %v2431 = vadd.f32 0.0, %v2430
  %2432 = vdwg.mxu0
  %v2434 = vsel %vm110, %v1727, 0
  %2436 = vmatpush.msra.mxu0 0.0
  %2437 = vmatpush.msra.mxu0 0.0
  %2438 = vmatpush.msra.mxu0 0.0
  %2439 = vmatpush.msra.mxu0 0.0
  %2440 = vmatpush.msra.mxu0 0.0
  %2441 = vmatpush.msra.mxu0 0.0
  %2442 = vmatpush.msra.mxu0 0.0
  %2443 = vmatpush.msra.mxu0 0.0
  %2444 = vmatpush.msra.mxu0 0.0
  %2445 = vmatpush.msra.mxu0 0.0
  %2446 = vmatpush.msra.mxu0 0.0
  %2447 = vmatpush.msra.mxu0 0.0
  %2448 = vmatpush.msra.mxu0 0.0
  %2449 = vmatpush.msra.mxu0 0.0
  %2450 = vmatpush.msra.mxu0 0.0
  %2451 = vmatpush.msra.mxu0 %v108
  %2452 = vmatmul.f32.gmra.mxu0 %v2434
  %v2453 = vpop.f32.mrf.mxu0
  %v2454 = vadd.f32 0.0, %v2453
  %2455 = vdwg.mxu0
  %v2457 = vsel %vm110, %v1742, 0
  %2459 = vmatpush.msra.mxu0 0.0
  %2460 = vmatpush.msra.mxu0 0.0
  %2461 = vmatpush.msra.mxu0 0.0
  %2462 = vmatpush.msra.mxu0 0.0
  %2463 = vmatpush.msra.mxu0 0.0
  %2464 = vmatpush.msra.mxu0 0.0
  %2465 = vmatpush.msra.mxu0 0.0
  %2466 = vmatpush.msra.mxu0 0.0
  %2467 = vmatpush.msra.mxu0 0.0
  %2468 = vmatpush.msra.mxu0 0.0
  %2469 = vmatpush.msra.mxu0 0.0
  %2470 = vmatpush.msra.mxu0 0.0
  %2471 = vmatpush.msra.mxu0 0.0
  %2472 = vmatpush.msra.mxu0 0.0
  %2473 = vmatpush.msra.mxu0 0.0
  %2474 = vmatpush.msra.mxu0 %v109
  %2475 = vmatmul.f32.gmra.mxu0 %v2457
  %v2476 = vpop.f32.mrf.mxu0
  %v2477 = vadd.f32 0.0, %v2476
  %2478 = vdwg.mxu0
  %2479 = vst.msk [vmem:[%s3] sm:$0xff] %vm110, %v1764
  %2480 = vst.msk [vmem:[%s3 + $0x8] sm:$0xff] %vm110, %v1787
  %2481 = vst.msk [vmem:[%s3 + $0x10] sm:$0xff] %vm110, %v1810
  %2482 = vst.msk [vmem:[%s3 + $0x18] sm:$0xff] %vm110, %v1833
  %2483 = vst.msk [vmem:[%s3 + $0x20] sm:$0xff] %vm110, %v1856
  %2484 = vst.msk [vmem:[%s3 + $0x28] sm:$0xff] %vm110, %v1879
  %2485 = vst.msk [vmem:[%s3 + $0x30] sm:$0xff] %vm110, %v1902
  %2486 = vst.msk [vmem:[%s3 + $0x38] sm:$0xff] %vm110, %v1925
  %2487 = vst.msk [vmem:[%s3 + $0x40] sm:$0xff] %vm110, %v1948
  %2488 = vst.msk [vmem:[%s3 + $0x48] sm:$0xff] %vm110, %v1971
  %2489 = vst.msk [vmem:[%s3 + $0x50] sm:$0xff] %vm110, %v1994
  %2490 = vst.msk [vmem:[%s3 + $0x58] sm:$0xff] %vm110, %v2017
  %2491 = vst.msk [vmem:[%s3 + $0x60] sm:$0xff] %vm110, %v2040
  %2492 = vst.msk [vmem:[%s3 + $0x68] sm:$0xff] %vm110, %v2063
  %2493 = vst.msk [vmem:[%s3 + $0x70] sm:$0xff] %vm110, %v2086
  %2494 = vst.msk [vmem:[%s3 + $0x78] sm:$0xff] %vm110, %v2109
  %2495 = vst.msk [vmem:[%s3 + $0x80] sm:$0xff] %vm110, %v2132
  %2496 = vst.msk [vmem:[%s3 + $0x88] sm:$0xff] %vm110, %v2155
  %2497 = vst.msk [vmem:[%s3 + $0x90] sm:$0xff] %vm110, %v2178
  %2498 = vst.msk [vmem:[%s3 + $0x98] sm:$0xff] %vm110, %v2201
  %2499 = vst.msk [vmem:[%s3 + $0xa0] sm:$0xff] %vm110, %v2224
  %2500 = vst.msk [vmem:[%s3 + $0xa8] sm:$0xff] %vm110, %v2247
  %2501 = vst.msk [vmem:[%s3 + $0xb0] sm:$0xff] %vm110, %v2270
  %2502 = vst.msk [vmem:[%s3 + $0xb8] sm:$0xff] %vm110, %v2293
  %2503 = vst.msk [vmem:[%s3 + $0xc0] sm:$0xff] %vm110, %v2316
  %2504 = vst.msk [vmem:[%s3 + $0xc8] sm:$0xff] %vm110, %v2339
  %2505 = vst.msk [vmem:[%s3 + $0xd0] sm:$0xff] %vm110, %v2362
  %2506 = vst.msk [vmem:[%s3 + $0xd8] sm:$0xff] %vm110, %v2385
  %2507 = vst.msk [vmem:[%s3 + $0xe0] sm:$0xff] %vm110, %v2408
  %2508 = vst.msk [vmem:[%s3 + $0xe8] sm:$0xff] %vm110, %v2431
  %2509 = vst.msk [vmem:[%s3 + $0xf0] sm:$0xff] %vm110, %v2454
  %2510 = vst.msk [vmem:[%s3 + $0xf8] sm:$0xff] %vm110, %v2477
  // Predicated region
  $region14: #{_lambda_.47} parent=0 // pred_check
    _
  $region15: #{_lambda_.47} parent=0 // pred_check_branch
    %2512 = sbr.rel (0) target = $region17
  $region16: #{_lambda_.47} parent=0 // pred_region
    _
  $region17: #{_lambda_.47} parent=0 // pred_fallthru
    _
  // Predicated region
  $region18: #{_lambda_.47} parent=0 // pred_check
    _
  $region19: #{_lambda_.47} parent=0 // pred_check_branch
    %2514 = sbr.rel (0) target = $region21
  $region20: #{_lambda_.47} parent=0 // pred_region
    _
  $region21: #{_lambda_.47} parent=0 // pred_fallthru
    _

// kernel: _lambda_.50
$region0: #{_lambda_.50}
  #allocation0 [shape = 'u32[]', space=smem, size = 0x4, offset = 0x4, fixed_abs, tag = 'smem constant byte address 0x4 - core index']
  #allocation1 [shape = 'u32[72,128]{1,0:T(1,128)}', space=vmem, size = 0x9000, scoped, tag = 'internal scratch']
  %s0 = inlined_call_operand.vmem [shape: f32[64,32], index: 0, kind: input, shape index: {}]
  %s1 = inlined_call_operand.vmem [shape: f32[1,32], index: 1, kind: input, shape index: {}]
  %s2 = inlined_call_operand.vmem [shape: f32[1,32], index: 2, kind: input, shape index: {}]
  %s3 = inlined_call_operand.vmem [shape: f32[64,32], index: 3, kind: output, shape index: {}]
  %s4 = sld [smem:[#allocation0]]
  $region22: #{_lambda_.50} parent=0
    _
  %s6 = ssub.s32 1, %s4
  %s7 = scalar_select 0, %s6, %s4
  // Predicated region
  $region2: #{_lambda_.50} parent=0 // pred_check
    _
  $region3: #{_lambda_.50} parent=0 // pred_check_branch
    %9 = sbr.rel (0) target = $region5
  $region4: #{_lambda_.50} parent=0 // pred_region
    _
  $region5: #{_lambda_.50} parent=0 // pred_fallthru
    _
  // Predicated region
  $region6: #{_lambda_.50} parent=0 // pred_check
    _
  $region7: #{_lambda_.50} parent=0 // pred_check_branch
    %11 = sbr.rel (0) target = $region9
  $region8: #{_lambda_.50} parent=0 // pred_region
    _
  $region9: #{_lambda_.50} parent=0 // pred_fallthru
    _
  // Predicated region
  $region10: #{_lambda_.50} parent=0 // pred_check
    _
  $region11: #{_lambda_.50} parent=0 // pred_check_branch
    %13 = sbr.rel (0) target = $region13
  $region12: #{_lambda_.50} parent=0 // pred_region
    _
  $region13: #{_lambda_.50} parent=0 // pred_fallthru
    _
  %v14 = vld [vmem:[%s0] sm:$0xff]
  %v15 = vld [vmem:[%s0 + $0x8] sm:$0xff]
  %v16 = vld [vmem:[%s0 + $0x10] sm:$0xff]
  %v17 = vld [vmem:[%s0 + $0x18] sm:$0xff]
  %v18 = vld [vmem:[%s0 + $0x20] sm:$0xff]
  %v19 = vld [vmem:[%s0 + $0x28] sm:$0xff]
  %v20 = vld [vmem:[%s0 + $0x30] sm:$0xff]
  %v21 = vld [vmem:[%s0 + $0x38] sm:$0xff]
  %vm22 = vcmask 261120
  %v23 = vsel %vm22, %v14, 0.0
  %24 = vadd.xlane.f32.xlu0 %v23
  %v25 = vpop.xlane.xlu0 %24
  %v26 = vsel %vm22, %v15, 0.0
  %27 = vadd.xlane.f32.xlu0 %v26
  %v28 = vpop.xlane.xlu0 %27
  %v29 = vsel %vm22, %v16, 0.0
  %30 = vadd.xlane.f32.xlu0 %v29
  %v31 = vpop.xlane.xlu0 %30
  %v32 = vsel %vm22, %v17, 0.0
  %33 = vadd.xlane.f32.xlu0 %v32
  %v34 = vpop.xlane.xlu0 %33
  %v35 = vsel %vm22, %v18, 0.0
  %36 = vadd.xlane.f32.xlu0 %v35
  %v37 = vpop.xlane.xlu0 %36
  %v38 = vsel %vm22, %v19, 0.0
  %39 = vadd.xlane.f32.xlu0 %v38
  %v40 = vpop.xlane.xlu0 %39
  %v41 = vsel %vm22, %v20, 0.0
  %42 = vadd.xlane.f32.xlu0 %v41
  %v43 = vpop.xlane.xlu0 %42
  %v44 = vsel %vm22, %v21, 0.0
  %45 = vadd.xlane.f32.xlu0 %v44
  %v46 = vpop.xlane.xlu0 %45
  %v47 = vrcp.pop 32.0
  %v48 = vmul.f32 32.0, %v47
  %v49 = vsub.f32 1.0, %v48
  %v50 = vmul.f32 %v47, %v49
  %v51 = vadd.f32 %v47, %v50
  %vm52 = vweird.f32 %v47
  %v53 = vsel %vm52, %v47, %v51
  %v54 = vmul.f32 %v25, %v53
  %v55 = vmul.f32 %v28, %v53
  %v56 = vmul.f32 %v31, %v53
  %v57 = vmul.f32 %v34, %v53
  %v58 = vmul.f32 %v37, %v53
  %v59 = vmul.f32 %v40, %v53
  %v60 = vmul.f32 %v43, %v53
  %v61 = vmul.f32 %v46, %v53
  %v62 = vsub.f32 %v14, %v54
  %v63 = vsub.f32 %v15, %v55
  %v64 = vsub.f32 %v16, %v56
  %v65 = vsub.f32 %v17, %v57
  %v66 = vsub.f32 %v18, %v58
  %v67 = vsub.f32 %v19, %v59
  %v68 = vsub.f32 %v20, %v60
  %v69 = vsub.f32 %v21, %v61
  %v70 = vmul.f32 %v62, %v62
  %v71 = vmul.f32 %v63, %v63
  %v72 = vmul.f32 %v64, %v64
  %v73 = vmul.f32 %v65, %v65
  %v74 = vmul.f32 %v66, %v66
  %v75 = vmul.f32 %v67, %v67
  %v76 = vmul.f32 %v68, %v68
  %v77 = vmul.f32 %v69, %v69
  %v78 = vsel %vm22, %v70, 0.0
  %79 = vadd.xlane.f32.xlu0 %v78
  %v80 = vpop.xlane.xlu0 %79
  %v81 = vsel %vm22, %v71, 0.0
  %82 = vadd.xlane.f32.xlu0 %v81
  %v83 = vpop.xlane.xlu0 %82
  %v84 = vsel %vm22, %v72, 0.0
  %85 = vadd.xlane.f32.xlu0 %v84
  %v86 = vpop.xlane.xlu0 %85
  %v87 = vsel %vm22, %v73, 0.0
  %88 = vadd.xlane.f32.xlu0 %v87
  %v89 = vpop.xlane.xlu0 %88
  %v90 = vsel %vm22, %v74, 0.0
  %91 = vadd.xlane.f32.xlu0 %v90
  %v92 = vpop.xlane.xlu0 %91
  %v93 = vsel %vm22, %v75, 0.0
  %94 = vadd.xlane.f32.xlu0 %v93
  %v95 = vpop.xlane.xlu0 %94
  %v96 = vsel %vm22, %v76, 0.0
  %97 = vadd.xlane.f32.xlu0 %v96
  %v98 = vpop.xlane.xlu0 %97
  %v99 = vsel %vm22, %v77, 0.0
  %100 = vadd.xlane.f32.xlu0 %v99
  %v101 = vpop.xlane.xlu0 %100
  %v102 = vmul.f32 %v80, %v53
  %v103 = vmul.f32 %v83, %v53
  %v104 = vmul.f32 %v86, %v53
  %v105 = vmul.f32 %v89, %v53
  %v106 = vmul.f32 %v92, %v53
  %v107 = vmul.f32 %v95, %v53
  %v108 = vmul.f32 %v98, %v53
  %v109 = vmul.f32 %v101, %v53
  %v110 = vadd.f32 %v102, 1e-06
  %v111 = vadd.f32 %v103, 1e-06
  %v112 = vadd.f32 %v104, 1e-06
  %v113 = vadd.f32 %v105, 1e-06
  %v114 = vadd.f32 %v106, 1e-06
  %v115 = vadd.f32 %v107, 1e-06
  %v116 = vadd.f32 %v108, 1e-06
  %v117 = vadd.f32 %v109, 1e-06
  %v118 = vrsqrt.pop %v110
  %v119 = vmul.f32 %v118, %v110
  %v120 = vmul.f32 %v119, %v118
  %v121 = vmul.f32 0.5, %v120
  %v122 = vsub.f32 1.5, %v121
  %v123 = vmul.f32 %v118, %v122
  %vm124 = vweird.f32 %v110
  %vm125 = vweird.f32 %v118
  %vm126 = vmor %vm124, %vm125
  %v127 = vsel %vm126, %v118, %v123
  %v128 = vrsqrt.pop %v111
  %v129 = vmul.f32 %v128, %v111
  %v130 = vmul.f32 %v129, %v128
  %v131 = vmul.f32 0.5, %v130
  %v132 = vsub.f32 1.5, %v131
  %v133 = vmul.f32 %v128, %v132
  %vm134 = vweird.f32 %v111
  %vm135 = vweird.f32 %v128
  %vm136 = vmor %vm134, %vm135
  %v137 = vsel %vm136, %v128, %v133
  %v138 = vrsqrt.pop %v112
  %v139 = vmul.f32 %v138, %v112
  %v140 = vmul.f32 %v139, %v138
  %v141 = vmul.f32 0.5, %v140
  %v142 = vsub.f32 1.5, %v141
  %v143 = vmul.f32 %v138, %v142
  %vm144 = vweird.f32 %v112
  %vm145 = vweird.f32 %v138
  %vm146 = vmor %vm144, %vm145
  %v147 = vsel %vm146, %v138, %v143
  %v148 = vrsqrt.pop %v113
  %v149 = vmul.f32 %v148, %v113
  %v150 = vmul.f32 %v149, %v148
  %v151 = vmul.f32 0.5, %v150
  %v152 = vsub.f32 1.5, %v151
  %v153 = vmul.f32 %v148, %v152
  %vm154 = vweird.f32 %v113
  %vm155 = vweird.f32 %v148
  %vm156 = vmor %vm154, %vm155
  %v157 = vsel %vm156, %v148, %v153
  %v158 = vrsqrt.pop %v114
  %v159 = vmul.f32 %v158, %v114
  %v160 = vmul.f32 %v159, %v158
  %v161 = vmul.f32 0.5, %v160
  %v162 = vsub.f32 1.5, %v161
  %v163 = vmul.f32 %v158, %v162
  %vm164 = vweird.f32 %v114
  %vm165 = vweird.f32 %v158
  %vm166 = vmor %vm164, %vm165
  %v167 = vsel %vm166, %v158, %v163
  %v168 = vrsqrt.pop %v115
  %v169 = vmul.f32 %v168, %v115
  %v170 = vmul.f32 %v169, %v168
  %v171 = vmul.f32 0.5, %v170
  %v172 = vsub.f32 1.5, %v171
  %v173 = vmul.f32 %v168, %v172
  %vm174 = vweird.f32 %v115
  %vm175 = vweird.f32 %v168
  %vm176 = vmor %vm174, %vm175
  %v177 = vsel %vm176, %v168, %v173
  %v178 = vrsqrt.pop %v116
  %v179 = vmul.f32 %v178, %v116
  %v180 = vmul.f32 %v179, %v178
  %v181 = vmul.f32 0.5, %v180
  %v182 = vsub.f32 1.5, %v181
  %v183 = vmul.f32 %v178, %v182
  %vm184 = vweird.f32 %v116
  %vm185 = vweird.f32 %v178
  %vm186 = vmor %vm184, %vm185
  %v187 = vsel %vm186, %v178, %v183
  %v188 = vrsqrt.pop %v117
  %v189 = vmul.f32 %v188, %v117
  %v190 = vmul.f32 %v189, %v188
  %v191 = vmul.f32 0.5, %v190
  %v192 = vsub.f32 1.5, %v191
  %v193 = vmul.f32 %v188, %v192
  %vm194 = vweird.f32 %v117
  %vm195 = vweird.f32 %v188
  %vm196 = vmor %vm194, %vm195
  %v197 = vsel %vm196, %v188, %v193
  %v198 = vmul.f32 %v62, %v127
  %v199 = vmul.f32 %v63, %v137
  %v200 = vmul.f32 %v64, %v147
  %v201 = vmul.f32 %v65, %v157
  %v202 = vmul.f32 %v66, %v167
  %v203 = vmul.f32 %v67, %v177
  %v204 = vmul.f32 %v68, %v187
  %v205 = vmul.f32 %v69, %v197
  %v206 = vld [vmem:[%s1] sm:$0x1]
  %v208 = vperm.slane %v206, 0
  %v210 = vmul.f32 %v198, %v208
  %v211 = vmul.f32 %v199, %v208
  %v212 = vmul.f32 %v200, %v208
  %v213 = vmul.f32 %v201, %v208
  %v214 = vmul.f32 %v202, %v208
  %v215 = vmul.f32 %v203, %v208
  %v216 = vmul.f32 %v204, %v208
  %v217 = vmul.f32 %v205, %v208
  %v218 = vld [vmem:[%s2] sm:$0x1]
  %v220 = vperm.slane %v218, 0
  %v222 = vadd.f32 %v210, %v220
  %v223 = vadd.f32 %v211, %v220
  %v224 = vadd.f32 %v212, %v220
  %v225 = vadd.f32 %v213, %v220
  %v226 = vadd.f32 %v214, %v220
  %v227 = vadd.f32 %v215, %v220
  %v228 = vadd.f32 %v216, %v220
  %v229 = vadd.f32 %v217, %v220
  %230 = vst.msk [vmem:[%s3] sm:$0xff] %vm22, %v222
  %231 = vst.msk [vmem:[%s3 + $0x8] sm:$0xff] %vm22, %v223
  %232 = vst.msk [vmem:[%s3 + $0x10] sm:$0xff] %vm22, %v224
  %233 = vst.msk [vmem:[%s3 + $0x18] sm:$0xff] %vm22, %v225
  %234 = vst.msk [vmem:[%s3 + $0x20] sm:$0xff] %vm22, %v226
  %235 = vst.msk [vmem:[%s3 + $0x28] sm:$0xff] %vm22, %v227
  %236 = vst.msk [vmem:[%s3 + $0x30] sm:$0xff] %vm22, %v228
  %237 = vst.msk [vmem:[%s3 + $0x38] sm:$0xff] %vm22, %v229
  // Predicated region
  $region14: #{_lambda_.50} parent=0 // pred_check
    _
  $region15: #{_lambda_.50} parent=0 // pred_check_branch
    %239 = sbr.rel (0) target = $region17
  $region16: #{_lambda_.50} parent=0 // pred_region
    _
  $region17: #{_lambda_.50} parent=0 // pred_fallthru
    _
  // Predicated region
  $region18: #{_lambda_.50} parent=0 // pred_check
    _
  $region19: #{_lambda_.50} parent=0 // pred_check_branch
    %241 = sbr.rel (0) target = $region21
  $region20: #{_lambda_.50} parent=0 // pred_region
    _
  $region21: #{_lambda_.50} parent=0 // pred_fallthru
    _

// kernel: _lambda_.59
$region0: #{_lambda_.59}
  #allocation0 [shape = 'u32[]', space=smem, size = 0x4, offset = 0x4, fixed_abs, tag = 'smem constant byte address 0x4 - core index']
  #allocation1 [shape = 'u32[72,128]{1,0:T(1,128)}', space=vmem, size = 0x9000, scoped, tag = 'internal scratch']
  %s0 = inlined_call_operand.vmem [shape: f32[64,32], index: 0, kind: input, shape index: {}]
  %s1 = inlined_call_operand.vmem [shape: f32[32,128], index: 1, kind: input, shape index: {}]
  %s2 = inlined_call_operand.vmem [shape: f32[1,128], index: 2, kind: input, shape index: {}]
  %s3 = inlined_call_operand.vmem [shape: f32[64,128], index: 3, kind: output, shape index: {}]
  %s4 = sld [smem:[#allocation0]]
  $region22: #{_lambda_.59} parent=0
    _
  %s6 = ssub.s32 1, %s4
  %s7 = scalar_select 0, %s6, %s4
  // Predicated region
  $region2: #{_lambda_.59} parent=0 // pred_check
    _
  $region3: #{_lambda_.59} parent=0 // pred_check_branch
    %9 = sbr.rel (0) target = $region5
  $region4: #{_lambda_.59} parent=0 // pred_region
    _
  $region5: #{_lambda_.59} parent=0 // pred_fallthru
    _
  // Predicated region
  $region6: #{_lambda_.59} parent=0 // pred_check
    _
  $region7: #{_lambda_.59} parent=0 // pred_check_branch
    %11 = sbr.rel (0) target = $region9
  $region8: #{_lambda_.59} parent=0 // pred_region
    _
  $region9: #{_lambda_.59} parent=0 // pred_fallthru
    _
  // Predicated region
  $region10: #{_lambda_.59} parent=0 // pred_check
    _
  $region11: #{_lambda_.59} parent=0 // pred_check_branch
    %13 = sbr.rel (0) target = $region13
  $region12: #{_lambda_.59} parent=0 // pred_region
    _
  $region13: #{_lambda_.59} parent=0 // pred_fallthru
    _
  %v14 = vld [vmem:[%s0] sm:$0xff]
  %v15 = vld [vmem:[%s0 + $0x8] sm:$0xff]
  %v16 = vld [vmem:[%s0 + $0x10] sm:$0xff]
  %v17 = vld [vmem:[%s0 + $0x18] sm:$0xff]
  %v18 = vld [vmem:[%s0 + $0x20] sm:$0xff]
  %v19 = vld [vmem:[%s0 + $0x28] sm:$0xff]
  %v20 = vld [vmem:[%s0 + $0x30] sm:$0xff]
  %v21 = vld [vmem:[%s0 + $0x38] sm:$0xff]
  %v22 = vld [vmem:[%s1] sm:$0xff]
  %v23 = vld [vmem:[%s1 + $0x8] sm:$0xff]
  %v24 = vld [vmem:[%s1 + $0x10] sm:$0xff]
  %v25 = vld [vmem:[%s1 + $0x18] sm:$0xff]
  %v26 = vld [vmem:[%s2] sm:$0x1]
  %v28 = vperm.slane %v26, 0
  %vm30 = vcmask 261120
  %v32 = vsel %vm30, %v14, 0
  %v35 = vsel %vm30, %v15, 0
  %v38 = vsel %vm30, %v16, 0
  %v41 = vsel %vm30, %v17, 0
  %v44 = vsel %vm30, %v18, 0
  %v47 = vsel %vm30, %v19, 0
  %v50 = vsel %vm30, %v20, 0
  %v53 = vsel %vm30, %v21, 0
  %55 = vmatpush.msra.mxu0 0.0
  %56 = vmatpush.msra.mxu0 0.0
  %57 = vmatpush.msra.mxu0 0.0
  %58 = vmatpush.msra.mxu0 0.0
  %59 = vmatpush.msra.mxu0 0.0
  %60 = vmatpush.msra.mxu0 0.0
  %61 = vmatpush.msra.mxu0 0.0
  %62 = vmatpush.msra.mxu0 0.0
  %63 = vmatpush.msra.mxu0 0.0
  %64 = vmatpush.msra.mxu0 0.0
  %65 = vmatpush.msra.mxu0 0.0
  %66 = vmatpush.msra.mxu0 0.0
  %67 = vmatpush.msra.mxu0 %v25
  %68 = vmatpush.msra.mxu0 %v24
  %69 = vmatpush.msra.mxu0 %v23
  %70 = vmatpush.msra.mxu0 %v22
  %71 = vmatmul.f32.gmra.mxu0 %v32
  %v72 = vpop.f32.mrf.mxu0
  %v73 = vadd.f32 %v28, %v72
  %74 = vmatmul.f32.gmra.mxu0 %v35
  %v75 = vpop.f32.mrf.mxu0
  %v76 = vadd.f32 %v28, %v75
  %77 = vmatmul.f32.gmra.mxu0 %v38
  %v78 = vpop.f32.mrf.mxu0
  %v79 = vadd.f32 %v28, %v78
  %80 = vmatmul.f32.gmra.mxu0 %v41
  %v81 = vpop.f32.mrf.mxu0
  %v82 = vadd.f32 %v28, %v81
  %83 = vmatmul.f32.gmra.mxu0 %v44
  %v84 = vpop.f32.mrf.mxu0
  %v85 = vadd.f32 %v28, %v84
  %86 = vmatmul.f32.gmra.mxu0 %v47
  %v87 = vpop.f32.mrf.mxu0
  %v88 = vadd.f32 %v28, %v87
  %89 = vmatmul.f32.gmra.mxu0 %v50
  %v90 = vpop.f32.mrf.mxu0
  %v91 = vadd.f32 %v28, %v90
  %92 = vmatmul.f32.gmra.mxu0 %v53
  %v93 = vpop.f32.mrf.mxu0
  %v94 = vadd.f32 %v28, %v93
  %95 = vdwg.mxu0
  %v96 = vmax.f32 %v73, 0.0
  %v97 = vmax.f32 %v76, 0.0
  %v98 = vmax.f32 %v79, 0.0
  %v99 = vmax.f32 %v82, 0.0
  %v100 = vmax.f32 %v85, 0.0
  %v101 = vmax.f32 %v88, 0.0
  %v102 = vmax.f32 %v91, 0.0
  %v103 = vmax.f32 %v94, 0.0
  %104 = vst [vmem:[%s3] sm:$0xff] %v96
  %105 = vst [vmem:[%s3 + $0x8] sm:$0xff] %v97
  %106 = vst [vmem:[%s3 + $0x10] sm:$0xff] %v98
  %107 = vst [vmem:[%s3 + $0x18] sm:$0xff] %v99
  %108 = vst [vmem:[%s3 + $0x20] sm:$0xff] %v100
  %109 = vst [vmem:[%s3 + $0x28] sm:$0xff] %v101
  %110 = vst [vmem:[%s3 + $0x30] sm:$0xff] %v102
  %111 = vst [vmem:[%s3 + $0x38] sm:$0xff] %v103
  // Predicated region
  $region14: #{_lambda_.59} parent=0 // pred_check
    _
  $region15: #{_lambda_.59} parent=0 // pred_check_branch
    %113 = sbr.rel (0) target = $region17
  $region16: #{_lambda_.59} parent=0 // pred_region
    _
  $region17: #{_lambda_.59} parent=0 // pred_fallthru
    _
  // Predicated region
  $region18: #{_lambda_.59} parent=0 // pred_check
    _
  $region19: #{_lambda_.59} parent=0 // pred_check_branch
    %115 = sbr.rel (0) target = $region21
  $region20: #{_lambda_.59} parent=0 // pred_region
    _
  $region21: #{_lambda_.59} parent=0 // pred_fallthru
    _

// kernel: _lambda_.81
$region0: #{_lambda_.81}
  #allocation0 [shape = 'u32[]', space=smem, size = 0x4, offset = 0x4, fixed_abs, tag = 'smem constant byte address 0x4 - core index']
  #allocation1 [shape = 'u32[72,128]{1,0:T(1,128)}', space=vmem, size = 0x9000, scoped, tag = 'internal scratch']
  %s0 = inlined_call_operand.vmem [shape: f32[64,32], index: 0, kind: input, shape index: {}]
  %s1 = inlined_call_operand.vmem [shape: f32[1,32], index: 1, kind: input, shape index: {}]
  %s2 = inlined_call_operand.vmem [shape: f32[1,32], index: 2, kind: input, shape index: {}]
  %s3 = inlined_call_operand.hbm [shape: f32[64,32], index: 3, kind: output, shape index: {}]
  %s4 = sld [smem:[#allocation0]]
  $region22: #{_lambda_.81} parent=0
    _
  %s6 = ssub.s32 1, %s4
  %s7 = scalar_select 0, %s6, %s4
  $region1: #{_lambda_.81} parent=0
    #allocation2 [shape = 'u8[32768]{0}', space=vmem, size = 0x8000, scoped, tag = 'output window, operand 0, single buffered']
    #allocation3 [shape = 's32[1]{0}', space=sflag, size = 0x4, scoped, tag = 'scoped memory for _lambda_.81']
    %8 = vsyncpa [#allocation3], 0
    // Predicated region
    $region2: #{_lambda_.81} parent=1 // pred_check
      _
    $region3: #{_lambda_.81} parent=1 // pred_check_branch
      %10 = sbr.rel (0) target = $region5
    $region4: #{_lambda_.81} parent=1 // pred_region
      _
    $region5: #{_lambda_.81} parent=1 // pred_fallthru
      _
    // Predicated region
    $region6: #{_lambda_.81} parent=1 // pred_check
      _
    $region7: #{_lambda_.81} parent=1 // pred_check_branch
      %12 = sbr.rel (0) target = $region9
    $region8: #{_lambda_.81} parent=1 // pred_region
      _
    $region9: #{_lambda_.81} parent=1 // pred_fallthru
      _
    // Predicated region
    $region10: #{_lambda_.81} parent=1 // pred_check
      _
    $region11: #{_lambda_.81} parent=1 // pred_check_branch
      %14 = sbr.rel (0) target = $region13
    $region12: #{_lambda_.81} parent=1 // pred_region
      _
    $region13: #{_lambda_.81} parent=1 // pred_fallthru
      _
    %v15 = vld [vmem:[%s0] sm:$0xff]
    %v16 = vld [vmem:[%s0 + $0x8] sm:$0xff]
    %v17 = vld [vmem:[%s0 + $0x10] sm:$0xff]
    %v18 = vld [vmem:[%s0 + $0x18] sm:$0xff]
    %v19 = vld [vmem:[%s0 + $0x20] sm:$0xff]
    %v20 = vld [vmem:[%s0 + $0x28] sm:$0xff]
    %v21 = vld [vmem:[%s0 + $0x30] sm:$0xff]
    %v22 = vld [vmem:[%s0 + $0x38] sm:$0xff]
    %vm23 = vcmask 261120
    %v24 = vsel %vm23, %v15, 0.0
    %25 = vadd.xlane.f32.xlu0 %v24
    %v26 = vpop.xlane.xlu0 %25
    %v27 = vsel %vm23, %v16, 0.0
    %28 = vadd.xlane.f32.xlu0 %v27
    %v29 = vpop.xlane.xlu0 %28
    %v30 = vsel %vm23, %v17, 0.0
    %31 = vadd.xlane.f32.xlu0 %v30
    %v32 = vpop.xlane.xlu0 %31
    %v33 = vsel %vm23, %v18, 0.0
    %34 = vadd.xlane.f32.xlu0 %v33
    %v35 = vpop.xlane.xlu0 %34
    %v36 = vsel %vm23, %v19, 0.0
    %37 = vadd.xlane.f32.xlu0 %v36
    %v38 = vpop.xlane.xlu0 %37
    %v39 = vsel %vm23, %v20, 0.0
    %40 = vadd.xlane.f32.xlu0 %v39
    %v41 = vpop.xlane.xlu0 %40
    %v42 = vsel %vm23, %v21, 0.0
    %43 = vadd.xlane.f32.xlu0 %v42
    %v44 = vpop.xlane.xlu0 %43
    %v45 = vsel %vm23, %v22, 0.0
    %46 = vadd.xlane.f32.xlu0 %v45
    %v47 = vpop.xlane.xlu0 %46
    %v48 = vrcp.pop 32.0
    %v49 = vmul.f32 32.0, %v48
    %v50 = vsub.f32 1.0, %v49
    %v51 = vmul.f32 %v48, %v50
    %v52 = vadd.f32 %v48, %v51
    %vm53 = vweird.f32 %v48
    %v54 = vsel %vm53, %v48, %v52
    %v55 = vmul.f32 %v26, %v54
    %v56 = vmul.f32 %v29, %v54
    %v57 = vmul.f32 %v32, %v54
    %v58 = vmul.f32 %v35, %v54
    %v59 = vmul.f32 %v38, %v54
    %v60 = vmul.f32 %v41, %v54
    %v61 = vmul.f32 %v44, %v54
    %v62 = vmul.f32 %v47, %v54
    %v63 = vsub.f32 %v15, %v55
    %v64 = vsub.f32 %v16, %v56
    %v65 = vsub.f32 %v17, %v57
    %v66 = vsub.f32 %v18, %v58
    %v67 = vsub.f32 %v19, %v59
    %v68 = vsub.f32 %v20, %v60
    %v69 = vsub.f32 %v21, %v61
    %v70 = vsub.f32 %v22, %v62
    %v71 = vmul.f32 %v63, %v63
    %v72 = vmul.f32 %v64, %v64
    %v73 = vmul.f32 %v65, %v65
    %v74 = vmul.f32 %v66, %v66
    %v75 = vmul.f32 %v67, %v67
    %v76 = vmul.f32 %v68, %v68
    %v77 = vmul.f32 %v69, %v69
    %v78 = vmul.f32 %v70, %v70
    %v79 = vsel %vm23, %v71, 0.0
    %80 = vadd.xlane.f32.xlu0 %v79
    %v81 = vpop.xlane.xlu0 %80
    %v82 = vsel %vm23, %v72, 0.0
    %83 = vadd.xlane.f32.xlu0 %v82
    %v84 = vpop.xlane.xlu0 %83
    %v85 = vsel %vm23, %v73, 0.0
    %86 = vadd.xlane.f32.xlu0 %v85
    %v87 = vpop.xlane.xlu0 %86
    %v88 = vsel %vm23, %v74, 0.0
    %89 = vadd.xlane.f32.xlu0 %v88
    %v90 = vpop.xlane.xlu0 %89
    %v91 = vsel %vm23, %v75, 0.0
    %92 = vadd.xlane.f32.xlu0 %v91
    %v93 = vpop.xlane.xlu0 %92
    %v94 = vsel %vm23, %v76, 0.0
    %95 = vadd.xlane.f32.xlu0 %v94
    %v96 = vpop.xlane.xlu0 %95
    %v97 = vsel %vm23, %v77, 0.0
    %98 = vadd.xlane.f32.xlu0 %v97
    %v99 = vpop.xlane.xlu0 %98
    %v100 = vsel %vm23, %v78, 0.0
    %101 = vadd.xlane.f32.xlu0 %v100
    %v102 = vpop.xlane.xlu0 %101
    %v103 = vmul.f32 %v81, %v54
    %v104 = vmul.f32 %v84, %v54
    %v105 = vmul.f32 %v87, %v54
    %v106 = vmul.f32 %v90, %v54
    %v107 = vmul.f32 %v93, %v54
    %v108 = vmul.f32 %v96, %v54
    %v109 = vmul.f32 %v99, %v54
    %v110 = vmul.f32 %v102, %v54
    %v111 = vadd.f32 %v103, 1e-06
    %v112 = vadd.f32 %v104, 1e-06
    %v113 = vadd.f32 %v105, 1e-06
    %v114 = vadd.f32 %v106, 1e-06
    %v115 = vadd.f32 %v107, 1e-06
    %v116 = vadd.f32 %v108, 1e-06
    %v117 = vadd.f32 %v109, 1e-06
    %v118 = vadd.f32 %v110, 1e-06
    %v119 = vrsqrt.pop %v111
    %v120 = vmul.f32 %v119, %v111
    %v121 = vmul.f32 %v120, %v119
    %v122 = vmul.f32 0.5, %v121
    %v123 = vsub.f32 1.5, %v122
    %v124 = vmul.f32 %v119, %v123
    %vm125 = vweird.f32 %v111
    %vm126 = vweird.f32 %v119
    %vm127 = vmor %vm125, %vm126
    %v128 = vsel %vm127, %v119, %v124
    %v129 = vrsqrt.pop %v112
    %v130 = vmul.f32 %v129, %v112
    %v131 = vmul.f32 %v130, %v129
    %v132 = vmul.f32 0.5, %v131
    %v133 = vsub.f32 1.5, %v132
    %v134 = vmul.f32 %v129, %v133
    %vm135 = vweird.f32 %v112
    %vm136 = vweird.f32 %v129
    %vm137 = vmor %vm135, %vm136
    %v138 = vsel %vm137, %v129, %v134
    %v139 = vrsqrt.pop %v113
    %v140 = vmul.f32 %v139, %v113
    %v141 = vmul.f32 %v140, %v139
    %v142 = vmul.f32 0.5, %v141
    %v143 = vsub.f32 1.5, %v142
    %v144 = vmul.f32 %v139, %v143
    %vm145 = vweird.f32 %v113
    %vm146 = vweird.f32 %v139
    %vm147 = vmor %vm145, %vm146
    %v148 = vsel %vm147, %v139, %v144
    %v149 = vrsqrt.pop %v114
    %v150 = vmul.f32 %v149, %v114
    %v151 = vmul.f32 %v150, %v149
    %v152 = vmul.f32 0.5, %v151
    %v153 = vsub.f32 1.5, %v152
    %v154 = vmul.f32 %v149, %v153
    %vm155 = vweird.f32 %v114
    %vm156 = vweird.f32 %v149
    %vm157 = vmor %vm155, %vm156
    %v158 = vsel %vm157, %v149, %v154
    %v159 = vrsqrt.pop %v115
    %v160 = vmul.f32 %v159, %v115
    %v161 = vmul.f32 %v160, %v159
    %v162 = vmul.f32 0.5, %v161
    %v163 = vsub.f32 1.5, %v162
    %v164 = vmul.f32 %v159, %v163
    %vm165 = vweird.f32 %v115
    %vm166 = vweird.f32 %v159
    %vm167 = vmor %vm165, %vm166
    %v168 = vsel %vm167, %v159, %v164
    %v169 = vrsqrt.pop %v116
    %v170 = vmul.f32 %v169, %v116
    %v171 = vmul.f32 %v170, %v169
    %v172 = vmul.f32 0.5, %v171
    %v173 = vsub.f32 1.5, %v172
    %v174 = vmul.f32 %v169, %v173
    %vm175 = vweird.f32 %v116
    %vm176 = vweird.f32 %v169
    %vm177 = vmor %vm175, %vm176
    %v178 = vsel %vm177, %v169, %v174
    %v179 = vrsqrt.pop %v117
    %v180 = vmul.f32 %v179, %v117
    %v181 = vmul.f32 %v180, %v179
    %v182 = vmul.f32 0.5, %v181
    %v183 = vsub.f32 1.5, %v182
    %v184 = vmul.f32 %v179, %v183
    %vm185 = vweird.f32 %v117
    %vm186 = vweird.f32 %v179
    %vm187 = vmor %vm185, %vm186
    %v188 = vsel %vm187, %v179, %v184
    %v189 = vrsqrt.pop %v118
    %v190 = vmul.f32 %v189, %v118
    %v191 = vmul.f32 %v190, %v189
    %v192 = vmul.f32 0.5, %v191
    %v193 = vsub.f32 1.5, %v192
    %v194 = vmul.f32 %v189, %v193
    %vm195 = vweird.f32 %v118
    %vm196 = vweird.f32 %v189
    %vm197 = vmor %vm195, %vm196
    %v198 = vsel %vm197, %v189, %v194
    %v199 = vmul.f32 %v63, %v128
    %v200 = vmul.f32 %v64, %v138
    %v201 = vmul.f32 %v65, %v148
    %v202 = vmul.f32 %v66, %v158
    %v203 = vmul.f32 %v67, %v168
    %v204 = vmul.f32 %v68, %v178
    %v205 = vmul.f32 %v69, %v188
    %v206 = vmul.f32 %v70, %v198
    %v207 = vld [vmem:[%s1] sm:$0x1]
    %v209 = vperm.slane %v207, 0
    %v211 = vmul.f32 %v199, %v209
    %v212 = vmul.f32 %v200, %v209
    %v213 = vmul.f32 %v201, %v209
    %v214 = vmul.f32 %v202, %v209
    %v215 = vmul.f32 %v203, %v209
    %v216 = vmul.f32 %v204, %v209
    %v217 = vmul.f32 %v205, %v209
    %v218 = vmul.f32 %v206, %v209
    %v219 = vld [vmem:[%s2] sm:$0x1]
    %v221 = vperm.slane %v219, 0
    %v223 = vadd.f32 %v211, %v221
    %v224 = vadd.f32 %v212, %v221
    %v225 = vadd.f32 %v213, %v221
    %v226 = vadd.f32 %v214, %v221
    %v227 = vadd.f32 %v215, %v221
    %v228 = vadd.f32 %v216, %v221
    %v229 = vadd.f32 %v217, %v221
    %v230 = vadd.f32 %v218, %v221
    %231 = vst.msk [vmem:[#allocation2] sm:$0xff] %vm23, %v223
    %232 = vst.msk [vmem:[#allocation2 + $0x8] sm:$0xff] %vm23, %v224
    %233 = vst.msk [vmem:[#allocation2 + $0x10] sm:$0xff] %vm23, %v225
    %234 = vst.msk [vmem:[#allocation2 + $0x18] sm:$0xff] %vm23, %v226
    %235 = vst.msk [vmem:[#allocation2 + $0x20] sm:$0xff] %vm23, %v227
    %236 = vst.msk [vmem:[#allocation2 + $0x28] sm:$0xff] %vm23, %v228
    %237 = vst.msk [vmem:[#allocation2 + $0x30] sm:$0xff] %vm23, %v229
    %238 = vst.msk [vmem:[#allocation2 + $0x38] sm:$0xff] %vm23, %v230
    // Predicated region
    $region14: #{_lambda_.81} parent=1 // pred_check
      _
    $region15: #{_lambda_.81} parent=1 // pred_check_branch
      %240 = sbr.rel (0) target = $region17
    $region16: #{_lambda_.81} parent=1 // pred_region
      %242 = vsyncadd [#allocation3], 0
      %s243 = sshll.u32 [#allocation2], 4
      %s244 = int_to_ptr.vmem [resolvable:$true] %s243
      %s245 = sshll.u32 %s3, 4
      %s246 = int_to_ptr.hbm [resolvable:$true] %s245
      %251 = dma.vmem_to_hbm [thread:$0]  %s244, 1024, %s246, [#allocation3], 128, 128, 8
    $region17: #{_lambda_.81} parent=1 // pred_fallthru
      _
    // Predicated region
    $region18: #{_lambda_.81} parent=1 // pred_check
      _
    $region19: #{_lambda_.81} parent=1 // pred_check_branch
      %253 = sbr.rel (0) target = $region21
    $region20: #{_lambda_.81} parent=1 // pred_region
      %255 = dma.done [#allocation3], 1024
    $region21: #{_lambda_.81} parent=1 // pred_fallthru
      _
    %256 = vsyncpa [#allocation3], 1

// kernel: _lambda_.48
$region0: #{_lambda_.48}
  #allocation0 [shape = 'u32[]', space=smem, size = 0x4, offset = 0x4, fixed_abs, tag = 'smem constant byte address 0x4 - core index']
  #allocation1 [shape = 'u32[72,128]{1,0:T(1,128)}', space=vmem, size = 0x9000, scoped, tag = 'internal scratch']
  %s0 = inlined_call_operand.vmem [shape: f32[64,4,8], index: 0, kind: input, shape index: {}, may-alias: {0,1,2}]
  %s1 = inlined_call_operand.vmem [shape: f32[64,4,8], index: 1, kind: input, shape index: {}, may-alias: {0,1,2}]
  %s2 = inlined_call_operand.vmem [shape: f32[64,4,8], index: 2, kind: input, shape index: {}, may-alias: {0,1,2}]
  %s3 = inlined_call_operand.vmem [shape: f32[64,4,8], index: 3, kind: output, shape index: {}]
  %s4 = sld [smem:[#allocation0]]
  $region22: #{_lambda_.48} parent=0
    _
  %s6 = ssub.s32 1, %s4
  %s7 = scalar_select 0, %s6, %s4
  // Predicated region
  $region2: #{_lambda_.48} parent=0 // pred_check
    _
  $region3: #{_lambda_.48} parent=0 // pred_check_branch
    %9 = sbr.rel (0) target = $region5
  $region4: #{_lambda_.48} parent=0 // pred_region
    _
  $region5: #{_lambda_.48} parent=0 // pred_fallthru
    _
  // Predicated region
  $region6: #{_lambda_.48} parent=0 // pred_check
    _
  $region7: #{_lambda_.48} parent=0 // pred_check_branch
    %11 = sbr.rel (0) target = $region9
  $region8: #{_lambda_.48} parent=0 // pred_region
    _
  $region9: #{_lambda_.48} parent=0 // pred_fallthru
    _
  // Predicated region
  $region10: #{_lambda_.48} parent=0 // pred_check
    _
  $region11: #{_lambda_.48} parent=0 // pred_check_branch
    %13 = sbr.rel (0) target = $region13
  $region12: #{_lambda_.48} parent=0 // pred_region
    _
  $region13: #{_lambda_.48} parent=0 // pred_fallthru
    _
  %v14 = vld [vmem:[%s0] sm:$0xf]
  %v15 = vld [vmem:[%s0 + $0x4] sm:$0xf]
  %v16 = vld [vmem:[%s0 + $0x8] sm:$0xf]
  %v17 = vld [vmem:[%s0 + $0xc] sm:$0xf]
  %v18 = vld [vmem:[%s0 + $0x10] sm:$0xf]
  %v19 = vld [vmem:[%s0 + $0x14] sm:$0xf]
  %v20 = vld [vmem:[%s0 + $0x18] sm:$0xf]
  %v21 = vld [vmem:[%s0 + $0x1c] sm:$0xf]
  %v22 = vld [vmem:[%s0 + $0x20] sm:$0xf]
  %v23 = vld [vmem:[%s0 + $0x24] sm:$0xf]
  %v24 = vld [vmem:[%s0 + $0x28] sm:$0xf]
  %v25 = vld [vmem:[%s0 + $0x2c] sm:$0xf]
  %v26 = vld [vmem:[%s0 + $0x30] sm:$0xf]
  %v27 = vld [vmem:[%s0 + $0x34] sm:$0xf]
  %v28 = vld [vmem:[%s0 + $0x38] sm:$0xf]
  %v29 = vld [vmem:[%s0 + $0x3c] sm:$0xf]
  %v30 = vld [vmem:[%s0 + $0x40] sm:$0xf]
  %v31 = vld [vmem:[%s0 + $0x44] sm:$0xf]
  %v32 = vld [vmem:[%s0 + $0x48] sm:$0xf]
  %v33 = vld [vmem:[%s0 + $0x4c] sm:$0xf]
  %v34 = vld [vmem:[%s0 + $0x50] sm:$0xf]
  %v35 = vld [vmem:[%s0 + $0x54] sm:$0xf]
  %v36 = vld [vmem:[%s0 + $0x58] sm:$0xf]
  %v37 = vld [vmem:[%s0 + $0x5c] sm:$0xf]
  %v38 = vld [vmem:[%s0 + $0x60] sm:$0xf]
  %v39 = vld [vmem:[%s0 + $0x64] sm:$0xf]
  %v40 = vld [vmem:[%s0 + $0x68] sm:$0xf]
  %v41 = vld [vmem:[%s0 + $0x6c] sm:$0xf]
  %v42 = vld [vmem:[%s0 + $0x70] sm:$0xf]
  %v43 = vld [vmem:[%s0 + $0x74] sm:$0xf]
  %v44 = vld [vmem:[%s0 + $0x78] sm:$0xf]
  %v45 = vld [vmem:[%s0 + $0x7c] sm:$0xf]
  %v46 = vld [vmem:[%s0 + $0x80] sm:$0xf]
  %v47 = vld [vmem:[%s0 + $0x84] sm:$0xf]
  %v48 = vld [vmem:[%s0 + $0x88] sm:$0xf]
  %v49 = vld [vmem:[%s0 + $0x8c] sm:$0xf]
  %v50 = vld [vmem:[%s0 + $0x90] sm:$0xf]
  %v51 = vld [vmem:[%s0 + $0x94] sm:$0xf]
  %v52 = vld [vmem:[%s0 + $0x98] sm:$0xf]
  %v53 = vld [vmem:[%s0 + $0x9c] sm:$0xf]
  %v54 = vld [vmem:[%s0 + $0xa0] sm:$0xf]
  %v55 = vld [vmem:[%s0 + $0xa4] sm:$0xf]
  %v56 = vld [vmem:[%s0 + $0xa8] sm:$0xf]
  %v57 = vld [vmem:[%s0 + $0xac] sm:$0xf]
  %v58 = vld [vmem:[%s0 + $0xb0] sm:$0xf]
  %v59 = vld [vmem:[%s0 + $0xb4] sm:$0xf]
  %v60 = vld [vmem:[%s0 + $0xb8] sm:$0xf]
  %v61 = vld [vmem:[%s0 + $0xbc] sm:$0xf]
  %v62 = vld [vmem:[%s0 + $0xc0] sm:$0xf]
  %v63 = vld [vmem:[%s0 + $0xc4] sm:$0xf]
  %v64 = vld [vmem:[%s0 + $0xc8] sm:$0xf]
  %v65 = vld [vmem:[%s0 + $0xcc] sm:$0xf]
  %v66 = vld [vmem:[%s0 + $0xd0] sm:$0xf]
  %v67 = vld [vmem:[%s0 + $0xd4] sm:$0xf]
  %v68 = vld [vmem:[%s0 + $0xd8] sm:$0xf]
  %v69 = vld [vmem:[%s0 + $0xdc] sm:$0xf]
  %v70 = vld [vmem:[%s0 + $0xe0] sm:$0xf]
  %v71 = vld [vmem:[%s0 + $0xe4] sm:$0xf]
  %v72 = vld [vmem:[%s0 + $0xe8] sm:$0xf]
  %v73 = vld [vmem:[%s0 + $0xec] sm:$0xf]
  %v74 = vld [vmem:[%s0 + $0xf0] sm:$0xf]
  %v75 = vld [vmem:[%s0 + $0xf4] sm:$0xf]
  %v76 = vld [vmem:[%s0 + $0xf8] sm:$0xf]
  %v77 = vld [vmem:[%s0 + $0xfc] sm:$0xf]
  %v78 = vld [vmem:[%s1] sm:$0xf]
  %v79 = vld [vmem:[%s1 + $0x4] sm:$0xf]
  %v80 = vld [vmem:[%s1 + $0x8] sm:$0xf]
  %v81 = vld [vmem:[%s1 + $0xc] sm:$0xf]
  %v82 = vld [vmem:[%s1 + $0x10] sm:$0xf]
  %v83 = vld [vmem:[%s1 + $0x14] sm:$0xf]
  %v84 = vld [vmem:[%s1 + $0x18] sm:$0xf]
  %v85 = vld [vmem:[%s1 + $0x1c] sm:$0xf]
  %v86 = vld [vmem:[%s1 + $0x20] sm:$0xf]
  %v87 = vld [vmem:[%s1 + $0x24] sm:$0xf]
  %v88 = vld [vmem:[%s1 + $0x28] sm:$0xf]
  %v89 = vld [vmem:[%s1 + $0x2c] sm:$0xf]
  %v90 = vld [vmem:[%s1 + $0x30] sm:$0xf]
  %v91 = vld [vmem:[%s1 + $0x34] sm:$0xf]
  %v92 = vld [vmem:[%s1 + $0x38] sm:$0xf]
  %v93 = vld [vmem:[%s1 + $0x3c] sm:$0xf]
  %v94 = vld [vmem:[%s1 + $0x40] sm:$0xf]
  %v95 = vld [vmem:[%s1 + $0x44] sm:$0xf]
  %v96 = vld [vmem:[%s1 + $0x48] sm:$0xf]
  %v97 = vld [vmem:[%s1 + $0x4c] sm:$0xf]
  %v98 = vld [vmem:[%s1 + $0x50] sm:$0xf]
  %v99 = vld [vmem:[%s1 + $0x54] sm:$0xf]
  %v100 = vld [vmem:[%s1 + $0x58] sm:$0xf]
  %v101 = vld [vmem:[%s1 + $0x5c] sm:$0xf]
  %v102 = vld [vmem:[%s1 + $0x60] sm:$0xf]
  %v103 = vld [vmem:[%s1 + $0x64] sm:$0xf]
  %v104 = vld [vmem:[%s1 + $0x68] sm:$0xf]
  %v105 = vld [vmem:[%s1 + $0x6c] sm:$0xf]
  %v106 = vld [vmem:[%s1 + $0x70] sm:$0xf]
  %v107 = vld [vmem:[%s1 + $0x74] sm:$0xf]
  %v108 = vld [vmem:[%s1 + $0x78] sm:$0xf]
  %v109 = vld [vmem:[%s1 + $0x7c] sm:$0xf]
  %v110 = vld [vmem:[%s1 + $0x80] sm:$0xf]
  %v111 = vld [vmem:[%s1 + $0x84] sm:$0xf]
  %v112 = vld [vmem:[%s1 + $0x88] sm:$0xf]
  %v113 = vld [vmem:[%s1 + $0x8c] sm:$0xf]
  %v114 = vld [vmem:[%s1 + $0x90] sm:$0xf]
  %v115 = vld [vmem:[%s1 + $0x94] sm:$0xf]
  %v116 = vld [vmem:[%s1 + $0x98] sm:$0xf]
  %v117 = vld [vmem:[%s1 + $0x9c] sm:$0xf]
  %v118 = vld [vmem:[%s1 + $0xa0] sm:$0xf]
  %v119 = vld [vmem:[%s1 + $0xa4] sm:$0xf]
  %v120 = vld [vmem:[%s1 + $0xa8] sm:$0xf]
  %v121 = vld [vmem:[%s1 + $0xac] sm:$0xf]
  %v122 = vld [vmem:[%s1 + $0xb0] sm:$0xf]
  %v123 = vld [vmem:[%s1 + $0xb4] sm:$0xf]
  %v124 = vld [vmem:[%s1 + $0xb8] sm:$0xf]
  %v125 = vld [vmem:[%s1 + $0xbc] sm:$0xf]
  %v126 = vld [vmem:[%s1 + $0xc0] sm:$0xf]
  %v127 = vld [vmem:[%s1 + $0xc4] sm:$0xf]
  %v128 = vld [vmem:[%s1 + $0xc8] sm:$0xf]
  %v129 = vld [vmem:[%s1 + $0xcc] sm:$0xf]
  %v130 = vld [vmem:[%s1 + $0xd0] sm:$0xf]
  %v131 = vld [vmem:[%s1 + $0xd4] sm:$0xf]
  %v132 = vld [vmem:[%s1 + $0xd8] sm:$0xf]
  %v133 = vld [vmem:[%s1 + $0xdc] sm:$0xf]
  %v134 = vld [vmem:[%s1 + $0xe0] sm:$0xf]
  %v135 = vld [vmem:[%s1 + $0xe4] sm:$0xf]
  %v136 = vld [vmem:[%s1 + $0xe8] sm:$0xf]
  %v137 = vld [vmem:[%s1 + $0xec] sm:$0xf]
  %v138 = vld [vmem:[%s1 + $0xf0] sm:$0xf]
  %v139 = vld [vmem:[%s1 + $0xf4] sm:$0xf]
  %v140 = vld [vmem:[%s1 + $0xf8] sm:$0xf]
  %v141 = vld [vmem:[%s1 + $0xfc] sm:$0xf]
  %v142 = vld [vmem:[%s2] sm:$0xf]
  %v143 = vld [vmem:[%s2 + $0x4] sm:$0xf]
  %v144 = vld [vmem:[%s2 + $0x8] sm:$0xf]
  %v145 = vld [vmem:[%s2 + $0xc] sm:$0xf]
  %v146 = vld [vmem:[%s2 + $0x10] sm:$0xf]
  %v147 = vld [vmem:[%s2 + $0x14] sm:$0xf]
  %v148 = vld [vmem:[%s2 + $0x18] sm:$0xf]
  %v149 = vld [vmem:[%s2 + $0x1c] sm:$0xf]
  %v150 = vld [vmem:[%s2 + $0x20] sm:$0xf]
  %v151 = vld [vmem:[%s2 + $0x24] sm:$0xf]
  %v152 = vld [vmem:[%s2 + $0x28] sm:$0xf]
  %v153 = vld [vmem:[%s2 + $0x2c] sm:$0xf]
  %v154 = vld [vmem:[%s2 + $0x30] sm:$0xf]
  %v155 = vld [vmem:[%s2 + $0x34] sm:$0xf]
  %v156 = vld [vmem:[%s2 + $0x38] sm:$0xf]
  %v157 = vld [vmem:[%s2 + $0x3c] sm:$0xf]
  %v158 = vld [vmem:[%s2 + $0x40] sm:$0xf]
  %v159 = vld [vmem:[%s2 + $0x44] sm:$0xf]
  %v160 = vld [vmem:[%s2 + $0x48] sm:$0xf]
  %v161 = vld [vmem:[%s2 + $0x4c] sm:$0xf]
  %v162 = vld [vmem:[%s2 + $0x50] sm:$0xf]
  %v163 = vld [vmem:[%s2 + $0x54] sm:$0xf]
  %v164 = vld [vmem:[%s2 + $0x58] sm:$0xf]
  %v165 = vld [vmem:[%s2 + $0x5c] sm:$0xf]
  %v166 = vld [vmem:[%s2 + $0x60] sm:$0xf]
  %v167 = vld [vmem:[%s2 + $0x64] sm:$0xf]
  %v168 = vld [vmem:[%s2 + $0x68] sm:$0xf]
  %v169 = vld [vmem:[%s2 + $0x6c] sm:$0xf]
  %v170 = vld [vmem:[%s2 + $0x70] sm:$0xf]
  %v171 = vld [vmem:[%s2 + $0x74] sm:$0xf]
  %v172 = vld [vmem:[%s2 + $0x78] sm:$0xf]
  %v173 = vld [vmem:[%s2 + $0x7c] sm:$0xf]
  %v174 = vld [vmem:[%s2 + $0x80] sm:$0xf]
  %v175 = vld [vmem:[%s2 + $0x84] sm:$0xf]
  %v176 = vld [vmem:[%s2 + $0x88] sm:$0xf]
  %v177 = vld [vmem:[%s2 + $0x8c] sm:$0xf]
  %v178 = vld [vmem:[%s2 + $0x90] sm:$0xf]
  %v179 = vld [vmem:[%s2 + $0x94] sm:$0xf]
  %v180 = vld [vmem:[%s2 + $0x98] sm:$0xf]
  %v181 = vld [vmem:[%s2 + $0x9c] sm:$0xf]
  %v182 = vld [vmem:[%s2 + $0xa0] sm:$0xf]
  %v183 = vld [vmem:[%s2 + $0xa4] sm:$0xf]
  %v184 = vld [vmem:[%s2 + $0xa8] sm:$0xf]
  %v185 = vld [vmem:[%s2 + $0xac] sm:$0xf]
  %v186 = vld [vmem:[%s2 + $0xb0] sm:$0xf]
  %v187 = vld [vmem:[%s2 + $0xb4] sm:$0xf]
  %v188 = vld [vmem:[%s2 + $0xb8] sm:$0xf]
  %v189 = vld [vmem:[%s2 + $0xbc] sm:$0xf]
  %v190 = vld [vmem:[%s2 + $0xc0] sm:$0xf]
  %v191 = vld [vmem:[%s2 + $0xc4] sm:$0xf]
  %v192 = vld [vmem:[%s2 + $0xc8] sm:$0xf]
  %v193 = vld [vmem:[%s2 + $0xcc] sm:$0xf]
  %v194 = vld [vmem:[%s2 + $0xd0] sm:$0xf]
  %v195 = vld [vmem:[%s2 + $0xd4] sm:$0xf]
  %v196 = vld [vmem:[%s2 + $0xd8] sm:$0xf]
  %v197 = vld [vmem:[%s2 + $0xdc] sm:$0xf]
  %v198 = vld [vmem:[%s2 + $0xe0] sm:$0xf]
  %v199 = vld [vmem:[%s2 + $0xe4] sm:$0xf]
  %v200 = vld [vmem:[%s2 + $0xe8] sm:$0xf]
  %v201 = vld [vmem:[%s2 + $0xec] sm:$0xf]
  %v202 = vld [vmem:[%s2 + $0xf0] sm:$0xf]
  %v203 = vld [vmem:[%s2 + $0xf4] sm:$0xf]
  %v204 = vld [vmem:[%s2 + $0xf8] sm:$0xf]
  %v205 = vld [vmem:[%s2 + $0xfc] sm:$0xf]
  %vm206 = vcmask 64512
  %v208 = vsel %vm206, %v14, 0
  %v211 = vsel %vm206, %v78, 0
  %213 = vmatpush.xpose.msra.mxu0 0.0
  %214 = vmatpush.xpose.msra.mxu0 0.0
  %215 = vmatpush.xpose.msra.mxu0 0.0
  %216 = vmatpush.xpose.msra.mxu0 0.0
  %217 = vmatpush.xpose.msra.mxu0 0.0
  %218 = vmatpush.xpose.msra.mxu0 0.0
  %219 = vmatpush.xpose.msra.mxu0 0.0
  %220 = vmatpush.xpose.msra.mxu0 0.0
  %221 = vmatpush.xpose.msra.mxu0 0.0
  %222 = vmatpush.xpose.msra.mxu0 0.0
  %223 = vmatpush.xpose.msra.mxu0 0.0
  %224 = vmatpush.xpose.msra.mxu0 0.0
  %225 = vmatpush.xpose.msra.mxu0 0.0
  %226 = vmatpush.xpose.msra.mxu0 0.0
  %227 = vmatpush.xpose.msra.mxu0 0.0
  %228 = vmatpush.xpose.msra.mxu0 %v211
  %229 = vmatmul.f32.gmra.mxu0 %v208
  %v230 = vpop.f32.mrf.mxu0
  %v231 = vadd.f32 0.0, %v230
  %232 = vdwg.mxu0
  %v234 = vsel %vm206, %v15, 0
  %v237 = vsel %vm206, %v79, 0
  %239 = vmatpush.xpose.msra.mxu0 0.0
  %240 = vmatpush.xpose.msra.mxu0 0.0
  %241 = vmatpush.xpose.msra.mxu0 0.0
  %242 = vmatpush.xpose.msra.mxu0 0.0
  %243 = vmatpush.xpose.msra.mxu0 0.0
  %244 = vmatpush.xpose.msra.mxu0 0.0
  %245 = vmatpush.xpose.msra.mxu0 0.0
  %246 = vmatpush.xpose.msra.mxu0 0.0
  %247 = vmatpush.xpose.msra.mxu0 0.0
  %248 = vmatpush.xpose.msra.mxu0 0.0
  %249 = vmatpush.xpose.msra.mxu0 0.0
  %250 = vmatpush.xpose.msra.mxu0 0.0
  %251 = vmatpush.xpose.msra.mxu0 0.0
  %252 = vmatpush.xpose.msra.mxu0 0.0
  %253 = vmatpush.xpose.msra.mxu0 0.0
  %254 = vmatpush.xpose.msra.mxu0 %v237
  %255 = vmatmul.f32.gmra.mxu0 %v234
  %v256 = vpop.f32.mrf.mxu0
  %v257 = vadd.f32 0.0, %v256
  %258 = vdwg.mxu0
  %v260 = vsel %vm206, %v16, 0
  %v263 = vsel %vm206, %v80, 0
  %265 = vmatpush.xpose.msra.mxu0 0.0
  %266 = vmatpush.xpose.msra.mxu0 0.0
  %267 = vmatpush.xpose.msra.mxu0 0.0
  %268 = vmatpush.xpose.msra.mxu0 0.0
  %269 = vmatpush.xpose.msra.mxu0 0.0
  %270 = vmatpush.xpose.msra.mxu0 0.0
  %271 = vmatpush.xpose.msra.mxu0 0.0
  %272 = vmatpush.xpose.msra.mxu0 0.0
  %273 = vmatpush.xpose.msra.mxu0 0.0
  %274 = vmatpush.xpose.msra.mxu0 0.0
  %275 = vmatpush.xpose.msra.mxu0 0.0
  %276 = vmatpush.xpose.msra.mxu0 0.0
  %277 = vmatpush.xpose.msra.mxu0 0.0
  %278 = vmatpush.xpose.msra.mxu0 0.0
  %279 = vmatpush.xpose.msra.mxu0 0.0
  %280 = vmatpush.xpose.msra.mxu0 %v263
  %281 = vmatmul.f32.gmra.mxu0 %v260
  %v282 = vpop.f32.mrf.mxu0
  %v283 = vadd.f32 0.0, %v282
  %284 = vdwg.mxu0
  %v286 = vsel %vm206, %v17, 0
  %v289 = vsel %vm206, %v81, 0
  %291 = vmatpush.xpose.msra.mxu0 0.0
  %292 = vmatpush.xpose.msra.mxu0 0.0
  %293 = vmatpush.xpose.msra.mxu0 0.0
  %294 = vmatpush.xpose.msra.mxu0 0.0
  %295 = vmatpush.xpose.msra.mxu0 0.0
  %296 = vmatpush.xpose.msra.mxu0 0.0
  %297 = vmatpush.xpose.msra.mxu0 0.0
  %298 = vmatpush.xpose.msra.mxu0 0.0
  %299 = vmatpush.xpose.msra.mxu0 0.0
  %300 = vmatpush.xpose.msra.mxu0 0.0
  %301 = vmatpush.xpose.msra.mxu0 0.0
  %302 = vmatpush.xpose.msra.mxu0 0.0
  %303 = vmatpush.xpose.msra.mxu0 0.0
  %304 = vmatpush.xpose.msra.mxu0 0.0
  %305 = vmatpush.xpose.msra.mxu0 0.0
  %306 = vmatpush.xpose.msra.mxu0 %v289
  %307 = vmatmul.f32.gmra.mxu0 %v286
  %v308 = vpop.f32.mrf.mxu0
  %v309 = vadd.f32 0.0, %v308
  %310 = vdwg.mxu0
  %v312 = vsel %vm206, %v18, 0
  %v315 = vsel %vm206, %v82, 0
  %317 = vmatpush.xpose.msra.mxu0 0.0
  %318 = vmatpush.xpose.msra.mxu0 0.0
  %319 = vmatpush.xpose.msra.mxu0 0.0
  %320 = vmatpush.xpose.msra.mxu0 0.0
  %321 = vmatpush.xpose.msra.mxu0 0.0
  %322 = vmatpush.xpose.msra.mxu0 0.0
  %323 = vmatpush.xpose.msra.mxu0 0.0
  %324 = vmatpush.xpose.msra.mxu0 0.0
  %325 = vmatpush.xpose.msra.mxu0 0.0
  %326 = vmatpush.xpose.msra.mxu0 0.0
  %327 = vmatpush.xpose.msra.mxu0 0.0
  %328 = vmatpush.xpose.msra.mxu0 0.0
  %329 = vmatpush.xpose.msra.mxu0 0.0
  %330 = vmatpush.xpose.msra.mxu0 0.0
  %331 = vmatpush.xpose.msra.mxu0 0.0
  %332 = vmatpush.xpose.msra.mxu0 %v315
  %333 = vmatmul.f32.gmra.mxu0 %v312
  %v334 = vpop.f32.mrf.mxu0
  %v335 = vadd.f32 0.0, %v334
  %336 = vdwg.mxu0
  %v338 = vsel %vm206, %v19, 0
  %v341 = vsel %vm206, %v83, 0
  %343 = vmatpush.xpose.msra.mxu0 0.0
  %344 = vmatpush.xpose.msra.mxu0 0.0
  %345 = vmatpush.xpose.msra.mxu0 0.0
  %346 = vmatpush.xpose.msra.mxu0 0.0
  %347 = vmatpush.xpose.msra.mxu0 0.0
  %348 = vmatpush.xpose.msra.mxu0 0.0
  %349 = vmatpush.xpose.msra.mxu0 0.0
  %350 = vmatpush.xpose.msra.mxu0 0.0
  %351 = vmatpush.xpose.msra.mxu0 0.0
  %352 = vmatpush.xpose.msra.mxu0 0.0
  %353 = vmatpush.xpose.msra.mxu0 0.0
  %354 = vmatpush.xpose.msra.mxu0 0.0
  %355 = vmatpush.xpose.msra.mxu0 0.0
  %356 = vmatpush.xpose.msra.mxu0 0.0
  %357 = vmatpush.xpose.msra.mxu0 0.0
  %358 = vmatpush.xpose.msra.mxu0 %v341
  %359 = vmatmul.f32.gmra.mxu0 %v338
  %v360 = vpop.f32.mrf.mxu0
  %v361 = vadd.f32 0.0, %v360
  %362 = vdwg.mxu0
  %v364 = vsel %vm206, %v20, 0
  %v367 = vsel %vm206, %v84, 0
  %369 = vmatpush.xpose.msra.mxu0 0.0
  %370 = vmatpush.xpose.msra.mxu0 0.0
  %371 = vmatpush.xpose.msra.mxu0 0.0
  %372 = vmatpush.xpose.msra.mxu0 0.0
  %373 = vmatpush.xpose.msra.mxu0 0.0
  %374 = vmatpush.xpose.msra.mxu0 0.0
  %375 = vmatpush.xpose.msra.mxu0 0.0
  %376 = vmatpush.xpose.msra.mxu0 0.0
  %377 = vmatpush.xpose.msra.mxu0 0.0
  %378 = vmatpush.xpose.msra.mxu0 0.0
  %379 = vmatpush.xpose.msra.mxu0 0.0
  %380 = vmatpush.xpose.msra.mxu0 0.0
  %381 = vmatpush.xpose.msra.mxu0 0.0
  %382 = vmatpush.xpose.msra.mxu0 0.0
  %383 = vmatpush.xpose.msra.mxu0 0.0
  %384 = vmatpush.xpose.msra.mxu0 %v367
  %385 = vmatmul.f32.gmra.mxu0 %v364
  %v386 = vpop.f32.mrf.mxu0
  %v387 = vadd.f32 0.0, %v386
  %388 = vdwg.mxu0
  %v390 = vsel %vm206, %v21, 0
  %v393 = vsel %vm206, %v85, 0
  %395 = vmatpush.xpose.msra.mxu0 0.0
  %396 = vmatpush.xpose.msra.mxu0 0.0
  %397 = vmatpush.xpose.msra.mxu0 0.0
  %398 = vmatpush.xpose.msra.mxu0 0.0
  %399 = vmatpush.xpose.msra.mxu0 0.0
  %400 = vmatpush.xpose.msra.mxu0 0.0
  %401 = vmatpush.xpose.msra.mxu0 0.0
  %402 = vmatpush.xpose.msra.mxu0 0.0
  %403 = vmatpush.xpose.msra.mxu0 0.0
  %404 = vmatpush.xpose.msra.mxu0 0.0
  %405 = vmatpush.xpose.msra.mxu0 0.0
  %406 = vmatpush.xpose.msra.mxu0 0.0
  %407 = vmatpush.xpose.msra.mxu0 0.0
  %408 = vmatpush.xpose.msra.mxu0 0.0
  %409 = vmatpush.xpose.msra.mxu0 0.0
  %410 = vmatpush.xpose.msra.mxu0 %v393
  %411 = vmatmul.f32.gmra.mxu0 %v390
  %v412 = vpop.f32.mrf.mxu0
  %v413 = vadd.f32 0.0, %v412
  %414 = vdwg.mxu0
  %v416 = vsel %vm206, %v22, 0
  %v419 = vsel %vm206, %v86, 0
  %421 = vmatpush.xpose.msra.mxu0 0.0
  %422 = vmatpush.xpose.msra.mxu0 0.0
  %423 = vmatpush.xpose.msra.mxu0 0.0
  %424 = vmatpush.xpose.msra.mxu0 0.0
  %425 = vmatpush.xpose.msra.mxu0 0.0
  %426 = vmatpush.xpose.msra.mxu0 0.0
  %427 = vmatpush.xpose.msra.mxu0 0.0
  %428 = vmatpush.xpose.msra.mxu0 0.0
  %429 = vmatpush.xpose.msra.mxu0 0.0
  %430 = vmatpush.xpose.msra.mxu0 0.0
  %431 = vmatpush.xpose.msra.mxu0 0.0
  %432 = vmatpush.xpose.msra.mxu0 0.0
  %433 = vmatpush.xpose.msra.mxu0 0.0
  %434 = vmatpush.xpose.msra.mxu0 0.0
  %435 = vmatpush.xpose.msra.mxu0 0.0
  %436 = vmatpush.xpose.msra.mxu0 %v419
  %437 = vmatmul.f32.gmra.mxu0 %v416
  %v438 = vpop.f32.mrf.mxu0
  %v439 = vadd.f32 0.0, %v438
  %440 = vdwg.mxu0
  %v442 = vsel %vm206, %v23, 0
  %v445 = vsel %vm206, %v87, 0
  %447 = vmatpush.xpose.msra.mxu0 0.0
  %448 = vmatpush.xpose.msra.mxu0 0.0
  %449 = vmatpush.xpose.msra.mxu0 0.0
  %450 = vmatpush.xpose.msra.mxu0 0.0
  %451 = vmatpush.xpose.msra.mxu0 0.0
  %452 = vmatpush.xpose.msra.mxu0 0.0
  %453 = vmatpush.xpose.msra.mxu0 0.0
  %454 = vmatpush.xpose.msra.mxu0 0.0
  %455 = vmatpush.xpose.msra.mxu0 0.0
  %456 = vmatpush.xpose.msra.mxu0 0.0
  %457 = vmatpush.xpose.msra.mxu0 0.0
  %458 = vmatpush.xpose.msra.mxu0 0.0
  %459 = vmatpush.xpose.msra.mxu0 0.0
  %460 = vmatpush.xpose.msra.mxu0 0.0
  %461 = vmatpush.xpose.msra.mxu0 0.0
  %462 = vmatpush.xpose.msra.mxu0 %v445
  %463 = vmatmul.f32.gmra.mxu0 %v442
  %v464 = vpop.f32.mrf.mxu0
  %v465 = vadd.f32 0.0, %v464
  %466 = vdwg.mxu0
  %v468 = vsel %vm206, %v24, 0
  %v471 = vsel %vm206, %v88, 0
  %473 = vmatpush.xpose.msra.mxu0 0.0
  %474 = vmatpush.xpose.msra.mxu0 0.0
  %475 = vmatpush.xpose.msra.mxu0 0.0
  %476 = vmatpush.xpose.msra.mxu0 0.0
  %477 = vmatpush.xpose.msra.mxu0 0.0
  %478 = vmatpush.xpose.msra.mxu0 0.0
  %479 = vmatpush.xpose.msra.mxu0 0.0
  %480 = vmatpush.xpose.msra.mxu0 0.0
  %481 = vmatpush.xpose.msra.mxu0 0.0
  %482 = vmatpush.xpose.msra.mxu0 0.0
  %483 = vmatpush.xpose.msra.mxu0 0.0
  %484 = vmatpush.xpose.msra.mxu0 0.0
  %485 = vmatpush.xpose.msra.mxu0 0.0
  %486 = vmatpush.xpose.msra.mxu0 0.0
  %487 = vmatpush.xpose.msra.mxu0 0.0
  %488 = vmatpush.xpose.msra.mxu0 %v471
  %489 = vmatmul.f32.gmra.mxu0 %v468
  %v490 = vpop.f32.mrf.mxu0
  %v491 = vadd.f32 0.0, %v490
  %492 = vdwg.mxu0
  %v494 = vsel %vm206, %v25, 0
  %v497 = vsel %vm206, %v89, 0
  %499 = vmatpush.xpose.msra.mxu0 0.0
  %500 = vmatpush.xpose.msra.mxu0 0.0
  %501 = vmatpush.xpose.msra.mxu0 0.0
  %502 = vmatpush.xpose.msra.mxu0 0.0
  %503 = vmatpush.xpose.msra.mxu0 0.0
  %504 = vmatpush.xpose.msra.mxu0 0.0
  %505 = vmatpush.xpose.msra.mxu0 0.0
  %506 = vmatpush.xpose.msra.mxu0 0.0
  %507 = vmatpush.xpose.msra.mxu0 0.0
  %508 = vmatpush.xpose.msra.mxu0 0.0
  %509 = vmatpush.xpose.msra.mxu0 0.0
  %510 = vmatpush.xpose.msra.mxu0 0.0
  %511 = vmatpush.xpose.msra.mxu0 0.0
  %512 = vmatpush.xpose.msra.mxu0 0.0
  %513 = vmatpush.xpose.msra.mxu0 0.0
  %514 = vmatpush.xpose.msra.mxu0 %v497
  %515 = vmatmul.f32.gmra.mxu0 %v494
  %v516 = vpop.f32.mrf.mxu0
  %v517 = vadd.f32 0.0, %v516
  %518 = vdwg.mxu0
  %v520 = vsel %vm206, %v26, 0
  %v523 = vsel %vm206, %v90, 0
  %525 = vmatpush.xpose.msra.mxu0 0.0
  %526 = vmatpush.xpose.msra.mxu0 0.0
  %527 = vmatpush.xpose.msra.mxu0 0.0
  %528 = vmatpush.xpose.msra.mxu0 0.0
  %529 = vmatpush.xpose.msra.mxu0 0.0
  %530 = vmatpush.xpose.msra.mxu0 0.0
  %531 = vmatpush.xpose.msra.mxu0 0.0
  %532 = vmatpush.xpose.msra.mxu0 0.0
  %533 = vmatpush.xpose.msra.mxu0 0.0
  %534 = vmatpush.xpose.msra.mxu0 0.0
  %535 = vmatpush.xpose.msra.mxu0 0.0
  %536 = vmatpush.xpose.msra.mxu0 0.0
  %537 = vmatpush.xpose.msra.mxu0 0.0
  %538 = vmatpush.xpose.msra.mxu0 0.0
  %539 = vmatpush.xpose.msra.mxu0 0.0
  %540 = vmatpush.xpose.msra.mxu0 %v523
  %541 = vmatmul.f32.gmra.mxu0 %v520
  %v542 = vpop.f32.mrf.mxu0
  %v543 = vadd.f32 0.0, %v542
  %544 = vdwg.mxu0
  %v546 = vsel %vm206, %v27, 0
  %v549 = vsel %vm206, %v91, 0
  %551 = vmatpush.xpose.msra.mxu0 0.0
  %552 = vmatpush.xpose.msra.mxu0 0.0
  %553 = vmatpush.xpose.msra.mxu0 0.0
  %554 = vmatpush.xpose.msra.mxu0 0.0
  %555 = vmatpush.xpose.msra.mxu0 0.0
  %556 = vmatpush.xpose.msra.mxu0 0.0
  %557 = vmatpush.xpose.msra.mxu0 0.0
  %558 = vmatpush.xpose.msra.mxu0 0.0
  %559 = vmatpush.xpose.msra.mxu0 0.0
  %560 = vmatpush.xpose.msra.mxu0 0.0
  %561 = vmatpush.xpose.msra.mxu0 0.0
  %562 = vmatpush.xpose.msra.mxu0 0.0
  %563 = vmatpush.xpose.msra.mxu0 0.0
  %564 = vmatpush.xpose.msra.mxu0 0.0
  %565 = vmatpush.xpose.msra.mxu0 0.0
  %566 = vmatpush.xpose.msra.mxu0 %v549
  %567 = vmatmul.f32.gmra.mxu0 %v546
  %v568 = vpop.f32.mrf.mxu0
  %v569 = vadd.f32 0.0, %v568
  %570 = vdwg.mxu0
  %v572 = vsel %vm206, %v28, 0
  %v575 = vsel %vm206, %v92, 0
  %577 = vmatpush.xpose.msra.mxu0 0.0
  %578 = vmatpush.xpose.msra.mxu0 0.0
  %579 = vmatpush.xpose.msra.mxu0 0.0
  %580 = vmatpush.xpose.msra.mxu0 0.0
  %581 = vmatpush.xpose.msra.mxu0 0.0
  %582 = vmatpush.xpose.msra.mxu0 0.0
  %583 = vmatpush.xpose.msra.mxu0 0.0
  %584 = vmatpush.xpose.msra.mxu0 0.0
  %585 = vmatpush.xpose.msra.mxu0 0.0
  %586 = vmatpush.xpose.msra.mxu0 0.0
  %587 = vmatpush.xpose.msra.mxu0 0.0
  %588 = vmatpush.xpose.msra.mxu0 0.0
  %589 = vmatpush.xpose.msra.mxu0 0.0
  %590 = vmatpush.xpose.msra.mxu0 0.0
  %591 = vmatpush.xpose.msra.mxu0 0.0
  %592 = vmatpush.xpose.msra.mxu0 %v575
  %593 = vmatmul.f32.gmra.mxu0 %v572
  %v594 = vpop.f32.mrf.mxu0
  %v595 = vadd.f32 0.0, %v594
  %596 = vdwg.mxu0
  %v598 = vsel %vm206, %v29, 0
  %v601 = vsel %vm206, %v93, 0
  %603 = vmatpush.xpose.msra.mxu0 0.0
  %604 = vmatpush.xpose.msra.mxu0 0.0
  %605 = vmatpush.xpose.msra.mxu0 0.0
  %606 = vmatpush.xpose.msra.mxu0 0.0
  %607 = vmatpush.xpose.msra.mxu0 0.0
  %608 = vmatpush.xpose.msra.mxu0 0.0
  %609 = vmatpush.xpose.msra.mxu0 0.0
  %610 = vmatpush.xpose.msra.mxu0 0.0
  %611 = vmatpush.xpose.msra.mxu0 0.0
  %612 = vmatpush.xpose.msra.mxu0 0.0
  %613 = vmatpush.xpose.msra.mxu0 0.0
  %614 = vmatpush.xpose.msra.mxu0 0.0
  %615 = vmatpush.xpose.msra.mxu0 0.0
  %616 = vmatpush.xpose.msra.mxu0 0.0
  %617 = vmatpush.xpose.msra.mxu0 0.0
  %618 = vmatpush.xpose.msra.mxu0 %v601
  %619 = vmatmul.f32.gmra.mxu0 %v598
  %v620 = vpop.f32.mrf.mxu0
  %v621 = vadd.f32 0.0, %v620
  %622 = vdwg.mxu0
  %v624 = vsel %vm206, %v30, 0
  %v627 = vsel %vm206, %v94, 0
  %629 = vmatpush.xpose.msra.mxu0 0.0
  %630 = vmatpush.xpose.msra.mxu0 0.0
  %631 = vmatpush.xpose.msra.mxu0 0.0
  %632 = vmatpush.xpose.msra.mxu0 0.0
  %633 = vmatpush.xpose.msra.mxu0 0.0
  %634 = vmatpush.xpose.msra.mxu0 0.0
  %635 = vmatpush.xpose.msra.mxu0 0.0
  %636 = vmatpush.xpose.msra.mxu0 0.0
  %637 = vmatpush.xpose.msra.mxu0 0.0
  %638 = vmatpush.xpose.msra.mxu0 0.0
  %639 = vmatpush.xpose.msra.mxu0 0.0
  %640 = vmatpush.xpose.msra.mxu0 0.0
  %641 = vmatpush.xpose.msra.mxu0 0.0
  %642 = vmatpush.xpose.msra.mxu0 0.0
  %643 = vmatpush.xpose.msra.mxu0 0.0
  %644 = vmatpush.xpose.msra.mxu0 %v627
  %645 = vmatmul.f32.gmra.mxu0 %v624
  %v646 = vpop.f32.mrf.mxu0
  %v647 = vadd.f32 0.0, %v646
  %648 = vdwg.mxu0
  %v650 = vsel %vm206, %v31, 0
  %v653 = vsel %vm206, %v95, 0
  %655 = vmatpush.xpose.msra.mxu0 0.0
  %656 = vmatpush.xpose.msra.mxu0 0.0
  %657 = vmatpush.xpose.msra.mxu0 0.0
  %658 = vmatpush.xpose.msra.mxu0 0.0
  %659 = vmatpush.xpose.msra.mxu0 0.0
  %660 = vmatpush.xpose.msra.mxu0 0.0
  %661 = vmatpush.xpose.msra.mxu0 0.0
  %662 = vmatpush.xpose.msra.mxu0 0.0
  %663 = vmatpush.xpose.msra.mxu0 0.0
  %664 = vmatpush.xpose.msra.mxu0 0.0
  %665 = vmatpush.xpose.msra.mxu0 0.0
  %666 = vmatpush.xpose.msra.mxu0 0.0
  %667 = vmatpush.xpose.msra.mxu0 0.0
  %668 = vmatpush.xpose.msra.mxu0 0.0
  %669 = vmatpush.xpose.msra.mxu0 0.0
  %670 = vmatpush.xpose.msra.mxu0 %v653
  %671 = vmatmul.f32.gmra.mxu0 %v650
  %v672 = vpop.f32.mrf.mxu0
  %v673 = vadd.f32 0.0, %v672
  %674 = vdwg.mxu0
  %v676 = vsel %vm206, %v32, 0
  %v679 = vsel %vm206, %v96, 0
  %681 = vmatpush.xpose.msra.mxu0 0.0
  %682 = vmatpush.xpose.msra.mxu0 0.0
  %683 = vmatpush.xpose.msra.mxu0 0.0
  %684 = vmatpush.xpose.msra.mxu0 0.0
  %685 = vmatpush.xpose.msra.mxu0 0.0
  %686 = vmatpush.xpose.msra.mxu0 0.0
  %687 = vmatpush.xpose.msra.mxu0 0.0
  %688 = vmatpush.xpose.msra.mxu0 0.0
  %689 = vmatpush.xpose.msra.mxu0 0.0
  %690 = vmatpush.xpose.msra.mxu0 0.0
  %691 = vmatpush.xpose.msra.mxu0 0.0
  %692 = vmatpush.xpose.msra.mxu0 0.0
  %693 = vmatpush.xpose.msra.mxu0 0.0
  %694 = vmatpush.xpose.msra.mxu0 0.0
  %695 = vmatpush.xpose.msra.mxu0 0.0
  %696 = vmatpush.xpose.msra.mxu0 %v679
  %697 = vmatmul.f32.gmra.mxu0 %v676
  %v698 = vpop.f32.mrf.mxu0
  %v699 = vadd.f32 0.0, %v698
  %700 = vdwg.mxu0
  %v702 = vsel %vm206, %v33, 0
  %v705 = vsel %vm206, %v97, 0
  %707 = vmatpush.xpose.msra.mxu0 0.0
  %708 = vmatpush.xpose.msra.mxu0 0.0
  %709 = vmatpush.xpose.msra.mxu0 0.0
  %710 = vmatpush.xpose.msra.mxu0 0.0
  %711 = vmatpush.xpose.msra.mxu0 0.0
  %712 = vmatpush.xpose.msra.mxu0 0.0
  %713 = vmatpush.xpose.msra.mxu0 0.0
  %714 = vmatpush.xpose.msra.mxu0 0.0
  %715 = vmatpush.xpose.msra.mxu0 0.0
  %716 = vmatpush.xpose.msra.mxu0 0.0
  %717 = vmatpush.xpose.msra.mxu0 0.0
  %718 = vmatpush.xpose.msra.mxu0 0.0
  %719 = vmatpush.xpose.msra.mxu0 0.0
  %720 = vmatpush.xpose.msra.mxu0 0.0
  %721 = vmatpush.xpose.msra.mxu0 0.0
  %722 = vmatpush.xpose.msra.mxu0 %v705
  %723 = vmatmul.f32.gmra.mxu0 %v702
  %v724 = vpop.f32.mrf.mxu0
  %v725 = vadd.f32 0.0, %v724
  %726 = vdwg.mxu0
  %v728 = vsel %vm206, %v34, 0
  %v731 = vsel %vm206, %v98, 0
  %733 = vmatpush.xpose.msra.mxu0 0.0
  %734 = vmatpush.xpose.msra.mxu0 0.0
  %735 = vmatpush.xpose.msra.mxu0 0.0
  %736 = vmatpush.xpose.msra.mxu0 0.0
  %737 = vmatpush.xpose.msra.mxu0 0.0
  %738 = vmatpush.xpose.msra.mxu0 0.0
  %739 = vmatpush.xpose.msra.mxu0 0.0
  %740 = vmatpush.xpose.msra.mxu0 0.0
  %741 = vmatpush.xpose.msra.mxu0 0.0
  %742 = vmatpush.xpose.msra.mxu0 0.0
  %743 = vmatpush.xpose.msra.mxu0 0.0
  %744 = vmatpush.xpose.msra.mxu0 0.0
  %745 = vmatpush.xpose.msra.mxu0 0.0
  %746 = vmatpush.xpose.msra.mxu0 0.0
  %747 = vmatpush.xpose.msra.mxu0 0.0
  %748 = vmatpush.xpose.msra.mxu0 %v731
  %749 = vmatmul.f32.gmra.mxu0 %v728
  %v750 = vpop.f32.mrf.mxu0
  %v751 = vadd.f32 0.0, %v750
  %752 = vdwg.mxu0
  %v754 = vsel %vm206, %v35, 0
  %v757 = vsel %vm206, %v99, 0
  %759 = vmatpush.xpose.msra.mxu0 0.0
  %760 = vmatpush.xpose.msra.mxu0 0.0
  %761 = vmatpush.xpose.msra.mxu0 0.0
  %762 = vmatpush.xpose.msra.mxu0 0.0
  %763 = vmatpush.xpose.msra.mxu0 0.0
  %764 = vmatpush.xpose.msra.mxu0 0.0
  %765 = vmatpush.xpose.msra.mxu0 0.0
  %766 = vmatpush.xpose.msra.mxu0 0.0
  %767 = vmatpush.xpose.msra.mxu0 0.0
  %768 = vmatpush.xpose.msra.mxu0 0.0
  %769 = vmatpush.xpose.msra.mxu0 0.0
  %770 = vmatpush.xpose.msra.mxu0 0.0
  %771 = vmatpush.xpose.msra.mxu0 0.0
  %772 = vmatpush.xpose.msra.mxu0 0.0
  %773 = vmatpush.xpose.msra.mxu0 0.0
  %774 = vmatpush.xpose.msra.mxu0 %v757
  %775 = vmatmul.f32.gmra.mxu0 %v754
  %v776 = vpop.f32.mrf.mxu0
  %v777 = vadd.f32 0.0, %v776
  %778 = vdwg.mxu0
  %v780 = vsel %vm206, %v36, 0
  %v783 = vsel %vm206, %v100, 0
  %785 = vmatpush.xpose.msra.mxu0 0.0
  %786 = vmatpush.xpose.msra.mxu0 0.0
  %787 = vmatpush.xpose.msra.mxu0 0.0
  %788 = vmatpush.xpose.msra.mxu0 0.0
  %789 = vmatpush.xpose.msra.mxu0 0.0
  %790 = vmatpush.xpose.msra.mxu0 0.0
  %791 = vmatpush.xpose.msra.mxu0 0.0
  %792 = vmatpush.xpose.msra.mxu0 0.0
  %793 = vmatpush.xpose.msra.mxu0 0.0
  %794 = vmatpush.xpose.msra.mxu0 0.0
  %795 = vmatpush.xpose.msra.mxu0 0.0
  %796 = vmatpush.xpose.msra.mxu0 0.0
  %797 = vmatpush.xpose.msra.mxu0 0.0
  %798 = vmatpush.xpose.msra.mxu0 0.0
  %799 = vmatpush.xpose.msra.mxu0 0.0
  %800 = vmatpush.xpose.msra.mxu0 %v783
  %801 = vmatmul.f32.gmra.mxu0 %v780
  %v802 = vpop.f32.mrf.mxu0
  %v803 = vadd.f32 0.0, %v802
  %804 = vdwg.mxu0
  %v806 = vsel %vm206, %v37, 0
  %v809 = vsel %vm206, %v101, 0
  %811 = vmatpush.xpose.msra.mxu0 0.0
  %812 = vmatpush.xpose.msra.mxu0 0.0
  %813 = vmatpush.xpose.msra.mxu0 0.0
  %814 = vmatpush.xpose.msra.mxu0 0.0
  %815 = vmatpush.xpose.msra.mxu0 0.0
  %816 = vmatpush.xpose.msra.mxu0 0.0
  %817 = vmatpush.xpose.msra.mxu0 0.0
  %818 = vmatpush.xpose.msra.mxu0 0.0
  %819 = vmatpush.xpose.msra.mxu0 0.0
  %820 = vmatpush.xpose.msra.mxu0 0.0
  %821 = vmatpush.xpose.msra.mxu0 0.0
  %822 = vmatpush.xpose.msra.mxu0 0.0
  %823 = vmatpush.xpose.msra.mxu0 0.0
  %824 = vmatpush.xpose.msra.mxu0 0.0
  %825 = vmatpush.xpose.msra.mxu0 0.0
  %826 = vmatpush.xpose.msra.mxu0 %v809
  %827 = vmatmul.f32.gmra.mxu0 %v806
  %v828 = vpop.f32.mrf.mxu0
  %v829 = vadd.f32 0.0, %v828
  %830 = vdwg.mxu0
  %v832 = vsel %vm206, %v38, 0
  %v835 = vsel %vm206, %v102, 0
  %837 = vmatpush.xpose.msra.mxu0 0.0
  %838 = vmatpush.xpose.msra.mxu0 0.0
  %839 = vmatpush.xpose.msra.mxu0 0.0
  %840 = vmatpush.xpose.msra.mxu0 0.0
  %841 = vmatpush.xpose.msra.mxu0 0.0
  %842 = vmatpush.xpose.msra.mxu0 0.0
  %843 = vmatpush.xpose.msra.mxu0 0.0
  %844 = vmatpush.xpose.msra.mxu0 0.0
  %845 = vmatpush.xpose.msra.mxu0 0.0
  %846 = vmatpush.xpose.msra.mxu0 0.0
  %847 = vmatpush.xpose.msra.mxu0 0.0
  %848 = vmatpush.xpose.msra.mxu0 0.0
  %849 = vmatpush.xpose.msra.mxu0 0.0
  %850 = vmatpush.xpose.msra.mxu0 0.0
  %851 = vmatpush.xpose.msra.mxu0 0.0
  %852 = vmatpush.xpose.msra.mxu0 %v835
  %853 = vmatmul.f32.gmra.mxu0 %v832
  %v854 = vpop.f32.mrf.mxu0
  %v855 = vadd.f32 0.0, %v854
  %856 = vdwg.mxu0
  %v858 = vsel %vm206, %v39, 0
  %v861 = vsel %vm206, %v103, 0
  %863 = vmatpush.xpose.msra.mxu0 0.0
  %864 = vmatpush.xpose.msra.mxu0 0.0
  %865 = vmatpush.xpose.msra.mxu0 0.0
  %866 = vmatpush.xpose.msra.mxu0 0.0
  %867 = vmatpush.xpose.msra.mxu0 0.0
  %868 = vmatpush.xpose.msra.mxu0 0.0
  %869 = vmatpush.xpose.msra.mxu0 0.0
  %870 = vmatpush.xpose.msra.mxu0 0.0
  %871 = vmatpush.xpose.msra.mxu0 0.0
  %872 = vmatpush.xpose.msra.mxu0 0.0
  %873 = vmatpush.xpose.msra.mxu0 0.0
  %874 = vmatpush.xpose.msra.mxu0 0.0
  %875 = vmatpush.xpose.msra.mxu0 0.0
  %876 = vmatpush.xpose.msra.mxu0 0.0
  %877 = vmatpush.xpose.msra.mxu0 0.0
  %878 = vmatpush.xpose.msra.mxu0 %v861
  %879 = vmatmul.f32.gmra.mxu0 %v858
  %v880 = vpop.f32.mrf.mxu0
  %v881 = vadd.f32 0.0, %v880
  %882 = vdwg.mxu0
  %v884 = vsel %vm206, %v40, 0
  %v887 = vsel %vm206, %v104, 0
  %889 = vmatpush.xpose.msra.mxu0 0.0
  %890 = vmatpush.xpose.msra.mxu0 0.0
  %891 = vmatpush.xpose.msra.mxu0 0.0
  %892 = vmatpush.xpose.msra.mxu0 0.0
  %893 = vmatpush.xpose.msra.mxu0 0.0
  %894 = vmatpush.xpose.msra.mxu0 0.0
  %895 = vmatpush.xpose.msra.mxu0 0.0
  %896 = vmatpush.xpose.msra.mxu0 0.0
  %897 = vmatpush.xpose.msra.mxu0 0.0
  %898 = vmatpush.xpose.msra.mxu0 0.0
  %899 = vmatpush.xpose.msra.mxu0 0.0
  %900 = vmatpush.xpose.msra.mxu0 0.0
  %901 = vmatpush.xpose.msra.mxu0 0.0
  %902 = vmatpush.xpose.msra.mxu0 0.0
  %903 = vmatpush.xpose.msra.mxu0 0.0
  %904 = vmatpush.xpose.msra.mxu0 %v887
  %905 = vmatmul.f32.gmra.mxu0 %v884
  %v906 = vpop.f32.mrf.mxu0
  %v907 = vadd.f32 0.0, %v906
  %908 = vdwg.mxu0
  %v910 = vsel %vm206, %v41, 0
  %v913 = vsel %vm206, %v105, 0
  %915 = vmatpush.xpose.msra.mxu0 0.0
  %916 = vmatpush.xpose.msra.mxu0 0.0
  %917 = vmatpush.xpose.msra.mxu0 0.0
  %918 = vmatpush.xpose.msra.mxu0 0.0
  %919 = vmatpush.xpose.msra.mxu0 0.0
  %920 = vmatpush.xpose.msra.mxu0 0.0
  %921 = vmatpush.xpose.msra.mxu0 0.0
  %922 = vmatpush.xpose.msra.mxu0 0.0
  %923 = vmatpush.xpose.msra.mxu0 0.0
  %924 = vmatpush.xpose.msra.mxu0 0.0
  %925 = vmatpush.xpose.msra.mxu0 0.0
  %926 = vmatpush.xpose.msra.mxu0 0.0
  %927 = vmatpush.xpose.msra.mxu0 0.0
  %928 = vmatpush.xpose.msra.mxu0 0.0
  %929 = vmatpush.xpose.msra.mxu0 0.0
  %930 = vmatpush.xpose.msra.mxu0 %v913
  %931 = vmatmul.f32.gmra.mxu0 %v910
  %v932 = vpop.f32.mrf.mxu0
  %v933 = vadd.f32 0.0, %v932
  %934 = vdwg.mxu0
  %v936 = vsel %vm206, %v42, 0
  %v939 = vsel %vm206, %v106, 0
  %941 = vmatpush.xpose.msra.mxu0 0.0
  %942 = vmatpush.xpose.msra.mxu0 0.0
  %943 = vmatpush.xpose.msra.mxu0 0.0
  %944 = vmatpush.xpose.msra.mxu0 0.0
  %945 = vmatpush.xpose.msra.mxu0 0.0
  %946 = vmatpush.xpose.msra.mxu0 0.0
  %947 = vmatpush.xpose.msra.mxu0 0.0
  %948 = vmatpush.xpose.msra.mxu0 0.0
  %949 = vmatpush.xpose.msra.mxu0 0.0
  %950 = vmatpush.xpose.msra.mxu0 0.0
  %951 = vmatpush.xpose.msra.mxu0 0.0
  %952 = vmatpush.xpose.msra.mxu0 0.0
  %953 = vmatpush.xpose.msra.mxu0 0.0
  %954 = vmatpush.xpose.msra.mxu0 0.0
  %955 = vmatpush.xpose.msra.mxu0 0.0
  %956 = vmatpush.xpose.msra.mxu0 %v939
  %957 = vmatmul.f32.gmra.mxu0 %v936
  %v958 = vpop.f32.mrf.mxu0
  %v959 = vadd.f32 0.0, %v958
  %960 = vdwg.mxu0
  %v962 = vsel %vm206, %v43, 0
  %v965 = vsel %vm206, %v107, 0
  %967 = vmatpush.xpose.msra.mxu0 0.0
  %968 = vmatpush.xpose.msra.mxu0 0.0
  %969 = vmatpush.xpose.msra.mxu0 0.0
  %970 = vmatpush.xpose.msra.mxu0 0.0
  %971 = vmatpush.xpose.msra.mxu0 0.0
  %972 = vmatpush.xpose.msra.mxu0 0.0
  %973 = vmatpush.xpose.msra.mxu0 0.0
  %974 = vmatpush.xpose.msra.mxu0 0.0
  %975 = vmatpush.xpose.msra.mxu0 0.0
  %976 = vmatpush.xpose.msra.mxu0 0.0
  %977 = vmatpush.xpose.msra.mxu0 0.0
  %978 = vmatpush.xpose.msra.mxu0 0.0
  %979 = vmatpush.xpose.msra.mxu0 0.0
  %980 = vmatpush.xpose.msra.mxu0 0.0
  %981 = vmatpush.xpose.msra.mxu0 0.0
  %982 = vmatpush.xpose.msra.mxu0 %v965
  %983 = vmatmul.f32.gmra.mxu0 %v962
  %v984 = vpop.f32.mrf.mxu0
  %v985 = vadd.f32 0.0, %v984
  %986 = vdwg.mxu0
  %v988 = vsel %vm206, %v44, 0
  %v991 = vsel %vm206, %v108, 0
  %993 = vmatpush.xpose.msra.mxu0 0.0
  %994 = vmatpush.xpose.msra.mxu0 0.0
  %995 = vmatpush.xpose.msra.mxu0 0.0
  %996 = vmatpush.xpose.msra.mxu0 0.0
  %997 = vmatpush.xpose.msra.mxu0 0.0
  %998 = vmatpush.xpose.msra.mxu0 0.0
  %999 = vmatpush.xpose.msra.mxu0 0.0
  %1000 = vmatpush.xpose.msra.mxu0 0.0
  %1001 = vmatpush.xpose.msra.mxu0 0.0
  %1002 = vmatpush.xpose.msra.mxu0 0.0
  %1003 = vmatpush.xpose.msra.mxu0 0.0
  %1004 = vmatpush.xpose.msra.mxu0 0.0
  %1005 = vmatpush.xpose.msra.mxu0 0.0
  %1006 = vmatpush.xpose.msra.mxu0 0.0
  %1007 = vmatpush.xpose.msra.mxu0 0.0
  %1008 = vmatpush.xpose.msra.mxu0 %v991
  %1009 = vmatmul.f32.gmra.mxu0 %v988
  %v1010 = vpop.f32.mrf.mxu0
  %v1011 = vadd.f32 0.0, %v1010
  %1012 = vdwg.mxu0
  %v1014 = vsel %vm206, %v45, 0
  %v1017 = vsel %vm206, %v109, 0
  %1019 = vmatpush.xpose.msra.mxu0 0.0
  %1020 = vmatpush.xpose.msra.mxu0 0.0
  %1021 = vmatpush.xpose.msra.mxu0 0.0
  %1022 = vmatpush.xpose.msra.mxu0 0.0
  %1023 = vmatpush.xpose.msra.mxu0 0.0
  %1024 = vmatpush.xpose.msra.mxu0 0.0
  %1025 = vmatpush.xpose.msra.mxu0 0.0
  %1026 = vmatpush.xpose.msra.mxu0 0.0
  %1027 = vmatpush.xpose.msra.mxu0 0.0
  %1028 = vmatpush.xpose.msra.mxu0 0.0
  %1029 = vmatpush.xpose.msra.mxu0 0.0
  %1030 = vmatpush.xpose.msra.mxu0 0.0
  %1031 = vmatpush.xpose.msra.mxu0 0.0
  %1032 = vmatpush.xpose.msra.mxu0 0.0
  %1033 = vmatpush.xpose.msra.mxu0 0.0
  %1034 = vmatpush.xpose.msra.mxu0 %v1017
  %1035 = vmatmul.f32.gmra.mxu0 %v1014
  %v1036 = vpop.f32.mrf.mxu0
  %v1037 = vadd.f32 0.0, %v1036
  %1038 = vdwg.mxu0
  %v1040 = vsel %vm206, %v46, 0
  %v1043 = vsel %vm206, %v110, 0
  %1045 = vmatpush.xpose.msra.mxu0 0.0
  %1046 = vmatpush.xpose.msra.mxu0 0.0
  %1047 = vmatpush.xpose.msra.mxu0 0.0
  %1048 = vmatpush.xpose.msra.mxu0 0.0
  %1049 = vmatpush.xpose.msra.mxu0 0.0
  %1050 = vmatpush.xpose.msra.mxu0 0.0
  %1051 = vmatpush.xpose.msra.mxu0 0.0
  %1052 = vmatpush.xpose.msra.mxu0 0.0
  %1053 = vmatpush.xpose.msra.mxu0 0.0
  %1054 = vmatpush.xpose.msra.mxu0 0.0
  %1055 = vmatpush.xpose.msra.mxu0 0.0
  %1056 = vmatpush.xpose.msra.mxu0 0.0
  %1057 = vmatpush.xpose.msra.mxu0 0.0
  %1058 = vmatpush.xpose.msra.mxu0 0.0
  %1059 = vmatpush.xpose.msra.mxu0 0.0
  %1060 = vmatpush.xpose.msra.mxu0 %v1043
  %1061 = vmatmul.f32.gmra.mxu0 %v1040
  %v1062 = vpop.f32.mrf.mxu0
  %v1063 = vadd.f32 0.0, %v1062
  %1064 = vdwg.mxu0
  %v1066 = vsel %vm206, %v47, 0
  %v1069 = vsel %vm206, %v111, 0
  %1071 = vmatpush.xpose.msra.mxu0 0.0
  %1072 = vmatpush.xpose.msra.mxu0 0.0
  %1073 = vmatpush.xpose.msra.mxu0 0.0
  %1074 = vmatpush.xpose.msra.mxu0 0.0
  %1075 = vmatpush.xpose.msra.mxu0 0.0
  %1076 = vmatpush.xpose.msra.mxu0 0.0
  %1077 = vmatpush.xpose.msra.mxu0 0.0
  %1078 = vmatpush.xpose.msra.mxu0 0.0
  %1079 = vmatpush.xpose.msra.mxu0 0.0
  %1080 = vmatpush.xpose.msra.mxu0 0.0
  %1081 = vmatpush.xpose.msra.mxu0 0.0
  %1082 = vmatpush.xpose.msra.mxu0 0.0
  %1083 = vmatpush.xpose.msra.mxu0 0.0
  %1084 = vmatpush.xpose.msra.mxu0 0.0
  %1085 = vmatpush.xpose.msra.mxu0 0.0
  %1086 = vmatpush.xpose.msra.mxu0 %v1069
  %1087 = vmatmul.f32.gmra.mxu0 %v1066
  %v1088 = vpop.f32.mrf.mxu0
  %v1089 = vadd.f32 0.0, %v1088
  %1090 = vdwg.mxu0
  %v1092 = vsel %vm206, %v48, 0
  %v1095 = vsel %vm206, %v112, 0
  %1097 = vmatpush.xpose.msra.mxu0 0.0
  %1098 = vmatpush.xpose.msra.mxu0 0.0
  %1099 = vmatpush.xpose.msra.mxu0 0.0
  %1100 = vmatpush.xpose.msra.mxu0 0.0
  %1101 = vmatpush.xpose.msra.mxu0 0.0
  %1102 = vmatpush.xpose.msra.mxu0 0.0
  %1103 = vmatpush.xpose.msra.mxu0 0.0
  %1104 = vmatpush.xpose.msra.mxu0 0.0
  %1105 = vmatpush.xpose.msra.mxu0 0.0
  %1106 = vmatpush.xpose.msra.mxu0 0.0
  %1107 = vmatpush.xpose.msra.mxu0 0.0
  %1108 = vmatpush.xpose.msra.mxu0 0.0
  %1109 = vmatpush.xpose.msra.mxu0 0.0
  %1110 = vmatpush.xpose.msra.mxu0 0.0
  %1111 = vmatpush.xpose.msra.mxu0 0.0
  %1112 = vmatpush.xpose.msra.mxu0 %v1095
  %1113 = vmatmul.f32.gmra.mxu0 %v1092
  %v1114 = vpop.f32.mrf.mxu0
  %v1115 = vadd.f32 0.0, %v1114
  %1116 = vdwg.mxu0
  %v1118 = vsel %vm206, %v49, 0
  %v1121 = vsel %vm206, %v113, 0
  %1123 = vmatpush.xpose.msra.mxu0 0.0
  %1124 = vmatpush.xpose.msra.mxu0 0.0
  %1125 = vmatpush.xpose.msra.mxu0 0.0
  %1126 = vmatpush.xpose.msra.mxu0 0.0
  %1127 = vmatpush.xpose.msra.mxu0 0.0
  %1128 = vmatpush.xpose.msra.mxu0 0.0
  %1129 = vmatpush.xpose.msra.mxu0 0.0
  %1130 = vmatpush.xpose.msra.mxu0 0.0
  %1131 = vmatpush.xpose.msra.mxu0 0.0
  %1132 = vmatpush.xpose.msra.mxu0 0.0
  %1133 = vmatpush.xpose.msra.mxu0 0.0
  %1134 = vmatpush.xpose.msra.mxu0 0.0
  %1135 = vmatpush.xpose.msra.mxu0 0.0
  %1136 = vmatpush.xpose.msra.mxu0 0.0
  %1137 = vmatpush.xpose.msra.mxu0 0.0
  %1138 = vmatpush.xpose.msra.mxu0 %v1121
  %1139 = vmatmul.f32.gmra.mxu0 %v1118
  %v1140 = vpop.f32.mrf.mxu0
  %v1141 = vadd.f32 0.0, %v1140
  %1142 = vdwg.mxu0
  %v1144 = vsel %vm206, %v50, 0
  %v1147 = vsel %vm206, %v114, 0
  %1149 = vmatpush.xpose.msra.mxu0 0.0
  %1150 = vmatpush.xpose.msra.mxu0 0.0
  %1151 = vmatpush.xpose.msra.mxu0 0.0
  %1152 = vmatpush.xpose.msra.mxu0 0.0
  %1153 = vmatpush.xpose.msra.mxu0 0.0
  %1154 = vmatpush.xpose.msra.mxu0 0.0
  %1155 = vmatpush.xpose.msra.mxu0 0.0
  %1156 = vmatpush.xpose.msra.mxu0 0.0
  %1157 = vmatpush.xpose.msra.mxu0 0.0
  %1158 = vmatpush.xpose.msra.mxu0 0.0
  %1159 = vmatpush.xpose.msra.mxu0 0.0
  %1160 = vmatpush.xpose.msra.mxu0 0.0
  %1161 = vmatpush.xpose.msra.mxu0 0.0
  %1162 = vmatpush.xpose.msra.mxu0 0.0
  %1163 = vmatpush.xpose.msra.mxu0 0.0
  %1164 = vmatpush.xpose.msra.mxu0 %v1147
  %1165 = vmatmul.f32.gmra.mxu0 %v1144
  %v1166 = vpop.f32.mrf.mxu0
  %v1167 = vadd.f32 0.0, %v1166
  %1168 = vdwg.mxu0
  %v1170 = vsel %vm206, %v51, 0
  %v1173 = vsel %vm206, %v115, 0
  %1175 = vmatpush.xpose.msra.mxu0 0.0
  %1176 = vmatpush.xpose.msra.mxu0 0.0
  %1177 = vmatpush.xpose.msra.mxu0 0.0
  %1178 = vmatpush.xpose.msra.mxu0 0.0
  %1179 = vmatpush.xpose.msra.mxu0 0.0
  %1180 = vmatpush.xpose.msra.mxu0 0.0
  %1181 = vmatpush.xpose.msra.mxu0 0.0
  %1182 = vmatpush.xpose.msra.mxu0 0.0
  %1183 = vmatpush.xpose.msra.mxu0 0.0
  %1184 = vmatpush.xpose.msra.mxu0 0.0
  %1185 = vmatpush.xpose.msra.mxu0 0.0
  %1186 = vmatpush.xpose.msra.mxu0 0.0
  %1187 = vmatpush.xpose.msra.mxu0 0.0
  %1188 = vmatpush.xpose.msra.mxu0 0.0
  %1189 = vmatpush.xpose.msra.mxu0 0.0
  %1190 = vmatpush.xpose.msra.mxu0 %v1173
  %1191 = vmatmul.f32.gmra.mxu0 %v1170
  %v1192 = vpop.f32.mrf.mxu0
  %v1193 = vadd.f32 0.0, %v1192
  %1194 = vdwg.mxu0
  %v1196 = vsel %vm206, %v52, 0
  %v1199 = vsel %vm206, %v116, 0
  %1201 = vmatpush.xpose.msra.mxu0 0.0
  %1202 = vmatpush.xpose.msra.mxu0 0.0
  %1203 = vmatpush.xpose.msra.mxu0 0.0
  %1204 = vmatpush.xpose.msra.mxu0 0.0
  %1205 = vmatpush.xpose.msra.mxu0 0.0
  %1206 = vmatpush.xpose.msra.mxu0 0.0
  %1207 = vmatpush.xpose.msra.mxu0 0.0
  %1208 = vmatpush.xpose.msra.mxu0 0.0
  %1209 = vmatpush.xpose.msra.mxu0 0.0
  %1210 = vmatpush.xpose.msra.mxu0 0.0
  %1211 = vmatpush.xpose.msra.mxu0 0.0
  %1212 = vmatpush.xpose.msra.mxu0 0.0
  %1213 = vmatpush.xpose.msra.mxu0 0.0
  %1214 = vmatpush.xpose.msra.mxu0 0.0
  %1215 = vmatpush.xpose.msra.mxu0 0.0
  %1216 = vmatpush.xpose.msra.mxu0 %v1199
  %1217 = vmatmul.f32.gmra.mxu0 %v1196
  %v1218 = vpop.f32.mrf.mxu0
  %v1219 = vadd.f32 0.0, %v1218
  %1220 = vdwg.mxu0
  %v1222 = vsel %vm206, %v53, 0
  %v1225 = vsel %vm206, %v117, 0
  %1227 = vmatpush.xpose.msra.mxu0 0.0
  %1228 = vmatpush.xpose.msra.mxu0 0.0
  %1229 = vmatpush.xpose.msra.mxu0 0.0
  %1230 = vmatpush.xpose.msra.mxu0 0.0
  %1231 = vmatpush.xpose.msra.mxu0 0.0
  %1232 = vmatpush.xpose.msra.mxu0 0.0
  %1233 = vmatpush.xpose.msra.mxu0 0.0
  %1234 = vmatpush.xpose.msra.mxu0 0.0
  %1235 = vmatpush.xpose.msra.mxu0 0.0
  %1236 = vmatpush.xpose.msra.mxu0 0.0
  %1237 = vmatpush.xpose.msra.mxu0 0.0
  %1238 = vmatpush.xpose.msra.mxu0 0.0
  %1239 = vmatpush.xpose.msra.mxu0 0.0
  %1240 = vmatpush.xpose.msra.mxu0 0.0
  %1241 = vmatpush.xpose.msra.mxu0 0.0
  %1242 = vmatpush.xpose.msra.mxu0 %v1225
  %1243 = vmatmul.f32.gmra.mxu0 %v1222
  %v1244 = vpop.f32.mrf.mxu0
  %v1245 = vadd.f32 0.0, %v1244
  %1246 = vdwg.mxu0
  %v1248 = vsel %vm206, %v54, 0
  %v1251 = vsel %vm206, %v118, 0
  %1253 = vmatpush.xpose.msra.mxu0 0.0
  %1254 = vmatpush.xpose.msra.mxu0 0.0
  %1255 = vmatpush.xpose.msra.mxu0 0.0
  %1256 = vmatpush.xpose.msra.mxu0 0.0
  %1257 = vmatpush.xpose.msra.mxu0 0.0
  %1258 = vmatpush.xpose.msra.mxu0 0.0
  %1259 = vmatpush.xpose.msra.mxu0 0.0
  %1260 = vmatpush.xpose.msra.mxu0 0.0
  %1261 = vmatpush.xpose.msra.mxu0 0.0
  %1262 = vmatpush.xpose.msra.mxu0 0.0
  %1263 = vmatpush.xpose.msra.mxu0 0.0
  %1264 = vmatpush.xpose.msra.mxu0 0.0
  %1265 = vmatpush.xpose.msra.mxu0 0.0
  %1266 = vmatpush.xpose.msra.mxu0 0.0
  %1267 = vmatpush.xpose.msra.mxu0 0.0
  %1268 = vmatpush.xpose.msra.mxu0 %v1251
  %1269 = vmatmul.f32.gmra.mxu0 %v1248
  %v1270 = vpop.f32.mrf.mxu0
  %v1271 = vadd.f32 0.0, %v1270
  %1272 = vdwg.mxu0
  %v1274 = vsel %vm206, %v55, 0
  %v1277 = vsel %vm206, %v119, 0
  %1279 = vmatpush.xpose.msra.mxu0 0.0
  %1280 = vmatpush.xpose.msra.mxu0 0.0
  %1281 = vmatpush.xpose.msra.mxu0 0.0
  %1282 = vmatpush.xpose.msra.mxu0 0.0
  %1283 = vmatpush.xpose.msra.mxu0 0.0
  %1284 = vmatpush.xpose.msra.mxu0 0.0
  %1285 = vmatpush.xpose.msra.mxu0 0.0
  %1286 = vmatpush.xpose.msra.mxu0 0.0
  %1287 = vmatpush.xpose.msra.mxu0 0.0
  %1288 = vmatpush.xpose.msra.mxu0 0.0
  %1289 = vmatpush.xpose.msra.mxu0 0.0
  %1290 = vmatpush.xpose.msra.mxu0 0.0
  %1291 = vmatpush.xpose.msra.mxu0 0.0
  %1292 = vmatpush.xpose.msra.mxu0 0.0
  %1293 = vmatpush.xpose.msra.mxu0 0.0
  %1294 = vmatpush.xpose.msra.mxu0 %v1277
  %1295 = vmatmul.f32.gmra.mxu0 %v1274
  %v1296 = vpop.f32.mrf.mxu0
  %v1297 = vadd.f32 0.0, %v1296
  %1298 = vdwg.mxu0
  %v1300 = vsel %vm206, %v56, 0
  %v1303 = vsel %vm206, %v120, 0
  %1305 = vmatpush.xpose.msra.mxu0 0.0
  %1306 = vmatpush.xpose.msra.mxu0 0.0
  %1307 = vmatpush.xpose.msra.mxu0 0.0
  %1308 = vmatpush.xpose.msra.mxu0 0.0
  %1309 = vmatpush.xpose.msra.mxu0 0.0
  %1310 = vmatpush.xpose.msra.mxu0 0.0
  %1311 = vmatpush.xpose.msra.mxu0 0.0
  %1312 = vmatpush.xpose.msra.mxu0 0.0
  %1313 = vmatpush.xpose.msra.mxu0 0.0
  %1314 = vmatpush.xpose.msra.mxu0 0.0
  %1315 = vmatpush.xpose.msra.mxu0 0.0
  %1316 = vmatpush.xpose.msra.mxu0 0.0
  %1317 = vmatpush.xpose.msra.mxu0 0.0
  %1318 = vmatpush.xpose.msra.mxu0 0.0
  %1319 = vmatpush.xpose.msra.mxu0 0.0
  %1320 = vmatpush.xpose.msra.mxu0 %v1303
  %1321 = vmatmul.f32.gmra.mxu0 %v1300
  %v1322 = vpop.f32.mrf.mxu0
  %v1323 = vadd.f32 0.0, %v1322
  %1324 = vdwg.mxu0
  %v1326 = vsel %vm206, %v57, 0
  %v1329 = vsel %vm206, %v121, 0
  %1331 = vmatpush.xpose.msra.mxu0 0.0
  %1332 = vmatpush.xpose.msra.mxu0 0.0
  %1333 = vmatpush.xpose.msra.mxu0 0.0
  %1334 = vmatpush.xpose.msra.mxu0 0.0
  %1335 = vmatpush.xpose.msra.mxu0 0.0
  %1336 = vmatpush.xpose.msra.mxu0 0.0
  %1337 = vmatpush.xpose.msra.mxu0 0.0
  %1338 = vmatpush.xpose.msra.mxu0 0.0
  %1339 = vmatpush.xpose.msra.mxu0 0.0
  %1340 = vmatpush.xpose.msra.mxu0 0.0
  %1341 = vmatpush.xpose.msra.mxu0 0.0
  %1342 = vmatpush.xpose.msra.mxu0 0.0
  %1343 = vmatpush.xpose.msra.mxu0 0.0
  %1344 = vmatpush.xpose.msra.mxu0 0.0
  %1345 = vmatpush.xpose.msra.mxu0 0.0
  %1346 = vmatpush.xpose.msra.mxu0 %v1329
  %1347 = vmatmul.f32.gmra.mxu0 %v1326
  %v1348 = vpop.f32.mrf.mxu0
  %v1349 = vadd.f32 0.0, %v1348
  %1350 = vdwg.mxu0
  %v1352 = vsel %vm206, %v58, 0
  %v1355 = vsel %vm206, %v122, 0
  %1357 = vmatpush.xpose.msra.mxu0 0.0
  %1358 = vmatpush.xpose.msra.mxu0 0.0
  %1359 = vmatpush.xpose.msra.mxu0 0.0
  %1360 = vmatpush.xpose.msra.mxu0 0.0
  %1361 = vmatpush.xpose.msra.mxu0 0.0
  %1362 = vmatpush.xpose.msra.mxu0 0.0
  %1363 = vmatpush.xpose.msra.mxu0 0.0
  %1364 = vmatpush.xpose.msra.mxu0 0.0
  %1365 = vmatpush.xpose.msra.mxu0 0.0
  %1366 = vmatpush.xpose.msra.mxu0 0.0
  %1367 = vmatpush.xpose.msra.mxu0 0.0
  %1368 = vmatpush.xpose.msra.mxu0 0.0
  %1369 = vmatpush.xpose.msra.mxu0 0.0
  %1370 = vmatpush.xpose.msra.mxu0 0.0
  %1371 = vmatpush.xpose.msra.mxu0 0.0
  %1372 = vmatpush.xpose.msra.mxu0 %v1355
  %1373 = vmatmul.f32.gmra.mxu0 %v1352
  %v1374 = vpop.f32.mrf.mxu0
  %v1375 = vadd.f32 0.0, %v1374
  %1376 = vdwg.mxu0
  %v1378 = vsel %vm206, %v59, 0
  %v1381 = vsel %vm206, %v123, 0
  %1383 = vmatpush.xpose.msra.mxu0 0.0
  %1384 = vmatpush.xpose.msra.mxu0 0.0
  %1385 = vmatpush.xpose.msra.mxu0 0.0
  %1386 = vmatpush.xpose.msra.mxu0 0.0
  %1387 = vmatpush.xpose.msra.mxu0 0.0
  %1388 = vmatpush.xpose.msra.mxu0 0.0
  %1389 = vmatpush.xpose.msra.mxu0 0.0
  %1390 = vmatpush.xpose.msra.mxu0 0.0
  %1391 = vmatpush.xpose.msra.mxu0 0.0
  %1392 = vmatpush.xpose.msra.mxu0 0.0
  %1393 = vmatpush.xpose.msra.mxu0 0.0
  %1394 = vmatpush.xpose.msra.mxu0 0.0
  %1395 = vmatpush.xpose.msra.mxu0 0.0
  %1396 = vmatpush.xpose.msra.mxu0 0.0
  %1397 = vmatpush.xpose.msra.mxu0 0.0
  %1398 = vmatpush.xpose.msra.mxu0 %v1381
  %1399 = vmatmul.f32.gmra.mxu0 %v1378
  %v1400 = vpop.f32.mrf.mxu0
  %v1401 = vadd.f32 0.0, %v1400
  %1402 = vdwg.mxu0
  %v1404 = vsel %vm206, %v60, 0
  %v1407 = vsel %vm206, %v124, 0
  %1409 = vmatpush.xpose.msra.mxu0 0.0
  %1410 = vmatpush.xpose.msra.mxu0 0.0
  %1411 = vmatpush.xpose.msra.mxu0 0.0
  %1412 = vmatpush.xpose.msra.mxu0 0.0
  %1413 = vmatpush.xpose.msra.mxu0 0.0
  %1414 = vmatpush.xpose.msra.mxu0 0.0
  %1415 = vmatpush.xpose.msra.mxu0 0.0
  %1416 = vmatpush.xpose.msra.mxu0 0.0
  %1417 = vmatpush.xpose.msra.mxu0 0.0
  %1418 = vmatpush.xpose.msra.mxu0 0.0
  %1419 = vmatpush.xpose.msra.mxu0 0.0
  %1420 = vmatpush.xpose.msra.mxu0 0.0
  %1421 = vmatpush.xpose.msra.mxu0 0.0
  %1422 = vmatpush.xpose.msra.mxu0 0.0
  %1423 = vmatpush.xpose.msra.mxu0 0.0
  %1424 = vmatpush.xpose.msra.mxu0 %v1407
  %1425 = vmatmul.f32.gmra.mxu0 %v1404
  %v1426 = vpop.f32.mrf.mxu0
  %v1427 = vadd.f32 0.0, %v1426
  %1428 = vdwg.mxu0
  %v1430 = vsel %vm206, %v61, 0
  %v1433 = vsel %vm206, %v125, 0
  %1435 = vmatpush.xpose.msra.mxu0 0.0
  %1436 = vmatpush.xpose.msra.mxu0 0.0
  %1437 = vmatpush.xpose.msra.mxu0 0.0
  %1438 = vmatpush.xpose.msra.mxu0 0.0
  %1439 = vmatpush.xpose.msra.mxu0 0.0
  %1440 = vmatpush.xpose.msra.mxu0 0.0
  %1441 = vmatpush.xpose.msra.mxu0 0.0
  %1442 = vmatpush.xpose.msra.mxu0 0.0
  %1443 = vmatpush.xpose.msra.mxu0 0.0
  %1444 = vmatpush.xpose.msra.mxu0 0.0
  %1445 = vmatpush.xpose.msra.mxu0 0.0
  %1446 = vmatpush.xpose.msra.mxu0 0.0
  %1447 = vmatpush.xpose.msra.mxu0 0.0
  %1448 = vmatpush.xpose.msra.mxu0 0.0
  %1449 = vmatpush.xpose.msra.mxu0 0.0
  %1450 = vmatpush.xpose.msra.mxu0 %v1433
  %1451 = vmatmul.f32.gmra.mxu0 %v1430
  %v1452 = vpop.f32.mrf.mxu0
  %v1453 = vadd.f32 0.0, %v1452
  %1454 = vdwg.mxu0
  %v1456 = vsel %vm206, %v62, 0
  %v1459 = vsel %vm206, %v126, 0
  %1461 = vmatpush.xpose.msra.mxu0 0.0
  %1462 = vmatpush.xpose.msra.mxu0 0.0
  %1463 = vmatpush.xpose.msra.mxu0 0.0
  %1464 = vmatpush.xpose.msra.mxu0 0.0
  %1465 = vmatpush.xpose.msra.mxu0 0.0
  %1466 = vmatpush.xpose.msra.mxu0 0.0
  %1467 = vmatpush.xpose.msra.mxu0 0.0
  %1468 = vmatpush.xpose.msra.mxu0 0.0
  %1469 = vmatpush.xpose.msra.mxu0 0.0
  %1470 = vmatpush.xpose.msra.mxu0 0.0
  %1471 = vmatpush.xpose.msra.mxu0 0.0
  %1472 = vmatpush.xpose.msra.mxu0 0.0
  %1473 = vmatpush.xpose.msra.mxu0 0.0
  %1474 = vmatpush.xpose.msra.mxu0 0.0
  %1475 = vmatpush.xpose.msra.mxu0 0.0
  %1476 = vmatpush.xpose.msra.mxu0 %v1459
  %1477 = vmatmul.f32.gmra.mxu0 %v1456
  %v1478 = vpop.f32.mrf.mxu0
  %v1479 = vadd.f32 0.0, %v1478
  %1480 = vdwg.mxu0
  %v1482 = vsel %vm206, %v63, 0
  %v1485 = vsel %vm206, %v127, 0
  %1487 = vmatpush.xpose.msra.mxu0 0.0
  %1488 = vmatpush.xpose.msra.mxu0 0.0
  %1489 = vmatpush.xpose.msra.mxu0 0.0
  %1490 = vmatpush.xpose.msra.mxu0 0.0
  %1491 = vmatpush.xpose.msra.mxu0 0.0
  %1492 = vmatpush.xpose.msra.mxu0 0.0
  %1493 = vmatpush.xpose.msra.mxu0 0.0
  %1494 = vmatpush.xpose.msra.mxu0 0.0
  %1495 = vmatpush.xpose.msra.mxu0 0.0
  %1496 = vmatpush.xpose.msra.mxu0 0.0
  %1497 = vmatpush.xpose.msra.mxu0 0.0
  %1498 = vmatpush.xpose.msra.mxu0 0.0
  %1499 = vmatpush.xpose.msra.mxu0 0.0
  %1500 = vmatpush.xpose.msra.mxu0 0.0
  %1501 = vmatpush.xpose.msra.mxu0 0.0
  %1502 = vmatpush.xpose.msra.mxu0 %v1485
  %1503 = vmatmul.f32.gmra.mxu0 %v1482
  %v1504 = vpop.f32.mrf.mxu0
  %v1505 = vadd.f32 0.0, %v1504
  %1506 = vdwg.mxu0
  %v1508 = vsel %vm206, %v64, 0
  %v1511 = vsel %vm206, %v128, 0
  %1513 = vmatpush.xpose.msra.mxu0 0.0
  %1514 = vmatpush.xpose.msra.mxu0 0.0
  %1515 = vmatpush.xpose.msra.mxu0 0.0
  %1516 = vmatpush.xpose.msra.mxu0 0.0
  %1517 = vmatpush.xpose.msra.mxu0 0.0
  %1518 = vmatpush.xpose.msra.mxu0 0.0
  %1519 = vmatpush.xpose.msra.mxu0 0.0
  %1520 = vmatpush.xpose.msra.mxu0 0.0
  %1521 = vmatpush.xpose.msra.mxu0 0.0
  %1522 = vmatpush.xpose.msra.mxu0 0.0
  %1523 = vmatpush.xpose.msra.mxu0 0.0
  %1524 = vmatpush.xpose.msra.mxu0 0.0
  %1525 = vmatpush.xpose.msra.mxu0 0.0
  %1526 = vmatpush.xpose.msra.mxu0 0.0
  %1527 = vmatpush.xpose.msra.mxu0 0.0
  %1528 = vmatpush.xpose.msra.mxu0 %v1511
  %1529 = vmatmul.f32.gmra.mxu0 %v1508
  %v1530 = vpop.f32.mrf.mxu0
  %v1531 = vadd.f32 0.0, %v1530
  %1532 = vdwg.mxu0
  %v1534 = vsel %vm206, %v65, 0
  %v1537 = vsel %vm206, %v129, 0
  %1539 = vmatpush.xpose.msra.mxu0 0.0
  %1540 = vmatpush.xpose.msra.mxu0 0.0
  %1541 = vmatpush.xpose.msra.mxu0 0.0
  %1542 = vmatpush.xpose.msra.mxu0 0.0
  %1543 = vmatpush.xpose.msra.mxu0 0.0
  %1544 = vmatpush.xpose.msra.mxu0 0.0
  %1545 = vmatpush.xpose.msra.mxu0 0.0
  %1546 = vmatpush.xpose.msra.mxu0 0.0
  %1547 = vmatpush.xpose.msra.mxu0 0.0
  %1548 = vmatpush.xpose.msra.mxu0 0.0
  %1549 = vmatpush.xpose.msra.mxu0 0.0
  %1550 = vmatpush.xpose.msra.mxu0 0.0
  %1551 = vmatpush.xpose.msra.mxu0 0.0
  %1552 = vmatpush.xpose.msra.mxu0 0.0
  %1553 = vmatpush.xpose.msra.mxu0 0.0
  %1554 = vmatpush.xpose.msra.mxu0 %v1537
  %1555 = vmatmul.f32.gmra.mxu0 %v1534
  %v1556 = vpop.f32.mrf.mxu0
  %v1557 = vadd.f32 0.0, %v1556
  %1558 = vdwg.mxu0
  %v1560 = vsel %vm206, %v66, 0
  %v1563 = vsel %vm206, %v130, 0
  %1565 = vmatpush.xpose.msra.mxu0 0.0
  %1566 = vmatpush.xpose.msra.mxu0 0.0
  %1567 = vmatpush.xpose.msra.mxu0 0.0
  %1568 = vmatpush.xpose.msra.mxu0 0.0
  %1569 = vmatpush.xpose.msra.mxu0 0.0
  %1570 = vmatpush.xpose.msra.mxu0 0.0
  %1571 = vmatpush.xpose.msra.mxu0 0.0
  %1572 = vmatpush.xpose.msra.mxu0 0.0
  %1573 = vmatpush.xpose.msra.mxu0 0.0
  %1574 = vmatpush.xpose.msra.mxu0 0.0
  %1575 = vmatpush.xpose.msra.mxu0 0.0
  %1576 = vmatpush.xpose.msra.mxu0 0.0
  %1577 = vmatpush.xpose.msra.mxu0 0.0
  %1578 = vmatpush.xpose.msra.mxu0 0.0
  %1579 = vmatpush.xpose.msra.mxu0 0.0
  %1580 = vmatpush.xpose.msra.mxu0 %v1563
  %1581 = vmatmul.f32.gmra.mxu0 %v1560
  %v1582 = vpop.f32.mrf.mxu0
  %v1583 = vadd.f32 0.0, %v1582
  %1584 = vdwg.mxu0
  %v1586 = vsel %vm206, %v67, 0
  %v1589 = vsel %vm206, %v131, 0
  %1591 = vmatpush.xpose.msra.mxu0 0.0
  %1592 = vmatpush.xpose.msra.mxu0 0.0
  %1593 = vmatpush.xpose.msra.mxu0 0.0
  %1594 = vmatpush.xpose.msra.mxu0 0.0
  %1595 = vmatpush.xpose.msra.mxu0 0.0
  %1596 = vmatpush.xpose.msra.mxu0 0.0
  %1597 = vmatpush.xpose.msra.mxu0 0.0
  %1598 = vmatpush.xpose.msra.mxu0 0.0
  %1599 = vmatpush.xpose.msra.mxu0 0.0
  %1600 = vmatpush.xpose.msra.mxu0 0.0
  %1601 = vmatpush.xpose.msra.mxu0 0.0
  %1602 = vmatpush.xpose.msra.mxu0 0.0
  %1603 = vmatpush.xpose.msra.mxu0 0.0
  %1604 = vmatpush.xpose.msra.mxu0 0.0
  %1605 = vmatpush.xpose.msra.mxu0 0.0
  %1606 = vmatpush.xpose.msra.mxu0 %v1589
  %1607 = vmatmul.f32.gmra.mxu0 %v1586
  %v1608 = vpop.f32.mrf.mxu0
  %v1609 = vadd.f32 0.0, %v1608
  %1610 = vdwg.mxu0
  %v1612 = vsel %vm206, %v68, 0
  %v1615 = vsel %vm206, %v132, 0
  %1617 = vmatpush.xpose.msra.mxu0 0.0
  %1618 = vmatpush.xpose.msra.mxu0 0.0
  %1619 = vmatpush.xpose.msra.mxu0 0.0
  %1620 = vmatpush.xpose.msra.mxu0 0.0
  %1621 = vmatpush.xpose.msra.mxu0 0.0
  %1622 = vmatpush.xpose.msra.mxu0 0.0
  %1623 = vmatpush.xpose.msra.mxu0 0.0
  %1624 = vmatpush.xpose.msra.mxu0 0.0
  %1625 = vmatpush.xpose.msra.mxu0 0.0
  %1626 = vmatpush.xpose.msra.mxu0 0.0
  %1627 = vmatpush.xpose.msra.mxu0 0.0
  %1628 = vmatpush.xpose.msra.mxu0 0.0
  %1629 = vmatpush.xpose.msra.mxu0 0.0
  %1630 = vmatpush.xpose.msra.mxu0 0.0
  %1631 = vmatpush.xpose.msra.mxu0 0.0
  %1632 = vmatpush.xpose.msra.mxu0 %v1615
  %1633 = vmatmul.f32.gmra.mxu0 %v1612
  %v1634 = vpop.f32.mrf.mxu0
  %v1635 = vadd.f32 0.0, %v1634
  %1636 = vdwg.mxu0
  %v1638 = vsel %vm206, %v69, 0
  %v1641 = vsel %vm206, %v133, 0
  %1643 = vmatpush.xpose.msra.mxu0 0.0
  %1644 = vmatpush.xpose.msra.mxu0 0.0
  %1645 = vmatpush.xpose.msra.mxu0 0.0
  %1646 = vmatpush.xpose.msra.mxu0 0.0
  %1647 = vmatpush.xpose.msra.mxu0 0.0
  %1648 = vmatpush.xpose.msra.mxu0 0.0
  %1649 = vmatpush.xpose.msra.mxu0 0.0
  %1650 = vmatpush.xpose.msra.mxu0 0.0
  %1651 = vmatpush.xpose.msra.mxu0 0.0
  %1652 = vmatpush.xpose.msra.mxu0 0.0
  %1653 = vmatpush.xpose.msra.mxu0 0.0
  %1654 = vmatpush.xpose.msra.mxu0 0.0
  %1655 = vmatpush.xpose.msra.mxu0 0.0
  %1656 = vmatpush.xpose.msra.mxu0 0.0
  %1657 = vmatpush.xpose.msra.mxu0 0.0
  %1658 = vmatpush.xpose.msra.mxu0 %v1641
  %1659 = vmatmul.f32.gmra.mxu0 %v1638
  %v1660 = vpop.f32.mrf.mxu0
  %v1661 = vadd.f32 0.0, %v1660
  %1662 = vdwg.mxu0
  %v1664 = vsel %vm206, %v70, 0
  %v1667 = vsel %vm206, %v134, 0
  %1669 = vmatpush.xpose.msra.mxu0 0.0
  %1670 = vmatpush.xpose.msra.mxu0 0.0
  %1671 = vmatpush.xpose.msra.mxu0 0.0
  %1672 = vmatpush.xpose.msra.mxu0 0.0
  %1673 = vmatpush.xpose.msra.mxu0 0.0
  %1674 = vmatpush.xpose.msra.mxu0 0.0
  %1675 = vmatpush.xpose.msra.mxu0 0.0
  %1676 = vmatpush.xpose.msra.mxu0 0.0
  %1677 = vmatpush.xpose.msra.mxu0 0.0
  %1678 = vmatpush.xpose.msra.mxu0 0.0
  %1679 = vmatpush.xpose.msra.mxu0 0.0
  %1680 = vmatpush.xpose.msra.mxu0 0.0
  %1681 = vmatpush.xpose.msra.mxu0 0.0
  %1682 = vmatpush.xpose.msra.mxu0 0.0
  %1683 = vmatpush.xpose.msra.mxu0 0.0
  %1684 = vmatpush.xpose.msra.mxu0 %v1667
  %1685 = vmatmul.f32.gmra.mxu0 %v1664
  %v1686 = vpop.f32.mrf.mxu0
  %v1687 = vadd.f32 0.0, %v1686
  %1688 = vdwg.mxu0
  %v1690 = vsel %vm206, %v71, 0
  %v1693 = vsel %vm206, %v135, 0
  %1695 = vmatpush.xpose.msra.mxu0 0.0
  %1696 = vmatpush.xpose.msra.mxu0 0.0
  %1697 = vmatpush.xpose.msra.mxu0 0.0
  %1698 = vmatpush.xpose.msra.mxu0 0.0
  %1699 = vmatpush.xpose.msra.mxu0 0.0
  %1700 = vmatpush.xpose.msra.mxu0 0.0
  %1701 = vmatpush.xpose.msra.mxu0 0.0
  %1702 = vmatpush.xpose.msra.mxu0 0.0
  %1703 = vmatpush.xpose.msra.mxu0 0.0
  %1704 = vmatpush.xpose.msra.mxu0 0.0
  %1705 = vmatpush.xpose.msra.mxu0 0.0
  %1706 = vmatpush.xpose.msra.mxu0 0.0
  %1707 = vmatpush.xpose.msra.mxu0 0.0
  %1708 = vmatpush.xpose.msra.mxu0 0.0
  %1709 = vmatpush.xpose.msra.mxu0 0.0
  %1710 = vmatpush.xpose.msra.mxu0 %v1693
  %1711 = vmatmul.f32.gmra.mxu0 %v1690
  %v1712 = vpop.f32.mrf.mxu0
  %v1713 = vadd.f32 0.0, %v1712
  %1714 = vdwg.mxu0
  %v1716 = vsel %vm206, %v72, 0
  %v1719 = vsel %vm206, %v136, 0
  %1721 = vmatpush.xpose.msra.mxu0 0.0
  %1722 = vmatpush.xpose.msra.mxu0 0.0
  %1723 = vmatpush.xpose.msra.mxu0 0.0
  %1724 = vmatpush.xpose.msra.mxu0 0.0
  %1725 = vmatpush.xpose.msra.mxu0 0.0
  %1726 = vmatpush.xpose.msra.mxu0 0.0
  %1727 = vmatpush.xpose.msra.mxu0 0.0
  %1728 = vmatpush.xpose.msra.mxu0 0.0
  %1729 = vmatpush.xpose.msra.mxu0 0.0
  %1730 = vmatpush.xpose.msra.mxu0 0.0
  %1731 = vmatpush.xpose.msra.mxu0 0.0
  %1732 = vmatpush.xpose.msra.mxu0 0.0
  %1733 = vmatpush.xpose.msra.mxu0 0.0
  %1734 = vmatpush.xpose.msra.mxu0 0.0
  %1735 = vmatpush.xpose.msra.mxu0 0.0
  %1736 = vmatpush.xpose.msra.mxu0 %v1719
  %1737 = vmatmul.f32.gmra.mxu0 %v1716
  %v1738 = vpop.f32.mrf.mxu0
  %v1739 = vadd.f32 0.0, %v1738
  %1740 = vdwg.mxu0
  %v1742 = vsel %vm206, %v73, 0
  %v1745 = vsel %vm206, %v137, 0
  %1747 = vmatpush.xpose.msra.mxu0 0.0
  %1748 = vmatpush.xpose.msra.mxu0 0.0
  %1749 = vmatpush.xpose.msra.mxu0 0.0
  %1750 = vmatpush.xpose.msra.mxu0 0.0
  %1751 = vmatpush.xpose.msra.mxu0 0.0
  %1752 = vmatpush.xpose.msra.mxu0 0.0
  %1753 = vmatpush.xpose.msra.mxu0 0.0
  %1754 = vmatpush.xpose.msra.mxu0 0.0
  %1755 = vmatpush.xpose.msra.mxu0 0.0
  %1756 = vmatpush.xpose.msra.mxu0 0.0
  %1757 = vmatpush.xpose.msra.mxu0 0.0
  %1758 = vmatpush.xpose.msra.mxu0 0.0
  %1759 = vmatpush.xpose.msra.mxu0 0.0
  %1760 = vmatpush.xpose.msra.mxu0 0.0
  %1761 = vmatpush.xpose.msra.mxu0 0.0
  %1762 = vmatpush.xpose.msra.mxu0 %v1745
  %1763 = vmatmul.f32.gmra.mxu0 %v1742
  %v1764 = vpop.f32.mrf.mxu0
  %v1765 = vadd.f32 0.0, %v1764
  %1766 = vdwg.mxu0
  %v1768 = vsel %vm206, %v74, 0
  %v1771 = vsel %vm206, %v138, 0
  %1773 = vmatpush.xpose.msra.mxu0 0.0
  %1774 = vmatpush.xpose.msra.mxu0 0.0
  %1775 = vmatpush.xpose.msra.mxu0 0.0
  %1776 = vmatpush.xpose.msra.mxu0 0.0
  %1777 = vmatpush.xpose.msra.mxu0 0.0
  %1778 = vmatpush.xpose.msra.mxu0 0.0
  %1779 = vmatpush.xpose.msra.mxu0 0.0
  %1780 = vmatpush.xpose.msra.mxu0 0.0
  %1781 = vmatpush.xpose.msra.mxu0 0.0
  %1782 = vmatpush.xpose.msra.mxu0 0.0
  %1783 = vmatpush.xpose.msra.mxu0 0.0
  %1784 = vmatpush.xpose.msra.mxu0 0.0
  %1785 = vmatpush.xpose.msra.mxu0 0.0
  %1786 = vmatpush.xpose.msra.mxu0 0.0
  %1787 = vmatpush.xpose.msra.mxu0 0.0
  %1788 = vmatpush.xpose.msra.mxu0 %v1771
  %1789 = vmatmul.f32.gmra.mxu0 %v1768
  %v1790 = vpop.f32.mrf.mxu0
  %v1791 = vadd.f32 0.0, %v1790
  %1792 = vdwg.mxu0
  %v1794 = vsel %vm206, %v75, 0
  %v1797 = vsel %vm206, %v139, 0
  %1799 = vmatpush.xpose.msra.mxu0 0.0
  %1800 = vmatpush.xpose.msra.mxu0 0.0
  %1801 = vmatpush.xpose.msra.mxu0 0.0
  %1802 = vmatpush.xpose.msra.mxu0 0.0
  %1803 = vmatpush.xpose.msra.mxu0 0.0
  %1804 = vmatpush.xpose.msra.mxu0 0.0
  %1805 = vmatpush.xpose.msra.mxu0 0.0
  %1806 = vmatpush.xpose.msra.mxu0 0.0
  %1807 = vmatpush.xpose.msra.mxu0 0.0
  %1808 = vmatpush.xpose.msra.mxu0 0.0
  %1809 = vmatpush.xpose.msra.mxu0 0.0
  %1810 = vmatpush.xpose.msra.mxu0 0.0
  %1811 = vmatpush.xpose.msra.mxu0 0.0
  %1812 = vmatpush.xpose.msra.mxu0 0.0
  %1813 = vmatpush.xpose.msra.mxu0 0.0
  %1814 = vmatpush.xpose.msra.mxu0 %v1797
  %1815 = vmatmul.f32.gmra.mxu0 %v1794
  %v1816 = vpop.f32.mrf.mxu0
  %v1817 = vadd.f32 0.0, %v1816
  %1818 = vdwg.mxu0
  %v1820 = vsel %vm206, %v76, 0
  %v1823 = vsel %vm206, %v140, 0
  %1825 = vmatpush.xpose.msra.mxu0 0.0
  %1826 = vmatpush.xpose.msra.mxu0 0.0
  %1827 = vmatpush.xpose.msra.mxu0 0.0
  %1828 = vmatpush.xpose.msra.mxu0 0.0
  %1829 = vmatpush.xpose.msra.mxu0 0.0
  %1830 = vmatpush.xpose.msra.mxu0 0.0
  %1831 = vmatpush.xpose.msra.mxu0 0.0
  %1832 = vmatpush.xpose.msra.mxu0 0.0
  %1833 = vmatpush.xpose.msra.mxu0 0.0
  %1834 = vmatpush.xpose.msra.mxu0 0.0
  %1835 = vmatpush.xpose.msra.mxu0 0.0
  %1836 = vmatpush.xpose.msra.mxu0 0.0
  %1837 = vmatpush.xpose.msra.mxu0 0.0
  %1838 = vmatpush.xpose.msra.mxu0 0.0
  %1839 = vmatpush.xpose.msra.mxu0 0.0
  %1840 = vmatpush.xpose.msra.mxu0 %v1823
  %1841 = vmatmul.f32.gmra.mxu0 %v1820
  %v1842 = vpop.f32.mrf.mxu0
  %v1843 = vadd.f32 0.0, %v1842
  %1844 = vdwg.mxu0
  %v1846 = vsel %vm206, %v77, 0
  %v1849 = vsel %vm206, %v141, 0
  %1851 = vmatpush.xpose.msra.mxu0 0.0
  %1852 = vmatpush.xpose.msra.mxu0 0.0
  %1853 = vmatpush.xpose.msra.mxu0 0.0
  %1854 = vmatpush.xpose.msra.mxu0 0.0
  %1855 = vmatpush.xpose.msra.mxu0 0.0
  %1856 = vmatpush.xpose.msra.mxu0 0.0
  %1857 = vmatpush.xpose.msra.mxu0 0.0
  %1858 = vmatpush.xpose.msra.mxu0 0.0
  %1859 = vmatpush.xpose.msra.mxu0 0.0
  %1860 = vmatpush.xpose.msra.mxu0 0.0
  %1861 = vmatpush.xpose.msra.mxu0 0.0
  %1862 = vmatpush.xpose.msra.mxu0 0.0
  %1863 = vmatpush.xpose.msra.mxu0 0.0
  %1864 = vmatpush.xpose.msra.mxu0 0.0
  %1865 = vmatpush.xpose.msra.mxu0 0.0
  %1866 = vmatpush.xpose.msra.mxu0 %v1849
  %1867 = vmatmul.f32.gmra.mxu0 %v1846
  %v1868 = vpop.f32.mrf.mxu0
  %v1869 = vadd.f32 0.0, %v1868
  %1870 = vdwg.mxu0
  %v1871 = vmul.f32 %v231, 0.35355338
  %v1872 = vmul.f32 %v257, 0.35355338
  %v1873 = vmul.f32 %v283, 0.35355338
  %v1874 = vmul.f32 %v309, 0.35355338
  %v1875 = vmul.f32 %v335, 0.35355338
  %v1876 = vmul.f32 %v361, 0.35355338
  %v1877 = vmul.f32 %v387, 0.35355338
  %v1878 = vmul.f32 %v413, 0.35355338
  %v1879 = vmul.f32 %v439, 0.35355338
  %v1880 = vmul.f32 %v465, 0.35355338
  %v1881 = vmul.f32 %v491, 0.35355338
  %v1882 = vmul.f32 %v517, 0.35355338
  %v1883 = vmul.f32 %v543, 0.35355338
  %v1884 = vmul.f32 %v569, 0.35355338
  %v1885 = vmul.f32 %v595, 0.35355338
  %v1886 = vmul.f32 %v621, 0.35355338
  %v1887 = vmul.f32 %v647, 0.35355338
  %v1888 = vmul.f32 %v673, 0.35355338
  %v1889 = vmul.f32 %v699, 0.35355338
  %v1890 = vmul.f32 %v725, 0.35355338
  %v1891 = vmul.f32 %v751, 0.35355338
  %v1892 = vmul.f32 %v777, 0.35355338
  %v1893 = vmul.f32 %v803, 0.35355338
  %v1894 = vmul.f32 %v829, 0.35355338
  %v1895 = vmul.f32 %v855, 0.35355338
  %v1896 = vmul.f32 %v881, 0.35355338
  %v1897 = vmul.f32 %v907, 0.35355338
  %v1898 = vmul.f32 %v933, 0.35355338
  %v1899 = vmul.f32 %v959, 0.35355338
  %v1900 = vmul.f32 %v985, 0.35355338
  %v1901 = vmul.f32 %v1011, 0.35355338
  %v1902 = vmul.f32 %v1037, 0.35355338
  %v1903 = vmul.f32 %v1063, 0.35355338
  %v1904 = vmul.f32 %v1089, 0.35355338
  %v1905 = vmul.f32 %v1115, 0.35355338
  %v1906 = vmul.f32 %v1141, 0.35355338
  %v1907 = vmul.f32 %v1167, 0.35355338
  %v1908 = vmul.f32 %v1193, 0.35355338
  %v1909 = vmul.f32 %v1219, 0.35355338
  %v1910 = vmul.f32 %v1245, 0.35355338
  %v1911 = vmul.f32 %v1271, 0.35355338
  %v1912 = vmul.f32 %v1297, 0.35355338
  %v1913 = vmul.f32 %v1323, 0.35355338
  %v1914 = vmul.f32 %v1349, 0.35355338
  %v1915 = vmul.f32 %v1375, 0.35355338
  %v1916 = vmul.f32 %v1401, 0.35355338
  %v1917 = vmul.f32 %v1427, 0.35355338
  %v1918 = vmul.f32 %v1453, 0.35355338
  %v1919 = vmul.f32 %v1479, 0.35355338
  %v1920 = vmul.f32 %v1505, 0.35355338
  %v1921 = vmul.f32 %v1531, 0.35355338
  %v1922 = vmul.f32 %v1557, 0.35355338
  %v1923 = vmul.f32 %v1583, 0.35355338
  %v1924 = vmul.f32 %v1609, 0.35355338
  %v1925 = vmul.f32 %v1635, 0.35355338
  %v1926 = vmul.f32 %v1661, 0.35355338
  %v1927 = vmul.f32 %v1687, 0.35355338
  %v1928 = vmul.f32 %v1713, 0.35355338
  %v1929 = vmul.f32 %v1739, 0.35355338
  %v1930 = vmul.f32 %v1765, 0.35355338
  %v1931 = vmul.f32 %v1791, 0.35355338
  %v1932 = vmul.f32 %v1817, 0.35355338
  %v1933 = vmul.f32 %v1843, 0.35355338
  %v1934 = vmul.f32 %v1869, 0.35355338
  %vm1935 = vcmask 27648
  %v1936 = vsel %vm1935, %v1871, -inf
  %1937 = vmax.xlane.f32.xlu0 %v1936
  %v1938 = vpop.xlane.xlu0 %1937
  %v1939 = vsel %vm1935, %v1872, -inf
  %1940 = vmax.xlane.f32.xlu0 %v1939
  %v1941 = vpop.xlane.xlu0 %1940
  %v1942 = vsel %vm1935, %v1873, -inf
  %1943 = vmax.xlane.f32.xlu0 %v1942
  %v1944 = vpop.xlane.xlu0 %1943
  %v1945 = vsel %vm1935, %v1874, -inf
  %1946 = vmax.xlane.f32.xlu0 %v1945
  %v1947 = vpop.xlane.xlu0 %1946
  %v1948 = vsel %vm1935, %v1875, -inf
  %1949 = vmax.xlane.f32.xlu0 %v1948
  %v1950 = vpop.xlane.xlu0 %1949
  %v1951 = vsel %vm1935, %v1876, -inf
  %1952 = vmax.xlane.f32.xlu0 %v1951
  %v1953 = vpop.xlane.xlu0 %1952
  %v1954 = vsel %vm1935, %v1877, -inf
  %1955 = vmax.xlane.f32.xlu0 %v1954
  %v1956 = vpop.xlane.xlu0 %1955
  %v1957 = vsel %vm1935, %v1878, -inf
  %1958 = vmax.xlane.f32.xlu0 %v1957
  %v1959 = vpop.xlane.xlu0 %1958
  %v1960 = vsel %vm1935, %v1879, -inf
  %1961 = vmax.xlane.f32.xlu0 %v1960
  %v1962 = vpop.xlane.xlu0 %1961
  %v1963 = vsel %vm1935, %v1880, -inf
  %1964 = vmax.xlane.f32.xlu0 %v1963
  %v1965 = vpop.xlane.xlu0 %1964
  %v1966 = vsel %vm1935, %v1881, -inf
  %1967 = vmax.xlane.f32.xlu0 %v1966
  %v1968 = vpop.xlane.xlu0 %1967
  %v1969 = vsel %vm1935, %v1882, -inf
  %1970 = vmax.xlane.f32.xlu0 %v1969
  %v1971 = vpop.xlane.xlu0 %1970
  %v1972 = vsel %vm1935, %v1883, -inf
  %1973 = vmax.xlane.f32.xlu0 %v1972
  %v1974 = vpop.xlane.xlu0 %1973
  %v1975 = vsel %vm1935, %v1884, -inf
  %1976 = vmax.xlane.f32.xlu0 %v1975
  %v1977 = vpop.xlane.xlu0 %1976
  %v1978 = vsel %vm1935, %v1885, -inf
  %1979 = vmax.xlane.f32.xlu0 %v1978
  %v1980 = vpop.xlane.xlu0 %1979
  %v1981 = vsel %vm1935, %v1886, -inf
  %1982 = vmax.xlane.f32.xlu0 %v1981
  %v1983 = vpop.xlane.xlu0 %1982
  %v1984 = vsel %vm1935, %v1887, -inf
  %1985 = vmax.xlane.f32.xlu0 %v1984
  %v1986 = vpop.xlane.xlu0 %1985
  %v1987 = vsel %vm1935, %v1888, -inf
  %1988 = vmax.xlane.f32.xlu0 %v1987
  %v1989 = vpop.xlane.xlu0 %1988
  %v1990 = vsel %vm1935, %v1889, -inf
  %1991 = vmax.xlane.f32.xlu0 %v1990
  %v1992 = vpop.xlane.xlu0 %1991
  %v1993 = vsel %vm1935, %v1890, -inf
  %1994 = vmax.xlane.f32.xlu0 %v1993
  %v1995 = vpop.xlane.xlu0 %1994
  %v1996 = vsel %vm1935, %v1891, -inf
  %1997 = vmax.xlane.f32.xlu0 %v1996
  %v1998 = vpop.xlane.xlu0 %1997
  %v1999 = vsel %vm1935, %v1892, -inf
  %2000 = vmax.xlane.f32.xlu0 %v1999
  %v2001 = vpop.xlane.xlu0 %2000
  %v2002 = vsel %vm1935, %v1893, -inf
  %2003 = vmax.xlane.f32.xlu0 %v2002
  %v2004 = vpop.xlane.xlu0 %2003
  %v2005 = vsel %vm1935, %v1894, -inf
  %2006 = vmax.xlane.f32.xlu0 %v2005
  %v2007 = vpop.xlane.xlu0 %2006
  %v2008 = vsel %vm1935, %v1895, -inf
  %2009 = vmax.xlane.f32.xlu0 %v2008
  %v2010 = vpop.xlane.xlu0 %2009
  %v2011 = vsel %vm1935, %v1896, -inf
  %2012 = vmax.xlane.f32.xlu0 %v2011
  %v2013 = vpop.xlane.xlu0 %2012
  %v2014 = vsel %vm1935, %v1897, -inf
  %2015 = vmax.xlane.f32.xlu0 %v2014
  %v2016 = vpop.xlane.xlu0 %2015
  %v2017 = vsel %vm1935, %v1898, -inf
  %2018 = vmax.xlane.f32.xlu0 %v2017
  %v2019 = vpop.xlane.xlu0 %2018
  %v2020 = vsel %vm1935, %v1899, -inf
  %2021 = vmax.xlane.f32.xlu0 %v2020
  %v2022 = vpop.xlane.xlu0 %2021
  %v2023 = vsel %vm1935, %v1900, -inf
  %2024 = vmax.xlane.f32.xlu0 %v2023
  %v2025 = vpop.xlane.xlu0 %2024
  %v2026 = vsel %vm1935, %v1901, -inf
  %2027 = vmax.xlane.f32.xlu0 %v2026
  %v2028 = vpop.xlane.xlu0 %2027
  %v2029 = vsel %vm1935, %v1902, -inf
  %2030 = vmax.xlane.f32.xlu0 %v2029
  %v2031 = vpop.xlane.xlu0 %2030
  %v2032 = vsel %vm1935, %v1903, -inf
  %2033 = vmax.xlane.f32.xlu0 %v2032
  %v2034 = vpop.xlane.xlu0 %2033
  %v2035 = vsel %vm1935, %v1904, -inf
  %2036 = vmax.xlane.f32.xlu0 %v2035
  %v2037 = vpop.xlane.xlu0 %2036
  %v2038 = vsel %vm1935, %v1905, -inf
  %2039 = vmax.xlane.f32.xlu0 %v2038
  %v2040 = vpop.xlane.xlu0 %2039
  %v2041 = vsel %vm1935, %v1906, -inf
  %2042 = vmax.xlane.f32.xlu0 %v2041
  %v2043 = vpop.xlane.xlu0 %2042
  %v2044 = vsel %vm1935, %v1907, -inf
  %2045 = vmax.xlane.f32.xlu0 %v2044
  %v2046 = vpop.xlane.xlu0 %2045
  %v2047 = vsel %vm1935, %v1908, -inf
  %2048 = vmax.xlane.f32.xlu0 %v2047
  %v2049 = vpop.xlane.xlu0 %2048
  %v2050 = vsel %vm1935, %v1909, -inf
  %2051 = vmax.xlane.f32.xlu0 %v2050
  %v2052 = vpop.xlane.xlu0 %2051
  %v2053 = vsel %vm1935, %v1910, -inf
  %2054 = vmax.xlane.f32.xlu0 %v2053
  %v2055 = vpop.xlane.xlu0 %2054
  %v2056 = vsel %vm1935, %v1911, -inf
  %2057 = vmax.xlane.f32.xlu0 %v2056
  %v2058 = vpop.xlane.xlu0 %2057
  %v2059 = vsel %vm1935, %v1912, -inf
  %2060 = vmax.xlane.f32.xlu0 %v2059
  %v2061 = vpop.xlane.xlu0 %2060
  %v2062 = vsel %vm1935, %v1913, -inf
  %2063 = vmax.xlane.f32.xlu0 %v2062
  %v2064 = vpop.xlane.xlu0 %2063
  %v2065 = vsel %vm1935, %v1914, -inf
  %2066 = vmax.xlane.f32.xlu0 %v2065
  %v2067 = vpop.xlane.xlu0 %2066
  %v2068 = vsel %vm1935, %v1915, -inf
  %2069 = vmax.xlane.f32.xlu0 %v2068
  %v2070 = vpop.xlane.xlu0 %2069
  %v2071 = vsel %vm1935, %v1916, -inf
  %2072 = vmax.xlane.f32.xlu0 %v2071
  %v2073 = vpop.xlane.xlu0 %2072
  %v2074 = vsel %vm1935, %v1917, -inf
  %2075 = vmax.xlane.f32.xlu0 %v2074
  %v2076 = vpop.xlane.xlu0 %2075
  %v2077 = vsel %vm1935, %v1918, -inf
  %2078 = vmax.xlane.f32.xlu0 %v2077
  %v2079 = vpop.xlane.xlu0 %2078
  %v2080 = vsel %vm1935, %v1919, -inf
  %2081 = vmax.xlane.f32.xlu0 %v2080
  %v2082 = vpop.xlane.xlu0 %2081
  %v2083 = vsel %vm1935, %v1920, -inf
  %2084 = vmax.xlane.f32.xlu0 %v2083
  %v2085 = vpop.xlane.xlu0 %2084
  %v2086 = vsel %vm1935, %v1921, -inf
  %2087 = vmax.xlane.f32.xlu0 %v2086
  %v2088 = vpop.xlane.xlu0 %2087
  %v2089 = vsel %vm1935, %v1922, -inf
  %2090 = vmax.xlane.f32.xlu0 %v2089
  %v2091 = vpop.xlane.xlu0 %2090
  %v2092 = vsel %vm1935, %v1923, -inf
  %2093 = vmax.xlane.f32.xlu0 %v2092
  %v2094 = vpop.xlane.xlu0 %2093
  %v2095 = vsel %vm1935, %v1924, -inf
  %2096 = vmax.xlane.f32.xlu0 %v2095
  %v2097 = vpop.xlane.xlu0 %2096
  %v2098 = vsel %vm1935, %v1925, -inf
  %2099 = vmax.xlane.f32.xlu0 %v2098
  %v2100 = vpop.xlane.xlu0 %2099
  %v2101 = vsel %vm1935, %v1926, -inf
  %2102 = vmax.xlane.f32.xlu0 %v2101
  %v2103 = vpop.xlane.xlu0 %2102
  %v2104 = vsel %vm1935, %v1927, -inf
  %2105 = vmax.xlane.f32.xlu0 %v2104
  %v2106 = vpop.xlane.xlu0 %2105
  %v2107 = vsel %vm1935, %v1928, -inf
  %2108 = vmax.xlane.f32.xlu0 %v2107
  %v2109 = vpop.xlane.xlu0 %2108
  %v2110 = vsel %vm1935, %v1929, -inf
  %2111 = vmax.xlane.f32.xlu0 %v2110
  %v2112 = vpop.xlane.xlu0 %2111
  %v2113 = vsel %vm1935, %v1930, -inf
  %2114 = vmax.xlane.f32.xlu0 %v2113
  %v2115 = vpop.xlane.xlu0 %2114
  %v2116 = vsel %vm1935, %v1931, -inf
  %2117 = vmax.xlane.f32.xlu0 %v2116
  %v2118 = vpop.xlane.xlu0 %2117
  %v2119 = vsel %vm1935, %v1932, -inf
  %2120 = vmax.xlane.f32.xlu0 %v2119
  %v2121 = vpop.xlane.xlu0 %2120
  %v2122 = vsel %vm1935, %v1933, -inf
  %2123 = vmax.xlane.f32.xlu0 %v2122
  %v2124 = vpop.xlane.xlu0 %2123
  %v2125 = vsel %vm1935, %v1934, -inf
  %2126 = vmax.xlane.f32.xlu0 %v2125
  %v2127 = vpop.xlane.xlu0 %2126
  %v2128 = vsub.f32 %v1871, %v1938
  %v2129 = vsub.f32 %v1872, %v1941
  %v2130 = vsub.f32 %v1873, %v1944
  %v2131 = vsub.f32 %v1874, %v1947
  %v2132 = vsub.f32 %v1875, %v1950
  %v2133 = vsub.f32 %v1876, %v1953
  %v2134 = vsub.f32 %v1877, %v1956
  %v2135 = vsub.f32 %v1878, %v1959
  %v2136 = vsub.f32 %v1879, %v1962
  %v2137 = vsub.f32 %v1880, %v1965
  %v2138 = vsub.f32 %v1881, %v1968
  %v2139 = vsub.f32 %v1882, %v1971
  %v2140 = vsub.f32 %v1883, %v1974
  %v2141 = vsub.f32 %v1884, %v1977
  %v2142 = vsub.f32 %v1885, %v1980
  %v2143 = vsub.f32 %v1886, %v1983
  %v2144 = vsub.f32 %v1887, %v1986
  %v2145 = vsub.f32 %v1888, %v1989
  %v2146 = vsub.f32 %v1889, %v1992
  %v2147 = vsub.f32 %v1890, %v1995
  %v2148 = vsub.f32 %v1891, %v1998
  %v2149 = vsub.f32 %v1892, %v2001
  %v2150 = vsub.f32 %v1893, %v2004
  %v2151 = vsub.f32 %v1894, %v2007
  %v2152 = vsub.f32 %v1895, %v2010
  %v2153 = vsub.f32 %v1896, %v2013
  %v2154 = vsub.f32 %v1897, %v2016
  %v2155 = vsub.f32 %v1898, %v2019
  %v2156 = vsub.f32 %v1899, %v2022
  %v2157 = vsub.f32 %v1900, %v2025
  %v2158 = vsub.f32 %v1901, %v2028
  %v2159 = vsub.f32 %v1902, %v2031
  %v2160 = vsub.f32 %v1903, %v2034
  %v2161 = vsub.f32 %v1904, %v2037
  %v2162 = vsub.f32 %v1905, %v2040
  %v2163 = vsub.f32 %v1906, %v2043
  %v2164 = vsub.f32 %v1907, %v2046
  %v2165 = vsub.f32 %v1908, %v2049
  %v2166 = vsub.f32 %v1909, %v2052
  %v2167 = vsub.f32 %v1910, %v2055
  %v2168 = vsub.f32 %v1911, %v2058
  %v2169 = vsub.f32 %v1912, %v2061
  %v2170 = vsub.f32 %v1913, %v2064
  %v2171 = vsub.f32 %v1914, %v2067
  %v2172 = vsub.f32 %v1915, %v2070
  %v2173 = vsub.f32 %v1916, %v2073
  %v2174 = vsub.f32 %v1917, %v2076
  %v2175 = vsub.f32 %v1918, %v2079
  %v2176 = vsub.f32 %v1919, %v2082
  %v2177 = vsub.f32 %v1920, %v2085
  %v2178 = vsub.f32 %v1921, %v2088
  %v2179 = vsub.f32 %v1922, %v2091
  %v2180 = vsub.f32 %v1923, %v2094
  %v2181 = vsub.f32 %v1924, %v2097
  %v2182 = vsub.f32 %v1925, %v2100
  %v2183 = vsub.f32 %v1926, %v2103
  %v2184 = vsub.f32 %v1927, %v2106
  %v2185 = vsub.f32 %v1928, %v2109
  %v2186 = vsub.f32 %v1929, %v2112
  %v2187 = vsub.f32 %v1930, %v2115
  %v2188 = vsub.f32 %v1931, %v2118
  %v2189 = vsub.f32 %v1932, %v2121
  %v2190 = vsub.f32 %v1933, %v2124
  %v2191 = vsub.f32 %v1934, %v2127
  %v2192 = vmul.f32 %v2128, 1.442695
  %v2193 = vpow.pop %v2192
  %v2194 = vmul.f32 %v2129, 1.442695
  %v2195 = vpow.pop %v2194
  %v2196 = vmul.f32 %v2130, 1.442695
  %v2197 = vpow.pop %v2196
  %v2198 = vmul.f32 %v2131, 1.442695
  %v2199 = vpow.pop %v2198
  %v2200 = vmul.f32 %v2132, 1.442695
  %v2201 = vpow.pop %v2200
  %v2202 = vmul.f32 %v2133, 1.442695
  %v2203 = vpow.pop %v2202
  %v2204 = vmul.f32 %v2134, 1.442695
  %v2205 = vpow.pop %v2204
  %v2206 = vmul.f32 %v2135, 1.442695
  %v2207 = vpow.pop %v2206
  %v2208 = vmul.f32 %v2136, 1.442695
  %v2209 = vpow.pop %v2208
  %v2210 = vmul.f32 %v2137, 1.442695
  %v2211 = vpow.pop %v2210
  %v2212 = vmul.f32 %v2138, 1.442695
  %v2213 = vpow.pop %v2212
  %v2214 = vmul.f32 %v2139, 1.442695
  %v2215 = vpow.pop %v2214
  %v2216 = vmul.f32 %v2140, 1.442695
  %v2217 = vpow.pop %v2216
  %v2218 = vmul.f32 %v2141, 1.442695
  %v2219 = vpow.pop %v2218
  %v2220 = vmul.f32 %v2142, 1.442695
  %v2221 = vpow.pop %v2220
  %v2222 = vmul.f32 %v2143, 1.442695
  %v2223 = vpow.pop %v2222
  %v2224 = vmul.f32 %v2144, 1.442695
  %v2225 = vpow.pop %v2224
  %v2226 = vmul.f32 %v2145, 1.442695
  %v2227 = vpow.pop %v2226
  %v2228 = vmul.f32 %v2146, 1.442695
  %v2229 = vpow.pop %v2228
  %v2230 = vmul.f32 %v2147, 1.442695
  %v2231 = vpow.pop %v2230
  %v2232 = vmul.f32 %v2148, 1.442695
  %v2233 = vpow.pop %v2232
  %v2234 = vmul.f32 %v2149, 1.442695
  %v2235 = vpow.pop %v2234
  %v2236 = vmul.f32 %v2150, 1.442695
  %v2237 = vpow.pop %v2236
  %v2238 = vmul.f32 %v2151, 1.442695
  %v2239 = vpow.pop %v2238
  %v2240 = vmul.f32 %v2152, 1.442695
  %v2241 = vpow.pop %v2240
  %v2242 = vmul.f32 %v2153, 1.442695
  %v2243 = vpow.pop %v2242
  %v2244 = vmul.f32 %v2154, 1.442695
  %v2245 = vpow.pop %v2244
  %v2246 = vmul.f32 %v2155, 1.442695
  %v2247 = vpow.pop %v2246
  %v2248 = vmul.f32 %v2156, 1.442695
  %v2249 = vpow.pop %v2248
  %v2250 = vmul.f32 %v2157, 1.442695
  %v2251 = vpow.pop %v2250
  %v2252 = vmul.f32 %v2158, 1.442695
  %v2253 = vpow.pop %v2252
  %v2254 = vmul.f32 %v2159, 1.442695
  %v2255 = vpow.pop %v2254
  %v2256 = vmul.f32 %v2160, 1.442695
  %v2257 = vpow.pop %v2256
  %v2258 = vmul.f32 %v2161, 1.442695
  %v2259 = vpow.pop %v2258
  %v2260 = vmul.f32 %v2162, 1.442695
  %v2261 = vpow.pop %v2260
  %v2262 = vmul.f32 %v2163, 1.442695
  %v2263 = vpow.pop %v2262
  %v2264 = vmul.f32 %v2164, 1.442695
  %v2265 = vpow.pop %v2264
  %v2266 = vmul.f32 %v2165, 1.442695
  %v2267 = vpow.pop %v2266
  %v2268 = vmul.f32 %v2166, 1.442695
  %v2269 = vpow.pop %v2268
  %v2270 = vmul.f32 %v2167, 1.442695
  %v2271 = vpow.pop %v2270
  %v2272 = vmul.f32 %v2168, 1.442695
  %v2273 = vpow.pop %v2272
  %v2274 = vmul.f32 %v2169, 1.442695
  %v2275 = vpow.pop %v2274
  %v2276 = vmul.f32 %v2170, 1.442695
  %v2277 = vpow.pop %v2276
  %v2278 = vmul.f32 %v2171, 1.442695
  %v2279 = vpow.pop %v2278
  %v2280 = vmul.f32 %v2172, 1.442695
  %v2281 = vpow.pop %v2280
  %v2282 = vmul.f32 %v2173, 1.442695
  %v2283 = vpow.pop %v2282
  %v2284 = vmul.f32 %v2174, 1.442695
  %v2285 = vpow.pop %v2284
  %v2286 = vmul.f32 %v2175, 1.442695
  %v2287 = vpow.pop %v2286
  %v2288 = vmul.f32 %v2176, 1.442695
  %v2289 = vpow.pop %v2288
  %v2290 = vmul.f32 %v2177, 1.442695
  %v2291 = vpow.pop %v2290
  %v2292 = vmul.f32 %v2178, 1.442695
  %v2293 = vpow.pop %v2292
  %v2294 = vmul.f32 %v2179, 1.442695
  %v2295 = vpow.pop %v2294
  %v2296 = vmul.f32 %v2180, 1.442695
  %v2297 = vpow.pop %v2296
  %v2298 = vmul.f32 %v2181, 1.442695
  %v2299 = vpow.pop %v2298
  %v2300 = vmul.f32 %v2182, 1.442695
  %v2301 = vpow.pop %v2300
  %v2302 = vmul.f32 %v2183, 1.442695
  %v2303 = vpow.pop %v2302
  %v2304 = vmul.f32 %v2184, 1.442695
  %v2305 = vpow.pop %v2304
  %v2306 = vmul.f32 %v2185, 1.442695
  %v2307 = vpow.pop %v2306
  %v2308 = vmul.f32 %v2186, 1.442695
  %v2309 = vpow.pop %v2308
  %v2310 = vmul.f32 %v2187, 1.442695
  %v2311 = vpow.pop %v2310
  %v2312 = vmul.f32 %v2188, 1.442695
  %v2313 = vpow.pop %v2312
  %v2314 = vmul.f32 %v2189, 1.442695
  %v2315 = vpow.pop %v2314
  %v2316 = vmul.f32 %v2190, 1.442695
  %v2317 = vpow.pop %v2316
  %v2318 = vmul.f32 %v2191, 1.442695
  %v2319 = vpow.pop %v2318
  %v2320 = vsel %vm1935, %v2193, 0.0
  %2321 = vadd.xlane.f32.xlu0 %v2320
  %v2322 = vpop.xlane.xlu0 %2321
  %v2323 = vsel %vm1935, %v2195, 0.0
  %2324 = vadd.xlane.f32.xlu0 %v2323
  %v2325 = vpop.xlane.xlu0 %2324
  %v2326 = vsel %vm1935, %v2197, 0.0
  %2327 = vadd.xlane.f32.xlu0 %v2326
  %v2328 = vpop.xlane.xlu0 %2327
  %v2329 = vsel %vm1935, %v2199, 0.0
  %2330 = vadd.xlane.f32.xlu0 %v2329
  %v2331 = vpop.xlane.xlu0 %2330
  %v2332 = vsel %vm1935, %v2201, 0.0
  %2333 = vadd.xlane.f32.xlu0 %v2332
  %v2334 = vpop.xlane.xlu0 %2333
  %v2335 = vsel %vm1935, %v2203, 0.0
  %2336 = vadd.xlane.f32.xlu0 %v2335
  %v2337 = vpop.xlane.xlu0 %2336
  %v2338 = vsel %vm1935, %v2205, 0.0
  %2339 = vadd.xlane.f32.xlu0 %v2338
  %v2340 = vpop.xlane.xlu0 %2339
  %v2341 = vsel %vm1935, %v2207, 0.0
  %2342 = vadd.xlane.f32.xlu0 %v2341
  %v2343 = vpop.xlane.xlu0 %2342
  %v2344 = vsel %vm1935, %v2209, 0.0
  %2345 = vadd.xlane.f32.xlu0 %v2344
  %v2346 = vpop.xlane.xlu0 %2345
  %v2347 = vsel %vm1935, %v2211, 0.0
  %2348 = vadd.xlane.f32.xlu0 %v2347
  %v2349 = vpop.xlane.xlu0 %2348
  %v2350 = vsel %vm1935, %v2213, 0.0
  %2351 = vadd.xlane.f32.xlu0 %v2350
  %v2352 = vpop.xlane.xlu0 %2351
  %v2353 = vsel %vm1935, %v2215, 0.0
  %2354 = vadd.xlane.f32.xlu0 %v2353
  %v2355 = vpop.xlane.xlu0 %2354
  %v2356 = vsel %vm1935, %v2217, 0.0
  %2357 = vadd.xlane.f32.xlu0 %v2356
  %v2358 = vpop.xlane.xlu0 %2357
  %v2359 = vsel %vm1935, %v2219, 0.0
  %2360 = vadd.xlane.f32.xlu0 %v2359
  %v2361 = vpop.xlane.xlu0 %2360
  %v2362 = vsel %vm1935, %v2221, 0.0
  %2363 = vadd.xlane.f32.xlu0 %v2362
  %v2364 = vpop.xlane.xlu0 %2363
  %v2365 = vsel %vm1935, %v2223, 0.0
  %2366 = vadd.xlane.f32.xlu0 %v2365
  %v2367 = vpop.xlane.xlu0 %2366
  %v2368 = vsel %vm1935, %v2225, 0.0
  %2369 = vadd.xlane.f32.xlu0 %v2368
  %v2370 = vpop.xlane.xlu0 %2369
  %v2371 = vsel %vm1935, %v2227, 0.0
  %2372 = vadd.xlane.f32.xlu0 %v2371
  %v2373 = vpop.xlane.xlu0 %2372
  %v2374 = vsel %vm1935, %v2229, 0.0
  %2375 = vadd.xlane.f32.xlu0 %v2374
  %v2376 = vpop.xlane.xlu0 %2375
  %v2377 = vsel %vm1935, %v2231, 0.0
  %2378 = vadd.xlane.f32.xlu0 %v2377
  %v2379 = vpop.xlane.xlu0 %2378
  %v2380 = vsel %vm1935, %v2233, 0.0
  %2381 = vadd.xlane.f32.xlu0 %v2380
  %v2382 = vpop.xlane.xlu0 %2381
  %v2383 = vsel %vm1935, %v2235, 0.0
  %2384 = vadd.xlane.f32.xlu0 %v2383
  %v2385 = vpop.xlane.xlu0 %2384
  %v2386 = vsel %vm1935, %v2237, 0.0
  %2387 = vadd.xlane.f32.xlu0 %v2386
  %v2388 = vpop.xlane.xlu0 %2387
  %v2389 = vsel %vm1935, %v2239, 0.0
  %2390 = vadd.xlane.f32.xlu0 %v2389
  %v2391 = vpop.xlane.xlu0 %2390
  %v2392 = vsel %vm1935, %v2241, 0.0
  %2393 = vadd.xlane.f32.xlu0 %v2392
  %v2394 = vpop.xlane.xlu0 %2393
  %v2395 = vsel %vm1935, %v2243, 0.0
  %2396 = vadd.xlane.f32.xlu0 %v2395
  %v2397 = vpop.xlane.xlu0 %2396
  %v2398 = vsel %vm1935, %v2245, 0.0
  %2399 = vadd.xlane.f32.xlu0 %v2398
  %v2400 = vpop.xlane.xlu0 %2399
  %v2401 = vsel %vm1935, %v2247, 0.0
  %2402 = vadd.xlane.f32.xlu0 %v2401
  %v2403 = vpop.xlane.xlu0 %2402
  %v2404 = vsel %vm1935, %v2249, 0.0
  %2405 = vadd.xlane.f32.xlu0 %v2404
  %v2406 = vpop.xlane.xlu0 %2405
  %v2407 = vsel %vm1935, %v2251, 0.0
  %2408 = vadd.xlane.f32.xlu0 %v2407
  %v2409 = vpop.xlane.xlu0 %2408
  %v2410 = vsel %vm1935, %v2253, 0.0
  %2411 = vadd.xlane.f32.xlu0 %v2410
  %v2412 = vpop.xlane.xlu0 %2411
  %v2413 = vsel %vm1935, %v2255, 0.0
  %2414 = vadd.xlane.f32.xlu0 %v2413
  %v2415 = vpop.xlane.xlu0 %2414
  %v2416 = vsel %vm1935, %v2257, 0.0
  %2417 = vadd.xlane.f32.xlu0 %v2416
  %v2418 = vpop.xlane.xlu0 %2417
  %v2419 = vsel %vm1935, %v2259, 0.0
  %2420 = vadd.xlane.f32.xlu0 %v2419
  %v2421 = vpop.xlane.xlu0 %2420
  %v2422 = vsel %vm1935, %v2261, 0.0
  %2423 = vadd.xlane.f32.xlu0 %v2422
  %v2424 = vpop.xlane.xlu0 %2423
  %v2425 = vsel %vm1935, %v2263, 0.0
  %2426 = vadd.xlane.f32.xlu0 %v2425
  %v2427 = vpop.xlane.xlu0 %2426
  %v2428 = vsel %vm1935, %v2265, 0.0
  %2429 = vadd.xlane.f32.xlu0 %v2428
  %v2430 = vpop.xlane.xlu0 %2429
  %v2431 = vsel %vm1935, %v2267, 0.0
  %2432 = vadd.xlane.f32.xlu0 %v2431
  %v2433 = vpop.xlane.xlu0 %2432
  %v2434 = vsel %vm1935, %v2269, 0.0
  %2435 = vadd.xlane.f32.xlu0 %v2434
  %v2436 = vpop.xlane.xlu0 %2435
  %v2437 = vsel %vm1935, %v2271, 0.0
  %2438 = vadd.xlane.f32.xlu0 %v2437
  %v2439 = vpop.xlane.xlu0 %2438
  %v2440 = vsel %vm1935, %v2273, 0.0
  %2441 = vadd.xlane.f32.xlu0 %v2440
  %v2442 = vpop.xlane.xlu0 %2441
  %v2443 = vsel %vm1935, %v2275, 0.0
  %2444 = vadd.xlane.f32.xlu0 %v2443
  %v2445 = vpop.xlane.xlu0 %2444
  %v2446 = vsel %vm1935, %v2277, 0.0
  %2447 = vadd.xlane.f32.xlu0 %v2446
  %v2448 = vpop.xlane.xlu0 %2447
  %v2449 = vsel %vm1935, %v2279, 0.0
  %2450 = vadd.xlane.f32.xlu0 %v2449
  %v2451 = vpop.xlane.xlu0 %2450
  %v2452 = vsel %vm1935, %v2281, 0.0
  %2453 = vadd.xlane.f32.xlu0 %v2452
  %v2454 = vpop.xlane.xlu0 %2453
  %v2455 = vsel %vm1935, %v2283, 0.0
  %2456 = vadd.xlane.f32.xlu0 %v2455
  %v2457 = vpop.xlane.xlu0 %2456
  %v2458 = vsel %vm1935, %v2285, 0.0
  %2459 = vadd.xlane.f32.xlu0 %v2458
  %v2460 = vpop.xlane.xlu0 %2459
  %v2461 = vsel %vm1935, %v2287, 0.0
  %2462 = vadd.xlane.f32.xlu0 %v2461
  %v2463 = vpop.xlane.xlu0 %2462
  %v2464 = vsel %vm1935, %v2289, 0.0
  %2465 = vadd.xlane.f32.xlu0 %v2464
  %v2466 = vpop.xlane.xlu0 %2465
  %v2467 = vsel %vm1935, %v2291, 0.0
  %2468 = vadd.xlane.f32.xlu0 %v2467
  %v2469 = vpop.xlane.xlu0 %2468
  %v2470 = vsel %vm1935, %v2293, 0.0
  %2471 = vadd.xlane.f32.xlu0 %v2470
  %v2472 = vpop.xlane.xlu0 %2471
  %v2473 = vsel %vm1935, %v2295, 0.0
  %2474 = vadd.xlane.f32.xlu0 %v2473
  %v2475 = vpop.xlane.xlu0 %2474
  %v2476 = vsel %vm1935, %v2297, 0.0
  %2477 = vadd.xlane.f32.xlu0 %v2476
  %v2478 = vpop.xlane.xlu0 %2477
  %v2479 = vsel %vm1935, %v2299, 0.0
  %2480 = vadd.xlane.f32.xlu0 %v2479
  %v2481 = vpop.xlane.xlu0 %2480
  %v2482 = vsel %vm1935, %v2301, 0.0
  %2483 = vadd.xlane.f32.xlu0 %v2482
  %v2484 = vpop.xlane.xlu0 %2483
  %v2485 = vsel %vm1935, %v2303, 0.0
  %2486 = vadd.xlane.f32.xlu0 %v2485
  %v2487 = vpop.xlane.xlu0 %2486
  %v2488 = vsel %vm1935, %v2305, 0.0
  %2489 = vadd.xlane.f32.xlu0 %v2488
  %v2490 = vpop.xlane.xlu0 %2489
  %v2491 = vsel %vm1935, %v2307, 0.0
  %2492 = vadd.xlane.f32.xlu0 %v2491
  %v2493 = vpop.xlane.xlu0 %2492
  %v2494 = vsel %vm1935, %v2309, 0.0
  %2495 = vadd.xlane.f32.xlu0 %v2494
  %v2496 = vpop.xlane.xlu0 %2495
  %v2497 = vsel %vm1935, %v2311, 0.0
  %2498 = vadd.xlane.f32.xlu0 %v2497
  %v2499 = vpop.xlane.xlu0 %2498
  %v2500 = vsel %vm1935, %v2313, 0.0
  %2501 = vadd.xlane.f32.xlu0 %v2500
  %v2502 = vpop.xlane.xlu0 %2501
  %v2503 = vsel %vm1935, %v2315, 0.0
  %2504 = vadd.xlane.f32.xlu0 %v2503
  %v2505 = vpop.xlane.xlu0 %2504
  %v2506 = vsel %vm1935, %v2317, 0.0
  %2507 = vadd.xlane.f32.xlu0 %v2506
  %v2508 = vpop.xlane.xlu0 %2507
  %v2509 = vsel %vm1935, %v2319, 0.0
  %2510 = vadd.xlane.f32.xlu0 %v2509
  %v2511 = vpop.xlane.xlu0 %2510
  %v2512 = vrcp.pop %v2322
  %v2513 = vmul.f32 %v2322, %v2512
  %v2514 = vsub.f32 1.0, %v2513
  %v2515 = vmul.f32 %v2512, %v2514
  %v2516 = vadd.f32 %v2512, %v2515
  %vm2517 = vweird.f32 %v2322
  %vm2518 = vweird.f32 %v2512
  %vm2519 = vmor %vm2517, %vm2518
  %v2520 = vsel %vm2519, %v2512, %v2516
  %v2521 = vand.u32 2147483647, %v2322
  %vm2522 = vcmp.eq.f32.partialorder %v2521, 8.507059e+37
  %v2523 = vand.u32 %v2322, 2147483648
  %v2524 = vor.u32 1.1754944e-38, %v2523
  %v2525 = vsel %vm2522, %v2524, %v2520
  %v2526 = vmul.f32 %v2193, %v2525
  %v2527 = vrcp.pop %v2325
  %v2528 = vmul.f32 %v2325, %v2527
  %v2529 = vsub.f32 1.0, %v2528
  %v2530 = vmul.f32 %v2527, %v2529
  %v2531 = vadd.f32 %v2527, %v2530
  %vm2532 = vweird.f32 %v2325
  %vm2533 = vweird.f32 %v2527
  %vm2534 = vmor %vm2532, %vm2533
  %v2535 = vsel %vm2534, %v2527, %v2531
  %v2536 = vand.u32 2147483647, %v2325
  %vm2537 = vcmp.eq.f32.partialorder %v2536, 8.507059e+37
  %v2538 = vand.u32 %v2325, 2147483648
  %v2539 = vor.u32 1.1754944e-38, %v2538
  %v2540 = vsel %vm2537, %v2539, %v2535
  %v2541 = vmul.f32 %v2195, %v2540
  %v2542 = vrcp.pop %v2328
  %v2543 = vmul.f32 %v2328, %v2542
  %v2544 = vsub.f32 1.0, %v2543
  %v2545 = vmul.f32 %v2542, %v2544
  %v2546 = vadd.f32 %v2542, %v2545
  %vm2547 = vweird.f32 %v2328
  %vm2548 = vweird.f32 %v2542
  %vm2549 = vmor %vm2547, %vm2548
  %v2550 = vsel %vm2549, %v2542, %v2546
  %v2551 = vand.u32 2147483647, %v2328
  %vm2552 = vcmp.eq.f32.partialorder %v2551, 8.507059e+37
  %v2553 = vand.u32 %v2328, 2147483648
  %v2554 = vor.u32 1.1754944e-38, %v2553
  %v2555 = vsel %vm2552, %v2554, %v2550
  %v2556 = vmul.f32 %v2197, %v2555
  %v2557 = vrcp.pop %v2331
  %v2558 = vmul.f32 %v2331, %v2557
  %v2559 = vsub.f32 1.0, %v2558
  %v2560 = vmul.f32 %v2557, %v2559
  %v2561 = vadd.f32 %v2557, %v2560
  %vm2562 = vweird.f32 %v2331
  %vm2563 = vweird.f32 %v2557
  %vm2564 = vmor %vm2562, %vm2563
  %v2565 = vsel %vm2564, %v2557, %v2561
  %v2566 = vand.u32 2147483647, %v2331
  %vm2567 = vcmp.eq.f32.partialorder %v2566, 8.507059e+37
  %v2568 = vand.u32 %v2331, 2147483648
  %v2569 = vor.u32 1.1754944e-38, %v2568
  %v2570 = vsel %vm2567, %v2569, %v2565
  %v2571 = vmul.f32 %v2199, %v2570
  %v2572 = vrcp.pop %v2334
  %v2573 = vmul.f32 %v2334, %v2572
  %v2574 = vsub.f32 1.0, %v2573
  %v2575 = vmul.f32 %v2572, %v2574
  %v2576 = vadd.f32 %v2572, %v2575
  %vm2577 = vweird.f32 %v2334
  %vm2578 = vweird.f32 %v2572
  %vm2579 = vmor %vm2577, %vm2578
  %v2580 = vsel %vm2579, %v2572, %v2576
  %v2581 = vand.u32 2147483647, %v2334
  %vm2582 = vcmp.eq.f32.partialorder %v2581, 8.507059e+37
  %v2583 = vand.u32 %v2334, 2147483648
  %v2584 = vor.u32 1.1754944e-38, %v2583
  %v2585 = vsel %vm2582, %v2584, %v2580
  %v2586 = vmul.f32 %v2201, %v2585
  %v2587 = vrcp.pop %v2337
  %v2588 = vmul.f32 %v2337, %v2587
  %v2589 = vsub.f32 1.0, %v2588
  %v2590 = vmul.f32 %v2587, %v2589
  %v2591 = vadd.f32 %v2587, %v2590
  %vm2592 = vweird.f32 %v2337
  %vm2593 = vweird.f32 %v2587
  %vm2594 = vmor %vm2592, %vm2593
  %v2595 = vsel %vm2594, %v2587, %v2591
  %v2596 = vand.u32 2147483647, %v2337
  %vm2597 = vcmp.eq.f32.partialorder %v2596, 8.507059e+37
  %v2598 = vand.u32 %v2337, 2147483648
  %v2599 = vor.u32 1.1754944e-38, %v2598
  %v2600 = vsel %vm2597, %v2599, %v2595
  %v2601 = vmul.f32 %v2203, %v2600
  %v2602 = vrcp.pop %v2340
  %v2603 = vmul.f32 %v2340, %v2602
  %v2604 = vsub.f32 1.0, %v2603
  %v2605 = vmul.f32 %v2602, %v2604
  %v2606 = vadd.f32 %v2602, %v2605
  %vm2607 = vweird.f32 %v2340
  %vm2608 = vweird.f32 %v2602
  %vm2609 = vmor %vm2607, %vm2608
  %v2610 = vsel %vm2609, %v2602, %v2606
  %v2611 = vand.u32 2147483647, %v2340
  %vm2612 = vcmp.eq.f32.partialorder %v2611, 8.507059e+37
  %v2613 = vand.u32 %v2340, 2147483648
  %v2614 = vor.u32 1.1754944e-38, %v2613
  %v2615 = vsel %vm2612, %v2614, %v2610
  %v2616 = vmul.f32 %v2205, %v2615
  %v2617 = vrcp.pop %v2343
  %v2618 = vmul.f32 %v2343, %v2617
  %v2619 = vsub.f32 1.0, %v2618
  %v2620 = vmul.f32 %v2617, %v2619
  %v2621 = vadd.f32 %v2617, %v2620
  %vm2622 = vweird.f32 %v2343
  %vm2623 = vweird.f32 %v2617
  %vm2624 = vmor %vm2622, %vm2623
  %v2625 = vsel %vm2624, %v2617, %v2621
  %v2626 = vand.u32 2147483647, %v2343
  %vm2627 = vcmp.eq.f32.partialorder %v2626, 8.507059e+37
  %v2628 = vand.u32 %v2343, 2147483648
  %v2629 = vor.u32 1.1754944e-38, %v2628
  %v2630 = vsel %vm2627, %v2629, %v2625
  %v2631 = vmul.f32 %v2207, %v2630
  %v2632 = vrcp.pop %v2346
  %v2633 = vmul.f32 %v2346, %v2632
  %v2634 = vsub.f32 1.0, %v2633
  %v2635 = vmul.f32 %v2632, %v2634
  %v2636 = vadd.f32 %v2632, %v2635
  %vm2637 = vweird.f32 %v2346
  %vm2638 = vweird.f32 %v2632
  %vm2639 = vmor %vm2637, %vm2638
  %v2640 = vsel %vm2639, %v2632, %v2636
  %v2641 = vand.u32 2147483647, %v2346
  %vm2642 = vcmp.eq.f32.partialorder %v2641, 8.507059e+37
  %v2643 = vand.u32 %v2346, 2147483648
  %v2644 = vor.u32 1.1754944e-38, %v2643
  %v2645 = vsel %vm2642, %v2644, %v2640
  %v2646 = vmul.f32 %v2209, %v2645
  %v2647 = vrcp.pop %v2349
  %v2648 = vmul.f32 %v2349, %v2647
  %v2649 = vsub.f32 1.0, %v2648
  %v2650 = vmul.f32 %v2647, %v2649
  %v2651 = vadd.f32 %v2647, %v2650
  %vm2652 = vweird.f32 %v2349
  %vm2653 = vweird.f32 %v2647
  %vm2654 = vmor %vm2652, %vm2653
  %v2655 = vsel %vm2654, %v2647, %v2651
  %v2656 = vand.u32 2147483647, %v2349
  %vm2657 = vcmp.eq.f32.partialorder %v2656, 8.507059e+37
  %v2658 = vand.u32 %v2349, 2147483648
  %v2659 = vor.u32 1.1754944e-38, %v2658
  %v2660 = vsel %vm2657, %v2659, %v2655
  %v2661 = vmul.f32 %v2211, %v2660
  %v2662 = vrcp.pop %v2352
  %v2663 = vmul.f32 %v2352, %v2662
  %v2664 = vsub.f32 1.0, %v2663
  %v2665 = vmul.f32 %v2662, %v2664
  %v2666 = vadd.f32 %v2662, %v2665
  %vm2667 = vweird.f32 %v2352
  %vm2668 = vweird.f32 %v2662
  %vm2669 = vmor %vm2667, %vm2668
  %v2670 = vsel %vm2669, %v2662, %v2666
  %v2671 = vand.u32 2147483647, %v2352
  %vm2672 = vcmp.eq.f32.partialorder %v2671, 8.507059e+37
  %v2673 = vand.u32 %v2352, 2147483648
  %v2674 = vor.u32 1.1754944e-38, %v2673
  %v2675 = vsel %vm2672, %v2674, %v2670
  %v2676 = vmul.f32 %v2213, %v2675
  %v2677 = vrcp.pop %v2355
  %v2678 = vmul.f32 %v2355, %v2677
  %v2679 = vsub.f32 1.0, %v2678
  %v2680 = vmul.f32 %v2677, %v2679
  %v2681 = vadd.f32 %v2677, %v2680
  %vm2682 = vweird.f32 %v2355
  %vm2683 = vweird.f32 %v2677
  %vm2684 = vmor %vm2682, %vm2683
  %v2685 = vsel %vm2684, %v2677, %v2681
  %v2686 = vand.u32 2147483647, %v2355
  %vm2687 = vcmp.eq.f32.partialorder %v2686, 8.507059e+37
  %v2688 = vand.u32 %v2355, 2147483648
  %v2689 = vor.u32 1.1754944e-38, %v2688
  %v2690 = vsel %vm2687, %v2689, %v2685
  %v2691 = vmul.f32 %v2215, %v2690
  %v2692 = vrcp.pop %v2358
  %v2693 = vmul.f32 %v2358, %v2692
  %v2694 = vsub.f32 1.0, %v2693
  %v2695 = vmul.f32 %v2692, %v2694
  %v2696 = vadd.f32 %v2692, %v2695
  %vm2697 = vweird.f32 %v2358
  %vm2698 = vweird.f32 %v2692
  %vm2699 = vmor %vm2697, %vm2698
  %v2700 = vsel %vm2699, %v2692, %v2696
  %v2701 = vand.u32 2147483647, %v2358
  %vm2702 = vcmp.eq.f32.partialorder %v2701, 8.507059e+37
  %v2703 = vand.u32 %v2358, 2147483648
  %v2704 = vor.u32 1.1754944e-38, %v2703
  %v2705 = vsel %vm2702, %v2704, %v2700
  %v2706 = vmul.f32 %v2217, %v2705
  %v2707 = vrcp.pop %v2361
  %v2708 = vmul.f32 %v2361, %v2707
  %v2709 = vsub.f32 1.0, %v2708
  %v2710 = vmul.f32 %v2707, %v2709
  %v2711 = vadd.f32 %v2707, %v2710
  %vm2712 = vweird.f32 %v2361
  %vm2713 = vweird.f32 %v2707
  %vm2714 = vmor %vm2712, %vm2713
  %v2715 = vsel %vm2714, %v2707, %v2711
  %v2716 = vand.u32 2147483647, %v2361
  %vm2717 = vcmp.eq.f32.partialorder %v2716, 8.507059e+37
  %v2718 = vand.u32 %v2361, 2147483648
  %v2719 = vor.u32 1.1754944e-38, %v2718
  %v2720 = vsel %vm2717, %v2719, %v2715
  %v2721 = vmul.f32 %v2219, %v2720
  %v2722 = vrcp.pop %v2364
  %v2723 = vmul.f32 %v2364, %v2722
  %v2724 = vsub.f32 1.0, %v2723
  %v2725 = vmul.f32 %v2722, %v2724
  %v2726 = vadd.f32 %v2722, %v2725
  %vm2727 = vweird.f32 %v2364
  %vm2728 = vweird.f32 %v2722
  %vm2729 = vmor %vm2727, %vm2728
  %v2730 = vsel %vm2729, %v2722, %v2726
  %v2731 = vand.u32 2147483647, %v2364
  %vm2732 = vcmp.eq.f32.partialorder %v2731, 8.507059e+37
  %v2733 = vand.u32 %v2364, 2147483648
  %v2734 = vor.u32 1.1754944e-38, %v2733
  %v2735 = vsel %vm2732, %v2734, %v2730
  %v2736 = vmul.f32 %v2221, %v2735
  %v2737 = vrcp.pop %v2367
  %v2738 = vmul.f32 %v2367, %v2737
  %v2739 = vsub.f32 1.0, %v2738
  %v2740 = vmul.f32 %v2737, %v2739
  %v2741 = vadd.f32 %v2737, %v2740
  %vm2742 = vweird.f32 %v2367
  %vm2743 = vweird.f32 %v2737
  %vm2744 = vmor %vm2742, %vm2743
  %v2745 = vsel %vm2744, %v2737, %v2741
  %v2746 = vand.u32 2147483647, %v2367
  %vm2747 = vcmp.eq.f32.partialorder %v2746, 8.507059e+37
  %v2748 = vand.u32 %v2367, 2147483648
  %v2749 = vor.u32 1.1754944e-38, %v2748
  %v2750 = vsel %vm2747, %v2749, %v2745
  %v2751 = vmul.f32 %v2223, %v2750
  %v2752 = vrcp.pop %v2370
  %v2753 = vmul.f32 %v2370, %v2752
  %v2754 = vsub.f32 1.0, %v2753
  %v2755 = vmul.f32 %v2752, %v2754
  %v2756 = vadd.f32 %v2752, %v2755
  %vm2757 = vweird.f32 %v2370
  %vm2758 = vweird.f32 %v2752
  %vm2759 = vmor %vm2757, %vm2758
  %v2760 = vsel %vm2759, %v2752, %v2756
  %v2761 = vand.u32 2147483647, %v2370
  %vm2762 = vcmp.eq.f32.partialorder %v2761, 8.507059e+37
  %v2763 = vand.u32 %v2370, 2147483648
  %v2764 = vor.u32 1.1754944e-38, %v2763
  %v2765 = vsel %vm2762, %v2764, %v2760
  %v2766 = vmul.f32 %v2225, %v2765
  %v2767 = vrcp.pop %v2373
  %v2768 = vmul.f32 %v2373, %v2767
  %v2769 = vsub.f32 1.0, %v2768
  %v2770 = vmul.f32 %v2767, %v2769
  %v2771 = vadd.f32 %v2767, %v2770
  %vm2772 = vweird.f32 %v2373
  %vm2773 = vweird.f32 %v2767
  %vm2774 = vmor %vm2772, %vm2773
  %v2775 = vsel %vm2774, %v2767, %v2771
  %v2776 = vand.u32 2147483647, %v2373
  %vm2777 = vcmp.eq.f32.partialorder %v2776, 8.507059e+37
  %v2778 = vand.u32 %v2373, 2147483648
  %v2779 = vor.u32 1.1754944e-38, %v2778
  %v2780 = vsel %vm2777, %v2779, %v2775
  %v2781 = vmul.f32 %v2227, %v2780
  %v2782 = vrcp.pop %v2376
  %v2783 = vmul.f32 %v2376, %v2782
  %v2784 = vsub.f32 1.0, %v2783
  %v2785 = vmul.f32 %v2782, %v2784
  %v2786 = vadd.f32 %v2782, %v2785
  %vm2787 = vweird.f32 %v2376
  %vm2788 = vweird.f32 %v2782
  %vm2789 = vmor %vm2787, %vm2788
  %v2790 = vsel %vm2789, %v2782, %v2786
  %v2791 = vand.u32 2147483647, %v2376
  %vm2792 = vcmp.eq.f32.partialorder %v2791, 8.507059e+37
  %v2793 = vand.u32 %v2376, 2147483648
  %v2794 = vor.u32 1.1754944e-38, %v2793
  %v2795 = vsel %vm2792, %v2794, %v2790
  %v2796 = vmul.f32 %v2229, %v2795
  %v2797 = vrcp.pop %v2379
  %v2798 = vmul.f32 %v2379, %v2797
  %v2799 = vsub.f32 1.0, %v2798
  %v2800 = vmul.f32 %v2797, %v2799
  %v2801 = vadd.f32 %v2797, %v2800
  %vm2802 = vweird.f32 %v2379
  %vm2803 = vweird.f32 %v2797
  %vm2804 = vmor %vm2802, %vm2803
  %v2805 = vsel %vm2804, %v2797, %v2801
  %v2806 = vand.u32 2147483647, %v2379
  %vm2807 = vcmp.eq.f32.partialorder %v2806, 8.507059e+37
  %v2808 = vand.u32 %v2379, 2147483648
  %v2809 = vor.u32 1.1754944e-38, %v2808
  %v2810 = vsel %vm2807, %v2809, %v2805
  %v2811 = vmul.f32 %v2231, %v2810
  %v2812 = vrcp.pop %v2382
  %v2813 = vmul.f32 %v2382, %v2812
  %v2814 = vsub.f32 1.0, %v2813
  %v2815 = vmul.f32 %v2812, %v2814
  %v2816 = vadd.f32 %v2812, %v2815
  %vm2817 = vweird.f32 %v2382
  %vm2818 = vweird.f32 %v2812
  %vm2819 = vmor %vm2817, %vm2818
  %v2820 = vsel %vm2819, %v2812, %v2816
  %v2821 = vand.u32 2147483647, %v2382
  %vm2822 = vcmp.eq.f32.partialorder %v2821, 8.507059e+37
  %v2823 = vand.u32 %v2382, 2147483648
  %v2824 = vor.u32 1.1754944e-38, %v2823
  %v2825 = vsel %vm2822, %v2824, %v2820
  %v2826 = vmul.f32 %v2233, %v2825
  %v2827 = vrcp.pop %v2385
  %v2828 = vmul.f32 %v2385, %v2827
  %v2829 = vsub.f32 1.0, %v2828
  %v2830 = vmul.f32 %v2827, %v2829
  %v2831 = vadd.f32 %v2827, %v2830
  %vm2832 = vweird.f32 %v2385
  %vm2833 = vweird.f32 %v2827
  %vm2834 = vmor %vm2832, %vm2833
  %v2835 = vsel %vm2834, %v2827, %v2831
  %v2836 = vand.u32 2147483647, %v2385
  %vm2837 = vcmp.eq.f32.partialorder %v2836, 8.507059e+37
  %v2838 = vand.u32 %v2385, 2147483648
  %v2839 = vor.u32 1.1754944e-38, %v2838
  %v2840 = vsel %vm2837, %v2839, %v2835
  %v2841 = vmul.f32 %v2235, %v2840
  %v2842 = vrcp.pop %v2388
  %v2843 = vmul.f32 %v2388, %v2842
  %v2844 = vsub.f32 1.0, %v2843
  %v2845 = vmul.f32 %v2842, %v2844
  %v2846 = vadd.f32 %v2842, %v2845
  %vm2847 = vweird.f32 %v2388
  %vm2848 = vweird.f32 %v2842
  %vm2849 = vmor %vm2847, %vm2848
  %v2850 = vsel %vm2849, %v2842, %v2846
  %v2851 = vand.u32 2147483647, %v2388
  %vm2852 = vcmp.eq.f32.partialorder %v2851, 8.507059e+37
  %v2853 = vand.u32 %v2388, 2147483648
  %v2854 = vor.u32 1.1754944e-38, %v2853
  %v2855 = vsel %vm2852, %v2854, %v2850
  %v2856 = vmul.f32 %v2237, %v2855
  %v2857 = vrcp.pop %v2391
  %v2858 = vmul.f32 %v2391, %v2857
  %v2859 = vsub.f32 1.0, %v2858
  %v2860 = vmul.f32 %v2857, %v2859
  %v2861 = vadd.f32 %v2857, %v2860
  %vm2862 = vweird.f32 %v2391
  %vm2863 = vweird.f32 %v2857
  %vm2864 = vmor %vm2862, %vm2863
  %v2865 = vsel %vm2864, %v2857, %v2861
  %v2866 = vand.u32 2147483647, %v2391
  %vm2867 = vcmp.eq.f32.partialorder %v2866, 8.507059e+37
  %v2868 = vand.u32 %v2391, 2147483648
  %v2869 = vor.u32 1.1754944e-38, %v2868
  %v2870 = vsel %vm2867, %v2869, %v2865
  %v2871 = vmul.f32 %v2239, %v2870
  %v2872 = vrcp.pop %v2394
  %v2873 = vmul.f32 %v2394, %v2872
  %v2874 = vsub.f32 1.0, %v2873
  %v2875 = vmul.f32 %v2872, %v2874
  %v2876 = vadd.f32 %v2872, %v2875
  %vm2877 = vweird.f32 %v2394
  %vm2878 = vweird.f32 %v2872
  %vm2879 = vmor %vm2877, %vm2878
  %v2880 = vsel %vm2879, %v2872, %v2876
  %v2881 = vand.u32 2147483647, %v2394
  %vm2882 = vcmp.eq.f32.partialorder %v2881, 8.507059e+37
  %v2883 = vand.u32 %v2394, 2147483648
  %v2884 = vor.u32 1.1754944e-38, %v2883
  %v2885 = vsel %vm2882, %v2884, %v2880
  %v2886 = vmul.f32 %v2241, %v2885
  %v2887 = vrcp.pop %v2397
  %v2888 = vmul.f32 %v2397, %v2887
  %v2889 = vsub.f32 1.0, %v2888
  %v2890 = vmul.f32 %v2887, %v2889
  %v2891 = vadd.f32 %v2887, %v2890
  %vm2892 = vweird.f32 %v2397
  %vm2893 = vweird.f32 %v2887
  %vm2894 = vmor %vm2892, %vm2893
  %v2895 = vsel %vm2894, %v2887, %v2891
  %v2896 = vand.u32 2147483647, %v2397
  %vm2897 = vcmp.eq.f32.partialorder %v2896, 8.507059e+37
  %v2898 = vand.u32 %v2397, 2147483648
  %v2899 = vor.u32 1.1754944e-38, %v2898
  %v2900 = vsel %vm2897, %v2899, %v2895
  %v2901 = vmul.f32 %v2243, %v2900
  %v2902 = vrcp.pop %v2400
  %v2903 = vmul.f32 %v2400, %v2902
  %v2904 = vsub.f32 1.0, %v2903
  %v2905 = vmul.f32 %v2902, %v2904
  %v2906 = vadd.f32 %v2902, %v2905
  %vm2907 = vweird.f32 %v2400
  %vm2908 = vweird.f32 %v2902
  %vm2909 = vmor %vm2907, %vm2908
  %v2910 = vsel %vm2909, %v2902, %v2906
  %v2911 = vand.u32 2147483647, %v2400
  %vm2912 = vcmp.eq.f32.partialorder %v2911, 8.507059e+37
  %v2913 = vand.u32 %v2400, 2147483648
  %v2914 = vor.u32 1.1754944e-38, %v2913
  %v2915 = vsel %vm2912, %v2914, %v2910
  %v2916 = vmul.f32 %v2245, %v2915
  %v2917 = vrcp.pop %v2403
  %v2918 = vmul.f32 %v2403, %v2917
  %v2919 = vsub.f32 1.0, %v2918
  %v2920 = vmul.f32 %v2917, %v2919
  %v2921 = vadd.f32 %v2917, %v2920
  %vm2922 = vweird.f32 %v2403
  %vm2923 = vweird.f32 %v2917
  %vm2924 = vmor %vm2922, %vm2923
  %v2925 = vsel %vm2924, %v2917, %v2921
  %v2926 = vand.u32 2147483647, %v2403
  %vm2927 = vcmp.eq.f32.partialorder %v2926, 8.507059e+37
  %v2928 = vand.u32 %v2403, 2147483648
  %v2929 = vor.u32 1.1754944e-38, %v2928
  %v2930 = vsel %vm2927, %v2929, %v2925
  %v2931 = vmul.f32 %v2247, %v2930
  %v2932 = vrcp.pop %v2406
  %v2933 = vmul.f32 %v2406, %v2932
  %v2934 = vsub.f32 1.0, %v2933
  %v2935 = vmul.f32 %v2932, %v2934
  %v2936 = vadd.f32 %v2932, %v2935
  %vm2937 = vweird.f32 %v2406
  %vm2938 = vweird.f32 %v2932
  %vm2939 = vmor %vm2937, %vm2938
  %v2940 = vsel %vm2939, %v2932, %v2936
  %v2941 = vand.u32 2147483647, %v2406
  %vm2942 = vcmp.eq.f32.partialorder %v2941, 8.507059e+37
  %v2943 = vand.u32 %v2406, 2147483648
  %v2944 = vor.u32 1.1754944e-38, %v2943
  %v2945 = vsel %vm2942, %v2944, %v2940
  %v2946 = vmul.f32 %v2249, %v2945
  %v2947 = vrcp.pop %v2409
  %v2948 = vmul.f32 %v2409, %v2947
  %v2949 = vsub.f32 1.0, %v2948
  %v2950 = vmul.f32 %v2947, %v2949
  %v2951 = vadd.f32 %v2947, %v2950
  %vm2952 = vweird.f32 %v2409
  %vm2953 = vweird.f32 %v2947
  %vm2954 = vmor %vm2952, %vm2953
  %v2955 = vsel %vm2954, %v2947, %v2951
  %v2956 = vand.u32 2147483647, %v2409
  %vm2957 = vcmp.eq.f32.partialorder %v2956, 8.507059e+37
  %v2958 = vand.u32 %v2409, 2147483648
  %v2959 = vor.u32 1.1754944e-38, %v2958
  %v2960 = vsel %vm2957, %v2959, %v2955
  %v2961 = vmul.f32 %v2251, %v2960
  %v2962 = vrcp.pop %v2412
  %v2963 = vmul.f32 %v2412, %v2962
  %v2964 = vsub.f32 1.0, %v2963
  %v2965 = vmul.f32 %v2962, %v2964
  %v2966 = vadd.f32 %v2962, %v2965
  %vm2967 = vweird.f32 %v2412
  %vm2968 = vweird.f32 %v2962
  %vm2969 = vmor %vm2967, %vm2968
  %v2970 = vsel %vm2969, %v2962, %v2966
  %v2971 = vand.u32 2147483647, %v2412
  %vm2972 = vcmp.eq.f32.partialorder %v2971, 8.507059e+37
  %v2973 = vand.u32 %v2412, 2147483648
  %v2974 = vor.u32 1.1754944e-38, %v2973
  %v2975 = vsel %vm2972, %v2974, %v2970
  %v2976 = vmul.f32 %v2253, %v2975
  %v2977 = vrcp.pop %v2415
  %v2978 = vmul.f32 %v2415, %v2977
  %v2979 = vsub.f32 1.0, %v2978
  %v2980 = vmul.f32 %v2977, %v2979
  %v2981 = vadd.f32 %v2977, %v2980
  %vm2982 = vweird.f32 %v2415
  %vm2983 = vweird.f32 %v2977
  %vm2984 = vmor %vm2982, %vm2983
  %v2985 = vsel %vm2984, %v2977, %v2981
  %v2986 = vand.u32 2147483647, %v2415
  %vm2987 = vcmp.eq.f32.partialorder %v2986, 8.507059e+37
  %v2988 = vand.u32 %v2415, 2147483648
  %v2989 = vor.u32 1.1754944e-38, %v2988
  %v2990 = vsel %vm2987, %v2989, %v2985
  %v2991 = vmul.f32 %v2255, %v2990
  %v2992 = vrcp.pop %v2418
  %v2993 = vmul.f32 %v2418, %v2992
  %v2994 = vsub.f32 1.0, %v2993
  %v2995 = vmul.f32 %v2992, %v2994
  %v2996 = vadd.f32 %v2992, %v2995
  %vm2997 = vweird.f32 %v2418
  %vm2998 = vweird.f32 %v2992
  %vm2999 = vmor %vm2997, %vm2998
  %v3000 = vsel %vm2999, %v2992, %v2996
  %v3001 = vand.u32 2147483647, %v2418
  %vm3002 = vcmp.eq.f32.partialorder %v3001, 8.507059e+37
  %v3003 = vand.u32 %v2418, 2147483648
  %v3004 = vor.u32 1.1754944e-38, %v3003
  %v3005 = vsel %vm3002, %v3004, %v3000
  %v3006 = vmul.f32 %v2257, %v3005
  %v3007 = vrcp.pop %v2421
  %v3008 = vmul.f32 %v2421, %v3007
  %v3009 = vsub.f32 1.0, %v3008
  %v3010 = vmul.f32 %v3007, %v3009
  %v3011 = vadd.f32 %v3007, %v3010
  %vm3012 = vweird.f32 %v2421
  %vm3013 = vweird.f32 %v3007
  %vm3014 = vmor %vm3012, %vm3013
  %v3015 = vsel %vm3014, %v3007, %v3011
  %v3016 = vand.u32 2147483647, %v2421
  %vm3017 = vcmp.eq.f32.partialorder %v3016, 8.507059e+37
  %v3018 = vand.u32 %v2421, 2147483648
  %v3019 = vor.u32 1.1754944e-38, %v3018
  %v3020 = vsel %vm3017, %v3019, %v3015
  %v3021 = vmul.f32 %v2259, %v3020
  %v3022 = vrcp.pop %v2424
  %v3023 = vmul.f32 %v2424, %v3022
  %v3024 = vsub.f32 1.0, %v3023
  %v3025 = vmul.f32 %v3022, %v3024
  %v3026 = vadd.f32 %v3022, %v3025
  %vm3027 = vweird.f32 %v2424
  %vm3028 = vweird.f32 %v3022
  %vm3029 = vmor %vm3027, %vm3028
  %v3030 = vsel %vm3029, %v3022, %v3026
  %v3031 = vand.u32 2147483647, %v2424
  %vm3032 = vcmp.eq.f32.partialorder %v3031, 8.507059e+37
  %v3033 = vand.u32 %v2424, 2147483648
  %v3034 = vor.u32 1.1754944e-38, %v3033
  %v3035 = vsel %vm3032, %v3034, %v3030
  %v3036 = vmul.f32 %v2261, %v3035
  %v3037 = vrcp.pop %v2427
  %v3038 = vmul.f32 %v2427, %v3037
  %v3039 = vsub.f32 1.0, %v3038
  %v3040 = vmul.f32 %v3037, %v3039
  %v3041 = vadd.f32 %v3037, %v3040
  %vm3042 = vweird.f32 %v2427
  %vm3043 = vweird.f32 %v3037
  %vm3044 = vmor %vm3042, %vm3043
  %v3045 = vsel %vm3044, %v3037, %v3041
  %v3046 = vand.u32 2147483647, %v2427
  %vm3047 = vcmp.eq.f32.partialorder %v3046, 8.507059e+37
  %v3048 = vand.u32 %v2427, 2147483648
  %v3049 = vor.u32 1.1754944e-38, %v3048
  %v3050 = vsel %vm3047, %v3049, %v3045
  %v3051 = vmul.f32 %v2263, %v3050
  %v3052 = vrcp.pop %v2430
  %v3053 = vmul.f32 %v2430, %v3052
  %v3054 = vsub.f32 1.0, %v3053
  %v3055 = vmul.f32 %v3052, %v3054
  %v3056 = vadd.f32 %v3052, %v3055
  %vm3057 = vweird.f32 %v2430
  %vm3058 = vweird.f32 %v3052
  %vm3059 = vmor %vm3057, %vm3058
  %v3060 = vsel %vm3059, %v3052, %v3056
  %v3061 = vand.u32 2147483647, %v2430
  %vm3062 = vcmp.eq.f32.partialorder %v3061, 8.507059e+37
  %v3063 = vand.u32 %v2430, 2147483648
  %v3064 = vor.u32 1.1754944e-38, %v3063
  %v3065 = vsel %vm3062, %v3064, %v3060
  %v3066 = vmul.f32 %v2265, %v3065
  %v3067 = vrcp.pop %v2433
  %v3068 = vmul.f32 %v2433, %v3067
  %v3069 = vsub.f32 1.0, %v3068
  %v3070 = vmul.f32 %v3067, %v3069
  %v3071 = vadd.f32 %v3067, %v3070
  %vm3072 = vweird.f32 %v2433
  %vm3073 = vweird.f32 %v3067
  %vm3074 = vmor %vm3072, %vm3073
  %v3075 = vsel %vm3074, %v3067, %v3071
  %v3076 = vand.u32 2147483647, %v2433
  %vm3077 = vcmp.eq.f32.partialorder %v3076, 8.507059e+37
  %v3078 = vand.u32 %v2433, 2147483648
  %v3079 = vor.u32 1.1754944e-38, %v3078
  %v3080 = vsel %vm3077, %v3079, %v3075
  %v3081 = vmul.f32 %v2267, %v3080
  %v3082 = vrcp.pop %v2436
  %v3083 = vmul.f32 %v2436, %v3082
  %v3084 = vsub.f32 1.0, %v3083
  %v3085 = vmul.f32 %v3082, %v3084
  %v3086 = vadd.f32 %v3082, %v3085
  %vm3087 = vweird.f32 %v2436
  %vm3088 = vweird.f32 %v3082
  %vm3089 = vmor %vm3087, %vm3088
  %v3090 = vsel %vm3089, %v3082, %v3086
  %v3091 = vand.u32 2147483647, %v2436
  %vm3092 = vcmp.eq.f32.partialorder %v3091, 8.507059e+37
  %v3093 = vand.u32 %v2436, 2147483648
  %v3094 = vor.u32 1.1754944e-38, %v3093
  %v3095 = vsel %vm3092, %v3094, %v3090
  %v3096 = vmul.f32 %v2269, %v3095
  %v3097 = vrcp.pop %v2439
  %v3098 = vmul.f32 %v2439, %v3097
  %v3099 = vsub.f32 1.0, %v3098
  %v3100 = vmul.f32 %v3097, %v3099
  %v3101 = vadd.f32 %v3097, %v3100
  %vm3102 = vweird.f32 %v2439
  %vm3103 = vweird.f32 %v3097
  %vm3104 = vmor %vm3102, %vm3103
  %v3105 = vsel %vm3104, %v3097, %v3101
  %v3106 = vand.u32 2147483647, %v2439
  %vm3107 = vcmp.eq.f32.partialorder %v3106, 8.507059e+37
  %v3108 = vand.u32 %v2439, 2147483648
  %v3109 = vor.u32 1.1754944e-38, %v3108
  %v3110 = vsel %vm3107, %v3109, %v3105
  %v3111 = vmul.f32 %v2271, %v3110
  %v3112 = vrcp.pop %v2442
  %v3113 = vmul.f32 %v2442, %v3112
  %v3114 = vsub.f32 1.0, %v3113
  %v3115 = vmul.f32 %v3112, %v3114
  %v3116 = vadd.f32 %v3112, %v3115
  %vm3117 = vweird.f32 %v2442
  %vm3118 = vweird.f32 %v3112
  %vm3119 = vmor %vm3117, %vm3118
  %v3120 = vsel %vm3119, %v3112, %v3116
  %v3121 = vand.u32 2147483647, %v2442
  %vm3122 = vcmp.eq.f32.partialorder %v3121, 8.507059e+37
  %v3123 = vand.u32 %v2442, 2147483648
  %v3124 = vor.u32 1.1754944e-38, %v3123
  %v3125 = vsel %vm3122, %v3124, %v3120
  %v3126 = vmul.f32 %v2273, %v3125
  %v3127 = vrcp.pop %v2445
  %v3128 = vmul.f32 %v2445, %v3127
  %v3129 = vsub.f32 1.0, %v3128
  %v3130 = vmul.f32 %v3127, %v3129
  %v3131 = vadd.f32 %v3127, %v3130
  %vm3132 = vweird.f32 %v2445
  %vm3133 = vweird.f32 %v3127
  %vm3134 = vmor %vm3132, %vm3133
  %v3135 = vsel %vm3134, %v3127, %v3131
  %v3136 = vand.u32 2147483647, %v2445
  %vm3137 = vcmp.eq.f32.partialorder %v3136, 8.507059e+37
  %v3138 = vand.u32 %v2445, 2147483648
  %v3139 = vor.u32 1.1754944e-38, %v3138
  %v3140 = vsel %vm3137, %v3139, %v3135
  %v3141 = vmul.f32 %v2275, %v3140
  %v3142 = vrcp.pop %v2448
  %v3143 = vmul.f32 %v2448, %v3142
  %v3144 = vsub.f32 1.0, %v3143
  %v3145 = vmul.f32 %v3142, %v3144
  %v3146 = vadd.f32 %v3142, %v3145
  %vm3147 = vweird.f32 %v2448
  %vm3148 = vweird.f32 %v3142
  %vm3149 = vmor %vm3147, %vm3148
  %v3150 = vsel %vm3149, %v3142, %v3146
  %v3151 = vand.u32 2147483647, %v2448
  %vm3152 = vcmp.eq.f32.partialorder %v3151, 8.507059e+37
  %v3153 = vand.u32 %v2448, 2147483648
  %v3154 = vor.u32 1.1754944e-38, %v3153
  %v3155 = vsel %vm3152, %v3154, %v3150
  %v3156 = vmul.f32 %v2277, %v3155
  %v3157 = vrcp.pop %v2451
  %v3158 = vmul.f32 %v2451, %v3157
  %v3159 = vsub.f32 1.0, %v3158
  %v3160 = vmul.f32 %v3157, %v3159
  %v3161 = vadd.f32 %v3157, %v3160
  %vm3162 = vweird.f32 %v2451
  %vm3163 = vweird.f32 %v3157
  %vm3164 = vmor %vm3162, %vm3163
  %v3165 = vsel %vm3164, %v3157, %v3161
  %v3166 = vand.u32 2147483647, %v2451
  %vm3167 = vcmp.eq.f32.partialorder %v3166, 8.507059e+37
  %v3168 = vand.u32 %v2451, 2147483648
  %v3169 = vor.u32 1.1754944e-38, %v3168
  %v3170 = vsel %vm3167, %v3169, %v3165
  %v3171 = vmul.f32 %v2279, %v3170
  %v3172 = vrcp.pop %v2454
  %v3173 = vmul.f32 %v2454, %v3172
  %v3174 = vsub.f32 1.0, %v3173
  %v3175 = vmul.f32 %v3172, %v3174
  %v3176 = vadd.f32 %v3172, %v3175
  %vm3177 = vweird.f32 %v2454
  %vm3178 = vweird.f32 %v3172
  %vm3179 = vmor %vm3177, %vm3178
  %v3180 = vsel %vm3179, %v3172, %v3176
  %v3181 = vand.u32 2147483647, %v2454
  %vm3182 = vcmp.eq.f32.partialorder %v3181, 8.507059e+37
  %v3183 = vand.u32 %v2454, 2147483648
  %v3184 = vor.u32 1.1754944e-38, %v3183
  %v3185 = vsel %vm3182, %v3184, %v3180
  %v3186 = vmul.f32 %v2281, %v3185
  %v3187 = vrcp.pop %v2457
  %v3188 = vmul.f32 %v2457, %v3187
  %v3189 = vsub.f32 1.0, %v3188
  %v3190 = vmul.f32 %v3187, %v3189
  %v3191 = vadd.f32 %v3187, %v3190
  %vm3192 = vweird.f32 %v2457
  %vm3193 = vweird.f32 %v3187
  %vm3194 = vmor %vm3192, %vm3193
  %v3195 = vsel %vm3194, %v3187, %v3191
  %v3196 = vand.u32 2147483647, %v2457
  %vm3197 = vcmp.eq.f32.partialorder %v3196, 8.507059e+37
  %v3198 = vand.u32 %v2457, 2147483648
  %v3199 = vor.u32 1.1754944e-38, %v3198
  %v3200 = vsel %vm3197, %v3199, %v3195
  %v3201 = vmul.f32 %v2283, %v3200
  %v3202 = vrcp.pop %v2460
  %v3203 = vmul.f32 %v2460, %v3202
  %v3204 = vsub.f32 1.0, %v3203
  %v3205 = vmul.f32 %v3202, %v3204
  %v3206 = vadd.f32 %v3202, %v3205
  %vm3207 = vweird.f32 %v2460
  %vm3208 = vweird.f32 %v3202
  %vm3209 = vmor %vm3207, %vm3208
  %v3210 = vsel %vm3209, %v3202, %v3206
  %v3211 = vand.u32 2147483647, %v2460
  %vm3212 = vcmp.eq.f32.partialorder %v3211, 8.507059e+37
  %v3213 = vand.u32 %v2460, 2147483648
  %v3214 = vor.u32 1.1754944e-38, %v3213
  %v3215 = vsel %vm3212, %v3214, %v3210
  %v3216 = vmul.f32 %v2285, %v3215
  %v3217 = vrcp.pop %v2463
  %v3218 = vmul.f32 %v2463, %v3217
  %v3219 = vsub.f32 1.0, %v3218
  %v3220 = vmul.f32 %v3217, %v3219
  %v3221 = vadd.f32 %v3217, %v3220
  %vm3222 = vweird.f32 %v2463
  %vm3223 = vweird.f32 %v3217
  %vm3224 = vmor %vm3222, %vm3223
  %v3225 = vsel %vm3224, %v3217, %v3221
  %v3226 = vand.u32 2147483647, %v2463
  %vm3227 = vcmp.eq.f32.partialorder %v3226, 8.507059e+37
  %v3228 = vand.u32 %v2463, 2147483648
  %v3229 = vor.u32 1.1754944e-38, %v3228
  %v3230 = vsel %vm3227, %v3229, %v3225
  %v3231 = vmul.f32 %v2287, %v3230
  %v3232 = vrcp.pop %v2466
  %v3233 = vmul.f32 %v2466, %v3232
  %v3234 = vsub.f32 1.0, %v3233
  %v3235 = vmul.f32 %v3232, %v3234
  %v3236 = vadd.f32 %v3232, %v3235
  %vm3237 = vweird.f32 %v2466
  %vm3238 = vweird.f32 %v3232
  %vm3239 = vmor %vm3237, %vm3238
  %v3240 = vsel %vm3239, %v3232, %v3236
  %v3241 = vand.u32 2147483647, %v2466
  %vm3242 = vcmp.eq.f32.partialorder %v3241, 8.507059e+37
  %v3243 = vand.u32 %v2466, 2147483648
  %v3244 = vor.u32 1.1754944e-38, %v3243
  %v3245 = vsel %vm3242, %v3244, %v3240
  %v3246 = vmul.f32 %v2289, %v3245
  %v3247 = vrcp.pop %v2469
  %v3248 = vmul.f32 %v2469, %v3247
  %v3249 = vsub.f32 1.0, %v3248
  %v3250 = vmul.f32 %v3247, %v3249
  %v3251 = vadd.f32 %v3247, %v3250
  %vm3252 = vweird.f32 %v2469
  %vm3253 = vweird.f32 %v3247
  %vm3254 = vmor %vm3252, %vm3253
  %v3255 = vsel %vm3254, %v3247, %v3251
  %v3256 = vand.u32 2147483647, %v2469
  %vm3257 = vcmp.eq.f32.partialorder %v3256, 8.507059e+37
  %v3258 = vand.u32 %v2469, 2147483648
  %v3259 = vor.u32 1.1754944e-38, %v3258
  %v3260 = vsel %vm3257, %v3259, %v3255
  %v3261 = vmul.f32 %v2291, %v3260
  %v3262 = vrcp.pop %v2472
  %v3263 = vmul.f32 %v2472, %v3262
  %v3264 = vsub.f32 1.0, %v3263
  %v3265 = vmul.f32 %v3262, %v3264
  %v3266 = vadd.f32 %v3262, %v3265
  %vm3267 = vweird.f32 %v2472
  %vm3268 = vweird.f32 %v3262
  %vm3269 = vmor %vm3267, %vm3268
  %v3270 = vsel %vm3269, %v3262, %v3266
  %v3271 = vand.u32 2147483647, %v2472
  %vm3272 = vcmp.eq.f32.partialorder %v3271, 8.507059e+37
  %v3273 = vand.u32 %v2472, 2147483648
  %v3274 = vor.u32 1.1754944e-38, %v3273
  %v3275 = vsel %vm3272, %v3274, %v3270
  %v3276 = vmul.f32 %v2293, %v3275
  %v3277 = vrcp.pop %v2475
  %v3278 = vmul.f32 %v2475, %v3277
  %v3279 = vsub.f32 1.0, %v3278
  %v3280 = vmul.f32 %v3277, %v3279
  %v3281 = vadd.f32 %v3277, %v3280
  %vm3282 = vweird.f32 %v2475
  %vm3283 = vweird.f32 %v3277
  %vm3284 = vmor %vm3282, %vm3283
  %v3285 = vsel %vm3284, %v3277, %v3281
  %v3286 = vand.u32 2147483647, %v2475
  %vm3287 = vcmp.eq.f32.partialorder %v3286, 8.507059e+37
  %v3288 = vand.u32 %v2475, 2147483648
  %v3289 = vor.u32 1.1754944e-38, %v3288
  %v3290 = vsel %vm3287, %v3289, %v3285
  %v3291 = vmul.f32 %v2295, %v3290
  %v3292 = vrcp.pop %v2478
  %v3293 = vmul.f32 %v2478, %v3292
  %v3294 = vsub.f32 1.0, %v3293
  %v3295 = vmul.f32 %v3292, %v3294
  %v3296 = vadd.f32 %v3292, %v3295
  %vm3297 = vweird.f32 %v2478
  %vm3298 = vweird.f32 %v3292
  %vm3299 = vmor %vm3297, %vm3298
  %v3300 = vsel %vm3299, %v3292, %v3296
  %v3301 = vand.u32 2147483647, %v2478
  %vm3302 = vcmp.eq.f32.partialorder %v3301, 8.507059e+37
  %v3303 = vand.u32 %v2478, 2147483648
  %v3304 = vor.u32 1.1754944e-38, %v3303
  %v3305 = vsel %vm3302, %v3304, %v3300
  %v3306 = vmul.f32 %v2297, %v3305
  %v3307 = vrcp.pop %v2481
  %v3308 = vmul.f32 %v2481, %v3307
  %v3309 = vsub.f32 1.0, %v3308
  %v3310 = vmul.f32 %v3307, %v3309
  %v3311 = vadd.f32 %v3307, %v3310
  %vm3312 = vweird.f32 %v2481
  %vm3313 = vweird.f32 %v3307
  %vm3314 = vmor %vm3312, %vm3313
  %v3315 = vsel %vm3314, %v3307, %v3311
  %v3316 = vand.u32 2147483647, %v2481
  %vm3317 = vcmp.eq.f32.partialorder %v3316, 8.507059e+37
  %v3318 = vand.u32 %v2481, 2147483648
  %v3319 = vor.u32 1.1754944e-38, %v3318
  %v3320 = vsel %vm3317, %v3319, %v3315
  %v3321 = vmul.f32 %v2299, %v3320
  %v3322 = vrcp.pop %v2484
  %v3323 = vmul.f32 %v2484, %v3322
  %v3324 = vsub.f32 1.0, %v3323
  %v3325 = vmul.f32 %v3322, %v3324
  %v3326 = vadd.f32 %v3322, %v3325
  %vm3327 = vweird.f32 %v2484
  %vm3328 = vweird.f32 %v3322
  %vm3329 = vmor %vm3327, %vm3328
  %v3330 = vsel %vm3329, %v3322, %v3326
  %v3331 = vand.u32 2147483647, %v2484
  %vm3332 = vcmp.eq.f32.partialorder %v3331, 8.507059e+37
  %v3333 = vand.u32 %v2484, 2147483648
  %v3334 = vor.u32 1.1754944e-38, %v3333
  %v3335 = vsel %vm3332, %v3334, %v3330
  %v3336 = vmul.f32 %v2301, %v3335
  %v3337 = vrcp.pop %v2487
  %v3338 = vmul.f32 %v2487, %v3337
  %v3339 = vsub.f32 1.0, %v3338
  %v3340 = vmul.f32 %v3337, %v3339
  %v3341 = vadd.f32 %v3337, %v3340
  %vm3342 = vweird.f32 %v2487
  %vm3343 = vweird.f32 %v3337
  %vm3344 = vmor %vm3342, %vm3343
  %v3345 = vsel %vm3344, %v3337, %v3341
  %v3346 = vand.u32 2147483647, %v2487
  %vm3347 = vcmp.eq.f32.partialorder %v3346, 8.507059e+37
  %v3348 = vand.u32 %v2487, 2147483648
  %v3349 = vor.u32 1.1754944e-38, %v3348
  %v3350 = vsel %vm3347, %v3349, %v3345
  %v3351 = vmul.f32 %v2303, %v3350
  %v3352 = vrcp.pop %v2490
  %v3353 = vmul.f32 %v2490, %v3352
  %v3354 = vsub.f32 1.0, %v3353
  %v3355 = vmul.f32 %v3352, %v3354
  %v3356 = vadd.f32 %v3352, %v3355
  %vm3357 = vweird.f32 %v2490
  %vm3358 = vweird.f32 %v3352
  %vm3359 = vmor %vm3357, %vm3358
  %v3360 = vsel %vm3359, %v3352, %v3356
  %v3361 = vand.u32 2147483647, %v2490
  %vm3362 = vcmp.eq.f32.partialorder %v3361, 8.507059e+37
  %v3363 = vand.u32 %v2490, 2147483648
  %v3364 = vor.u32 1.1754944e-38, %v3363
  %v3365 = vsel %vm3362, %v3364, %v3360
  %v3366 = vmul.f32 %v2305, %v3365
  %v3367 = vrcp.pop %v2493
  %v3368 = vmul.f32 %v2493, %v3367
  %v3369 = vsub.f32 1.0, %v3368
  %v3370 = vmul.f32 %v3367, %v3369
  %v3371 = vadd.f32 %v3367, %v3370
  %vm3372 = vweird.f32 %v2493
  %vm3373 = vweird.f32 %v3367
  %vm3374 = vmor %vm3372, %vm3373
  %v3375 = vsel %vm3374, %v3367, %v3371
  %v3376 = vand.u32 2147483647, %v2493
  %vm3377 = vcmp.eq.f32.partialorder %v3376, 8.507059e+37
  %v3378 = vand.u32 %v2493, 2147483648
  %v3379 = vor.u32 1.1754944e-38, %v3378
  %v3380 = vsel %vm3377, %v3379, %v3375
  %v3381 = vmul.f32 %v2307, %v3380
  %v3382 = vrcp.pop %v2496
  %v3383 = vmul.f32 %v2496, %v3382
  %v3384 = vsub.f32 1.0, %v3383
  %v3385 = vmul.f32 %v3382, %v3384
  %v3386 = vadd.f32 %v3382, %v3385
  %vm3387 = vweird.f32 %v2496
  %vm3388 = vweird.f32 %v3382
  %vm3389 = vmor %vm3387, %vm3388
  %v3390 = vsel %vm3389, %v3382, %v3386
  %v3391 = vand.u32 2147483647, %v2496
  %vm3392 = vcmp.eq.f32.partialorder %v3391, 8.507059e+37
  %v3393 = vand.u32 %v2496, 2147483648
  %v3394 = vor.u32 1.1754944e-38, %v3393
  %v3395 = vsel %vm3392, %v3394, %v3390
  %v3396 = vmul.f32 %v2309, %v3395
  %v3397 = vrcp.pop %v2499
  %v3398 = vmul.f32 %v2499, %v3397
  %v3399 = vsub.f32 1.0, %v3398
  %v3400 = vmul.f32 %v3397, %v3399
  %v3401 = vadd.f32 %v3397, %v3400
  %vm3402 = vweird.f32 %v2499
  %vm3403 = vweird.f32 %v3397
  %vm3404 = vmor %vm3402, %vm3403
  %v3405 = vsel %vm3404, %v3397, %v3401
  %v3406 = vand.u32 2147483647, %v2499
  %vm3407 = vcmp.eq.f32.partialorder %v3406, 8.507059e+37
  %v3408 = vand.u32 %v2499, 2147483648
  %v3409 = vor.u32 1.1754944e-38, %v3408
  %v3410 = vsel %vm3407, %v3409, %v3405
  %v3411 = vmul.f32 %v2311, %v3410
  %v3412 = vrcp.pop %v2502
  %v3413 = vmul.f32 %v2502, %v3412
  %v3414 = vsub.f32 1.0, %v3413
  %v3415 = vmul.f32 %v3412, %v3414
  %v3416 = vadd.f32 %v3412, %v3415
  %vm3417 = vweird.f32 %v2502
  %vm3418 = vweird.f32 %v3412
  %vm3419 = vmor %vm3417, %vm3418
  %v3420 = vsel %vm3419, %v3412, %v3416
  %v3421 = vand.u32 2147483647, %v2502
  %vm3422 = vcmp.eq.f32.partialorder %v3421, 8.507059e+37
  %v3423 = vand.u32 %v2502, 2147483648
  %v3424 = vor.u32 1.1754944e-38, %v3423
  %v3425 = vsel %vm3422, %v3424, %v3420
  %v3426 = vmul.f32 %v2313, %v3425
  %v3427 = vrcp.pop %v2505
  %v3428 = vmul.f32 %v2505, %v3427
  %v3429 = vsub.f32 1.0, %v3428
  %v3430 = vmul.f32 %v3427, %v3429
  %v3431 = vadd.f32 %v3427, %v3430
  %vm3432 = vweird.f32 %v2505
  %vm3433 = vweird.f32 %v3427
  %vm3434 = vmor %vm3432, %vm3433
  %v3435 = vsel %vm3434, %v3427, %v3431
  %v3436 = vand.u32 2147483647, %v2505
  %vm3437 = vcmp.eq.f32.partialorder %v3436, 8.507059e+37
  %v3438 = vand.u32 %v2505, 2147483648
  %v3439 = vor.u32 1.1754944e-38, %v3438
  %v3440 = vsel %vm3437, %v3439, %v3435
  %v3441 = vmul.f32 %v2315, %v3440
  %v3442 = vrcp.pop %v2508
  %v3443 = vmul.f32 %v2508, %v3442
  %v3444 = vsub.f32 1.0, %v3443
  %v3445 = vmul.f32 %v3442, %v3444
  %v3446 = vadd.f32 %v3442, %v3445
  %vm3447 = vweird.f32 %v2508
  %vm3448 = vweird.f32 %v3442
  %vm3449 = vmor %vm3447, %vm3448
  %v3450 = vsel %vm3449, %v3442, %v3446
  %v3451 = vand.u32 2147483647, %v2508
  %vm3452 = vcmp.eq.f32.partialorder %v3451, 8.507059e+37
  %v3453 = vand.u32 %v2508, 2147483648
  %v3454 = vor.u32 1.1754944e-38, %v3453
  %v3455 = vsel %vm3452, %v3454, %v3450
  %v3456 = vmul.f32 %v2317, %v3455
  %v3457 = vrcp.pop %v2511
  %v3458 = vmul.f32 %v2511, %v3457
  %v3459 = vsub.f32 1.0, %v3458
  %v3460 = vmul.f32 %v3457, %v3459
  %v3461 = vadd.f32 %v3457, %v3460
  %vm3462 = vweird.f32 %v2511
  %vm3463 = vweird.f32 %v3457
  %vm3464 = vmor %vm3462, %vm3463
  %v3465 = vsel %vm3464, %v3457, %v3461
  %v3466 = vand.u32 2147483647, %v2511
  %vm3467 = vcmp.eq.f32.partialorder %v3466, 8.507059e+37
  %v3468 = vand.u32 %v2511, 2147483648
  %v3469 = vor.u32 1.1754944e-38, %v3468
  %v3470 = vsel %vm3467, %v3469, %v3465
  %v3471 = vmul.f32 %v2319, %v3470
  %vm3472 = vcmask 31744
  %v3474 = vsel %vm3472, %v2526, 0
  %vm3476 = vcmask 1043456
  %v3478 = vsel %vm3476, %v142, 0
  %3480 = vmatpush.msra.mxu0 0.0
  %3481 = vmatpush.msra.mxu0 0.0
  %3482 = vmatpush.msra.mxu0 0.0
  %3483 = vmatpush.msra.mxu0 0.0
  %3484 = vmatpush.msra.mxu0 0.0
  %3485 = vmatpush.msra.mxu0 0.0
  %3486 = vmatpush.msra.mxu0 0.0
  %3487 = vmatpush.msra.mxu0 0.0
  %3488 = vmatpush.msra.mxu0 0.0
  %3489 = vmatpush.msra.mxu0 0.0
  %3490 = vmatpush.msra.mxu0 0.0
  %3491 = vmatpush.msra.mxu0 0.0
  %3492 = vmatpush.msra.mxu0 0.0
  %3493 = vmatpush.msra.mxu0 0.0
  %3494 = vmatpush.msra.mxu0 0.0
  %3495 = vmatpush.msra.mxu0 %v3478
  %3496 = vmatmul.f32.gmra.mxu0 %v3474
  %v3497 = vpop.f32.mrf.mxu0
  %v3498 = vadd.f32 0.0, %v3497
  %3499 = vdwg.mxu0
  %v3501 = vsel %vm3472, %v2541, 0
  %v3504 = vsel %vm3476, %v143, 0
  %3506 = vmatpush.msra.mxu0 0.0
  %3507 = vmatpush.msra.mxu0 0.0
  %3508 = vmatpush.msra.mxu0 0.0
  %3509 = vmatpush.msra.mxu0 0.0
  %3510 = vmatpush.msra.mxu0 0.0
  %3511 = vmatpush.msra.mxu0 0.0
  %3512 = vmatpush.msra.mxu0 0.0
  %3513 = vmatpush.msra.mxu0 0.0
  %3514 = vmatpush.msra.mxu0 0.0
  %3515 = vmatpush.msra.mxu0 0.0
  %3516 = vmatpush.msra.mxu0 0.0
  %3517 = vmatpush.msra.mxu0 0.0
  %3518 = vmatpush.msra.mxu0 0.0
  %3519 = vmatpush.msra.mxu0 0.0
  %3520 = vmatpush.msra.mxu0 0.0
  %3521 = vmatpush.msra.mxu0 %v3504
  %3522 = vmatmul.f32.gmra.mxu0 %v3501
  %v3523 = vpop.f32.mrf.mxu0
  %v3524 = vadd.f32 0.0, %v3523
  %3525 = vdwg.mxu0
  %v3527 = vsel %vm3472, %v2556, 0
  %v3530 = vsel %vm3476, %v144, 0
  %3532 = vmatpush.msra.mxu0 0.0
  %3533 = vmatpush.msra.mxu0 0.0
  %3534 = vmatpush.msra.mxu0 0.0
  %3535 = vmatpush.msra.mxu0 0.0
  %3536 = vmatpush.msra.mxu0 0.0
  %3537 = vmatpush.msra.mxu0 0.0
  %3538 = vmatpush.msra.mxu0 0.0
  %3539 = vmatpush.msra.mxu0 0.0
  %3540 = vmatpush.msra.mxu0 0.0
  %3541 = vmatpush.msra.mxu0 0.0
  %3542 = vmatpush.msra.mxu0 0.0
  %3543 = vmatpush.msra.mxu0 0.0
  %3544 = vmatpush.msra.mxu0 0.0
  %3545 = vmatpush.msra.mxu0 0.0
  %3546 = vmatpush.msra.mxu0 0.0
  %3547 = vmatpush.msra.mxu0 %v3530
  %3548 = vmatmul.f32.gmra.mxu0 %v3527
  %v3549 = vpop.f32.mrf.mxu0
  %v3550 = vadd.f32 0.0, %v3549
  %3551 = vdwg.mxu0
  %v3553 = vsel %vm3472, %v2571, 0
  %v3556 = vsel %vm3476, %v145, 0
  %3558 = vmatpush.msra.mxu0 0.0
  %3559 = vmatpush.msra.mxu0 0.0
  %3560 = vmatpush.msra.mxu0 0.0
  %3561 = vmatpush.msra.mxu0 0.0
  %3562 = vmatpush.msra.mxu0 0.0
  %3563 = vmatpush.msra.mxu0 0.0
  %3564 = vmatpush.msra.mxu0 0.0
  %3565 = vmatpush.msra.mxu0 0.0
  %3566 = vmatpush.msra.mxu0 0.0
  %3567 = vmatpush.msra.mxu0 0.0
  %3568 = vmatpush.msra.mxu0 0.0
  %3569 = vmatpush.msra.mxu0 0.0
  %3570 = vmatpush.msra.mxu0 0.0
  %3571 = vmatpush.msra.mxu0 0.0
  %3572 = vmatpush.msra.mxu0 0.0
  %3573 = vmatpush.msra.mxu0 %v3556
  %3574 = vmatmul.f32.gmra.mxu0 %v3553
  %v3575 = vpop.f32.mrf.mxu0
  %v3576 = vadd.f32 0.0, %v3575
  %3577 = vdwg.mxu0
  %v3579 = vsel %vm3472, %v2586, 0
  %v3582 = vsel %vm3476, %v146, 0
  %3584 = vmatpush.msra.mxu0 0.0
  %3585 = vmatpush.msra.mxu0 0.0
  %3586 = vmatpush.msra.mxu0 0.0
  %3587 = vmatpush.msra.mxu0 0.0
  %3588 = vmatpush.msra.mxu0 0.0
  %3589 = vmatpush.msra.mxu0 0.0
  %3590 = vmatpush.msra.mxu0 0.0
  %3591 = vmatpush.msra.mxu0 0.0
  %3592 = vmatpush.msra.mxu0 0.0
  %3593 = vmatpush.msra.mxu0 0.0
  %3594 = vmatpush.msra.mxu0 0.0
  %3595 = vmatpush.msra.mxu0 0.0
  %3596 = vmatpush.msra.mxu0 0.0
  %3597 = vmatpush.msra.mxu0 0.0
  %3598 = vmatpush.msra.mxu0 0.0
  %3599 = vmatpush.msra.mxu0 %v3582
  %3600 = vmatmul.f32.gmra.mxu0 %v3579
  %v3601 = vpop.f32.mrf.mxu0
  %v3602 = vadd.f32 0.0, %v3601
  %3603 = vdwg.mxu0
  %v3605 = vsel %vm3472, %v2601, 0
  %v3608 = vsel %vm3476, %v147, 0
  %3610 = vmatpush.msra.mxu0 0.0
  %3611 = vmatpush.msra.mxu0 0.0
  %3612 = vmatpush.msra.mxu0 0.0
  %3613 = vmatpush.msra.mxu0 0.0
  %3614 = vmatpush.msra.mxu0 0.0
  %3615 = vmatpush.msra.mxu0 0.0
  %3616 = vmatpush.msra.mxu0 0.0
  %3617 = vmatpush.msra.mxu0 0.0
  %3618 = vmatpush.msra.mxu0 0.0
  %3619 = vmatpush.msra.mxu0 0.0
  %3620 = vmatpush.msra.mxu0 0.0
  %3621 = vmatpush.msra.mxu0 0.0
  %3622 = vmatpush.msra.mxu0 0.0
  %3623 = vmatpush.msra.mxu0 0.0
  %3624 = vmatpush.msra.mxu0 0.0
  %3625 = vmatpush.msra.mxu0 %v3608
  %3626 = vmatmul.f32.gmra.mxu0 %v3605
  %v3627 = vpop.f32.mrf.mxu0
  %v3628 = vadd.f32 0.0, %v3627
  %3629 = vdwg.mxu0
  %v3631 = vsel %vm3472, %v2616, 0
  %v3634 = vsel %vm3476, %v148, 0
  %3636 = vmatpush.msra.mxu0 0.0
  %3637 = vmatpush.msra.mxu0 0.0
  %3638 = vmatpush.msra.mxu0 0.0
  %3639 = vmatpush.msra.mxu0 0.0
  %3640 = vmatpush.msra.mxu0 0.0
  %3641 = vmatpush.msra.mxu0 0.0
  %3642 = vmatpush.msra.mxu0 0.0
  %3643 = vmatpush.msra.mxu0 0.0
  %3644 = vmatpush.msra.mxu0 0.0
  %3645 = vmatpush.msra.mxu0 0.0
  %3646 = vmatpush.msra.mxu0 0.0
  %3647 = vmatpush.msra.mxu0 0.0
  %3648 = vmatpush.msra.mxu0 0.0
  %3649 = vmatpush.msra.mxu0 0.0
  %3650 = vmatpush.msra.mxu0 0.0
  %3651 = vmatpush.msra.mxu0 %v3634
  %3652 = vmatmul.f32.gmra.mxu0 %v3631
  %v3653 = vpop.f32.mrf.mxu0
  %v3654 = vadd.f32 0.0, %v3653
  %3655 = vdwg.mxu0
  %v3657 = vsel %vm3472, %v2631, 0
  %v3660 = vsel %vm3476, %v149, 0
  %3662 = vmatpush.msra.mxu0 0.0
  %3663 = vmatpush.msra.mxu0 0.0
  %3664 = vmatpush.msra.mxu0 0.0
  %3665 = vmatpush.msra.mxu0 0.0
  %3666 = vmatpush.msra.mxu0 0.0
  %3667 = vmatpush.msra.mxu0 0.0
  %3668 = vmatpush.msra.mxu0 0.0
  %3669 = vmatpush.msra.mxu0 0.0
  %3670 = vmatpush.msra.mxu0 0.0
  %3671 = vmatpush.msra.mxu0 0.0
  %3672 = vmatpush.msra.mxu0 0.0
  %3673 = vmatpush.msra.mxu0 0.0
  %3674 = vmatpush.msra.mxu0 0.0
  %3675 = vmatpush.msra.mxu0 0.0
  %3676 = vmatpush.msra.mxu0 0.0
  %3677 = vmatpush.msra.mxu0 %v3660
  %3678 = vmatmul.f32.gmra.mxu0 %v3657
  %v3679 = vpop.f32.mrf.mxu0
  %v3680 = vadd.f32 0.0, %v3679
  %3681 = vdwg.mxu0
  %v3683 = vsel %vm3472, %v2646, 0
  %v3686 = vsel %vm3476, %v150, 0
  %3688 = vmatpush.msra.mxu0 0.0
  %3689 = vmatpush.msra.mxu0 0.0
  %3690 = vmatpush.msra.mxu0 0.0
  %3691 = vmatpush.msra.mxu0 0.0
  %3692 = vmatpush.msra.mxu0 0.0
  %3693 = vmatpush.msra.mxu0 0.0
  %3694 = vmatpush.msra.mxu0 0.0
  %3695 = vmatpush.msra.mxu0 0.0
  %3696 = vmatpush.msra.mxu0 0.0
  %3697 = vmatpush.msra.mxu0 0.0
  %3698 = vmatpush.msra.mxu0 0.0
  %3699 = vmatpush.msra.mxu0 0.0
  %3700 = vmatpush.msra.mxu0 0.0
  %3701 = vmatpush.msra.mxu0 0.0
  %3702 = vmatpush.msra.mxu0 0.0
  %3703 = vmatpush.msra.mxu0 %v3686
  %3704 = vmatmul.f32.gmra.mxu0 %v3683
  %v3705 = vpop.f32.mrf.mxu0
  %v3706 = vadd.f32 0.0, %v3705
  %3707 = vdwg.mxu0
  %v3709 = vsel %vm3472, %v2661, 0
  %v3712 = vsel %vm3476, %v151, 0
  %3714 = vmatpush.msra.mxu0 0.0
  %3715 = vmatpush.msra.mxu0 0.0
  %3716 = vmatpush.msra.mxu0 0.0
  %3717 = vmatpush.msra.mxu0 0.0
  %3718 = vmatpush.msra.mxu0 0.0
  %3719 = vmatpush.msra.mxu0 0.0
  %3720 = vmatpush.msra.mxu0 0.0
  %3721 = vmatpush.msra.mxu0 0.0
  %3722 = vmatpush.msra.mxu0 0.0
  %3723 = vmatpush.msra.mxu0 0.0
  %3724 = vmatpush.msra.mxu0 0.0
  %3725 = vmatpush.msra.mxu0 0.0
  %3726 = vmatpush.msra.mxu0 0.0
  %3727 = vmatpush.msra.mxu0 0.0
  %3728 = vmatpush.msra.mxu0 0.0
  %3729 = vmatpush.msra.mxu0 %v3712
  %3730 = vmatmul.f32.gmra.mxu0 %v3709
  %v3731 = vpop.f32.mrf.mxu0
  %v3732 = vadd.f32 0.0, %v3731
  %3733 = vdwg.mxu0
  %v3735 = vsel %vm3472, %v2676, 0
  %v3738 = vsel %vm3476, %v152, 0
  %3740 = vmatpush.msra.mxu0 0.0
  %3741 = vmatpush.msra.mxu0 0.0
  %3742 = vmatpush.msra.mxu0 0.0
  %3743 = vmatpush.msra.mxu0 0.0
  %3744 = vmatpush.msra.mxu0 0.0
  %3745 = vmatpush.msra.mxu0 0.0
  %3746 = vmatpush.msra.mxu0 0.0
  %3747 = vmatpush.msra.mxu0 0.0
  %3748 = vmatpush.msra.mxu0 0.0
  %3749 = vmatpush.msra.mxu0 0.0
  %3750 = vmatpush.msra.mxu0 0.0
  %3751 = vmatpush.msra.mxu0 0.0
  %3752 = vmatpush.msra.mxu0 0.0
  %3753 = vmatpush.msra.mxu0 0.0
  %3754 = vmatpush.msra.mxu0 0.0
  %3755 = vmatpush.msra.mxu0 %v3738
  %3756 = vmatmul.f32.gmra.mxu0 %v3735
  %v3757 = vpop.f32.mrf.mxu0
  %v3758 = vadd.f32 0.0, %v3757
  %3759 = vdwg.mxu0
  %v3761 = vsel %vm3472, %v2691, 0
  %v3764 = vsel %vm3476, %v153, 0
  %3766 = vmatpush.msra.mxu0 0.0
  %3767 = vmatpush.msra.mxu0 0.0
  %3768 = vmatpush.msra.mxu0 0.0
  %3769 = vmatpush.msra.mxu0 0.0
  %3770 = vmatpush.msra.mxu0 0.0
  %3771 = vmatpush.msra.mxu0 0.0
  %3772 = vmatpush.msra.mxu0 0.0
  %3773 = vmatpush.msra.mxu0 0.0
  %3774 = vmatpush.msra.mxu0 0.0
  %3775 = vmatpush.msra.mxu0 0.0
  %3776 = vmatpush.msra.mxu0 0.0
  %3777 = vmatpush.msra.mxu0 0.0
  %3778 = vmatpush.msra.mxu0 0.0
  %3779 = vmatpush.msra.mxu0 0.0
  %3780 = vmatpush.msra.mxu0 0.0
  %3781 = vmatpush.msra.mxu0 %v3764
  %3782 = vmatmul.f32.gmra.mxu0 %v3761
  %v3783 = vpop.f32.mrf.mxu0
  %v3784 = vadd.f32 0.0, %v3783
  %3785 = vdwg.mxu0
  %v3787 = vsel %vm3472, %v2706, 0
  %v3790 = vsel %vm3476, %v154, 0
  %3792 = vmatpush.msra.mxu0 0.0
  %3793 = vmatpush.msra.mxu0 0.0
  %3794 = vmatpush.msra.mxu0 0.0
  %3795 = vmatpush.msra.mxu0 0.0
  %3796 = vmatpush.msra.mxu0 0.0
  %3797 = vmatpush.msra.mxu0 0.0
  %3798 = vmatpush.msra.mxu0 0.0
  %3799 = vmatpush.msra.mxu0 0.0
  %3800 = vmatpush.msra.mxu0 0.0
  %3801 = vmatpush.msra.mxu0 0.0
  %3802 = vmatpush.msra.mxu0 0.0
  %3803 = vmatpush.msra.mxu0 0.0
  %3804 = vmatpush.msra.mxu0 0.0
  %3805 = vmatpush.msra.mxu0 0.0
  %3806 = vmatpush.msra.mxu0 0.0
  %3807 = vmatpush.msra.mxu0 %v3790
  %3808 = vmatmul.f32.gmra.mxu0 %v3787
  %v3809 = vpop.f32.mrf.mxu0
  %v3810 = vadd.f32 0.0, %v3809
  %3811 = vdwg.mxu0
  %v3813 = vsel %vm3472, %v2721, 0
  %v3816 = vsel %vm3476, %v155, 0
  %3818 = vmatpush.msra.mxu0 0.0
  %3819 = vmatpush.msra.mxu0 0.0
  %3820 = vmatpush.msra.mxu0 0.0
  %3821 = vmatpush.msra.mxu0 0.0
  %3822 = vmatpush.msra.mxu0 0.0
  %3823 = vmatpush.msra.mxu0 0.0
  %3824 = vmatpush.msra.mxu0 0.0
  %3825 = vmatpush.msra.mxu0 0.0
  %3826 = vmatpush.msra.mxu0 0.0
  %3827 = vmatpush.msra.mxu0 0.0
  %3828 = vmatpush.msra.mxu0 0.0
  %3829 = vmatpush.msra.mxu0 0.0
  %3830 = vmatpush.msra.mxu0 0.0
  %3831 = vmatpush.msra.mxu0 0.0
  %3832 = vmatpush.msra.mxu0 0.0
  %3833 = vmatpush.msra.mxu0 %v3816
  %3834 = vmatmul.f32.gmra.mxu0 %v3813
  %v3835 = vpop.f32.mrf.mxu0
  %v3836 = vadd.f32 0.0, %v3835
  %3837 = vdwg.mxu0
  %v3839 = vsel %vm3472, %v2736, 0
  %v3842 = vsel %vm3476, %v156, 0
  %3844 = vmatpush.msra.mxu0 0.0
  %3845 = vmatpush.msra.mxu0 0.0
  %3846 = vmatpush.msra.mxu0 0.0
  %3847 = vmatpush.msra.mxu0 0.0
  %3848 = vmatpush.msra.mxu0 0.0
  %3849 = vmatpush.msra.mxu0 0.0
  %3850 = vmatpush.msra.mxu0 0.0
  %3851 = vmatpush.msra.mxu0 0.0
  %3852 = vmatpush.msra.mxu0 0.0
  %3853 = vmatpush.msra.mxu0 0.0
  %3854 = vmatpush.msra.mxu0 0.0
  %3855 = vmatpush.msra.mxu0 0.0
  %3856 = vmatpush.msra.mxu0 0.0
  %3857 = vmatpush.msra.mxu0 0.0
  %3858 = vmatpush.msra.mxu0 0.0
  %3859 = vmatpush.msra.mxu0 %v3842
  %3860 = vmatmul.f32.gmra.mxu0 %v3839
  %v3861 = vpop.f32.mrf.mxu0
  %v3862 = vadd.f32 0.0, %v3861
  %3863 = vdwg.mxu0
  %v3865 = vsel %vm3472, %v2751, 0
  %v3868 = vsel %vm3476, %v157, 0
  %3870 = vmatpush.msra.mxu0 0.0
  %3871 = vmatpush.msra.mxu0 0.0
  %3872 = vmatpush.msra.mxu0 0.0
  %3873 = vmatpush.msra.mxu0 0.0
  %3874 = vmatpush.msra.mxu0 0.0
  %3875 = vmatpush.msra.mxu0 0.0
  %3876 = vmatpush.msra.mxu0 0.0
  %3877 = vmatpush.msra.mxu0 0.0
  %3878 = vmatpush.msra.mxu0 0.0
  %3879 = vmatpush.msra.mxu0 0.0
  %3880 = vmatpush.msra.mxu0 0.0
  %3881 = vmatpush.msra.mxu0 0.0
  %3882 = vmatpush.msra.mxu0 0.0
  %3883 = vmatpush.msra.mxu0 0.0
  %3884 = vmatpush.msra.mxu0 0.0
  %3885 = vmatpush.msra.mxu0 %v3868
  %3886 = vmatmul.f32.gmra.mxu0 %v3865
  %v3887 = vpop.f32.mrf.mxu0
  %v3888 = vadd.f32 0.0, %v3887
  %3889 = vdwg.mxu0
  %v3891 = vsel %vm3472, %v2766, 0
  %v3894 = vsel %vm3476, %v158, 0
  %3896 = vmatpush.msra.mxu0 0.0
  %3897 = vmatpush.msra.mxu0 0.0
  %3898 = vmatpush.msra.mxu0 0.0
  %3899 = vmatpush.msra.mxu0 0.0
  %3900 = vmatpush.msra.mxu0 0.0
  %3901 = vmatpush.msra.mxu0 0.0
  %3902 = vmatpush.msra.mxu0 0.0
  %3903 = vmatpush.msra.mxu0 0.0
  %3904 = vmatpush.msra.mxu0 0.0
  %3905 = vmatpush.msra.mxu0 0.0
  %3906 = vmatpush.msra.mxu0 0.0
  %3907 = vmatpush.msra.mxu0 0.0
  %3908 = vmatpush.msra.mxu0 0.0
  %3909 = vmatpush.msra.mxu0 0.0
  %3910 = vmatpush.msra.mxu0 0.0
  %3911 = vmatpush.msra.mxu0 %v3894
  %3912 = vmatmul.f32.gmra.mxu0 %v3891
  %v3913 = vpop.f32.mrf.mxu0
  %v3914 = vadd.f32 0.0, %v3913
  %3915 = vdwg.mxu0
  %v3917 = vsel %vm3472, %v2781, 0
  %v3920 = vsel %vm3476, %v159, 0
  %3922 = vmatpush.msra.mxu0 0.0
  %3923 = vmatpush.msra.mxu0 0.0
  %3924 = vmatpush.msra.mxu0 0.0
  %3925 = vmatpush.msra.mxu0 0.0
  %3926 = vmatpush.msra.mxu0 0.0
  %3927 = vmatpush.msra.mxu0 0.0
  %3928 = vmatpush.msra.mxu0 0.0
  %3929 = vmatpush.msra.mxu0 0.0
  %3930 = vmatpush.msra.mxu0 0.0
  %3931 = vmatpush.msra.mxu0 0.0
  %3932 = vmatpush.msra.mxu0 0.0
  %3933 = vmatpush.msra.mxu0 0.0
  %3934 = vmatpush.msra.mxu0 0.0
  %3935 = vmatpush.msra.mxu0 0.0
  %3936 = vmatpush.msra.mxu0 0.0
  %3937 = vmatpush.msra.mxu0 %v3920
  %3938 = vmatmul.f32.gmra.mxu0 %v3917
  %v3939 = vpop.f32.mrf.mxu0
  %v3940 = vadd.f32 0.0, %v3939
  %3941 = vdwg.mxu0
  %v3943 = vsel %vm3472, %v2796, 0
  %v3946 = vsel %vm3476, %v160, 0
  %3948 = vmatpush.msra.mxu0 0.0
  %3949 = vmatpush.msra.mxu0 0.0
  %3950 = vmatpush.msra.mxu0 0.0
  %3951 = vmatpush.msra.mxu0 0.0
  %3952 = vmatpush.msra.mxu0 0.0
  %3953 = vmatpush.msra.mxu0 0.0
  %3954 = vmatpush.msra.mxu0 0.0
  %3955 = vmatpush.msra.mxu0 0.0
  %3956 = vmatpush.msra.mxu0 0.0
  %3957 = vmatpush.msra.mxu0 0.0
  %3958 = vmatpush.msra.mxu0 0.0
  %3959 = vmatpush.msra.mxu0 0.0
  %3960 = vmatpush.msra.mxu0 0.0
  %3961 = vmatpush.msra.mxu0 0.0
  %3962 = vmatpush.msra.mxu0 0.0
  %3963 = vmatpush.msra.mxu0 %v3946
  %3964 = vmatmul.f32.gmra.mxu0 %v3943
  %v3965 = vpop.f32.mrf.mxu0
  %v3966 = vadd.f32 0.0, %v3965
  %3967 = vdwg.mxu0
  %v3969 = vsel %vm3472, %v2811, 0
  %v3972 = vsel %vm3476, %v161, 0
  %3974 = vmatpush.msra.mxu0 0.0
  %3975 = vmatpush.msra.mxu0 0.0
  %3976 = vmatpush.msra.mxu0 0.0
  %3977 = vmatpush.msra.mxu0 0.0
  %3978 = vmatpush.msra.mxu0 0.0
  %3979 = vmatpush.msra.mxu0 0.0
  %3980 = vmatpush.msra.mxu0 0.0
  %3981 = vmatpush.msra.mxu0 0.0
  %3982 = vmatpush.msra.mxu0 0.0
  %3983 = vmatpush.msra.mxu0 0.0
  %3984 = vmatpush.msra.mxu0 0.0
  %3985 = vmatpush.msra.mxu0 0.0
  %3986 = vmatpush.msra.mxu0 0.0
  %3987 = vmatpush.msra.mxu0 0.0
  %3988 = vmatpush.msra.mxu0 0.0
  %3989 = vmatpush.msra.mxu0 %v3972
  %3990 = vmatmul.f32.gmra.mxu0 %v3969
  %v3991 = vpop.f32.mrf.mxu0
  %v3992 = vadd.f32 0.0, %v3991
  %3993 = vdwg.mxu0
  %v3995 = vsel %vm3472, %v2826, 0
  %v3998 = vsel %vm3476, %v162, 0
  %4000 = vmatpush.msra.mxu0 0.0
  %4001 = vmatpush.msra.mxu0 0.0
  %4002 = vmatpush.msra.mxu0 0.0
  %4003 = vmatpush.msra.mxu0 0.0
  %4004 = vmatpush.msra.mxu0 0.0
  %4005 = vmatpush.msra.mxu0 0.0
  %4006 = vmatpush.msra.mxu0 0.0
  %4007 = vmatpush.msra.mxu0 0.0
  %4008 = vmatpush.msra.mxu0 0.0
  %4009 = vmatpush.msra.mxu0 0.0
  %4010 = vmatpush.msra.mxu0 0.0
  %4011 = vmatpush.msra.mxu0 0.0
  %4012 = vmatpush.msra.mxu0 0.0
  %4013 = vmatpush.msra.mxu0 0.0
  %4014 = vmatpush.msra.mxu0 0.0
  %4015 = vmatpush.msra.mxu0 %v3998
  %4016 = vmatmul.f32.gmra.mxu0 %v3995
  %v4017 = vpop.f32.mrf.mxu0
  %v4018 = vadd.f32 0.0, %v4017
  %4019 = vdwg.mxu0
  %v4021 = vsel %vm3472, %v2841, 0
  %v4024 = vsel %vm3476, %v163, 0
  %4026 = vmatpush.msra.mxu0 0.0
  %4027 = vmatpush.msra.mxu0 0.0
  %4028 = vmatpush.msra.mxu0 0.0
  %4029 = vmatpush.msra.mxu0 0.0
  %4030 = vmatpush.msra.mxu0 0.0
  %4031 = vmatpush.msra.mxu0 0.0
  %4032 = vmatpush.msra.mxu0 0.0
  %4033 = vmatpush.msra.mxu0 0.0
  %4034 = vmatpush.msra.mxu0 0.0
  %4035 = vmatpush.msra.mxu0 0.0
  %4036 = vmatpush.msra.mxu0 0.0
  %4037 = vmatpush.msra.mxu0 0.0
  %4038 = vmatpush.msra.mxu0 0.0
  %4039 = vmatpush.msra.mxu0 0.0
  %4040 = vmatpush.msra.mxu0 0.0
  %4041 = vmatpush.msra.mxu0 %v4024
  %4042 = vmatmul.f32.gmra.mxu0 %v4021
  %v4043 = vpop.f32.mrf.mxu0
  %v4044 = vadd.f32 0.0, %v4043
  %4045 = vdwg.mxu0
  %v4047 = vsel %vm3472, %v2856, 0
  %v4050 = vsel %vm3476, %v164, 0
  %4052 = vmatpush.msra.mxu0 0.0
  %4053 = vmatpush.msra.mxu0 0.0
  %4054 = vmatpush.msra.mxu0 0.0
  %4055 = vmatpush.msra.mxu0 0.0
  %4056 = vmatpush.msra.mxu0 0.0
  %4057 = vmatpush.msra.mxu0 0.0
  %4058 = vmatpush.msra.mxu0 0.0
  %4059 = vmatpush.msra.mxu0 0.0
  %4060 = vmatpush.msra.mxu0 0.0
  %4061 = vmatpush.msra.mxu0 0.0
  %4062 = vmatpush.msra.mxu0 0.0
  %4063 = vmatpush.msra.mxu0 0.0
  %4064 = vmatpush.msra.mxu0 0.0
  %4065 = vmatpush.msra.mxu0 0.0
  %4066 = vmatpush.msra.mxu0 0.0
  %4067 = vmatpush.msra.mxu0 %v4050
  %4068 = vmatmul.f32.gmra.mxu0 %v4047
  %v4069 = vpop.f32.mrf.mxu0
  %v4070 = vadd.f32 0.0, %v4069
  %4071 = vdwg.mxu0
  %v4073 = vsel %vm3472, %v2871, 0
  %v4076 = vsel %vm3476, %v165, 0
  %4078 = vmatpush.msra.mxu0 0.0
  %4079 = vmatpush.msra.mxu0 0.0
  %4080 = vmatpush.msra.mxu0 0.0
  %4081 = vmatpush.msra.mxu0 0.0
  %4082 = vmatpush.msra.mxu0 0.0
  %4083 = vmatpush.msra.mxu0 0.0
  %4084 = vmatpush.msra.mxu0 0.0
  %4085 = vmatpush.msra.mxu0 0.0
  %4086 = vmatpush.msra.mxu0 0.0
  %4087 = vmatpush.msra.mxu0 0.0
  %4088 = vmatpush.msra.mxu0 0.0
  %4089 = vmatpush.msra.mxu0 0.0
  %4090 = vmatpush.msra.mxu0 0.0
  %4091 = vmatpush.msra.mxu0 0.0
  %4092 = vmatpush.msra.mxu0 0.0
  %4093 = vmatpush.msra.mxu0 %v4076
  %4094 = vmatmul.f32.gmra.mxu0 %v4073
  %v4095 = vpop.f32.mrf.mxu0
  %v4096 = vadd.f32 0.0, %v4095
  %4097 = vdwg.mxu0
  %v4099 = vsel %vm3472, %v2886, 0
  %v4102 = vsel %vm3476, %v166, 0
  %4104 = vmatpush.msra.mxu0 0.0
  %4105 = vmatpush.msra.mxu0 0.0
  %4106 = vmatpush.msra.mxu0 0.0
  %4107 = vmatpush.msra.mxu0 0.0
  %4108 = vmatpush.msra.mxu0 0.0
  %4109 = vmatpush.msra.mxu0 0.0
  %4110 = vmatpush.msra.mxu0 0.0
  %4111 = vmatpush.msra.mxu0 0.0
  %4112 = vmatpush.msra.mxu0 0.0
  %4113 = vmatpush.msra.mxu0 0.0
  %4114 = vmatpush.msra.mxu0 0.0
  %4115 = vmatpush.msra.mxu0 0.0
  %4116 = vmatpush.msra.mxu0 0.0
  %4117 = vmatpush.msra.mxu0 0.0
  %4118 = vmatpush.msra.mxu0 0.0
  %4119 = vmatpush.msra.mxu0 %v4102
  %4120 = vmatmul.f32.gmra.mxu0 %v4099
  %v4121 = vpop.f32.mrf.mxu0
  %v4122 = vadd.f32 0.0, %v4121
  %4123 = vdwg.mxu0
  %v4125 = vsel %vm3472, %v2901, 0
  %v4128 = vsel %vm3476, %v167, 0
  %4130 = vmatpush.msra.mxu0 0.0
  %4131 = vmatpush.msra.mxu0 0.0
  %4132 = vmatpush.msra.mxu0 0.0
  %4133 = vmatpush.msra.mxu0 0.0
  %4134 = vmatpush.msra.mxu0 0.0
  %4135 = vmatpush.msra.mxu0 0.0
  %4136 = vmatpush.msra.mxu0 0.0
  %4137 = vmatpush.msra.mxu0 0.0
  %4138 = vmatpush.msra.mxu0 0.0
  %4139 = vmatpush.msra.mxu0 0.0
  %4140 = vmatpush.msra.mxu0 0.0
  %4141 = vmatpush.msra.mxu0 0.0
  %4142 = vmatpush.msra.mxu0 0.0
  %4143 = vmatpush.msra.mxu0 0.0
  %4144 = vmatpush.msra.mxu0 0.0
  %4145 = vmatpush.msra.mxu0 %v4128
  %4146 = vmatmul.f32.gmra.mxu0 %v4125
  %v4147 = vpop.f32.mrf.mxu0
  %v4148 = vadd.f32 0.0, %v4147
  %4149 = vdwg.mxu0
  %v4151 = vsel %vm3472, %v2916, 0
  %v4154 = vsel %vm3476, %v168, 0
  %4156 = vmatpush.msra.mxu0 0.0
  %4157 = vmatpush.msra.mxu0 0.0
  %4158 = vmatpush.msra.mxu0 0.0
  %4159 = vmatpush.msra.mxu0 0.0
  %4160 = vmatpush.msra.mxu0 0.0
  %4161 = vmatpush.msra.mxu0 0.0
  %4162 = vmatpush.msra.mxu0 0.0
  %4163 = vmatpush.msra.mxu0 0.0
  %4164 = vmatpush.msra.mxu0 0.0
  %4165 = vmatpush.msra.mxu0 0.0
  %4166 = vmatpush.msra.mxu0 0.0
  %4167 = vmatpush.msra.mxu0 0.0
  %4168 = vmatpush.msra.mxu0 0.0
  %4169 = vmatpush.msra.mxu0 0.0
  %4170 = vmatpush.msra.mxu0 0.0
  %4171 = vmatpush.msra.mxu0 %v4154
  %4172 = vmatmul.f32.gmra.mxu0 %v4151
  %v4173 = vpop.f32.mrf.mxu0
  %v4174 = vadd.f32 0.0, %v4173
  %4175 = vdwg.mxu0
  %v4177 = vsel %vm3472, %v2931, 0
  %v4180 = vsel %vm3476, %v169, 0
  %4182 = vmatpush.msra.mxu0 0.0
  %4183 = vmatpush.msra.mxu0 0.0
  %4184 = vmatpush.msra.mxu0 0.0
  %4185 = vmatpush.msra.mxu0 0.0
  %4186 = vmatpush.msra.mxu0 0.0
  %4187 = vmatpush.msra.mxu0 0.0
  %4188 = vmatpush.msra.mxu0 0.0
  %4189 = vmatpush.msra.mxu0 0.0
  %4190 = vmatpush.msra.mxu0 0.0
  %4191 = vmatpush.msra.mxu0 0.0
  %4192 = vmatpush.msra.mxu0 0.0
  %4193 = vmatpush.msra.mxu0 0.0
  %4194 = vmatpush.msra.mxu0 0.0
  %4195 = vmatpush.msra.mxu0 0.0
  %4196 = vmatpush.msra.mxu0 0.0
  %4197 = vmatpush.msra.mxu0 %v4180
  %4198 = vmatmul.f32.gmra.mxu0 %v4177
  %v4199 = vpop.f32.mrf.mxu0
  %v4200 = vadd.f32 0.0, %v4199
  %4201 = vdwg.mxu0
  %v4203 = vsel %vm3472, %v2946, 0
  %v4206 = vsel %vm3476, %v170, 0
  %4208 = vmatpush.msra.mxu0 0.0
  %4209 = vmatpush.msra.mxu0 0.0
  %4210 = vmatpush.msra.mxu0 0.0
  %4211 = vmatpush.msra.mxu0 0.0
  %4212 = vmatpush.msra.mxu0 0.0
  %4213 = vmatpush.msra.mxu0 0.0
  %4214 = vmatpush.msra.mxu0 0.0
  %4215 = vmatpush.msra.mxu0 0.0
  %4216 = vmatpush.msra.mxu0 0.0
  %4217 = vmatpush.msra.mxu0 0.0
  %4218 = vmatpush.msra.mxu0 0.0
  %4219 = vmatpush.msra.mxu0 0.0
  %4220 = vmatpush.msra.mxu0 0.0
  %4221 = vmatpush.msra.mxu0 0.0
  %4222 = vmatpush.msra.mxu0 0.0
  %4223 = vmatpush.msra.mxu0 %v4206
  %4224 = vmatmul.f32.gmra.mxu0 %v4203
  %v4225 = vpop.f32.mrf.mxu0
  %v4226 = vadd.f32 0.0, %v4225
  %4227 = vdwg.mxu0
  %v4229 = vsel %vm3472, %v2961, 0
  %v4232 = vsel %vm3476, %v171, 0
  %4234 = vmatpush.msra.mxu0 0.0
  %4235 = vmatpush.msra.mxu0 0.0
  %4236 = vmatpush.msra.mxu0 0.0
  %4237 = vmatpush.msra.mxu0 0.0
  %4238 = vmatpush.msra.mxu0 0.0
  %4239 = vmatpush.msra.mxu0 0.0
  %4240 = vmatpush.msra.mxu0 0.0
  %4241 = vmatpush.msra.mxu0 0.0
  %4242 = vmatpush.msra.mxu0 0.0
  %4243 = vmatpush.msra.mxu0 0.0
  %4244 = vmatpush.msra.mxu0 0.0
  %4245 = vmatpush.msra.mxu0 0.0
  %4246 = vmatpush.msra.mxu0 0.0
  %4247 = vmatpush.msra.mxu0 0.0
  %4248 = vmatpush.msra.mxu0 0.0
  %4249 = vmatpush.msra.mxu0 %v4232
  %4250 = vmatmul.f32.gmra.mxu0 %v4229
  %v4251 = vpop.f32.mrf.mxu0
  %v4252 = vadd.f32 0.0, %v4251
  %4253 = vdwg.mxu0
  %v4255 = vsel %vm3472, %v2976, 0
  %v4258 = vsel %vm3476, %v172, 0
  %4260 = vmatpush.msra.mxu0 0.0
  %4261 = vmatpush.msra.mxu0 0.0
  %4262 = vmatpush.msra.mxu0 0.0
  %4263 = vmatpush.msra.mxu0 0.0
  %4264 = vmatpush.msra.mxu0 0.0
  %4265 = vmatpush.msra.mxu0 0.0
  %4266 = vmatpush.msra.mxu0 0.0
  %4267 = vmatpush.msra.mxu0 0.0
  %4268 = vmatpush.msra.mxu0 0.0
  %4269 = vmatpush.msra.mxu0 0.0
  %4270 = vmatpush.msra.mxu0 0.0
  %4271 = vmatpush.msra.mxu0 0.0
  %4272 = vmatpush.msra.mxu0 0.0
  %4273 = vmatpush.msra.mxu0 0.0
  %4274 = vmatpush.msra.mxu0 0.0
  %4275 = vmatpush.msra.mxu0 %v4258
  %4276 = vmatmul.f32.gmra.mxu0 %v4255
  %v4277 = vpop.f32.mrf.mxu0
  %v4278 = vadd.f32 0.0, %v4277
  %4279 = vdwg.mxu0
  %v4281 = vsel %vm3472, %v2991, 0
  %v4284 = vsel %vm3476, %v173, 0
  %4286 = vmatpush.msra.mxu0 0.0
  %4287 = vmatpush.msra.mxu0 0.0
  %4288 = vmatpush.msra.mxu0 0.0
  %4289 = vmatpush.msra.mxu0 0.0
  %4290 = vmatpush.msra.mxu0 0.0
  %4291 = vmatpush.msra.mxu0 0.0
  %4292 = vmatpush.msra.mxu0 0.0
  %4293 = vmatpush.msra.mxu0 0.0
  %4294 = vmatpush.msra.mxu0 0.0
  %4295 = vmatpush.msra.mxu0 0.0
  %4296 = vmatpush.msra.mxu0 0.0
  %4297 = vmatpush.msra.mxu0 0.0
  %4298 = vmatpush.msra.mxu0 0.0
  %4299 = vmatpush.msra.mxu0 0.0
  %4300 = vmatpush.msra.mxu0 0.0
  %4301 = vmatpush.msra.mxu0 %v4284
  %4302 = vmatmul.f32.gmra.mxu0 %v4281
  %v4303 = vpop.f32.mrf.mxu0
  %v4304 = vadd.f32 0.0, %v4303
  %4305 = vdwg.mxu0
  %v4307 = vsel %vm3472, %v3006, 0
  %v4310 = vsel %vm3476, %v174, 0
  %4312 = vmatpush.msra.mxu0 0.0
  %4313 = vmatpush.msra.mxu0 0.0
  %4314 = vmatpush.msra.mxu0 0.0
  %4315 = vmatpush.msra.mxu0 0.0
  %4316 = vmatpush.msra.mxu0 0.0
  %4317 = vmatpush.msra.mxu0 0.0
  %4318 = vmatpush.msra.mxu0 0.0
  %4319 = vmatpush.msra.mxu0 0.0
  %4320 = vmatpush.msra.mxu0 0.0
  %4321 = vmatpush.msra.mxu0 0.0
  %4322 = vmatpush.msra.mxu0 0.0
  %4323 = vmatpush.msra.mxu0 0.0
  %4324 = vmatpush.msra.mxu0 0.0
  %4325 = vmatpush.msra.mxu0 0.0
  %4326 = vmatpush.msra.mxu0 0.0
  %4327 = vmatpush.msra.mxu0 %v4310
  %4328 = vmatmul.f32.gmra.mxu0 %v4307
  %v4329 = vpop.f32.mrf.mxu0
  %v4330 = vadd.f32 0.0, %v4329
  %4331 = vdwg.mxu0
  %v4333 = vsel %vm3472, %v3021, 0
  %v4336 = vsel %vm3476, %v175, 0
  %4338 = vmatpush.msra.mxu0 0.0
  %4339 = vmatpush.msra.mxu0 0.0
  %4340 = vmatpush.msra.mxu0 0.0
  %4341 = vmatpush.msra.mxu0 0.0
  %4342 = vmatpush.msra.mxu0 0.0
  %4343 = vmatpush.msra.mxu0 0.0
  %4344 = vmatpush.msra.mxu0 0.0
  %4345 = vmatpush.msra.mxu0 0.0
  %4346 = vmatpush.msra.mxu0 0.0
  %4347 = vmatpush.msra.mxu0 0.0
  %4348 = vmatpush.msra.mxu0 0.0
  %4349 = vmatpush.msra.mxu0 0.0
  %4350 = vmatpush.msra.mxu0 0.0
  %4351 = vmatpush.msra.mxu0 0.0
  %4352 = vmatpush.msra.mxu0 0.0
  %4353 = vmatpush.msra.mxu0 %v4336
  %4354 = vmatmul.f32.gmra.mxu0 %v4333
  %v4355 = vpop.f32.mrf.mxu0
  %v4356 = vadd.f32 0.0, %v4355
  %4357 = vdwg.mxu0
  %v4359 = vsel %vm3472, %v3036, 0
  %v4362 = vsel %vm3476, %v176, 0
  %4364 = vmatpush.msra.mxu0 0.0
  %4365 = vmatpush.msra.mxu0 0.0
  %4366 = vmatpush.msra.mxu0 0.0
  %4367 = vmatpush.msra.mxu0 0.0
  %4368 = vmatpush.msra.mxu0 0.0
  %4369 = vmatpush.msra.mxu0 0.0
  %4370 = vmatpush.msra.mxu0 0.0
  %4371 = vmatpush.msra.mxu0 0.0
  %4372 = vmatpush.msra.mxu0 0.0
  %4373 = vmatpush.msra.mxu0 0.0
  %4374 = vmatpush.msra.mxu0 0.0
  %4375 = vmatpush.msra.mxu0 0.0
  %4376 = vmatpush.msra.mxu0 0.0
  %4377 = vmatpush.msra.mxu0 0.0
  %4378 = vmatpush.msra.mxu0 0.0
  %4379 = vmatpush.msra.mxu0 %v4362
  %4380 = vmatmul.f32.gmra.mxu0 %v4359
  %v4381 = vpop.f32.mrf.mxu0
  %v4382 = vadd.f32 0.0, %v4381
  %4383 = vdwg.mxu0
  %v4385 = vsel %vm3472, %v3051, 0
  %v4388 = vsel %vm3476, %v177, 0
  %4390 = vmatpush.msra.mxu0 0.0
  %4391 = vmatpush.msra.mxu0 0.0
  %4392 = vmatpush.msra.mxu0 0.0
  %4393 = vmatpush.msra.mxu0 0.0
  %4394 = vmatpush.msra.mxu0 0.0
  %4395 = vmatpush.msra.mxu0 0.0
  %4396 = vmatpush.msra.mxu0 0.0
  %4397 = vmatpush.msra.mxu0 0.0
  %4398 = vmatpush.msra.mxu0 0.0
  %4399 = vmatpush.msra.mxu0 0.0
  %4400 = vmatpush.msra.mxu0 0.0
  %4401 = vmatpush.msra.mxu0 0.0
  %4402 = vmatpush.msra.mxu0 0.0
  %4403 = vmatpush.msra.mxu0 0.0
  %4404 = vmatpush.msra.mxu0 0.0
  %4405 = vmatpush.msra.mxu0 %v4388
  %4406 = vmatmul.f32.gmra.mxu0 %v4385
  %v4407 = vpop.f32.mrf.mxu0
  %v4408 = vadd.f32 0.0, %v4407
  %4409 = vdwg.mxu0
  %v4411 = vsel %vm3472, %v3066, 0
  %v4414 = vsel %vm3476, %v178, 0
  %4416 = vmatpush.msra.mxu0 0.0
  %4417 = vmatpush.msra.mxu0 0.0
  %4418 = vmatpush.msra.mxu0 0.0
  %4419 = vmatpush.msra.mxu0 0.0
  %4420 = vmatpush.msra.mxu0 0.0
  %4421 = vmatpush.msra.mxu0 0.0
  %4422 = vmatpush.msra.mxu0 0.0
  %4423 = vmatpush.msra.mxu0 0.0
  %4424 = vmatpush.msra.mxu0 0.0
  %4425 = vmatpush.msra.mxu0 0.0
  %4426 = vmatpush.msra.mxu0 0.0
  %4427 = vmatpush.msra.mxu0 0.0
  %4428 = vmatpush.msra.mxu0 0.0
  %4429 = vmatpush.msra.mxu0 0.0
  %4430 = vmatpush.msra.mxu0 0.0
  %4431 = vmatpush.msra.mxu0 %v4414
  %4432 = vmatmul.f32.gmra.mxu0 %v4411
  %v4433 = vpop.f32.mrf.mxu0
  %v4434 = vadd.f32 0.0, %v4433
  %4435 = vdwg.mxu0
  %v4437 = vsel %vm3472, %v3081, 0
  %v4440 = vsel %vm3476, %v179, 0
  %4442 = vmatpush.msra.mxu0 0.0
  %4443 = vmatpush.msra.mxu0 0.0
  %4444 = vmatpush.msra.mxu0 0.0
  %4445 = vmatpush.msra.mxu0 0.0
  %4446 = vmatpush.msra.mxu0 0.0
  %4447 = vmatpush.msra.mxu0 0.0
  %4448 = vmatpush.msra.mxu0 0.0
  %4449 = vmatpush.msra.mxu0 0.0
  %4450 = vmatpush.msra.mxu0 0.0
  %4451 = vmatpush.msra.mxu0 0.0
  %4452 = vmatpush.msra.mxu0 0.0
  %4453 = vmatpush.msra.mxu0 0.0
  %4454 = vmatpush.msra.mxu0 0.0
  %4455 = vmatpush.msra.mxu0 0.0
  %4456 = vmatpush.msra.mxu0 0.0
  %4457 = vmatpush.msra.mxu0 %v4440
  %4458 = vmatmul.f32.gmra.mxu0 %v4437
  %v4459 = vpop.f32.mrf.mxu0
  %v4460 = vadd.f32 0.0, %v4459
  %4461 = vdwg.mxu0
  %v4463 = vsel %vm3472, %v3096, 0
  %v4466 = vsel %vm3476, %v180, 0
  %4468 = vmatpush.msra.mxu0 0.0
  %4469 = vmatpush.msra.mxu0 0.0
  %4470 = vmatpush.msra.mxu0 0.0
  %4471 = vmatpush.msra.mxu0 0.0
  %4472 = vmatpush.msra.mxu0 0.0
  %4473 = vmatpush.msra.mxu0 0.0
  %4474 = vmatpush.msra.mxu0 0.0
  %4475 = vmatpush.msra.mxu0 0.0
  %4476 = vmatpush.msra.mxu0 0.0
  %4477 = vmatpush.msra.mxu0 0.0
  %4478 = vmatpush.msra.mxu0 0.0
  %4479 = vmatpush.msra.mxu0 0.0
  %4480 = vmatpush.msra.mxu0 0.0
  %4481 = vmatpush.msra.mxu0 0.0
  %4482 = vmatpush.msra.mxu0 0.0
  %4483 = vmatpush.msra.mxu0 %v4466
  %4484 = vmatmul.f32.gmra.mxu0 %v4463
  %v4485 = vpop.f32.mrf.mxu0
  %v4486 = vadd.f32 0.0, %v4485
  %4487 = vdwg.mxu0
  %v4489 = vsel %vm3472, %v3111, 0
  %v4492 = vsel %vm3476, %v181, 0
  %4494 = vmatpush.msra.mxu0 0.0
  %4495 = vmatpush.msra.mxu0 0.0
  %4496 = vmatpush.msra.mxu0 0.0
  %4497 = vmatpush.msra.mxu0 0.0
  %4498 = vmatpush.msra.mxu0 0.0
  %4499 = vmatpush.msra.mxu0 0.0
  %4500 = vmatpush.msra.mxu0 0.0
  %4501 = vmatpush.msra.mxu0 0.0
  %4502 = vmatpush.msra.mxu0 0.0
  %4503 = vmatpush.msra.mxu0 0.0
  %4504 = vmatpush.msra.mxu0 0.0
  %4505 = vmatpush.msra.mxu0 0.0
  %4506 = vmatpush.msra.mxu0 0.0
  %4507 = vmatpush.msra.mxu0 0.0
  %4508 = vmatpush.msra.mxu0 0.0
  %4509 = vmatpush.msra.mxu0 %v4492
  %4510 = vmatmul.f32.gmra.mxu0 %v4489
  %v4511 = vpop.f32.mrf.mxu0
  %v4512 = vadd.f32 0.0, %v4511
  %4513 = vdwg.mxu0
  %v4515 = vsel %vm3472, %v3126, 0
  %v4518 = vsel %vm3476, %v182, 0
  %4520 = vmatpush.msra.mxu0 0.0
  %4521 = vmatpush.msra.mxu0 0.0
  %4522 = vmatpush.msra.mxu0 0.0
  %4523 = vmatpush.msra.mxu0 0.0
  %4524 = vmatpush.msra.mxu0 0.0
  %4525 = vmatpush.msra.mxu0 0.0
  %4526 = vmatpush.msra.mxu0 0.0
  %4527 = vmatpush.msra.mxu0 0.0
  %4528 = vmatpush.msra.mxu0 0.0
  %4529 = vmatpush.msra.mxu0 0.0
  %4530 = vmatpush.msra.mxu0 0.0
  %4531 = vmatpush.msra.mxu0 0.0
  %4532 = vmatpush.msra.mxu0 0.0
  %4533 = vmatpush.msra.mxu0 0.0
  %4534 = vmatpush.msra.mxu0 0.0
  %4535 = vmatpush.msra.mxu0 %v4518
  %4536 = vmatmul.f32.gmra.mxu0 %v4515
  %v4537 = vpop.f32.mrf.mxu0
  %v4538 = vadd.f32 0.0, %v4537
  %4539 = vdwg.mxu0
  %v4541 = vsel %vm3472, %v3141, 0
  %v4544 = vsel %vm3476, %v183, 0
  %4546 = vmatpush.msra.mxu0 0.0
  %4547 = vmatpush.msra.mxu0 0.0
  %4548 = vmatpush.msra.mxu0 0.0
  %4549 = vmatpush.msra.mxu0 0.0
  %4550 = vmatpush.msra.mxu0 0.0
  %4551 = vmatpush.msra.mxu0 0.0
  %4552 = vmatpush.msra.mxu0 0.0
  %4553 = vmatpush.msra.mxu0 0.0
  %4554 = vmatpush.msra.mxu0 0.0
  %4555 = vmatpush.msra.mxu0 0.0
  %4556 = vmatpush.msra.mxu0 0.0
  %4557 = vmatpush.msra.mxu0 0.0
  %4558 = vmatpush.msra.mxu0 0.0
  %4559 = vmatpush.msra.mxu0 0.0
  %4560 = vmatpush.msra.mxu0 0.0
  %4561 = vmatpush.msra.mxu0 %v4544
  %4562 = vmatmul.f32.gmra.mxu0 %v4541
  %v4563 = vpop.f32.mrf.mxu0
  %v4564 = vadd.f32 0.0, %v4563
  %4565 = vdwg.mxu0
  %v4567 = vsel %vm3472, %v3156, 0
  %v4570 = vsel %vm3476, %v184, 0
  %4572 = vmatpush.msra.mxu0 0.0
  %4573 = vmatpush.msra.mxu0 0.0
  %4574 = vmatpush.msra.mxu0 0.0
  %4575 = vmatpush.msra.mxu0 0.0
  %4576 = vmatpush.msra.mxu0 0.0
  %4577 = vmatpush.msra.mxu0 0.0
  %4578 = vmatpush.msra.mxu0 0.0
  %4579 = vmatpush.msra.mxu0 0.0
  %4580 = vmatpush.msra.mxu0 0.0
  %4581 = vmatpush.msra.mxu0 0.0
  %4582 = vmatpush.msra.mxu0 0.0
  %4583 = vmatpush.msra.mxu0 0.0
  %4584 = vmatpush.msra.mxu0 0.0
  %4585 = vmatpush.msra.mxu0 0.0
  %4586 = vmatpush.msra.mxu0 0.0
  %4587 = vmatpush.msra.mxu0 %v4570
  %4588 = vmatmul.f32.gmra.mxu0 %v4567
  %v4589 = vpop.f32.mrf.mxu0
  %v4590 = vadd.f32 0.0, %v4589
  %4591 = vdwg.mxu0
  %v4593 = vsel %vm3472, %v3171, 0
  %v4596 = vsel %vm3476, %v185, 0
  %4598 = vmatpush.msra.mxu0 0.0
  %4599 = vmatpush.msra.mxu0 0.0
  %4600 = vmatpush.msra.mxu0 0.0
  %4601 = vmatpush.msra.mxu0 0.0
  %4602 = vmatpush.msra.mxu0 0.0
  %4603 = vmatpush.msra.mxu0 0.0
  %4604 = vmatpush.msra.mxu0 0.0
  %4605 = vmatpush.msra.mxu0 0.0
  %4606 = vmatpush.msra.mxu0 0.0
  %4607 = vmatpush.msra.mxu0 0.0
  %4608 = vmatpush.msra.mxu0 0.0
  %4609 = vmatpush.msra.mxu0 0.0
  %4610 = vmatpush.msra.mxu0 0.0
  %4611 = vmatpush.msra.mxu0 0.0
  %4612 = vmatpush.msra.mxu0 0.0
  %4613 = vmatpush.msra.mxu0 %v4596
  %4614 = vmatmul.f32.gmra.mxu0 %v4593
  %v4615 = vpop.f32.mrf.mxu0
  %v4616 = vadd.f32 0.0, %v4615
  %4617 = vdwg.mxu0
  %v4619 = vsel %vm3472, %v3186, 0
  %v4622 = vsel %vm3476, %v186, 0
  %4624 = vmatpush.msra.mxu0 0.0
  %4625 = vmatpush.msra.mxu0 0.0
  %4626 = vmatpush.msra.mxu0 0.0
  %4627 = vmatpush.msra.mxu0 0.0
  %4628 = vmatpush.msra.mxu0 0.0
  %4629 = vmatpush.msra.mxu0 0.0
  %4630 = vmatpush.msra.mxu0 0.0
  %4631 = vmatpush.msra.mxu0 0.0
  %4632 = vmatpush.msra.mxu0 0.0
  %4633 = vmatpush.msra.mxu0 0.0
  %4634 = vmatpush.msra.mxu0 0.0
  %4635 = vmatpush.msra.mxu0 0.0
  %4636 = vmatpush.msra.mxu0 0.0
  %4637 = vmatpush.msra.mxu0 0.0
  %4638 = vmatpush.msra.mxu0 0.0
  %4639 = vmatpush.msra.mxu0 %v4622
  %4640 = vmatmul.f32.gmra.mxu0 %v4619
  %v4641 = vpop.f32.mrf.mxu0
  %v4642 = vadd.f32 0.0, %v4641
  %4643 = vdwg.mxu0
  %v4645 = vsel %vm3472, %v3201, 0
  %v4648 = vsel %vm3476, %v187, 0
  %4650 = vmatpush.msra.mxu0 0.0
  %4651 = vmatpush.msra.mxu0 0.0
  %4652 = vmatpush.msra.mxu0 0.0
  %4653 = vmatpush.msra.mxu0 0.0
  %4654 = vmatpush.msra.mxu0 0.0
  %4655 = vmatpush.msra.mxu0 0.0
  %4656 = vmatpush.msra.mxu0 0.0
  %4657 = vmatpush.msra.mxu0 0.0
  %4658 = vmatpush.msra.mxu0 0.0
  %4659 = vmatpush.msra.mxu0 0.0
  %4660 = vmatpush.msra.mxu0 0.0
  %4661 = vmatpush.msra.mxu0 0.0
  %4662 = vmatpush.msra.mxu0 0.0
  %4663 = vmatpush.msra.mxu0 0.0
  %4664 = vmatpush.msra.mxu0 0.0
  %4665 = vmatpush.msra.mxu0 %v4648
  %4666 = vmatmul.f32.gmra.mxu0 %v4645
  %v4667 = vpop.f32.mrf.mxu0
  %v4668 = vadd.f32 0.0, %v4667
  %4669 = vdwg.mxu0
  %v4671 = vsel %vm3472, %v3216, 0
  %v4674 = vsel %vm3476, %v188, 0
  %4676 = vmatpush.msra.mxu0 0.0
  %4677 = vmatpush.msra.mxu0 0.0
  %4678 = vmatpush.msra.mxu0 0.0
  %4679 = vmatpush.msra.mxu0 0.0
  %4680 = vmatpush.msra.mxu0 0.0
  %4681 = vmatpush.msra.mxu0 0.0
  %4682 = vmatpush.msra.mxu0 0.0
  %4683 = vmatpush.msra.mxu0 0.0
  %4684 = vmatpush.msra.mxu0 0.0
  %4685 = vmatpush.msra.mxu0 0.0
  %4686 = vmatpush.msra.mxu0 0.0
  %4687 = vmatpush.msra.mxu0 0.0
  %4688 = vmatpush.msra.mxu0 0.0
  %4689 = vmatpush.msra.mxu0 0.0
  %4690 = vmatpush.msra.mxu0 0.0
  %4691 = vmatpush.msra.mxu0 %v4674
  %4692 = vmatmul.f32.gmra.mxu0 %v4671
  %v4693 = vpop.f32.mrf.mxu0
  %v4694 = vadd.f32 0.0, %v4693
  %4695 = vdwg.mxu0
  %v4697 = vsel %vm3472, %v3231, 0
  %v4700 = vsel %vm3476, %v189, 0
  %4702 = vmatpush.msra.mxu0 0.0
  %4703 = vmatpush.msra.mxu0 0.0
  %4704 = vmatpush.msra.mxu0 0.0
  %4705 = vmatpush.msra.mxu0 0.0
  %4706 = vmatpush.msra.mxu0 0.0
  %4707 = vmatpush.msra.mxu0 0.0
  %4708 = vmatpush.msra.mxu0 0.0
  %4709 = vmatpush.msra.mxu0 0.0
  %4710 = vmatpush.msra.mxu0 0.0
  %4711 = vmatpush.msra.mxu0 0.0
  %4712 = vmatpush.msra.mxu0 0.0
  %4713 = vmatpush.msra.mxu0 0.0
  %4714 = vmatpush.msra.mxu0 0.0
  %4715 = vmatpush.msra.mxu0 0.0
  %4716 = vmatpush.msra.mxu0 0.0
  %4717 = vmatpush.msra.mxu0 %v4700
  %4718 = vmatmul.f32.gmra.mxu0 %v4697
  %v4719 = vpop.f32.mrf.mxu0
  %v4720 = vadd.f32 0.0, %v4719
  %4721 = vdwg.mxu0
  %v4723 = vsel %vm3472, %v3246, 0
  %v4726 = vsel %vm3476, %v190, 0
  %4728 = vmatpush.msra.mxu0 0.0
  %4729 = vmatpush.msra.mxu0 0.0
  %4730 = vmatpush.msra.mxu0 0.0
  %4731 = vmatpush.msra.mxu0 0.0
  %4732 = vmatpush.msra.mxu0 0.0
  %4733 = vmatpush.msra.mxu0 0.0
  %4734 = vmatpush.msra.mxu0 0.0
  %4735 = vmatpush.msra.mxu0 0.0
  %4736 = vmatpush.msra.mxu0 0.0
  %4737 = vmatpush.msra.mxu0 0.0
  %4738 = vmatpush.msra.mxu0 0.0
  %4739 = vmatpush.msra.mxu0 0.0
  %4740 = vmatpush.msra.mxu0 0.0
  %4741 = vmatpush.msra.mxu0 0.0
  %4742 = vmatpush.msra.mxu0 0.0
  %4743 = vmatpush.msra.mxu0 %v4726
  %4744 = vmatmul.f32.gmra.mxu0 %v4723
  %v4745 = vpop.f32.mrf.mxu0
  %v4746 = vadd.f32 0.0, %v4745
  %4747 = vdwg.mxu0
  %v4749 = vsel %vm3472, %v3261, 0
  %v4752 = vsel %vm3476, %v191, 0
  %4754 = vmatpush.msra.mxu0 0.0
  %4755 = vmatpush.msra.mxu0 0.0
  %4756 = vmatpush.msra.mxu0 0.0
  %4757 = vmatpush.msra.mxu0 0.0
  %4758 = vmatpush.msra.mxu0 0.0
  %4759 = vmatpush.msra.mxu0 0.0
  %4760 = vmatpush.msra.mxu0 0.0
  %4761 = vmatpush.msra.mxu0 0.0
  %4762 = vmatpush.msra.mxu0 0.0
  %4763 = vmatpush.msra.mxu0 0.0
  %4764 = vmatpush.msra.mxu0 0.0
  %4765 = vmatpush.msra.mxu0 0.0
  %4766 = vmatpush.msra.mxu0 0.0
  %4767 = vmatpush.msra.mxu0 0.0
  %4768 = vmatpush.msra.mxu0 0.0
  %4769 = vmatpush.msra.mxu0 %v4752
  %4770 = vmatmul.f32.gmra.mxu0 %v4749
  %v4771 = vpop.f32.mrf.mxu0
  %v4772 = vadd.f32 0.0, %v4771
  %4773 = vdwg.mxu0
  %v4775 = vsel %vm3472, %v3276, 0
  %v4778 = vsel %vm3476, %v192, 0
  %4780 = vmatpush.msra.mxu0 0.0
  %4781 = vmatpush.msra.mxu0 0.0
  %4782 = vmatpush.msra.mxu0 0.0
  %4783 = vmatpush.msra.mxu0 0.0
  %4784 = vmatpush.msra.mxu0 0.0
  %4785 = vmatpush.msra.mxu0 0.0
  %4786 = vmatpush.msra.mxu0 0.0
  %4787 = vmatpush.msra.mxu0 0.0
  %4788 = vmatpush.msra.mxu0 0.0
  %4789 = vmatpush.msra.mxu0 0.0
  %4790 = vmatpush.msra.mxu0 0.0
  %4791 = vmatpush.msra.mxu0 0.0
  %4792 = vmatpush.msra.mxu0 0.0
  %4793 = vmatpush.msra.mxu0 0.0
  %4794 = vmatpush.msra.mxu0 0.0
  %4795 = vmatpush.msra.mxu0 %v4778
  %4796 = vmatmul.f32.gmra.mxu0 %v4775
  %v4797 = vpop.f32.mrf.mxu0
  %v4798 = vadd.f32 0.0, %v4797
  %4799 = vdwg.mxu0
  %v4801 = vsel %vm3472, %v3291, 0
  %v4804 = vsel %vm3476, %v193, 0
  %4806 = vmatpush.msra.mxu0 0.0
  %4807 = vmatpush.msra.mxu0 0.0
  %4808 = vmatpush.msra.mxu0 0.0
  %4809 = vmatpush.msra.mxu0 0.0
  %4810 = vmatpush.msra.mxu0 0.0
  %4811 = vmatpush.msra.mxu0 0.0
  %4812 = vmatpush.msra.mxu0 0.0
  %4813 = vmatpush.msra.mxu0 0.0
  %4814 = vmatpush.msra.mxu0 0.0
  %4815 = vmatpush.msra.mxu0 0.0
  %4816 = vmatpush.msra.mxu0 0.0
  %4817 = vmatpush.msra.mxu0 0.0
  %4818 = vmatpush.msra.mxu0 0.0
  %4819 = vmatpush.msra.mxu0 0.0
  %4820 = vmatpush.msra.mxu0 0.0
  %4821 = vmatpush.msra.mxu0 %v4804
  %4822 = vmatmul.f32.gmra.mxu0 %v4801
  %v4823 = vpop.f32.mrf.mxu0
  %v4824 = vadd.f32 0.0, %v4823
  %4825 = vdwg.mxu0
  %v4827 = vsel %vm3472, %v3306, 0
  %v4830 = vsel %vm3476, %v194, 0
  %4832 = vmatpush.msra.mxu0 0.0
  %4833 = vmatpush.msra.mxu0 0.0
  %4834 = vmatpush.msra.mxu0 0.0
  %4835 = vmatpush.msra.mxu0 0.0
  %4836 = vmatpush.msra.mxu0 0.0
  %4837 = vmatpush.msra.mxu0 0.0
  %4838 = vmatpush.msra.mxu0 0.0
  %4839 = vmatpush.msra.mxu0 0.0
  %4840 = vmatpush.msra.mxu0 0.0
  %4841 = vmatpush.msra.mxu0 0.0
  %4842 = vmatpush.msra.mxu0 0.0
  %4843 = vmatpush.msra.mxu0 0.0
  %4844 = vmatpush.msra.mxu0 0.0
  %4845 = vmatpush.msra.mxu0 0.0
  %4846 = vmatpush.msra.mxu0 0.0
  %4847 = vmatpush.msra.mxu0 %v4830
  %4848 = vmatmul.f32.gmra.mxu0 %v4827
  %v4849 = vpop.f32.mrf.mxu0
  %v4850 = vadd.f32 0.0, %v4849
  %4851 = vdwg.mxu0
  %v4853 = vsel %vm3472, %v3321, 0
  %v4856 = vsel %vm3476, %v195, 0
  %4858 = vmatpush.msra.mxu0 0.0
  %4859 = vmatpush.msra.mxu0 0.0
  %4860 = vmatpush.msra.mxu0 0.0
  %4861 = vmatpush.msra.mxu0 0.0
  %4862 = vmatpush.msra.mxu0 0.0
  %4863 = vmatpush.msra.mxu0 0.0
  %4864 = vmatpush.msra.mxu0 0.0
  %4865 = vmatpush.msra.mxu0 0.0
  %4866 = vmatpush.msra.mxu0 0.0
  %4867 = vmatpush.msra.mxu0 0.0
  %4868 = vmatpush.msra.mxu0 0.0
  %4869 = vmatpush.msra.mxu0 0.0
  %4870 = vmatpush.msra.mxu0 0.0
  %4871 = vmatpush.msra.mxu0 0.0
  %4872 = vmatpush.msra.mxu0 0.0
  %4873 = vmatpush.msra.mxu0 %v4856
  %4874 = vmatmul.f32.gmra.mxu0 %v4853
  %v4875 = vpop.f32.mrf.mxu0
  %v4876 = vadd.f32 0.0, %v4875
  %4877 = vdwg.mxu0
  %v4879 = vsel %vm3472, %v3336, 0
  %v4882 = vsel %vm3476, %v196, 0
  %4884 = vmatpush.msra.mxu0 0.0
  %4885 = vmatpush.msra.mxu0 0.0
  %4886 = vmatpush.msra.mxu0 0.0
  %4887 = vmatpush.msra.mxu0 0.0
  %4888 = vmatpush.msra.mxu0 0.0
  %4889 = vmatpush.msra.mxu0 0.0
  %4890 = vmatpush.msra.mxu0 0.0
  %4891 = vmatpush.msra.mxu0 0.0
  %4892 = vmatpush.msra.mxu0 0.0
  %4893 = vmatpush.msra.mxu0 0.0
  %4894 = vmatpush.msra.mxu0 0.0
  %4895 = vmatpush.msra.mxu0 0.0
  %4896 = vmatpush.msra.mxu0 0.0
  %4897 = vmatpush.msra.mxu0 0.0
  %4898 = vmatpush.msra.mxu0 0.0
  %4899 = vmatpush.msra.mxu0 %v4882
  %4900 = vmatmul.f32.gmra.mxu0 %v4879
  %v4901 = vpop.f32.mrf.mxu0
  %v4902 = vadd.f32 0.0, %v4901
  %4903 = vdwg.mxu0
  %v4905 = vsel %vm3472, %v3351, 0
  %v4908 = vsel %vm3476, %v197, 0
  %4910 = vmatpush.msra.mxu0 0.0
  %4911 = vmatpush.msra.mxu0 0.0
  %4912 = vmatpush.msra.mxu0 0.0
  %4913 = vmatpush.msra.mxu0 0.0
  %4914 = vmatpush.msra.mxu0 0.0
  %4915 = vmatpush.msra.mxu0 0.0
  %4916 = vmatpush.msra.mxu0 0.0
  %4917 = vmatpush.msra.mxu0 0.0
  %4918 = vmatpush.msra.mxu0 0.0
  %4919 = vmatpush.msra.mxu0 0.0
  %4920 = vmatpush.msra.mxu0 0.0
  %4921 = vmatpush.msra.mxu0 0.0
  %4922 = vmatpush.msra.mxu0 0.0
  %4923 = vmatpush.msra.mxu0 0.0
  %4924 = vmatpush.msra.mxu0 0.0
  %4925 = vmatpush.msra.mxu0 %v4908
  %4926 = vmatmul.f32.gmra.mxu0 %v4905
  %v4927 = vpop.f32.mrf.mxu0
  %v4928 = vadd.f32 0.0, %v4927
  %4929 = vdwg.mxu0
  %v4931 = vsel %vm3472, %v3366, 0
  %v4934 = vsel %vm3476, %v198, 0
  %4936 = vmatpush.msra.mxu0 0.0
  %4937 = vmatpush.msra.mxu0 0.0
  %4938 = vmatpush.msra.mxu0 0.0
  %4939 = vmatpush.msra.mxu0 0.0
  %4940 = vmatpush.msra.mxu0 0.0
  %4941 = vmatpush.msra.mxu0 0.0
  %4942 = vmatpush.msra.mxu0 0.0
  %4943 = vmatpush.msra.mxu0 0.0
  %4944 = vmatpush.msra.mxu0 0.0
  %4945 = vmatpush.msra.mxu0 0.0
  %4946 = vmatpush.msra.mxu0 0.0
  %4947 = vmatpush.msra.mxu0 0.0
  %4948 = vmatpush.msra.mxu0 0.0
  %4949 = vmatpush.msra.mxu0 0.0
  %4950 = vmatpush.msra.mxu0 0.0
  %4951 = vmatpush.msra.mxu0 %v4934
  %4952 = vmatmul.f32.gmra.mxu0 %v4931
  %v4953 = vpop.f32.mrf.mxu0
  %v4954 = vadd.f32 0.0, %v4953
  %4955 = vdwg.mxu0
  %v4957 = vsel %vm3472, %v3381, 0
  %v4960 = vsel %vm3476, %v199, 0
  %4962 = vmatpush.msra.mxu0 0.0
  %4963 = vmatpush.msra.mxu0 0.0
  %4964 = vmatpush.msra.mxu0 0.0
  %4965 = vmatpush.msra.mxu0 0.0
  %4966 = vmatpush.msra.mxu0 0.0
  %4967 = vmatpush.msra.mxu0 0.0
  %4968 = vmatpush.msra.mxu0 0.0
  %4969 = vmatpush.msra.mxu0 0.0
  %4970 = vmatpush.msra.mxu0 0.0
  %4971 = vmatpush.msra.mxu0 0.0
  %4972 = vmatpush.msra.mxu0 0.0
  %4973 = vmatpush.msra.mxu0 0.0
  %4974 = vmatpush.msra.mxu0 0.0
  %4975 = vmatpush.msra.mxu0 0.0
  %4976 = vmatpush.msra.mxu0 0.0
  %4977 = vmatpush.msra.mxu0 %v4960
  %4978 = vmatmul.f32.gmra.mxu0 %v4957
  %v4979 = vpop.f32.mrf.mxu0
  %v4980 = vadd.f32 0.0, %v4979
  %4981 = vdwg.mxu0
  %v4983 = vsel %vm3472, %v3396, 0
  %v4986 = vsel %vm3476, %v200, 0
  %4988 = vmatpush.msra.mxu0 0.0
  %4989 = vmatpush.msra.mxu0 0.0
  %4990 = vmatpush.msra.mxu0 0.0
  %4991 = vmatpush.msra.mxu0 0.0
  %4992 = vmatpush.msra.mxu0 0.0
  %4993 = vmatpush.msra.mxu0 0.0
  %4994 = vmatpush.msra.mxu0 0.0
  %4995 = vmatpush.msra.mxu0 0.0
  %4996 = vmatpush.msra.mxu0 0.0
  %4997 = vmatpush.msra.mxu0 0.0
  %4998 = vmatpush.msra.mxu0 0.0
  %4999 = vmatpush.msra.mxu0 0.0
  %5000 = vmatpush.msra.mxu0 0.0
  %5001 = vmatpush.msra.mxu0 0.0
  %5002 = vmatpush.msra.mxu0 0.0
  %5003 = vmatpush.msra.mxu0 %v4986
  %5004 = vmatmul.f32.gmra.mxu0 %v4983
  %v5005 = vpop.f32.mrf.mxu0
  %v5006 = vadd.f32 0.0, %v5005
  %5007 = vdwg.mxu0
  %v5009 = vsel %vm3472, %v3411, 0
  %v5012 = vsel %vm3476, %v201, 0
  %5014 = vmatpush.msra.mxu0 0.0
  %5015 = vmatpush.msra.mxu0 0.0
  %5016 = vmatpush.msra.mxu0 0.0
  %5017 = vmatpush.msra.mxu0 0.0
  %5018 = vmatpush.msra.mxu0 0.0
  %5019 = vmatpush.msra.mxu0 0.0
  %5020 = vmatpush.msra.mxu0 0.0
  %5021 = vmatpush.msra.mxu0 0.0
  %5022 = vmatpush.msra.mxu0 0.0
  %5023 = vmatpush.msra.mxu0 0.0
  %5024 = vmatpush.msra.mxu0 0.0
  %5025 = vmatpush.msra.mxu0 0.0
  %5026 = vmatpush.msra.mxu0 0.0
  %5027 = vmatpush.msra.mxu0 0.0
  %5028 = vmatpush.msra.mxu0 0.0
  %5029 = vmatpush.msra.mxu0 %v5012
  %5030 = vmatmul.f32.gmra.mxu0 %v5009
  %v5031 = vpop.f32.mrf.mxu0
  %v5032 = vadd.f32 0.0, %v5031
  %5033 = vdwg.mxu0
  %v5035 = vsel %vm3472, %v3426, 0
  %v5038 = vsel %vm3476, %v202, 0
  %5040 = vmatpush.msra.mxu0 0.0
  %5041 = vmatpush.msra.mxu0 0.0
  %5042 = vmatpush.msra.mxu0 0.0
  %5043 = vmatpush.msra.mxu0 0.0
  %5044 = vmatpush.msra.mxu0 0.0
  %5045 = vmatpush.msra.mxu0 0.0
  %5046 = vmatpush.msra.mxu0 0.0
  %5047 = vmatpush.msra.mxu0 0.0
  %5048 = vmatpush.msra.mxu0 0.0
  %5049 = vmatpush.msra.mxu0 0.0
  %5050 = vmatpush.msra.mxu0 0.0
  %5051 = vmatpush.msra.mxu0 0.0
  %5052 = vmatpush.msra.mxu0 0.0
  %5053 = vmatpush.msra.mxu0 0.0
  %5054 = vmatpush.msra.mxu0 0.0
  %5055 = vmatpush.msra.mxu0 %v5038
  %5056 = vmatmul.f32.gmra.mxu0 %v5035
  %v5057 = vpop.f32.mrf.mxu0
  %v5058 = vadd.f32 0.0, %v5057
  %5059 = vdwg.mxu0
  %v5061 = vsel %vm3472, %v3441, 0
  %v5064 = vsel %vm3476, %v203, 0
  %5066 = vmatpush.msra.mxu0 0.0
  %5067 = vmatpush.msra.mxu0 0.0
  %5068 = vmatpush.msra.mxu0 0.0
  %5069 = vmatpush.msra.mxu0 0.0
  %5070 = vmatpush.msra.mxu0 0.0
  %5071 = vmatpush.msra.mxu0 0.0
  %5072 = vmatpush.msra.mxu0 0.0
  %5073 = vmatpush.msra.mxu0 0.0
  %5074 = vmatpush.msra.mxu0 0.0
  %5075 = vmatpush.msra.mxu0 0.0
  %5076 = vmatpush.msra.mxu0 0.0
  %5077 = vmatpush.msra.mxu0 0.0
  %5078 = vmatpush.msra.mxu0 0.0
  %5079 = vmatpush.msra.mxu0 0.0
  %5080 = vmatpush.msra.mxu0 0.0
  %5081 = vmatpush.msra.mxu0 %v5064
  %5082 = vmatmul.f32.gmra.mxu0 %v5061
  %v5083 = vpop.f32.mrf.mxu0
  %v5084 = vadd.f32 0.0, %v5083
  %5085 = vdwg.mxu0
  %v5087 = vsel %vm3472, %v3456, 0
  %v5090 = vsel %vm3476, %v204, 0
  %5092 = vmatpush.msra.mxu0 0.0
  %5093 = vmatpush.msra.mxu0 0.0
  %5094 = vmatpush.msra.mxu0 0.0
  %5095 = vmatpush.msra.mxu0 0.0
  %5096 = vmatpush.msra.mxu0 0.0
  %5097 = vmatpush.msra.mxu0 0.0
  %5098 = vmatpush.msra.mxu0 0.0
  %5099 = vmatpush.msra.mxu0 0.0
  %5100 = vmatpush.msra.mxu0 0.0
  %5101 = vmatpush.msra.mxu0 0.0
  %5102 = vmatpush.msra.mxu0 0.0
  %5103 = vmatpush.msra.mxu0 0.0
  %5104 = vmatpush.msra.mxu0 0.0
  %5105 = vmatpush.msra.mxu0 0.0
  %5106 = vmatpush.msra.mxu0 0.0
  %5107 = vmatpush.msra.mxu0 %v5090
  %5108 = vmatmul.f32.gmra.mxu0 %v5087
  %v5109 = vpop.f32.mrf.mxu0
  %v5110 = vadd.f32 0.0, %v5109
  %5111 = vdwg.mxu0
  %v5113 = vsel %vm3472, %v3471, 0
  %v5116 = vsel %vm3476, %v205, 0
  %5118 = vmatpush.msra.mxu0 0.0
  %5119 = vmatpush.msra.mxu0 0.0
  %5120 = vmatpush.msra.mxu0 0.0
  %5121 = vmatpush.msra.mxu0 0.0
  %5122 = vmatpush.msra.mxu0 0.0
  %5123 = vmatpush.msra.mxu0 0.0
  %5124 = vmatpush.msra.mxu0 0.0
  %5125 = vmatpush.msra.mxu0 0.0
  %5126 = vmatpush.msra.mxu0 0.0
  %5127 = vmatpush.msra.mxu0 0.0
  %5128 = vmatpush.msra.mxu0 0.0
  %5129 = vmatpush.msra.mxu0 0.0
  %5130 = vmatpush.msra.mxu0 0.0
  %5131 = vmatpush.msra.mxu0 0.0
  %5132 = vmatpush.msra.mxu0 0.0
  %5133 = vmatpush.msra.mxu0 %v5116
  %5134 = vmatmul.f32.gmra.mxu0 %v5113
  %v5135 = vpop.f32.mrf.mxu0
  %v5136 = vadd.f32 0.0, %v5135
  %5137 = vdwg.mxu0
  %vm5138 = vcmask 60416
  %5139 = vst.msk [vmem:[%s3] sm:$0xf] %vm5138, %v3498
  %5140 = vst.msk [vmem:[%s3 + $0x4] sm:$0xf] %vm5138, %v3524
  %5141 = vst.msk [vmem:[%s3 + $0x8] sm:$0xf] %vm5138, %v3550
  %5142 = vst.msk [vmem:[%s3 + $0xc] sm:$0xf] %vm5138, %v3576
  %5143 = vst.msk [vmem:[%s3 + $0x10] sm:$0xf] %vm5138, %v3602
  %5144 = vst.msk [vmem:[%s3 + $0x14] sm:$0xf] %vm5138, %v3628
  %5145 = vst.msk [vmem:[%s3 + $0x18] sm:$0xf] %vm5138, %v3654
  %5146 = vst.msk [vmem:[%s3 + $0x1c] sm:$0xf] %vm5138, %v3680
  %5147 = vst.msk [vmem:[%s3 + $0x20] sm:$0xf] %vm5138, %v3706
  %5148 = vst.msk [vmem:[%s3 + $0x24] sm:$0xf] %vm5138, %v3732
  %5149 = vst.msk [vmem:[%s3 + $0x28] sm:$0xf] %vm5138, %v3758
  %5150 = vst.msk [vmem:[%s3 + $0x2c] sm:$0xf] %vm5138, %v3784
  %5151 = vst.msk [vmem:[%s3 + $0x30] sm:$0xf] %vm5138, %v3810
  %5152 = vst.msk [vmem:[%s3 + $0x34] sm:$0xf] %vm5138, %v3836
  %5153 = vst.msk [vmem:[%s3 + $0x38] sm:$0xf] %vm5138, %v3862
  %5154 = vst.msk [vmem:[%s3 + $0x3c] sm:$0xf] %vm5138, %v3888
  %5155 = vst.msk [vmem:[%s3 + $0x40] sm:$0xf] %vm5138, %v3914
  %5156 = vst.msk [vmem:[%s3 + $0x44] sm:$0xf] %vm5138, %v3940
  %5157 = vst.msk [vmem:[%s3 + $0x48] sm:$0xf] %vm5138, %v3966
  %5158 = vst.msk [vmem:[%s3 + $0x4c] sm:$0xf] %vm5138, %v3992
  %5159 = vst.msk [vmem:[%s3 + $0x50] sm:$0xf] %vm5138, %v4018
  %5160 = vst.msk [vmem:[%s3 + $0x54] sm:$0xf] %vm5138, %v4044
  %5161 = vst.msk [vmem:[%s3 + $0x58] sm:$0xf] %vm5138, %v4070
  %5162 = vst.msk [vmem:[%s3 + $0x5c] sm:$0xf] %vm5138, %v4096
  %5163 = vst.msk [vmem:[%s3 + $0x60] sm:$0xf] %vm5138, %v4122
  %5164 = vst.msk [vmem:[%s3 + $0x64] sm:$0xf] %vm5138, %v4148
  %5165 = vst.msk [vmem:[%s3 + $0x68] sm:$0xf] %vm5138, %v4174
  %5166 = vst.msk [vmem:[%s3 + $0x6c] sm:$0xf] %vm5138, %v4200
  %5167 = vst.msk [vmem:[%s3 + $0x70] sm:$0xf] %vm5138, %v4226
  %5168 = vst.msk [vmem:[%s3 + $0x74] sm:$0xf] %vm5138, %v4252
  %5169 = vst.msk [vmem:[%s3 + $0x78] sm:$0xf] %vm5138, %v4278
  %5170 = vst.msk [vmem:[%s3 + $0x7c] sm:$0xf] %vm5138, %v4304
  %5171 = vst.msk [vmem:[%s3 + $0x80] sm:$0xf] %vm5138, %v4330
  %5172 = vst.msk [vmem:[%s3 + $0x84] sm:$0xf] %vm5138, %v4356
  %5173 = vst.msk [vmem:[%s3 + $0x88] sm:$0xf] %vm5138, %v4382
  %5174 = vst.msk [vmem:[%s3 + $0x8c] sm:$0xf] %vm5138, %v4408
  %5175 = vst.msk [vmem:[%s3 + $0x90] sm:$0xf] %vm5138, %v4434
  %5176 = vst.msk [vmem:[%s3 + $0x94] sm:$0xf] %vm5138, %v4460
  %5177 = vst.msk [vmem:[%s3 + $0x98] sm:$0xf] %vm5138, %v4486
  %5178 = vst.msk [vmem:[%s3 + $0x9c] sm:$0xf] %vm5138, %v4512
  %5179 = vst.msk [vmem:[%s3 + $0xa0] sm:$0xf] %vm5138, %v4538
  %5180 = vst.msk [vmem:[%s3 + $0xa4] sm:$0xf] %vm5138, %v4564
  %5181 = vst.msk [vmem:[%s3 + $0xa8] sm:$0xf] %vm5138, %v4590
  %5182 = vst.msk [vmem:[%s3 + $0xac] sm:$0xf] %vm5138, %v4616
  %5183 = vst.msk [vmem:[%s3 + $0xb0] sm:$0xf] %vm5138, %v4642
  %5184 = vst.msk [vmem:[%s3 + $0xb4] sm:$0xf] %vm5138, %v4668
  %5185 = vst.msk [vmem:[%s3 + $0xb8] sm:$0xf] %vm5138, %v4694
  %5186 = vst.msk [vmem:[%s3 + $0xbc] sm:$0xf] %vm5138, %v4720
  %5187 = vst.msk [vmem:[%s3 + $0xc0] sm:$0xf] %vm5138, %v4746
  %5188 = vst.msk [vmem:[%s3 + $0xc4] sm:$0xf] %vm5138, %v4772
  %5189 = vst.msk [vmem:[%s3 + $0xc8] sm:$0xf] %vm5138, %v4798
  %5190 = vst.msk [vmem:[%s3 + $0xcc] sm:$0xf] %vm5138, %v4824
  %5191 = vst.msk [vmem:[%s3 + $0xd0] sm:$0xf] %vm5138, %v4850
  %5192 = vst.msk [vmem:[%s3 + $0xd4] sm:$0xf] %vm5138, %v4876
  %5193 = vst.msk [vmem:[%s3 + $0xd8] sm:$0xf] %vm5138, %v4902
  %5194 = vst.msk [vmem:[%s3 + $0xdc] sm:$0xf] %vm5138, %v4928
  %5195 = vst.msk [vmem:[%s3 + $0xe0] sm:$0xf] %vm5138, %v4954
  %5196 = vst.msk [vmem:[%s3 + $0xe4] sm:$0xf] %vm5138, %v4980
  %5197 = vst.msk [vmem:[%s3 + $0xe8] sm:$0xf] %vm5138, %v5006
  %5198 = vst.msk [vmem:[%s3 + $0xec] sm:$0xf] %vm5138, %v5032
  %5199 = vst.msk [vmem:[%s3 + $0xf0] sm:$0xf] %vm5138, %v5058
  %5200 = vst.msk [vmem:[%s3 + $0xf4] sm:$0xf] %vm5138, %v5084
  %5201 = vst.msk [vmem:[%s3 + $0xf8] sm:$0xf] %vm5138, %v5110
  %5202 = vst.msk [vmem:[%s3 + $0xfc] sm:$0xf] %vm5138, %v5136
  // Predicated region
  $region14: #{_lambda_.48} parent=0 // pred_check
    _
  $region15: #{_lambda_.48} parent=0 // pred_check_branch
    %5204 = sbr.rel (0) target = $region17
  $region16: #{_lambda_.48} parent=0 // pred_region
    _
  $region17: #{_lambda_.48} parent=0 // pred_fallthru
    _
  // Predicated region
  $region18: #{_lambda_.48} parent=0 // pred_check
    _
  $region19: #{_lambda_.48} parent=0 // pred_check_branch
    %5206 = sbr.rel (0) target = $region21
  $region20: #{_lambda_.48} parent=0 // pred_region
    _
  $region21: #{_lambda_.48} parent=0 // pred_fallthru
    _

// kernel: _lambda_.60
$region0: #{_lambda_.60}
  #allocation0 [shape = 'u32[]', space=smem, size = 0x4, offset = 0x4, fixed_abs, tag = 'smem constant byte address 0x4 - core index']
  #allocation1 [shape = 'u32[72,128]{1,0:T(1,128)}', space=vmem, size = 0x9000, scoped, tag = 'internal scratch']
  %s0 = inlined_call_operand.vmem [shape: f32[64,128], index: 0, kind: input, shape index: {}]
  %s1 = inlined_call_operand.vmem [shape: f32[128,32], index: 1, kind: input, shape index: {}]
  %s2 = inlined_call_operand.vmem [shape: f32[1,32], index: 2, kind: input, shape index: {}]
  %s3 = inlined_call_operand.vmem [shape: f32[64,32], index: 3, kind: output, shape index: {}]
  %s4 = sld [smem:[#allocation0]]
  $region22: #{_lambda_.60} parent=0
    _
  %s6 = ssub.s32 1, %s4
  %s7 = scalar_select 0, %s6, %s4
  // Predicated region
  $region2: #{_lambda_.60} parent=0 // pred_check
    _
  $region3: #{_lambda_.60} parent=0 // pred_check_branch
    %9 = sbr.rel (0) target = $region5
  $region4: #{_lambda_.60} parent=0 // pred_region
    _
  $region5: #{_lambda_.60} parent=0 // pred_fallthru
    _
  // Predicated region
  $region6: #{_lambda_.60} parent=0 // pred_check
    _
  $region7: #{_lambda_.60} parent=0 // pred_check_branch
    %11 = sbr.rel (0) target = $region9
  $region8: #{_lambda_.60} parent=0 // pred_region
    _
  $region9: #{_lambda_.60} parent=0 // pred_fallthru
    _
  // Predicated region
  $region10: #{_lambda_.60} parent=0 // pred_check
    _
  $region11: #{_lambda_.60} parent=0 // pred_check_branch
    %13 = sbr.rel (0) target = $region13
  $region12: #{_lambda_.60} parent=0 // pred_region
    _
  $region13: #{_lambda_.60} parent=0 // pred_fallthru
    _
  %v14 = vld [vmem:[%s0] sm:$0xff]
  %v15 = vld [vmem:[%s0 + $0x8] sm:$0xff]
  %v16 = vld [vmem:[%s0 + $0x10] sm:$0xff]
  %v17 = vld [vmem:[%s0 + $0x18] sm:$0xff]
  %v18 = vld [vmem:[%s0 + $0x20] sm:$0xff]
  %v19 = vld [vmem:[%s0 + $0x28] sm:$0xff]
  %v20 = vld [vmem:[%s0 + $0x30] sm:$0xff]
  %v21 = vld [vmem:[%s0 + $0x38] sm:$0xff]
  %v22 = vld [vmem:[%s1] sm:$0xff]
  %v23 = vld [vmem:[%s1 + $0x8] sm:$0xff]
  %v24 = vld [vmem:[%s1 + $0x10] sm:$0xff]
  %v25 = vld [vmem:[%s1 + $0x18] sm:$0xff]
  %v26 = vld [vmem:[%s1 + $0x20] sm:$0xff]
  %v27 = vld [vmem:[%s1 + $0x28] sm:$0xff]
  %v28 = vld [vmem:[%s1 + $0x30] sm:$0xff]
  %v29 = vld [vmem:[%s1 + $0x38] sm:$0xff]
  %v30 = vld [vmem:[%s1 + $0x40] sm:$0xff]
  %v31 = vld [vmem:[%s1 + $0x48] sm:$0xff]
  %v32 = vld [vmem:[%s1 + $0x50] sm:$0xff]
  %v33 = vld [vmem:[%s1 + $0x58] sm:$0xff]
  %v34 = vld [vmem:[%s1 + $0x60] sm:$0xff]
  %v35 = vld [vmem:[%s1 + $0x68] sm:$0xff]
  %v36 = vld [vmem:[%s1 + $0x70] sm:$0xff]
  %v37 = vld [vmem:[%s1 + $0x78] sm:$0xff]
  %v38 = vld [vmem:[%s2] sm:$0x1]
  %v40 = vperm.slane %v38, 0
  %42 = vmatpush.msra.mxu0 %v37
  %43 = vmatpush.msra.mxu0 %v36
  %44 = vmatpush.msra.mxu0 %v35
  %45 = vmatpush.msra.mxu0 %v34
  %46 = vmatpush.msra.mxu0 %v33
  %47 = vmatpush.msra.mxu0 %v32
  %48 = vmatpush.msra.mxu0 %v31
  %49 = vmatpush.msra.mxu0 %v30
  %50 = vmatpush.msra.mxu0 %v29
  %51 = vmatpush.msra.mxu0 %v28
  %52 = vmatpush.msra.mxu0 %v27
  %53 = vmatpush.msra.mxu0 %v26
  %54 = vmatpush.msra.mxu0 %v25
  %55 = vmatpush.msra.mxu0 %v24
  %56 = vmatpush.msra.mxu0 %v23
  %57 = vmatpush.msra.mxu0 %v22
  %58 = vmatmul.f32.gmra.mxu0 %v14
  %v59 = vpop.f32.mrf.mxu0
  %v60 = vadd.f32 %v40, %v59
  %61 = vmatmul.f32.gmra.mxu0 %v15
  %v62 = vpop.f32.mrf.mxu0
  %v63 = vadd.f32 %v40, %v62
  %64 = vmatmul.f32.gmra.mxu0 %v16
  %v65 = vpop.f32.mrf.mxu0
  %v66 = vadd.f32 %v40, %v65
  %67 = vmatmul.f32.gmra.mxu0 %v17
  %v68 = vpop.f32.mrf.mxu0
  %v69 = vadd.f32 %v40, %v68
  %70 = vmatmul.f32.gmra.mxu0 %v18
  %v71 = vpop.f32.mrf.mxu0
  %v72 = vadd.f32 %v40, %v71
  %73 = vmatmul.f32.gmra.mxu0 %v19
  %v74 = vpop.f32.mrf.mxu0
  %v75 = vadd.f32 %v40, %v74
  %76 = vmatmul.f32.gmra.mxu0 %v20
  %v77 = vpop.f32.mrf.mxu0
  %v78 = vadd.f32 %v40, %v77
  %79 = vmatmul.f32.gmra.mxu0 %v21
  %v80 = vpop.f32.mrf.mxu0
  %v81 = vadd.f32 %v40, %v80
  %82 = vdwg.mxu0
  %vm83 = vcmask 261120
  %84 = vst.msk [vmem:[%s3] sm:$0xff] %vm83, %v60
  %85 = vst.msk [vmem:[%s3 + $0x8] sm:$0xff] %vm83, %v63
  %86 = vst.msk [vmem:[%s3 + $0x10] sm:$0xff] %vm83, %v66
  %87 = vst.msk [vmem:[%s3 + $0x18] sm:$0xff] %vm83, %v69
  %88 = vst.msk [vmem:[%s3 + $0x20] sm:$0xff] %vm83, %v72
  %89 = vst.msk [vmem:[%s3 + $0x28] sm:$0xff] %vm83, %v75
  %90 = vst.msk [vmem:[%s3 + $0x30] sm:$0xff] %vm83, %v78
  %91 = vst.msk [vmem:[%s3 + $0x38] sm:$0xff] %vm83, %v81
  // Predicated region
  $region14: #{_lambda_.60} parent=0 // pred_check
    _
  $region15: #{_lambda_.60} parent=0 // pred_check_branch
    %93 = sbr.rel (0) target = $region17
  $region16: #{_lambda_.60} parent=0 // pred_region
    _
  $region17: #{_lambda_.60} parent=0 // pred_fallthru
    _
  // Predicated region
  $region18: #{_lambda_.60} parent=0 // pred_check
    _
  $region19: #{_lambda_.60} parent=0 // pred_check_branch
    %95 = sbr.rel (0) target = $region21
  $region20: #{_lambda_.60} parent=0 // pred_region
    _
  $region21: #{_lambda_.60} parent=0 // pred_fallthru
    _

</llo_original>
